<compile_context>
chip_gen: v7x
topology: tpu7x:2x2x1
jax: 0.10.0
libtpu: 0.0.40
codegen_flags: <defaults>
</compile_context>

<pallas_src>
import jax
import jax.numpy as jnp
from jax.experimental import pallas as pl
from jax.experimental.pallas import tpu as pltpu

NUM_EMBD = 192
NUM_HEADS = 6
HEAD_SIZE = NUM_EMBD // NUM_HEADS      # 32
BLOCK_SIZE = 128                       # max sequence length (causal mask size)
LN_EPS = 1e-5                          # torch.nn.LayerNorm default
NEG_INF = -1e30                        # large finite negative (avoids -inf -> NaN hazard)


def _layernorm(v, gamma, beta):
    # Single-pass stats: one sum + one sum-of-squares cross-lane reduction.
    inv_c = 1.0 / v.shape[-1]
    s1 = jnp.sum(v, axis=-1, keepdims=True)
    s2 = jnp.sum(v * v, axis=-1, keepdims=True)
    mu = s1 * inv_c
    var = s2 * inv_c - mu * mu
    return (v - mu) * jax.lax.rsqrt(var + LN_EPS) * gamma + beta


def block_kernel(x_ref, wqkv_ref, wo_ref, bo_ref,
                 g1_ref, b1_ref, g2_ref, b2_ref,
                 w1_ref, bias1_ref, w2_ref, bias2_ref,
                 o_ref, qkv_ref, sa_ref):
    BB, T, C = x_ref.shape
    M = BB * T
    H, HS = NUM_HEADS, HEAD_SIZE

    # ---- LayerNorm 1 (f32 math; bf16 only for MXU operands) ----
    x0 = x_ref[...].reshape(M, C).astype(jnp.float32)
    h_bf = _layernorm(x0, g1_ref[...], b1_ref[...]).astype(jnp.bfloat16)

    # ---- Fused QKV projection: one lane-dense (M, C) @ (C, 3C) matmul, stashed in VMEM ----
    qkv_ref[...] = jnp.dot(h_bf, wqkv_ref[...],
                           preferred_element_type=jnp.float32).astype(jnp.bfloat16)

    # Additive causal mask, shared across heads / batch rows in this block.
    row = jax.lax.broadcasted_iota(jnp.int32, (T, T), 0)
    col = jax.lax.broadcasted_iota(jnp.int32, (T, T), 1)
    mask_add = jnp.where(col <= row, 0.0, NEG_INF).astype(jnp.float32)

    # ---- Per-(batch, head) causal attention; head outputs stashed column-wise (write-only) ----
    # TODO(synk): if a bundle dump shows >50% spill traffic, split this static loop in halves.
    for b in range(BB):
        r0 = b * T
        for hh in range(H):
            c0 = hh * HS
            qh = qkv_ref[r0:r0 + T, c0:c0 + HS]                        # bf16 (T, HS)
            kh = qkv_ref[r0:r0 + T, C + c0:C + c0 + HS]
            vh = qkv_ref[r0:r0 + T, 2 * C + c0:2 * C + c0 + HS]

            # scores = qh @ kh.T via contraction on the last dims (no explicit transpose);
            # 1/sqrt(HS) is already folded into the q columns of wqkv.
            s = jax.lax.dot_general(
                qh, kh, dimension_numbers=(((1,), (1,)), ((), ())),
                preferred_element_type=jnp.float32)                    # (T, T) f32
            s = s + mask_add
            s = s - jnp.max(s, axis=-1, keepdims=True)
            p = jnp.exp(s)
            p = p * pl.reciprocal(jnp.sum(p, axis=-1, keepdims=True), approx=True)

            ho = jnp.dot(p.astype(jnp.bfloat16), vh,
                         preferred_element_type=jnp.float32)            # (T, HS)
            sa_ref[r0:r0 + T, c0:c0 + HS] = ho.astype(jnp.bfloat16)

    # ---- Single output projection + residual 1 (bo folded into the epilogue) ----
    sa = jnp.dot(sa_ref[...], wo_ref[...], preferred_element_type=jnp.float32)  # (M, C)
    x1 = x_ref[...].reshape(M, C).astype(jnp.float32) + sa + bo_ref[...]

    # ---- LayerNorm 2 + FeedForward + residual 2 ----
    h2 = _layernorm(x1, g2_ref[...], b2_ref[...]).astype(jnp.bfloat16)
    ff = jnp.dot(h2, w1_ref[...], preferred_element_type=jnp.float32) + bias1_ref[...]
    ff = jnp.maximum(ff, 0.0).astype(jnp.bfloat16)                     # ReLU in f32, bf16 for MXU
    ff = jnp.dot(ff, w2_ref[...], preferred_element_type=jnp.float32) + bias2_ref[...]
    x2 = x1 + ff

    o_ref[...] = x2.reshape(BB, T, C).astype(o_ref.dtype)


def pack_params(params):
    """One-time host-side repack into lane-dense bf16 kernel weights.

    Call once and reuse the packed pytree; keeps the transpose/cast XLA ops out of the
    per-forward measured path.
    """
    wq, wk, wv, wo, bo, g1, b1, g2, b2, w1, bias1, w2, bias2 = params
    scale = HEAD_SIZE ** -0.5
    # Column order [q | k | v]; heads are already packed column-wise inside each third.
    wqkv = jnp.concatenate([wq * scale, wk, wv], axis=1).astype(jnp.bfloat16)   # (C, 3C)
    return (wqkv, wo.astype(jnp.bfloat16), bo, g1, b1, g2, b2,
            w1.astype(jnp.bfloat16), bias1, w2.astype(jnp.bfloat16), bias2)


def transformer_block(x, packed):
    B, T, C = x.shape
    assert C == NUM_EMBD and T <= BLOCK_SIZE

    # Fuse 2 batch rows per grid step (M = 256 fills the 256-wide v6e/v7x MXU rows), but
    # only when the grid stays >= 2 so the parallel batch axis still feeds both v7x cores.
    BB = 2 if (B % 2 == 0 and B >= 4) else 1
    grid = (B // BB,)

    def rep(a):  # replicated (grid-invariant) weight spec
        n = a.ndim
        return pl.BlockSpec(a.shape, lambda b, _n=n: (0,) * _n)

    weight_specs = [rep(a) for a in packed]

    return pl.pallas_call(
        block_kernel,
        out_shape=jax.ShapeDtypeStruct((B, T, C), x.dtype),
        grid_spec=pltpu.PrefetchScalarGridSpec(
            num_scalar_prefetch=0,
            grid=grid,
            in_specs=[pl.BlockSpec((BB, T, C), lambda b: (b, 0, 0))] + weight_specs,
            out_specs=pl.BlockSpec((BB, T, C), lambda b: (b, 0, 0)),
            scratch_shapes=[
                pltpu.VMEM((BB * T, 3 * C), jnp.bfloat16),   # fused qkv stash
                pltpu.VMEM((BB * T, C), jnp.bfloat16),       # per-head attention outputs
            ],
        ),
        compiler_params=pltpu.CompilerParams(
            dimension_semantics=("parallel",),
            vmem_limit_bytes=32 << 20,   # v7x-safe
        ),
    )(x, *packed)


def init_params(key):
    """Deterministic synthetic parameters (shapes match the PyTorch module)."""
    C = NUM_EMBD
    ks = jax.random.split(key, 8)
    std = 0.02
    wq = std * jax.random.normal(ks[0], (C, C), jnp.float32)   # heads packed column-wise
    wk = std * jax.random.normal(ks[1], (C, C), jnp.float32)
    wv = std * jax.random.normal(ks[2], (C, C), jnp.float32)
    wo = std * jax.random.normal(ks[3], (C, C), jnp.float32)
    bo = std * jax.random.normal(ks[4], (1, C), jnp.float32)
    g1 = jnp.ones((1, C), jnp.float32)
    b1 = jnp.zeros((1, C), jnp.float32)
    g2 = jnp.ones((1, C), jnp.float32)
    b2 = jnp.zeros((1, C), jnp.float32)
    w1 = std * jax.random.normal(ks[5], (C, 4 * C), jnp.float32)
    bias1 = std * jax.random.normal(ks[6], (1, 4 * C), jnp.float32)
    w2 = std * jax.random.normal(ks[7], (4 * C, C), jnp.float32)
    bias2 = jnp.zeros((1, C), jnp.float32)
    return (wq, wk, wv, wo, bo, g1, b1, g2, b2, w1, bias1, w2, bias2)


def reference_block(x, params):
    """Pure-JAX f32 reference of the PyTorch forward (eval mode)."""
    wq, wk, wv, wo, bo, g1, b1, g2, b2, w1, bias1, w2, bias2 = params
    B, T, C = x.shape

    def ln(v, g, b):
        mu = jnp.mean(v, axis=-1, keepdims=True)
        var = jnp.mean((v - mu) ** 2, axis=-1, keepdims=True)
        return (v - mu) / jnp.sqrt(var + LN_EPS) * g + b

    h = ln(x, g1, b1)
    q = h @ wq
    k = h @ wk
    v = h @ wv
    qh = q.reshape(B, T, NUM_HEADS, HEAD_SIZE).transpose(0, 2, 1, 3)
    kh = k.reshape(B, T, NUM_HEADS, HEAD_SIZE).transpose(0, 2, 1, 3)
    vh = v.reshape(B, T, NUM_HEADS, HEAD_SIZE).transpose(0, 2, 1, 3)
    w = jnp.einsum("bhqd,bhkd->bhqk", qh, kh) * HEAD_SIZE ** -0.5
    mask = jnp.tril(jnp.ones((T, T), bool))
    w = jnp.where(mask, w, -jnp.inf)
    w = jax.nn.softmax(w, axis=-1)
    sa = jnp.einsum("bhqk,bhkd->bhqd", w, vh).transpose(0, 2, 1, 3).reshape(B, T, C)
    sa = sa @ wo + bo
    x = x + sa
    h2 = ln(x, g2, b2)
    ff = jnp.maximum(h2 @ w1 + bias1, 0.0) @ w2 + bias2
    return x + ff


if __name__ == "__main__":
    key = jax.random.PRNGKey(0)
    kx, kp = jax.random.split(key)
    B, T, C = 2, 128, NUM_EMBD
    x = jax.random.normal(kx, (B, T, C), jnp.float32)
    params = init_params(kp)

    packed = pack_params(params)          # one-time host-side repack, outside the hot path
    out = transformer_block(x, packed)
    out = jax.block_until_ready(out)

    ref = reference_block(x, params)
    assert out.shape == (B, T, C)
    # bf16 MXU operands (f32 accumulation) + approx reciprocal: loosen tolerance slightly
    # vs. the pure-f32 reference.
    assert jnp.allclose(out, ref, atol=5e-3, rtol=5e-3), float(jnp.max(jnp.abs(out - ref)))
    print("KERNEL_OK")
</pallas_src>

<mosaic_0001>
module attributes {stable_mosaic.version = 11 : i64} {
  func.func @block_kernel(%arg0: i32, %arg1: memref<1x128x192xf32, #tpu.memory_space<vmem>>, %arg2: memref<192x576xbf16, #tpu.memory_space<vmem>>, %arg3: memref<192x192xbf16, #tpu.memory_space<vmem>>, %arg4: memref<1x192xf32, #tpu.memory_space<vmem>>, %arg5: memref<1x192xf32, #tpu.memory_space<vmem>>, %arg6: memref<1x192xf32, #tpu.memory_space<vmem>>, %arg7: memref<1x192xf32, #tpu.memory_space<vmem>>, %arg8: memref<1x192xf32, #tpu.memory_space<vmem>>, %arg9: memref<192x768xbf16, #tpu.memory_space<vmem>>, %arg10: memref<1x768xf32, #tpu.memory_space<vmem>>, %arg11: memref<768x192xbf16, #tpu.memory_space<vmem>>, %arg12: memref<1x192xf32, #tpu.memory_space<vmem>>, %arg13: memref<1x128x192xf32, #tpu.memory_space<vmem>>, %arg14: memref<128x576xbf16, #tpu.memory_space<vmem>>, %arg15: memref<128x192xbf16, #tpu.memory_space<vmem>>) attributes {dimension_semantics = [#tpu.dimension_semantics<parallel>], iteration_bounds = array<i64: 2>, scalar_prefetch = 0 : i64, scratch_operands = 2 : i64, tpu.core_type = #tpu.core_type<tc>, window_params = [{transform_indices = @transform_0, window_bounds = array<i64: 1, 128, 192>}, {pipeline_mode = #tpu.pipeline_mode<synchronous>, transform_indices = @transform_1, window_bounds = array<i64: 192, 576>}, {pipeline_mode = #tpu.pipeline_mode<synchronous>, transform_indices = @transform_2, window_bounds = array<i64: 192, 192>}, {pipeline_mode = #tpu.pipeline_mode<synchronous>, transform_indices = @transform_3, window_bounds = array<i64: 1, 192>}, {pipeline_mode = #tpu.pipeline_mode<synchronous>, transform_indices = @transform_4, window_bounds = array<i64: 1, 192>}, {pipeline_mode = #tpu.pipeline_mode<synchronous>, transform_indices = @transform_5, window_bounds = array<i64: 1, 192>}, {pipeline_mode = #tpu.pipeline_mode<synchronous>, transform_indices = @transform_6, window_bounds = array<i64: 1, 192>}, {pipeline_mode = #tpu.pipeline_mode<synchronous>, transform_indices = @transform_7, window_bounds = array<i64: 1, 192>}, {pipeline_mode = #tpu.pipeline_mode<synchronous>, transform_indices = @transform_8, window_bounds = array<i64: 192, 768>}, {pipeline_mode = #tpu.pipeline_mode<synchronous>, transform_indices = @transform_9, window_bounds = array<i64: 1, 768>}, {pipeline_mode = #tpu.pipeline_mode<synchronous>, transform_indices = @transform_10, window_bounds = array<i64: 768, 192>}, {pipeline_mode = #tpu.pipeline_mode<synchronous>, transform_indices = @transform_11, window_bounds = array<i64: 1, 192>}, {transform_indices = @transform_12, window_bounds = array<i64: 1, 128, 192>}]} {
    %c0 = arith.constant 0 : index
    %c0_0 = arith.constant 0 : index
    %c0_1 = arith.constant 0 : index
    %0 = vector.load %arg1[%c0, %c0_0, %c0_1] : memref<1x128x192xf32, #tpu.memory_space<vmem>>, vector<1x128x192xf32>
    %1 = vector.shape_cast %0 : vector<1x128x192xf32> to vector<128x192xf32>
    %c0_2 = arith.constant 0 : index
    %c0_3 = arith.constant 0 : index
    %2 = vector.load %arg5[%c0_2, %c0_3] : memref<1x192xf32, #tpu.memory_space<vmem>>, vector<1x192xf32>
    %c0_4 = arith.constant 0 : index
    %c0_5 = arith.constant 0 : index
    %3 = vector.load %arg6[%c0_4, %c0_5] : memref<1x192xf32, #tpu.memory_space<vmem>>, vector<1x192xf32>
    %cst = arith.constant dense<0.000000e+00> : vector<128xf32>
    %4 = vector.multi_reduction <add>, %1, %cst [1] : vector<128x192xf32> to vector<128xf32>
    %5 = vector.shape_cast %4 : vector<128xf32> to vector<128x1xf32>
    %6 = arith.mulf %1, %1 : vector<128x192xf32>
    %cst_6 = arith.constant dense<0.000000e+00> : vector<128xf32>
    %7 = vector.multi_reduction <add>, %6, %cst_6 [1] : vector<128x192xf32> to vector<128xf32>
    %8 = vector.shape_cast %7 : vector<128xf32> to vector<128x1xf32>
    %cst_7 = arith.constant 0.00520833349 : f32
    %9 = vector.broadcast %cst_7 : f32 to vector<128x1xf32>
    %10 = arith.mulf %5, %9 : vector<128x1xf32>
    %cst_8 = arith.constant 0.00520833349 : f32
    %11 = vector.broadcast %cst_8 : f32 to vector<128x1xf32>
    %12 = arith.mulf %8, %11 : vector<128x1xf32>
    %13 = arith.mulf %10, %10 : vector<128x1xf32>
    %14 = arith.subf %12, %13 : vector<128x1xf32>
    %15 = vector.broadcast %10 : vector<128x1xf32> to vector<128x192xf32>
    %16 = arith.subf %1, %15 : vector<128x192xf32>
    %cst_9 = arith.constant 9.99999974E-6 : f32
    %17 = vector.broadcast %cst_9 : f32 to vector<128x1xf32>
    %18 = arith.addf %14, %17 : vector<128x1xf32>
    %19 = math.rsqrt %18 : vector<128x1xf32>
    %20 = vector.broadcast %19 : vector<128x1xf32> to vector<128x192xf32>
    %21 = arith.mulf %16, %20 : vector<128x192xf32>
    %22 = vector.broadcast %2 : vector<1x192xf32> to vector<128x192xf32>
    %23 = arith.mulf %21, %22 : vector<128x192xf32>
    %24 = vector.broadcast %3 : vector<1x192xf32> to vector<128x192xf32>
    %25 = arith.addf %23, %24 : vector<128x192xf32>
    %26 = arith.truncf %25 : vector<128x192xf32> to vector<128x192xbf16>
    %c0_10 = arith.constant 0 : index
    %c0_11 = arith.constant 0 : index
    %27 = vector.load %arg2[%c0_10, %c0_11] : memref<192x576xbf16, #tpu.memory_space<vmem>>, vector<192x576xbf16>
    %cst_12 = arith.constant dense<0.000000e+00> : vector<128x576xf32>
    %28 = tpu.matmul %26, %27, %cst_12 {dimension_numbers = #tpu.dot_dimension_numbers<[1], [0], [0], [1], [0, 0, 1, 1], [], []>} : vector<128x192xbf16>, vector<192x576xbf16>, vector<128x576xf32> -> vector<128x576xf32>
    %29 = arith.truncf %28 : vector<128x576xf32> to vector<128x576xbf16>
    %c0_13 = arith.constant 0 : index
    %c0_14 = arith.constant 0 : index
    %30 = vector.load %arg14[%c0_13, %c0_14] : memref<128x576xbf16, #tpu.memory_space<vmem>>, vector<128x576xbf16>
    tpu.vector_store %arg14[%c0_13, %c0_14], %29 {strides = array<i32>} : memref<128x576xbf16, #tpu.memory_space<vmem>>, vector<128x576xbf16>,
    %31 = tpu.iota {dimensions = array<i32: 0>} : vector<128x128xi32>
    %32 = tpu.iota {dimensions = array<i32: 1>} : vector<128x128xi32>
    %33 = arith.cmpi sle, %32, %31 : vector<128x128xi32>
    %cst_15 = arith.constant 0.000000e+00 : f32
    %cst_16 = arith.constant -1.000000e+30 : f32
    %34 = vector.broadcast %cst_15 : f32 to vector<128x128xf32>
    %35 = vector.broadcast %cst_16 : f32 to vector<128x128xf32>
    %36 = arith.select %33, %34, %35 : vector<128x128xi1>, vector<128x128xf32>
    %c0_17 = arith.constant 0 : index
    %c0_18 = arith.constant 0 : index
    %37 = vector.load %arg14[%c0_17, %c0_18] : memref<128x576xbf16, #tpu.memory_space<vmem>>, vector<128x32xbf16>
    %c0_19 = arith.constant 0 : index
    %c192 = arith.constant 192 : index
    %38 = vector.load %arg14[%c0_19, %c192] : memref<128x576xbf16, #tpu.memory_space<vmem>>, vector<128x32xbf16>
    %c0_20 = arith.constant 0 : index
    %c384 = arith.constant 384 : index
    %39 = vector.load %arg14[%c0_20, %c384] : memref<128x576xbf16, #tpu.memory_space<vmem>>, vector<128x32xbf16>
    %cst_21 = arith.constant dense<0.000000e+00> : vector<128x128xf32>
    %40 = tpu.matmul %37, %38, %cst_21 {dimension_numbers = #tpu.dot_dimension_numbers<[1], [1], [0], [0], [0, 0, 1, 0], [], []>} : vector<128x32xbf16>, vector<128x32xbf16>, vector<128x128xf32> -> vector<128x128xf32>
    %41 = arith.addf %40, %36 : vector<128x128xf32>
    %cst_22 = arith.constant dense<0xFF800000> : vector<128xf32>
    %42 = vector.multi_reduction <maximumf>, %41, %cst_22 [1] : vector<128x128xf32> to vector<128xf32>
    %43 = vector.shape_cast %42 : vector<128xf32> to vector<128x1xf32>
    %44 = vector.broadcast %43 : vector<128x1xf32> to vector<128x128xf32>
    %45 = arith.subf %41, %44 : vector<128x128xf32>
    %46 = math.exp %45 : vector<128x128xf32>
    %cst_23 = arith.constant dense<0.000000e+00> : vector<128xf32>
    %47 = vector.multi_reduction <add>, %46, %cst_23 [1] : vector<128x128xf32> to vector<128xf32>
    %48 = vector.shape_cast %47 : vector<128xf32> to vector<128x1xf32>
    %49 = tpu.reciprocal %48 {approx = true} : vector<128x1xf32> -> vector<128x1xf32>
    %50 = vector.broadcast %49 : vector<128x1xf32> to vector<128x128xf32>
    %51 = arith.mulf %46, %50 : vector<128x128xf32>
    %52 = arith.truncf %51 : vector<128x128xf32> to vector<128x128xbf16>
    %cst_24 = arith.constant dense<0.000000e+00> : vector<128x32xf32>
    %53 = tpu.matmul %52, %39, %cst_24 {dimension_numbers = #tpu.dot_dimension_numbers<[1], [0], [0], [1], [0, 0, 1, 1], [], []>} : vector<128x128xbf16>, vector<128x32xbf16>, vector<128x32xf32> -> vector<128x32xf32>
    %54 = arith.truncf %53 : vector<128x32xf32> to vector<128x32xbf16>
    %c0_25 = arith.constant 0 : index
    %c0_26 = arith.constant 0 : index
    %55 = vector.load %arg15[%c0_25, %c0_26] : memref<128x192xbf16, #tpu.memory_space<vmem>>, vector<128x32xbf16>
    tpu.vector_store %arg15[%c0_25, %c0_26], %54 {strides = array<i32>} : memref<128x192xbf16, #tpu.memory_space<vmem>>, vector<128x32xbf16>,
    %c0_27 = arith.constant 0 : index
    %c32 = arith.constant 32 : index
    %56 = vector.load %arg14[%c0_27, %c32] : memref<128x576xbf16, #tpu.memory_space<vmem>>, vector<128x32xbf16>
    %c0_28 = arith.constant 0 : index
    %c224 = arith.constant 224 : index
    %57 = vector.load %arg14[%c0_28, %c224] : memref<128x576xbf16, #tpu.memory_space<vmem>>, vector<128x32xbf16>
    %c0_29 = arith.constant 0 : index
    %c416 = arith.constant 416 : index
    %58 = vector.load %arg14[%c0_29, %c416] : memref<128x576xbf16, #tpu.memory_space<vmem>>, vector<128x32xbf16>
    %cst_30 = arith.constant dense<0.000000e+00> : vector<128x128xf32>
    %59 = tpu.matmul %56, %57, %cst_30 {dimension_numbers = #tpu.dot_dimension_numbers<[1], [1], [0], [0], [0, 0, 1, 0], [], []>} : vector<128x32xbf16>, vector<128x32xbf16>, vector<128x128xf32> -> vector<128x128xf32>
    %60 = arith.addf %59, %36 : vector<128x128xf32>
    %cst_31 = arith.constant dense<0xFF800000> : vector<128xf32>
    %61 = vector.multi_reduction <maximumf>, %60, %cst_31 [1] : vector<128x128xf32> to vector<128xf32>
    %62 = vector.shape_cast %61 : vector<128xf32> to vector<128x1xf32>
    %63 = vector.broadcast %62 : vector<128x1xf32> to vector<128x128xf32>
    %64 = arith.subf %60, %63 : vector<128x128xf32>
    %65 = math.exp %64 : vector<128x128xf32>
    %cst_32 = arith.constant dense<0.000000e+00> : vector<128xf32>
    %66 = vector.multi_reduction <add>, %65, %cst_32 [1] : vector<128x128xf32> to vector<128xf32>
    %67 = vector.shape_cast %66 : vector<128xf32> to vector<128x1xf32>
    %68 = tpu.reciprocal %67 {approx = true} : vector<128x1xf32> -> vector<128x1xf32>
    %69 = vector.broadcast %68 : vector<128x1xf32> to vector<128x128xf32>
    %70 = arith.mulf %65, %69 : vector<128x128xf32>
    %71 = arith.truncf %70 : vector<128x128xf32> to vector<128x128xbf16>
    %cst_33 = arith.constant dense<0.000000e+00> : vector<128x32xf32>
    %72 = tpu.matmul %71, %58, %cst_33 {dimension_numbers = #tpu.dot_dimension_numbers<[1], [0], [0], [1], [0, 0, 1, 1], [], []>} : vector<128x128xbf16>, vector<128x32xbf16>, vector<128x32xf32> -> vector<128x32xf32>
    %73 = arith.truncf %72 : vector<128x32xf32> to vector<128x32xbf16>
    %c0_34 = arith.constant 0 : index
    %c32_35 = arith.constant 32 : index
    %74 = vector.load %arg15[%c0_34, %c32_35] : memref<128x192xbf16, #tpu.memory_space<vmem>>, vector<128x32xbf16>
    tpu.vector_store %arg15[%c0_34, %c32_35], %73 {strides = array<i32>} : memref<128x192xbf16, #tpu.memory_space<vmem>>, vector<128x32xbf16>,
    %c0_36 = arith.constant 0 : index
    %c64 = arith.constant 64 : index
    %75 = vector.load %arg14[%c0_36, %c64] : memref<128x576xbf16, #tpu.memory_space<vmem>>, vector<128x32xbf16>
    %c0_37 = arith.constant 0 : index
    %c256 = arith.constant 256 : index
    %76 = vector.load %arg14[%c0_37, %c256] : memref<128x576xbf16, #tpu.memory_space<vmem>>, vector<128x32xbf16>
    %c0_38 = arith.constant 0 : index
    %c448 = arith.constant 448 : index
    %77 = vector.load %arg14[%c0_38, %c448] : memref<128x576xbf16, #tpu.memory_space<vmem>>, vector<128x32xbf16>
    %cst_39 = arith.constant dense<0.000000e+00> : vector<128x128xf32>
    %78 = tpu.matmul %75, %76, %cst_39 {dimension_numbers = #tpu.dot_dimension_numbers<[1], [1], [0], [0], [0, 0, 1, 0], [], []>} : vector<128x32xbf16>, vector<128x32xbf16>, vector<128x128xf32> -> vector<128x128xf32>
    %79 = arith.addf %78, %36 : vector<128x128xf32>
    %cst_40 = arith.constant dense<0xFF800000> : vector<128xf32>
    %80 = vector.multi_reduction <maximumf>, %79, %cst_40 [1] : vector<128x128xf32> to vector<128xf32>
    %81 = vector.shape_cast %80 : vector<128xf32> to vector<128x1xf32>
    %82 = vector.broadcast %81 : vector<128x1xf32> to vector<128x128xf32>
    %83 = arith.subf %79, %82 : vector<128x128xf32>
    %84 = math.exp %83 : vector<128x128xf32>
    %cst_41 = arith.constant dense<0.000000e+00> : vector<128xf32>
    %85 = vector.multi_reduction <add>, %84, %cst_41 [1] : vector<128x128xf32> to vector<128xf32>
    %86 = vector.shape_cast %85 : vector<128xf32> to vector<128x1xf32>
    %87 = tpu.reciprocal %86 {approx = true} : vector<128x1xf32> -> vector<128x1xf32>
    %88 = vector.broadcast %87 : vector<128x1xf32> to vector<128x128xf32>
    %89 = arith.mulf %84, %88 : vector<128x128xf32>
    %90 = arith.truncf %89 : vector<128x128xf32> to vector<128x128xbf16>
    %cst_42 = arith.constant dense<0.000000e+00> : vector<128x32xf32>
    %91 = tpu.matmul %90, %77, %cst_42 {dimension_numbers = #tpu.dot_dimension_numbers<[1], [0], [0], [1], [0, 0, 1, 1], [], []>} : vector<128x128xbf16>, vector<128x32xbf16>, vector<128x32xf32> -> vector<128x32xf32>
    %92 = arith.truncf %91 : vector<128x32xf32> to vector<128x32xbf16>
    %c0_43 = arith.constant 0 : index
    %c64_44 = arith.constant 64 : index
    %93 = vector.load %arg15[%c0_43, %c64_44] : memref<128x192xbf16, #tpu.memory_space<vmem>>, vector<128x32xbf16>
    tpu.vector_store %arg15[%c0_43, %c64_44], %92 {strides = array<i32>} : memref<128x192xbf16, #tpu.memory_space<vmem>>, vector<128x32xbf16>,
    %c0_45 = arith.constant 0 : index
    %c96 = arith.constant 96 : index
    %94 = vector.load %arg14[%c0_45, %c96] : memref<128x576xbf16, #tpu.memory_space<vmem>>, vector<128x32xbf16>
    %c0_46 = arith.constant 0 : index
    %c288 = arith.constant 288 : index
    %95 = vector.load %arg14[%c0_46, %c288] : memref<128x576xbf16, #tpu.memory_space<vmem>>, vector<128x32xbf16>
    %c0_47 = arith.constant 0 : index
    %c480 = arith.constant 480 : index
    %96 = vector.load %arg14[%c0_47, %c480] : memref<128x576xbf16, #tpu.memory_space<vmem>>, vector<128x32xbf16>
    %cst_48 = arith.constant dense<0.000000e+00> : vector<128x128xf32>
    %97 = tpu.matmul %94, %95, %cst_48 {dimension_numbers = #tpu.dot_dimension_numbers<[1], [1], [0], [0], [0, 0, 1, 0], [], []>} : vector<128x32xbf16>, vector<128x32xbf16>, vector<128x128xf32> -> vector<128x128xf32>
    %98 = arith.addf %97, %36 : vector<128x128xf32>
    %cst_49 = arith.constant dense<0xFF800000> : vector<128xf32>
    %99 = vector.multi_reduction <maximumf>, %98, %cst_49 [1] : vector<128x128xf32> to vector<128xf32>
    %100 = vector.shape_cast %99 : vector<128xf32> to vector<128x1xf32>
    %101 = vector.broadcast %100 : vector<128x1xf32> to vector<128x128xf32>
    %102 = arith.subf %98, %101 : vector<128x128xf32>
    %103 = math.exp %102 : vector<128x128xf32>
    %cst_50 = arith.constant dense<0.000000e+00> : vector<128xf32>
    %104 = vector.multi_reduction <add>, %103, %cst_50 [1] : vector<128x128xf32> to vector<128xf32>
    %105 = vector.shape_cast %104 : vector<128xf32> to vector<128x1xf32>
    %106 = tpu.reciprocal %105 {approx = true} : vector<128x1xf32> -> vector<128x1xf32>
    %107 = vector.broadcast %106 : vector<128x1xf32> to vector<128x128xf32>
    %108 = arith.mulf %103, %107 : vector<128x128xf32>
    %109 = arith.truncf %108 : vector<128x128xf32> to vector<128x128xbf16>
    %cst_51 = arith.constant dense<0.000000e+00> : vector<128x32xf32>
    %110 = tpu.matmul %109, %96, %cst_51 {dimension_numbers = #tpu.dot_dimension_numbers<[1], [0], [0], [1], [0, 0, 1, 1], [], []>} : vector<128x128xbf16>, vector<128x32xbf16>, vector<128x32xf32> -> vector<128x32xf32>
    %111 = arith.truncf %110 : vector<128x32xf32> to vector<128x32xbf16>
    %c0_52 = arith.constant 0 : index
    %c96_53 = arith.constant 96 : index
    %112 = vector.load %arg15[%c0_52, %c96_53] : memref<128x192xbf16, #tpu.memory_space<vmem>>, vector<128x32xbf16>
    tpu.vector_store %arg15[%c0_52, %c96_53], %111 {strides = array<i32>} : memref<128x192xbf16, #tpu.memory_space<vmem>>, vector<128x32xbf16>,
    %c0_54 = arith.constant 0 : index
    %c128 = arith.constant 128 : index
    %113 = vector.load %arg14[%c0_54, %c128] : memref<128x576xbf16, #tpu.memory_space<vmem>>, vector<128x32xbf16>
    %c0_55 = arith.constant 0 : index
    %c320 = arith.constant 320 : index
    %114 = vector.load %arg14[%c0_55, %c320] : memref<128x576xbf16, #tpu.memory_space<vmem>>, vector<128x32xbf16>
    %c0_56 = arith.constant 0 : index
    %c512 = arith.constant 512 : index
    %115 = vector.load %arg14[%c0_56, %c512] : memref<128x576xbf16, #tpu.memory_space<vmem>>, vector<128x32xbf16>
    %cst_57 = arith.constant dense<0.000000e+00> : vector<128x128xf32>
    %116 = tpu.matmul %113, %114, %cst_57 {dimension_numbers = #tpu.dot_dimension_numbers<[1], [1], [0], [0], [0, 0, 1, 0], [], []>} : vector<128x32xbf16>, vector<128x32xbf16>, vector<128x128xf32> -> vector<128x128xf32>
    %117 = arith.addf %116, %36 : vector<128x128xf32>
    %cst_58 = arith.constant dense<0xFF800000> : vector<128xf32>
    %118 = vector.multi_reduction <maximumf>, %117, %cst_58 [1] : vector<128x128xf32> to vector<128xf32>
    %119 = vector.shape_cast %118 : vector<128xf32> to vector<128x1xf32>
    %120 = vector.broadcast %119 : vector<128x1xf32> to vector<128x128xf32>
    %121 = arith.subf %117, %120 : vector<128x128xf32>
    %122 = math.exp %121 : vector<128x128xf32>
    %cst_59 = arith.constant dense<0.000000e+00> : vector<128xf32>
    %123 = vector.multi_reduction <add>, %122, %cst_59 [1] : vector<128x128xf32> to vector<128xf32>
    %124 = vector.shape_cast %123 : vector<128xf32> to vector<128x1xf32>
    %125 = tpu.reciprocal %124 {approx = true} : vector<128x1xf32> -> vector<128x1xf32>
    %126 = vector.broadcast %125 : vector<128x1xf32> to vector<128x128xf32>
    %127 = arith.mulf %122, %126 : vector<128x128xf32>
    %128 = arith.truncf %127 : vector<128x128xf32> to vector<128x128xbf16>
    %cst_60 = arith.constant dense<0.000000e+00> : vector<128x32xf32>
    %129 = tpu.matmul %128, %115, %cst_60 {dimension_numbers = #tpu.dot_dimension_numbers<[1], [0], [0], [1], [0, 0, 1, 1], [], []>} : vector<128x128xbf16>, vector<128x32xbf16>, vector<128x32xf32> -> vector<128x32xf32>
    %130 = arith.truncf %129 : vector<128x32xf32> to vector<128x32xbf16>
    %c0_61 = arith.constant 0 : index
    %c128_62 = arith.constant 128 : index
    %131 = vector.load %arg15[%c0_61, %c128_62] : memref<128x192xbf16, #tpu.memory_space<vmem>>, vector<128x32xbf16>
    tpu.vector_store %arg15[%c0_61, %c128_62], %130 {strides = array<i32>} : memref<128x192xbf16, #tpu.memory_space<vmem>>, vector<128x32xbf16>,
    %c0_63 = arith.constant 0 : index
    %c160 = arith.constant 160 : index
    %132 = vector.load %arg14[%c0_63, %c160] : memref<128x576xbf16, #tpu.memory_space<vmem>>, vector<128x32xbf16>
    %c0_64 = arith.constant 0 : index
    %c352 = arith.constant 352 : index
    %133 = vector.load %arg14[%c0_64, %c352] : memref<128x576xbf16, #tpu.memory_space<vmem>>, vector<128x32xbf16>
    %c0_65 = arith.constant 0 : index
    %c544 = arith.constant 544 : index
    %134 = vector.load %arg14[%c0_65, %c544] : memref<128x576xbf16, #tpu.memory_space<vmem>>, vector<128x32xbf16>
    %cst_66 = arith.constant dense<0.000000e+00> : vector<128x128xf32>
    %135 = tpu.matmul %132, %133, %cst_66 {dimension_numbers = #tpu.dot_dimension_numbers<[1], [1], [0], [0], [0, 0, 1, 0], [], []>} : vector<128x32xbf16>, vector<128x32xbf16>, vector<128x128xf32> -> vector<128x128xf32>
    %136 = arith.addf %135, %36 : vector<128x128xf32>
    %cst_67 = arith.constant dense<0xFF800000> : vector<128xf32>
    %137 = vector.multi_reduction <maximumf>, %136, %cst_67 [1] : vector<128x128xf32> to vector<128xf32>
    %138 = vector.shape_cast %137 : vector<128xf32> to vector<128x1xf32>
    %139 = vector.broadcast %138 : vector<128x1xf32> to vector<128x128xf32>
    %140 = arith.subf %136, %139 : vector<128x128xf32>
    %141 = math.exp %140 : vector<128x128xf32>
    %cst_68 = arith.constant dense<0.000000e+00> : vector<128xf32>
    %142 = vector.multi_reduction <add>, %141, %cst_68 [1] : vector<128x128xf32> to vector<128xf32>
    %143 = vector.shape_cast %142 : vector<128xf32> to vector<128x1xf32>
    %144 = tpu.reciprocal %143 {approx = true} : vector<128x1xf32> -> vector<128x1xf32>
    %145 = vector.broadcast %144 : vector<128x1xf32> to vector<128x128xf32>
    %146 = arith.mulf %141, %145 : vector<128x128xf32>
    %147 = arith.truncf %146 : vector<128x128xf32> to vector<128x128xbf16>
    %cst_69 = arith.constant dense<0.000000e+00> : vector<128x32xf32>
    %148 = tpu.matmul %147, %134, %cst_69 {dimension_numbers = #tpu.dot_dimension_numbers<[1], [0], [0], [1], [0, 0, 1, 1], [], []>} : vector<128x128xbf16>, vector<128x32xbf16>, vector<128x32xf32> -> vector<128x32xf32>
    %149 = arith.truncf %148 : vector<128x32xf32> to vector<128x32xbf16>
    %c0_70 = arith.constant 0 : index
    %c160_71 = arith.constant 160 : index
    %150 = vector.load %arg15[%c0_70, %c160_71] : memref<128x192xbf16, #tpu.memory_space<vmem>>, vector<128x32xbf16>
    tpu.vector_store %arg15[%c0_70, %c160_71], %149 {strides = array<i32>} : memref<128x192xbf16, #tpu.memory_space<vmem>>, vector<128x32xbf16>,
    %c0_72 = arith.constant 0 : index
    %c0_73 = arith.constant 0 : index
    %151 = vector.load %arg15[%c0_72, %c0_73] : memref<128x192xbf16, #tpu.memory_space<vmem>>, vector<128x192xbf16>
    %c0_74 = arith.constant 0 : index
    %c0_75 = arith.constant 0 : index
    %152 = vector.load %arg3[%c0_74, %c0_75] : memref<192x192xbf16, #tpu.memory_space<vmem>>, vector<192x192xbf16>
    %cst_76 = arith.constant dense<0.000000e+00> : vector<128x192xf32>
    %153 = tpu.matmul %151, %152, %cst_76 {dimension_numbers = #tpu.dot_dimension_numbers<[1], [0], [0], [1], [0, 0, 1, 1], [], []>} : vector<128x192xbf16>, vector<192x192xbf16>, vector<128x192xf32> -> vector<128x192xf32>
    %c0_77 = arith.constant 0 : index
    %c0_78 = arith.constant 0 : index
    %c0_79 = arith.constant 0 : index
    %154 = vector.load %arg1[%c0_77, %c0_78, %c0_79] : memref<1x128x192xf32, #tpu.memory_space<vmem>>, vector<1x128x192xf32>
    %155 = vector.shape_cast %154 : vector<1x128x192xf32> to vector<128x192xf32>
    %156 = arith.addf %155, %153 : vector<128x192xf32>
    %c0_80 = arith.constant 0 : index
    %c0_81 = arith.constant 0 : index
    %157 = vector.load %arg4[%c0_80, %c0_81] : memref<1x192xf32, #tpu.memory_space<vmem>>, vector<1x192xf32>
    %158 = vector.broadcast %157 : vector<1x192xf32> to vector<128x192xf32>
    %159 = arith.addf %156, %158 : vector<128x192xf32>
    %c0_82 = arith.constant 0 : index
    %c0_83 = arith.constant 0 : index
    %160 = vector.load %arg7[%c0_82, %c0_83] : memref<1x192xf32, #tpu.memory_space<vmem>>, vector<1x192xf32>
    %c0_84 = arith.constant 0 : index
    %c0_85 = arith.constant 0 : index
    %161 = vector.load %arg8[%c0_84, %c0_85] : memref<1x192xf32, #tpu.memory_space<vmem>>, vector<1x192xf32>
    %cst_86 = arith.constant dense<0.000000e+00> : vector<128xf32>
    %162 = vector.multi_reduction <add>, %159, %cst_86 [1] : vector<128x192xf32> to vector<128xf32>
    %163 = vector.shape_cast %162 : vector<128xf32> to vector<128x1xf32>
    %164 = arith.mulf %159, %159 : vector<128x192xf32>
    %cst_87 = arith.constant dense<0.000000e+00> : vector<128xf32>
    %165 = vector.multi_reduction <add>, %164, %cst_87 [1] : vector<128x192xf32> to vector<128xf32>
    %166 = vector.shape_cast %165 : vector<128xf32> to vector<128x1xf32>
    %cst_88 = arith.constant 0.00520833349 : f32
    %167 = vector.broadcast %cst_88 : f32 to vector<128x1xf32>
    %168 = arith.mulf %163, %167 : vector<128x1xf32>
    %cst_89 = arith.constant 0.00520833349 : f32
    %169 = vector.broadcast %cst_89 : f32 to vector<128x1xf32>
    %170 = arith.mulf %166, %169 : vector<128x1xf32>
    %171 = arith.mulf %168, %168 : vector<128x1xf32>
    %172 = arith.subf %170, %171 : vector<128x1xf32>
    %173 = vector.broadcast %168 : vector<128x1xf32> to vector<128x192xf32>
    %174 = arith.subf %159, %173 : vector<128x192xf32>
    %cst_90 = arith.constant 9.99999974E-6 : f32
    %175 = vector.broadcast %cst_90 : f32 to vector<128x1xf32>
    %176 = arith.addf %172, %175 : vector<128x1xf32>
    %177 = math.rsqrt %176 : vector<128x1xf32>
    %178 = vector.broadcast %177 : vector<128x1xf32> to vector<128x192xf32>
    %179 = arith.mulf %174, %178 : vector<128x192xf32>
    %180 = vector.broadcast %160 : vector<1x192xf32> to vector<128x192xf32>
    %181 = arith.mulf %179, %180 : vector<128x192xf32>
    %182 = vector.broadcast %161 : vector<1x192xf32> to vector<128x192xf32>
    %183 = arith.addf %181, %182 : vector<128x192xf32>
    %184 = arith.truncf %183 : vector<128x192xf32> to vector<128x192xbf16>
    %c0_91 = arith.constant 0 : index
    %c0_92 = arith.constant 0 : index
    %185 = vector.load %arg9[%c0_91, %c0_92] : memref<192x768xbf16, #tpu.memory_space<vmem>>, vector<192x768xbf16>
    %cst_93 = arith.constant dense<0.000000e+00> : vector<128x768xf32>
    %186 = tpu.matmul %184, %185, %cst_93 {dimension_numbers = #tpu.dot_dimension_numbers<[1], [0], [0], [1], [0, 0, 1, 1], [], []>} : vector<128x192xbf16>, vector<192x768xbf16>, vector<128x768xf32> -> vector<128x768xf32>
    %c0_94 = arith.constant 0 : index
    %c0_95 = arith.constant 0 : index
    %187 = vector.load %arg10[%c0_94, %c0_95] : memref<1x768xf32, #tpu.memory_space<vmem>>, vector<1x768xf32>
    %188 = vector.broadcast %187 : vector<1x768xf32> to vector<128x768xf32>
    %189 = arith.addf %186, %188 : vector<128x768xf32>
    %cst_96 = arith.constant 0.000000e+00 : f32
    %190 = vector.broadcast %cst_96 : f32 to vector<128x768xf32>
    %191 = arith.maximumf %189, %190 : vector<128x768xf32>
    %192 = arith.truncf %191 : vector<128x768xf32> to vector<128x768xbf16>
    %c0_97 = arith.constant 0 : index
    %c0_98 = arith.constant 0 : index
    %193 = vector.load %arg11[%c0_97, %c0_98] : memref<768x192xbf16, #tpu.memory_space<vmem>>, vector<768x192xbf16>
    %cst_99 = arith.constant dense<0.000000e+00> : vector<128x192xf32>
    %194 = tpu.matmul %192, %193, %cst_99 {dimension_numbers = #tpu.dot_dimension_numbers<[1], [0], [0], [1], [0, 0, 1, 1], [], []>} : vector<128x768xbf16>, vector<768x192xbf16>, vector<128x192xf32> -> vector<128x192xf32>
    %c0_100 = arith.constant 0 : index
    %c0_101 = arith.constant 0 : index
    %195 = vector.load %arg12[%c0_100, %c0_101] : memref<1x192xf32, #tpu.memory_space<vmem>>, vector<1x192xf32>
    %196 = vector.broadcast %195 : vector<1x192xf32> to vector<128x192xf32>
    %197 = arith.addf %194, %196 : vector<128x192xf32>
    %198 = arith.addf %159, %197 : vector<128x192xf32>
    %199 = vector.shape_cast %198 : vector<128x192xf32> to vector<1x128x192xf32>
    %c0_102 = arith.constant 0 : index
    %c0_103 = arith.constant 0 : index
    %c0_104 = arith.constant 0 : index
    %200 = vector.load %arg13[%c0_102, %c0_103, %c0_104] : memref<1x128x192xf32, #tpu.memory_space<vmem>>, vector<1x128x192xf32>
    tpu.vector_store %arg13[%c0_102, %c0_103, %c0_104], %199 {strides = array<i32>} : memref<1x128x192xf32, #tpu.memory_space<vmem>>, vector<1x128x192xf32>,
    return
  }
  func.func @transform_0(%arg0: i32) -> (i32, i32, i32) {
    %c0_i32 = arith.constant 0 : i32
    %c0_i32_0 = arith.constant 0 : i32
    %c0_i32_1 = arith.constant 0 : i32
    return %arg0, %c0_i32, %c0_i32_0 : i32, i32, i32
  }
  func.func @transform_1(%arg0: i32) -> (i32, i32) {
    %c0_i32 = arith.constant 0 : i32
    %c0_i32_0 = arith.constant 0 : i32
    %c0_i32_1 = arith.constant 0 : i32
    return %c0_i32, %c0_i32_0 : i32, i32
  }
  func.func @transform_2(%arg0: i32) -> (i32, i32) {
    %c0_i32 = arith.constant 0 : i32
    %c0_i32_0 = arith.constant 0 : i32
    %c0_i32_1 = arith.constant 0 : i32
    return %c0_i32, %c0_i32_0 : i32, i32
  }
  func.func @transform_3(%arg0: i32) -> (i32, i32) {
    %c0_i32 = arith.constant 0 : i32
    %c0_i32_0 = arith.constant 0 : i32
    %c0_i32_1 = arith.constant 0 : i32
    return %c0_i32, %c0_i32_0 : i32, i32
  }
  func.func @transform_4(%arg0: i32) -> (i32, i32) {
    %c0_i32 = arith.constant 0 : i32
    %c0_i32_0 = arith.constant 0 : i32
    %c0_i32_1 = arith.constant 0 : i32
    return %c0_i32, %c0_i32_0 : i32, i32
  }
  func.func @transform_5(%arg0: i32) -> (i32, i32) {
    %c0_i32 = arith.constant 0 : i32
    %c0_i32_0 = arith.constant 0 : i32
    %c0_i32_1 = arith.constant 0 : i32
    return %c0_i32, %c0_i32_0 : i32, i32
  }
  func.func @transform_6(%arg0: i32) -> (i32, i32) {
    %c0_i32 = arith.constant 0 : i32
    %c0_i32_0 = arith.constant 0 : i32
    %c0_i32_1 = arith.constant 0 : i32
    return %c0_i32, %c0_i32_0 : i32, i32
  }
  func.func @transform_7(%arg0: i32) -> (i32, i32) {
    %c0_i32 = arith.constant 0 : i32
    %c0_i32_0 = arith.constant 0 : i32
    %c0_i32_1 = arith.constant 0 : i32
    return %c0_i32, %c0_i32_0 : i32, i32
  }
  func.func @transform_8(%arg0: i32) -> (i32, i32) {
    %c0_i32 = arith.constant 0 : i32
    %c0_i32_0 = arith.constant 0 : i32
    %c0_i32_1 = arith.constant 0 : i32
    return %c0_i32, %c0_i32_0 : i32, i32
  }
  func.func @transform_9(%arg0: i32) -> (i32, i32) {
    %c0_i32 = arith.constant 0 : i32
    %c0_i32_0 = arith.constant 0 : i32
    %c0_i32_1 = arith.constant 0 : i32
    return %c0_i32, %c0_i32_0 : i32, i32
  }
  func.func @transform_10(%arg0: i32) -> (i32, i32) {
    %c0_i32 = arith.constant 0 : i32
    %c0_i32_0 = arith.constant 0 : i32
    %c0_i32_1 = arith.constant 0 : i32
    return %c0_i32, %c0_i32_0 : i32, i32
  }
  func.func @transform_11(%arg0: i32) -> (i32, i32) {
    %c0_i32 = arith.constant 0 : i32
    %c0_i32_0 = arith.constant 0 : i32
    %c0_i32_1 = arith.constant 0 : i32
    return %c0_i32, %c0_i32_0 : i32, i32
  }
  func.func @transform_12(%arg0: i32) -> (i32, i32, i32) {
    %c0_i32 = arith.constant 0 : i32
    %c0_i32_0 = arith.constant 0 : i32
    %c0_i32_1 = arith.constant 0 : i32
    return %arg0, %c0_i32, %c0_i32_0 : i32, i32, i32
  }
}

</mosaic_0001>

<llo_original>
// kernel: tpu_custom_call.1
$region0: #{tpu_custom_call.1}
  #allocation0 [shape = 'u32[]', space=smem, size = 0x4, offset = 0x4, fixed_abs, tag = 'smem constant byte address 0x4 - core index']
  #allocation1 [shape = 'u32[144,128]{1,0:T(1,128)}', space=vmem, size = 0x12000, scoped, tag = 'internal scratch']
  #allocation2 [shape = 'bf16[128,576]{1,0:T(16,128)(2,1)}', space=vmem, size = 0x28000, scoped, tag = 'scratch operand']
  #allocation3 [shape = 'bf16[128,192]{1,0:T(16,128)(2,1)}', space=vmem, size = 0x10000, scoped, tag = 'scratch operand']
  %s0 = inlined_call_operand.vmem [shape: f32[2,128,192], index: 0, kind: input, shape index: {}]
  %s1 = inlined_call_operand.vmem [shape: bf16[192,576], index: 1, kind: input, shape index: {}]
  %s2 = inlined_call_operand.vmem [shape: bf16[192,192], index: 2, kind: input, shape index: {}]
  %s3 = inlined_call_operand.vmem [shape: f32[1,192], index: 3, kind: input, shape index: {}]
  %s4 = inlined_call_operand.vmem [shape: f32[1,192], index: 4, kind: input, shape index: {}]
  %s5 = inlined_call_operand.vmem [shape: f32[1,192], index: 5, kind: input, shape index: {}]
  %s6 = inlined_call_operand.vmem [shape: f32[1,192], index: 6, kind: input, shape index: {}]
  %s7 = inlined_call_operand.vmem [shape: f32[1,192], index: 7, kind: input, shape index: {}]
  %s8 = inlined_call_operand.vmem [shape: bf16[192,768], index: 8, kind: input, shape index: {}]
  %s9 = inlined_call_operand.vmem [shape: f32[1,768], index: 9, kind: input, shape index: {}]
  %s10 = inlined_call_operand.vmem [shape: bf16[768,192], index: 10, kind: input, shape index: {}]
  %s11 = inlined_call_operand.vmem [shape: f32[1,192], index: 11, kind: input, shape index: {}]
  %s12 = inlined_call_operand.vmem [shape: f32[2,128,192], index: 12, kind: output, shape index: {}]
  %s13 = sld [smem:[#allocation0]]
  $region81: #{tpu_custom_call.1} parent=0
    _
  %s15 = ssub.s32 1, %s13
  %s16 = scalar_select 0, %s15, %s13
  loop: start=0, step=1, limit=4
  $region2: #{tpu_custom_call.1} parent=0 // loop_pre_header
    _
  $region3: #{tpu_custom_call.1} parent=0 // loop_header
    %s18 = sphi 0, %s22
    %p19 = scmp.ge.s32.totalorder %s18, 4
    %s28 = sphi 0, %s30
    %s31 = sphi 0, %s28
    %s32 = sphi 0, %s31
    %s48 = sphi 0, %s32
    %s52 = sphi 0, %s52
    %s54 = sphi 0, %s52
    %s55 = sphi 0, %s54
    %s69 = sphi 0, %s55
    %s73 = sphi 0, %s73
    %s75 = sphi 0, %s73
    %s76 = sphi 0, %s75
    %s90 = sphi 0, %s76
    %s94 = sphi 0, %s94
    %s96 = sphi 0, %s94
    %s97 = sphi 0, %s96
    %s111 = sphi 0, %s97
    %s115 = sphi 0, %s115
    %s117 = sphi 0, %s115
    %s118 = sphi 0, %s117
    %s132 = sphi 0, %s118
    %s136 = sphi 0, %s136
    %s138 = sphi 0, %s136
    %s139 = sphi 0, %s138
    %s153 = sphi 0, %s139
    %s157 = sphi 0, %s157
    %s159 = sphi 0, %s157
    %s160 = sphi 0, %s159
    %s174 = sphi 0, %s160
    %s178 = sphi 0, %s178
    %s180 = sphi 0, %s178
    %s181 = sphi 0, %s180
    %s195 = sphi 0, %s181
    %s199 = sphi 0, %s199
    %s201 = sphi 0, %s199
    %s202 = sphi 0, %s201
    %s216 = sphi 0, %s202
    %s220 = sphi 0, %s220
    %s222 = sphi 0, %s220
    %s223 = sphi 0, %s222
    %s237 = sphi 0, %s223
    %s241 = sphi 0, %s241
    %s243 = sphi 0, %s241
    %s244 = sphi 0, %s243
    %s258 = sphi 0, %s244
    %s262 = sphi 0, %s262
    %s264 = sphi 0, %s262
    %s265 = sphi 0, %s264
    %s279 = sphi 0, %s265
    %s285 = sphi 0, %s287
    %s288 = sphi 0, %s285
    %s289 = sphi 0, %s288
    %s305 = sphi 0, %s289
  $region4: #{tpu_custom_call.1} parent=0 // loop_header_branch
    %21 = sbr.rel (%p19) target = $region8
  $region5: #{tpu_custom_call.1} parent=0 // loop_body
    %s23 = ssub.s32 %s18, 1
    %s24 = ssub.s32 %s18, 2
    %s25 = sadd.s32 %s18, 1
    %s26 = ssub.s32 %s18, %s25
    %p27 = scmp.eq.s32.totalorder %s26, 0
    %s29 = sadd.s32 %s28, 1
    %s30 = scalar_select %p27, %s28, %s29
    %p33 = pneg %p27
    %p34 = scmp.eq.s32.totalorder %s18, 1
    %p35 = por %p33, %p34
    %p36 = scmp.ne.s32.totalorder %s28, %s31
    %p37 = scmp.eq.s32.totalorder %s18, 0
    %p38 = por %p36, %p37
    %p39 = scmp.ne.s32.totalorder %s28, %s31
    %p40 = scmp.eq.s32.totalorder %s23, 1
    %p41 = por %p39, %p40
    %p42 = scmp.ne.s32.totalorder %s31, %s32
    %p43 = scmp.eq.s32.totalorder %s23, 0
    %p44 = por %p42, %p43
    %p45 = scmp.ne.s32.totalorder %s31, %s32
    %p46 = scmp.eq.s32.totalorder %s24, 1
    %p47 = por %p45, %p46
    %p49 = scmp.ne.s32.totalorder %s32, %s48
    %p50 = scmp.eq.s32.totalorder %s24, 0
    %p51 = por %p49, %p50
    %s53 = sadd.s32 %s52, 1
    %p56 = scmp.eq.s32.totalorder %s18, 1
    %p57 = scmp.ne.s32.totalorder %s52, %s54
    %p58 = scmp.eq.s32.totalorder %s18, 0
    %p59 = por %p57, %p58
    %p60 = scmp.ne.s32.totalorder %s52, %s54
    %p61 = scmp.eq.s32.totalorder %s23, 1
    %p62 = por %p60, %p61
    %p63 = scmp.ne.s32.totalorder %s54, %s55
    %p64 = scmp.eq.s32.totalorder %s23, 0
    %p65 = por %p63, %p64
    %p66 = scmp.ne.s32.totalorder %s54, %s55
    %p67 = scmp.eq.s32.totalorder %s24, 1
    %p68 = por %p66, %p67
    %p70 = scmp.ne.s32.totalorder %s55, %s69
    %p71 = scmp.eq.s32.totalorder %s24, 0
    %p72 = por %p70, %p71
    %s74 = sadd.s32 %s73, 1
    %p77 = scmp.eq.s32.totalorder %s18, 1
    %p78 = scmp.ne.s32.totalorder %s73, %s75
    %p79 = scmp.eq.s32.totalorder %s18, 0
    %p80 = por %p78, %p79
    %p81 = scmp.ne.s32.totalorder %s73, %s75
    %p82 = scmp.eq.s32.totalorder %s23, 1
    %p83 = por %p81, %p82
    %p84 = scmp.ne.s32.totalorder %s75, %s76
    %p85 = scmp.eq.s32.totalorder %s23, 0
    %p86 = por %p84, %p85
    %p87 = scmp.ne.s32.totalorder %s75, %s76
    %p88 = scmp.eq.s32.totalorder %s24, 1
    %p89 = por %p87, %p88
    %p91 = scmp.ne.s32.totalorder %s76, %s90
    %p92 = scmp.eq.s32.totalorder %s24, 0
    %p93 = por %p91, %p92
    %s95 = sadd.s32 %s94, 1
    %p98 = scmp.eq.s32.totalorder %s18, 1
    %p99 = scmp.ne.s32.totalorder %s94, %s96
    %p100 = scmp.eq.s32.totalorder %s18, 0
    %p101 = por %p99, %p100
    %p102 = scmp.ne.s32.totalorder %s94, %s96
    %p103 = scmp.eq.s32.totalorder %s23, 1
    %p104 = por %p102, %p103
    %p105 = scmp.ne.s32.totalorder %s96, %s97
    %p106 = scmp.eq.s32.totalorder %s23, 0
    %p107 = por %p105, %p106
    %p108 = scmp.ne.s32.totalorder %s96, %s97
    %p109 = scmp.eq.s32.totalorder %s24, 1
    %p110 = por %p108, %p109
    %p112 = scmp.ne.s32.totalorder %s97, %s111
    %p113 = scmp.eq.s32.totalorder %s24, 0
    %p114 = por %p112, %p113
    %s116 = sadd.s32 %s115, 1
    %p119 = scmp.eq.s32.totalorder %s18, 1
    %p120 = scmp.ne.s32.totalorder %s115, %s117
    %p121 = scmp.eq.s32.totalorder %s18, 0
    %p122 = por %p120, %p121
    %p123 = scmp.ne.s32.totalorder %s115, %s117
    %p124 = scmp.eq.s32.totalorder %s23, 1
    %p125 = por %p123, %p124
    %p126 = scmp.ne.s32.totalorder %s117, %s118
    %p127 = scmp.eq.s32.totalorder %s23, 0
    %p128 = por %p126, %p127
    %p129 = scmp.ne.s32.totalorder %s117, %s118
    %p130 = scmp.eq.s32.totalorder %s24, 1
    %p131 = por %p129, %p130
    %p133 = scmp.ne.s32.totalorder %s118, %s132
    %p134 = scmp.eq.s32.totalorder %s24, 0
    %p135 = por %p133, %p134
    %s137 = sadd.s32 %s136, 1
    %p140 = scmp.eq.s32.totalorder %s18, 1
    %p141 = scmp.ne.s32.totalorder %s136, %s138
    %p142 = scmp.eq.s32.totalorder %s18, 0
    %p143 = por %p141, %p142
    %p144 = scmp.ne.s32.totalorder %s136, %s138
    %p145 = scmp.eq.s32.totalorder %s23, 1
    %p146 = por %p144, %p145
    %p147 = scmp.ne.s32.totalorder %s138, %s139
    %p148 = scmp.eq.s32.totalorder %s23, 0
    %p149 = por %p147, %p148
    %p150 = scmp.ne.s32.totalorder %s138, %s139
    %p151 = scmp.eq.s32.totalorder %s24, 1
    %p152 = por %p150, %p151
    %p154 = scmp.ne.s32.totalorder %s139, %s153
    %p155 = scmp.eq.s32.totalorder %s24, 0
    %p156 = por %p154, %p155
    %s158 = sadd.s32 %s157, 1
    %p161 = scmp.eq.s32.totalorder %s18, 1
    %p162 = scmp.ne.s32.totalorder %s157, %s159
    %p163 = scmp.eq.s32.totalorder %s18, 0
    %p164 = por %p162, %p163
    %p165 = scmp.ne.s32.totalorder %s157, %s159
    %p166 = scmp.eq.s32.totalorder %s23, 1
    %p167 = por %p165, %p166
    %p168 = scmp.ne.s32.totalorder %s159, %s160
    %p169 = scmp.eq.s32.totalorder %s23, 0
    %p170 = por %p168, %p169
    %p171 = scmp.ne.s32.totalorder %s159, %s160
    %p172 = scmp.eq.s32.totalorder %s24, 1
    %p173 = por %p171, %p172
    %p175 = scmp.ne.s32.totalorder %s160, %s174
    %p176 = scmp.eq.s32.totalorder %s24, 0
    %p177 = por %p175, %p176
    %s179 = sadd.s32 %s178, 1
    %p182 = scmp.eq.s32.totalorder %s18, 1
    %p183 = scmp.ne.s32.totalorder %s178, %s180
    %p184 = scmp.eq.s32.totalorder %s18, 0
    %p185 = por %p183, %p184
    %p186 = scmp.ne.s32.totalorder %s178, %s180
    %p187 = scmp.eq.s32.totalorder %s23, 1
    %p188 = por %p186, %p187
    %p189 = scmp.ne.s32.totalorder %s180, %s181
    %p190 = scmp.eq.s32.totalorder %s23, 0
    %p191 = por %p189, %p190
    %p192 = scmp.ne.s32.totalorder %s180, %s181
    %p193 = scmp.eq.s32.totalorder %s24, 1
    %p194 = por %p192, %p193
    %p196 = scmp.ne.s32.totalorder %s181, %s195
    %p197 = scmp.eq.s32.totalorder %s24, 0
    %p198 = por %p196, %p197
    %s200 = sadd.s32 %s199, 1
    %p203 = scmp.eq.s32.totalorder %s18, 1
    %p204 = scmp.ne.s32.totalorder %s199, %s201
    %p205 = scmp.eq.s32.totalorder %s18, 0
    %p206 = por %p204, %p205
    %p207 = scmp.ne.s32.totalorder %s199, %s201
    %p208 = scmp.eq.s32.totalorder %s23, 1
    %p209 = por %p207, %p208
    %p210 = scmp.ne.s32.totalorder %s201, %s202
    %p211 = scmp.eq.s32.totalorder %s23, 0
    %p212 = por %p210, %p211
    %p213 = scmp.ne.s32.totalorder %s201, %s202
    %p214 = scmp.eq.s32.totalorder %s24, 1
    %p215 = por %p213, %p214
    %p217 = scmp.ne.s32.totalorder %s202, %s216
    %p218 = scmp.eq.s32.totalorder %s24, 0
    %p219 = por %p217, %p218
    %s221 = sadd.s32 %s220, 1
    %p224 = scmp.eq.s32.totalorder %s18, 1
    %p225 = scmp.ne.s32.totalorder %s220, %s222
    %p226 = scmp.eq.s32.totalorder %s18, 0
    %p227 = por %p225, %p226
    %p228 = scmp.ne.s32.totalorder %s220, %s222
    %p229 = scmp.eq.s32.totalorder %s23, 1
    %p230 = por %p228, %p229
    %p231 = scmp.ne.s32.totalorder %s222, %s223
    %p232 = scmp.eq.s32.totalorder %s23, 0
    %p233 = por %p231, %p232
    %p234 = scmp.ne.s32.totalorder %s222, %s223
    %p235 = scmp.eq.s32.totalorder %s24, 1
    %p236 = por %p234, %p235
    %p238 = scmp.ne.s32.totalorder %s223, %s237
    %p239 = scmp.eq.s32.totalorder %s24, 0
    %p240 = por %p238, %p239
    %s242 = sadd.s32 %s241, 1
    %p245 = scmp.eq.s32.totalorder %s18, 1
    %p246 = scmp.ne.s32.totalorder %s241, %s243
    %p247 = scmp.eq.s32.totalorder %s18, 0
    %p248 = por %p246, %p247
    %p249 = scmp.ne.s32.totalorder %s241, %s243
    %p250 = scmp.eq.s32.totalorder %s23, 1
    %p251 = por %p249, %p250
    %p252 = scmp.ne.s32.totalorder %s243, %s244
    %p253 = scmp.eq.s32.totalorder %s23, 0
    %p254 = por %p252, %p253
    %p255 = scmp.ne.s32.totalorder %s243, %s244
    %p256 = scmp.eq.s32.totalorder %s24, 1
    %p257 = por %p255, %p256
    %p259 = scmp.ne.s32.totalorder %s244, %s258
    %p260 = scmp.eq.s32.totalorder %s24, 0
    %p261 = por %p259, %p260
    %s263 = sadd.s32 %s262, 1
    %p266 = scmp.eq.s32.totalorder %s18, 1
    %p267 = scmp.ne.s32.totalorder %s262, %s264
    %p268 = scmp.eq.s32.totalorder %s18, 0
    %p269 = por %p267, %p268
    %p270 = scmp.ne.s32.totalorder %s262, %s264
    %p271 = scmp.eq.s32.totalorder %s23, 1
    %p272 = por %p270, %p271
    %p273 = scmp.ne.s32.totalorder %s264, %s265
    %p274 = scmp.eq.s32.totalorder %s23, 0
    %p275 = por %p273, %p274
    %p276 = scmp.ne.s32.totalorder %s264, %s265
    %p277 = scmp.eq.s32.totalorder %s24, 1
    %p278 = por %p276, %p277
    %p280 = scmp.ne.s32.totalorder %s265, %s279
    %p281 = scmp.eq.s32.totalorder %s24, 0
    %p282 = por %p280, %p281
    %s283 = ssub.s32 %s18, %s25
    %p284 = scmp.eq.s32.totalorder %s283, 0
    %s286 = sadd.s32 %s285, 1
    %s287 = scalar_select %p284, %s285, %s286
    %p290 = pneg %p284
    %p291 = scmp.eq.s32.totalorder %s18, 1
    %p292 = por %p290, %p291
    %p293 = scmp.ne.s32.totalorder %s285, %s288
    %p294 = scmp.eq.s32.totalorder %s18, 0
    %p295 = por %p293, %p294
    %p296 = scmp.ne.s32.totalorder %s285, %s288
    %p297 = scmp.eq.s32.totalorder %s23, 1
    %p298 = por %p296, %p297
    %p299 = scmp.ne.s32.totalorder %s288, %s289
    %p300 = scmp.eq.s32.totalorder %s23, 0
    %p301 = por %p299, %p300
    %p302 = scmp.ne.s32.totalorder %s288, %s289
    %p303 = scmp.eq.s32.totalorder %s24, 1
    %p304 = por %p302, %p303
    %p306 = scmp.ne.s32.totalorder %s289, %s305
    %p307 = scmp.eq.s32.totalorder %s24, 0
    %p308 = por %p306, %p307
    %p309 = scmp.le.s32.totalorder 1, %s18
    %p310 = scmp.lt.s32.totalorder %s18, 3
    %p311 = pnand %p309, %p310
    %p312 = pneg %p311
    // Predicated region
    $region9: #{tpu_custom_call.1} parent=5 // pred_check
      _
    $region10: #{tpu_custom_call.1} parent=5 // pred_check_branch
      %314 = sbr.rel (%p311) target = $region12
    $region11: #{tpu_custom_call.1} parent=5 // pred_region
      %s315 = ssub.s32 %s18, 1
      // Predicated region
      $region13: #{tpu_custom_call.1} parent=11 // pred_check
        %p316 = pneg %p65
      $region14: #{tpu_custom_call.1} parent=11 // pred_check_branch
        %318 = sbr.rel (%p316) target = $region16
      $region15: #{tpu_custom_call.1} parent=11 // pred_region
        _
      $region16: #{tpu_custom_call.1} parent=11 // pred_fallthru
        _
      // Predicated region
      $region17: #{tpu_custom_call.1} parent=11 // pred_check
        %p319 = pneg %p86
      $region18: #{tpu_custom_call.1} parent=11 // pred_check_branch
        %321 = sbr.rel (%p319) target = $region20
      $region19: #{tpu_custom_call.1} parent=11 // pred_region
        _
      $region20: #{tpu_custom_call.1} parent=11 // pred_fallthru
        _
      // Predicated region
      $region21: #{tpu_custom_call.1} parent=11 // pred_check
        %p322 = pneg %p107
      $region22: #{tpu_custom_call.1} parent=11 // pred_check_branch
        %324 = sbr.rel (%p322) target = $region24
      $region23: #{tpu_custom_call.1} parent=11 // pred_region
        _
      $region24: #{tpu_custom_call.1} parent=11 // pred_fallthru
        _
      // Predicated region
      $region25: #{tpu_custom_call.1} parent=11 // pred_check
        %p325 = pneg %p128
      $region26: #{tpu_custom_call.1} parent=11 // pred_check_branch
        %327 = sbr.rel (%p325) target = $region28
      $region27: #{tpu_custom_call.1} parent=11 // pred_region
        _
      $region28: #{tpu_custom_call.1} parent=11 // pred_fallthru
        _
      // Predicated region
      $region29: #{tpu_custom_call.1} parent=11 // pred_check
        %p328 = pneg %p149
      $region30: #{tpu_custom_call.1} parent=11 // pred_check_branch
        %330 = sbr.rel (%p328) target = $region32
      $region31: #{tpu_custom_call.1} parent=11 // pred_region
        _
      $region32: #{tpu_custom_call.1} parent=11 // pred_fallthru
        _
      // Predicated region
      $region33: #{tpu_custom_call.1} parent=11 // pred_check
        %p331 = pneg %p170
      $region34: #{tpu_custom_call.1} parent=11 // pred_check_branch
        %333 = sbr.rel (%p331) target = $region36
      $region35: #{tpu_custom_call.1} parent=11 // pred_region
        _
      $region36: #{tpu_custom_call.1} parent=11 // pred_fallthru
        _
      // Predicated region
      $region37: #{tpu_custom_call.1} parent=11 // pred_check
        %p334 = pneg %p191
      $region38: #{tpu_custom_call.1} parent=11 // pred_check_branch
        %336 = sbr.rel (%p334) target = $region40
      $region39: #{tpu_custom_call.1} parent=11 // pred_region
        _
      $region40: #{tpu_custom_call.1} parent=11 // pred_fallthru
        _
      // Predicated region
      $region41: #{tpu_custom_call.1} parent=11 // pred_check
        %p337 = pneg %p212
      $region42: #{tpu_custom_call.1} parent=11 // pred_check_branch
        %339 = sbr.rel (%p337) target = $region44
      $region43: #{tpu_custom_call.1} parent=11 // pred_region
        _
      $region44: #{tpu_custom_call.1} parent=11 // pred_fallthru
        _
      // Predicated region
      $region45: #{tpu_custom_call.1} parent=11 // pred_check
        %p340 = pneg %p233
      $region46: #{tpu_custom_call.1} parent=11 // pred_check_branch
        %342 = sbr.rel (%p340) target = $region48
      $region47: #{tpu_custom_call.1} parent=11 // pred_region
        _
      $region48: #{tpu_custom_call.1} parent=11 // pred_fallthru
        _
      // Predicated region
      $region49: #{tpu_custom_call.1} parent=11 // pred_check
        %p343 = pneg %p254
      $region50: #{tpu_custom_call.1} parent=11 // pred_check_branch
        %345 = sbr.rel (%p343) target = $region52
      $region51: #{tpu_custom_call.1} parent=11 // pred_region
        _
      $region52: #{tpu_custom_call.1} parent=11 // pred_fallthru
        _
      // Predicated region
      $region53: #{tpu_custom_call.1} parent=11 // pred_check
        %p346 = pneg %p275
      $region54: #{tpu_custom_call.1} parent=11 // pred_check_branch
        %348 = sbr.rel (%p346) target = $region56
      $region55: #{tpu_custom_call.1} parent=11 // pred_region
        _
      $region56: #{tpu_custom_call.1} parent=11 // pred_fallthru
        _
    $region12: #{tpu_custom_call.1} parent=5 // pred_fallthru
      _
    %p349 = scmp.lt.s32.totalorder %s18, 2
    // Predicated region
    $region57: #{tpu_custom_call.1} parent=5 // pred_check
      %p350 = pneg %p349
    $region58: #{tpu_custom_call.1} parent=5 // pred_check_branch
      %352 = sbr.rel (%p350) target = $region60
    $region59: #{tpu_custom_call.1} parent=5 // pred_region
      // Predicated region
      $region61: #{tpu_custom_call.1} parent=59 // pred_check
        %p353 = pneg %p38
      $region62: #{tpu_custom_call.1} parent=59 // pred_check_branch
        %355 = sbr.rel (%p353) target = $region64
      $region63: #{tpu_custom_call.1} parent=59 // pred_region
        %p356 = scmp.lt.s32.totalorder %s18, 1
        %s357 = scalar_select %p356, %s18, 1
        %s358 = smul.addr %s357, 32
        %s359 = smul.addr %s358, 8
        %s360 = scalar_lea.vmem %s0, %s359
      $region64: #{tpu_custom_call.1} parent=59 // pred_fallthru
        _
    $region60: #{tpu_custom_call.1} parent=5 // pred_fallthru
      _
    %p361 = scmp.le.s32.totalorder 1, %s18
    %p362 = scmp.lt.s32.totalorder %s18, 3
    %p363 = pnand %p361, %p362
    %p364 = pneg %p363
    // Predicated region
    $region65: #{tpu_custom_call.1} parent=5 // pred_check
      _
    $region66: #{tpu_custom_call.1} parent=5 // pred_check_branch
      %366 = sbr.rel (%p363) target = $region68
    $region67: #{tpu_custom_call.1} parent=5 // pred_region
      %s367 = ssub.s32 %s18, 1
      %p368 = scmp.lt.s32.totalorder %s23, 1
      %s369 = scalar_select %p368, %s23, 1
      %s370 = smul.addr %s369, 32
      %s371 = smul.addr %s370, 8
      %s372 = scalar_lea.vmem %s0, %s371
      %p373 = pneg %p44
      %p374 = pneg %p41
      %p375 = pneg %p65
      %p376 = pneg %p62
      %p377 = pneg %p86
      %p378 = pneg %p83
      %p379 = pneg %p107
      %p380 = pneg %p104
      %p381 = pneg %p128
      %p382 = pneg %p125
      %p383 = pneg %p149
      %p384 = pneg %p146
      %p385 = pneg %p170
      %p386 = pneg %p167
      %p387 = pneg %p191
      %p388 = pneg %p188
      %p389 = pneg %p212
      %p390 = pneg %p209
      %p391 = pneg %p233
      %p392 = pneg %p230
      %p393 = pneg %p254
      %p394 = pneg %p251
      %p395 = pneg %p275
      %p396 = pneg %p272
      %p397 = pneg %p301
      %p398 = pneg %p298
      %p399 = scmp.lt.s32.totalorder %s23, 1
      %s400 = scalar_select %p399, %s23, 1
      %s401 = smul.addr %s400, 32
      %s402 = smul.addr %s401, 8
      %s403 = scalar_lea.vmem %s12, %s402
      %p404 = scmp.lt.s32.totalorder %s23, 1
      %s405 = scalar_select %p404, %s23, 1
      %s406 = smul.addr %s405, 32
      %s407 = smul.addr %s406, 8
      %s408 = scalar_lea.vmem %s0, %s407
      %p409 = scmp.lt.s32.totalorder %s23, 1
      %s410 = scalar_select %p409, %s23, 1
      %s411 = smul.addr %s410, 32
      %s412 = smul.addr %s411, 8
      %s413 = scalar_lea.vmem %s12, %s412
      %v415 = vld [vmem:[%s408] sm:$0xff]
      %v416 = vld [vmem:[%s408 + $0x8] sm:$0xff]
      %v417 = vld [vmem:[%s408 + $0x10] sm:$0xff]
      %v418 = vld [vmem:[%s408 + $0x18] sm:$0xff]
      %v419 = vld [vmem:[%s408 + $0x20] sm:$0xff]
      %v420 = vld [vmem:[%s408 + $0x28] sm:$0xff]
      %v421 = vld [vmem:[%s408 + $0x30] sm:$0xff]
      %v422 = vld [vmem:[%s408 + $0x38] sm:$0xff]
      %v423 = vld [vmem:[%s408 + $0x40] sm:$0xff]
      %v424 = vld [vmem:[%s408 + $0x48] sm:$0xff]
      %v425 = vld [vmem:[%s408 + $0x50] sm:$0xff]
      %v426 = vld [vmem:[%s408 + $0x58] sm:$0xff]
      %v427 = vld [vmem:[%s408 + $0x60] sm:$0xff]
      %v428 = vld [vmem:[%s408 + $0x68] sm:$0xff]
      %v429 = vld [vmem:[%s408 + $0x70] sm:$0xff]
      %v430 = vld [vmem:[%s408 + $0x78] sm:$0xff]
      %v431 = vld [vmem:[%s408 + $0x80] sm:$0xff]
      %v432 = vld [vmem:[%s408 + $0x88] sm:$0xff]
      %v433 = vld [vmem:[%s408 + $0x90] sm:$0xff]
      %v434 = vld [vmem:[%s408 + $0x98] sm:$0xff]
      %v435 = vld [vmem:[%s408 + $0xa0] sm:$0xff]
      %v436 = vld [vmem:[%s408 + $0xa8] sm:$0xff]
      %v437 = vld [vmem:[%s408 + $0xb0] sm:$0xff]
      %v438 = vld [vmem:[%s408 + $0xb8] sm:$0xff]
      %v439 = vld [vmem:[%s408 + $0xc0] sm:$0xff]
      %v440 = vld [vmem:[%s408 + $0xc8] sm:$0xff]
      %v441 = vld [vmem:[%s408 + $0xd0] sm:$0xff]
      %v442 = vld [vmem:[%s408 + $0xd8] sm:$0xff]
      %v443 = vld [vmem:[%s408 + $0xe0] sm:$0xff]
      %v444 = vld [vmem:[%s408 + $0xe8] sm:$0xff]
      %v445 = vld [vmem:[%s408 + $0xf0] sm:$0xff]
      %v446 = vld [vmem:[%s408 + $0xf8] sm:$0xff]
      %v447 = vld [vmem:[%s4] sm:$0x3]
      %v448 = vld [vmem:[%s5] sm:$0x3]
      %vm449 = vcmask 523264
      %v450 = vsel %vm449, %v416, 0.0
      %v451 = vadd.f32 %v415, %v450
      %452 = vadd.xlane.f32.xlu0 %v451
      %v453 = vpop.xlane.xlu0 %452
      %v454 = vsel %vm449, %v418, 0.0
      %v455 = vadd.f32 %v417, %v454
      %456 = vadd.xlane.f32.xlu0 %v455
      %v457 = vpop.xlane.xlu0 %456
      %v458 = vsel %vm449, %v420, 0.0
      %v459 = vadd.f32 %v419, %v458
      %460 = vadd.xlane.f32.xlu0 %v459
      %v461 = vpop.xlane.xlu0 %460
      %v462 = vsel %vm449, %v422, 0.0
      %v463 = vadd.f32 %v421, %v462
      %464 = vadd.xlane.f32.xlu0 %v463
      %v465 = vpop.xlane.xlu0 %464
      %v466 = vsel %vm449, %v424, 0.0
      %v467 = vadd.f32 %v423, %v466
      %468 = vadd.xlane.f32.xlu0 %v467
      %v469 = vpop.xlane.xlu0 %468
      %v470 = vsel %vm449, %v426, 0.0
      %v471 = vadd.f32 %v425, %v470
      %472 = vadd.xlane.f32.xlu0 %v471
      %v473 = vpop.xlane.xlu0 %472
      %v474 = vsel %vm449, %v428, 0.0
      %v475 = vadd.f32 %v427, %v474
      %476 = vadd.xlane.f32.xlu0 %v475
      %v477 = vpop.xlane.xlu0 %476
      %v478 = vsel %vm449, %v430, 0.0
      %v479 = vadd.f32 %v429, %v478
      %480 = vadd.xlane.f32.xlu0 %v479
      %v481 = vpop.xlane.xlu0 %480
      %v482 = vsel %vm449, %v432, 0.0
      %v483 = vadd.f32 %v431, %v482
      %484 = vadd.xlane.f32.xlu0 %v483
      %v485 = vpop.xlane.xlu0 %484
      %v486 = vsel %vm449, %v434, 0.0
      %v487 = vadd.f32 %v433, %v486
      %488 = vadd.xlane.f32.xlu0 %v487
      %v489 = vpop.xlane.xlu0 %488
      %v490 = vsel %vm449, %v436, 0.0
      %v491 = vadd.f32 %v435, %v490
      %492 = vadd.xlane.f32.xlu0 %v491
      %v493 = vpop.xlane.xlu0 %492
      %v494 = vsel %vm449, %v438, 0.0
      %v495 = vadd.f32 %v437, %v494
      %496 = vadd.xlane.f32.xlu0 %v495
      %v497 = vpop.xlane.xlu0 %496
      %v498 = vsel %vm449, %v440, 0.0
      %v499 = vadd.f32 %v439, %v498
      %500 = vadd.xlane.f32.xlu0 %v499
      %v501 = vpop.xlane.xlu0 %500
      %v502 = vsel %vm449, %v442, 0.0
      %v503 = vadd.f32 %v441, %v502
      %504 = vadd.xlane.f32.xlu0 %v503
      %v505 = vpop.xlane.xlu0 %504
      %v506 = vsel %vm449, %v444, 0.0
      %v507 = vadd.f32 %v443, %v506
      %508 = vadd.xlane.f32.xlu0 %v507
      %v509 = vpop.xlane.xlu0 %508
      %v510 = vsel %vm449, %v446, 0.0
      %v511 = vadd.f32 %v445, %v510
      %512 = vadd.xlane.f32.xlu0 %v511
      %v513 = vpop.xlane.xlu0 %512
      %v514 = vmul.f32 %v415, %v415
      %v515 = vmul.f32 %v416, %v416
      %v516 = vmul.f32 %v417, %v417
      %v517 = vmul.f32 %v418, %v418
      %v518 = vmul.f32 %v419, %v419
      %v519 = vmul.f32 %v420, %v420
      %v520 = vmul.f32 %v421, %v421
      %v521 = vmul.f32 %v422, %v422
      %v522 = vmul.f32 %v423, %v423
      %v523 = vmul.f32 %v424, %v424
      %v524 = vmul.f32 %v425, %v425
      %v525 = vmul.f32 %v426, %v426
      %v526 = vmul.f32 %v427, %v427
      %v527 = vmul.f32 %v428, %v428
      %v528 = vmul.f32 %v429, %v429
      %v529 = vmul.f32 %v430, %v430
      %v530 = vmul.f32 %v431, %v431
      %v531 = vmul.f32 %v432, %v432
      %v532 = vmul.f32 %v433, %v433
      %v533 = vmul.f32 %v434, %v434
      %v534 = vmul.f32 %v435, %v435
      %v535 = vmul.f32 %v436, %v436
      %v536 = vmul.f32 %v437, %v437
      %v537 = vmul.f32 %v438, %v438
      %v538 = vmul.f32 %v439, %v439
      %v539 = vmul.f32 %v440, %v440
      %v540 = vmul.f32 %v441, %v441
      %v541 = vmul.f32 %v442, %v442
      %v542 = vmul.f32 %v443, %v443
      %v543 = vmul.f32 %v444, %v444
      %v544 = vmul.f32 %v445, %v445
      %v545 = vmul.f32 %v446, %v446
      %v546 = vsel %vm449, %v515, 0.0
      %v547 = vadd.f32 %v514, %v546
      %548 = vadd.xlane.f32.xlu0 %v547
      %v549 = vpop.xlane.xlu0 %548
      %v550 = vsel %vm449, %v517, 0.0
      %v551 = vadd.f32 %v516, %v550
      %552 = vadd.xlane.f32.xlu0 %v551
      %v553 = vpop.xlane.xlu0 %552
      %v554 = vsel %vm449, %v519, 0.0
      %v555 = vadd.f32 %v518, %v554
      %556 = vadd.xlane.f32.xlu0 %v555
      %v557 = vpop.xlane.xlu0 %556
      %v558 = vsel %vm449, %v521, 0.0
      %v559 = vadd.f32 %v520, %v558
      %560 = vadd.xlane.f32.xlu0 %v559
      %v561 = vpop.xlane.xlu0 %560
      %v562 = vsel %vm449, %v523, 0.0
      %v563 = vadd.f32 %v522, %v562
      %564 = vadd.xlane.f32.xlu0 %v563
      %v565 = vpop.xlane.xlu0 %564
      %v566 = vsel %vm449, %v525, 0.0
      %v567 = vadd.f32 %v524, %v566
      %568 = vadd.xlane.f32.xlu0 %v567
      %v569 = vpop.xlane.xlu0 %568
      %v570 = vsel %vm449, %v527, 0.0
      %v571 = vadd.f32 %v526, %v570
      %572 = vadd.xlane.f32.xlu0 %v571
      %v573 = vpop.xlane.xlu0 %572
      %v574 = vsel %vm449, %v529, 0.0
      %v575 = vadd.f32 %v528, %v574
      %576 = vadd.xlane.f32.xlu0 %v575
      %v577 = vpop.xlane.xlu0 %576
      %v578 = vsel %vm449, %v531, 0.0
      %v579 = vadd.f32 %v530, %v578
      %580 = vadd.xlane.f32.xlu0 %v579
      %v581 = vpop.xlane.xlu0 %580
      %v582 = vsel %vm449, %v533, 0.0
      %v583 = vadd.f32 %v532, %v582
      %584 = vadd.xlane.f32.xlu0 %v583
      %v585 = vpop.xlane.xlu0 %584
      %v586 = vsel %vm449, %v535, 0.0
      %v587 = vadd.f32 %v534, %v586
      %588 = vadd.xlane.f32.xlu0 %v587
      %v589 = vpop.xlane.xlu0 %588
      %v590 = vsel %vm449, %v537, 0.0
      %v591 = vadd.f32 %v536, %v590
      %592 = vadd.xlane.f32.xlu0 %v591
      %v593 = vpop.xlane.xlu0 %592
      %v594 = vsel %vm449, %v539, 0.0
      %v595 = vadd.f32 %v538, %v594
      %596 = vadd.xlane.f32.xlu0 %v595
      %v597 = vpop.xlane.xlu0 %596
      %v598 = vsel %vm449, %v541, 0.0
      %v599 = vadd.f32 %v540, %v598
      %600 = vadd.xlane.f32.xlu0 %v599
      %v601 = vpop.xlane.xlu0 %600
      %v602 = vsel %vm449, %v543, 0.0
      %v603 = vadd.f32 %v542, %v602
      %604 = vadd.xlane.f32.xlu0 %v603
      %v605 = vpop.xlane.xlu0 %604
      %v606 = vsel %vm449, %v545, 0.0
      %v607 = vadd.f32 %v544, %v606
      %608 = vadd.xlane.f32.xlu0 %v607
      %v609 = vpop.xlane.xlu0 %608
      %v610 = vmul.f32 %v453, 0.0052083335
      %v611 = vmul.f32 %v457, 0.0052083335
      %v612 = vmul.f32 %v461, 0.0052083335
      %v613 = vmul.f32 %v465, 0.0052083335
      %v614 = vmul.f32 %v469, 0.0052083335
      %v615 = vmul.f32 %v473, 0.0052083335
      %v616 = vmul.f32 %v477, 0.0052083335
      %v617 = vmul.f32 %v481, 0.0052083335
      %v618 = vmul.f32 %v485, 0.0052083335
      %v619 = vmul.f32 %v489, 0.0052083335
      %v620 = vmul.f32 %v493, 0.0052083335
      %v621 = vmul.f32 %v497, 0.0052083335
      %v622 = vmul.f32 %v501, 0.0052083335
      %v623 = vmul.f32 %v505, 0.0052083335
      %v624 = vmul.f32 %v509, 0.0052083335
      %v625 = vmul.f32 %v513, 0.0052083335
      %v626 = vmul.f32 %v549, 0.0052083335
      %v627 = vmul.f32 %v553, 0.0052083335
      %v628 = vmul.f32 %v557, 0.0052083335
      %v629 = vmul.f32 %v561, 0.0052083335
      %v630 = vmul.f32 %v565, 0.0052083335
      %v631 = vmul.f32 %v569, 0.0052083335
      %v632 = vmul.f32 %v573, 0.0052083335
      %v633 = vmul.f32 %v577, 0.0052083335
      %v634 = vmul.f32 %v581, 0.0052083335
      %v635 = vmul.f32 %v585, 0.0052083335
      %v636 = vmul.f32 %v589, 0.0052083335
      %v637 = vmul.f32 %v593, 0.0052083335
      %v638 = vmul.f32 %v597, 0.0052083335
      %v639 = vmul.f32 %v601, 0.0052083335
      %v640 = vmul.f32 %v605, 0.0052083335
      %v641 = vmul.f32 %v609, 0.0052083335
      %v642 = vmul.f32 %v610, %v610
      %v643 = vmul.f32 %v611, %v611
      %v644 = vmul.f32 %v612, %v612
      %v645 = vmul.f32 %v613, %v613
      %v646 = vmul.f32 %v614, %v614
      %v647 = vmul.f32 %v615, %v615
      %v648 = vmul.f32 %v616, %v616
      %v649 = vmul.f32 %v617, %v617
      %v650 = vmul.f32 %v618, %v618
      %v651 = vmul.f32 %v619, %v619
      %v652 = vmul.f32 %v620, %v620
      %v653 = vmul.f32 %v621, %v621
      %v654 = vmul.f32 %v622, %v622
      %v655 = vmul.f32 %v623, %v623
      %v656 = vmul.f32 %v624, %v624
      %v657 = vmul.f32 %v625, %v625
      %v658 = vsub.f32 %v626, %v642
      %v659 = vsub.f32 %v627, %v643
      %v660 = vsub.f32 %v628, %v644
      %v661 = vsub.f32 %v629, %v645
      %v662 = vsub.f32 %v630, %v646
      %v663 = vsub.f32 %v631, %v647
      %v664 = vsub.f32 %v632, %v648
      %v665 = vsub.f32 %v633, %v649
      %v666 = vsub.f32 %v634, %v650
      %v667 = vsub.f32 %v635, %v651
      %v668 = vsub.f32 %v636, %v652
      %v669 = vsub.f32 %v637, %v653
      %v670 = vsub.f32 %v638, %v654
      %v671 = vsub.f32 %v639, %v655
      %v672 = vsub.f32 %v640, %v656
      %v673 = vsub.f32 %v641, %v657
      %v674 = vsub.f32 %v415, %v610
      %v675 = vsub.f32 %v416, %v610
      %v676 = vsub.f32 %v417, %v611
      %v677 = vsub.f32 %v418, %v611
      %v678 = vsub.f32 %v419, %v612
      %v679 = vsub.f32 %v420, %v612
      %v680 = vsub.f32 %v421, %v613
      %v681 = vsub.f32 %v422, %v613
      %v682 = vsub.f32 %v423, %v614
      %v683 = vsub.f32 %v424, %v614
      %v684 = vsub.f32 %v425, %v615
      %v685 = vsub.f32 %v426, %v615
      %v686 = vsub.f32 %v427, %v616
      %v687 = vsub.f32 %v428, %v616
      %v688 = vsub.f32 %v429, %v617
      %v689 = vsub.f32 %v430, %v617
      %v690 = vsub.f32 %v431, %v618
      %v691 = vsub.f32 %v432, %v618
      %v692 = vsub.f32 %v433, %v619
      %v693 = vsub.f32 %v434, %v619
      %v694 = vsub.f32 %v435, %v620
      %v695 = vsub.f32 %v436, %v620
      %v696 = vsub.f32 %v437, %v621
      %v697 = vsub.f32 %v438, %v621
      %v698 = vsub.f32 %v439, %v622
      %v699 = vsub.f32 %v440, %v622
      %v700 = vsub.f32 %v441, %v623
      %v701 = vsub.f32 %v442, %v623
      %v702 = vsub.f32 %v443, %v624
      %v703 = vsub.f32 %v444, %v624
      %v704 = vsub.f32 %v445, %v625
      %v705 = vsub.f32 %v446, %v625
      %v706 = vadd.f32 %v658, 1e-05
      %v707 = vadd.f32 %v659, 1e-05
      %v708 = vadd.f32 %v660, 1e-05
      %v709 = vadd.f32 %v661, 1e-05
      %v710 = vadd.f32 %v662, 1e-05
      %v711 = vadd.f32 %v663, 1e-05
      %v712 = vadd.f32 %v664, 1e-05
      %v713 = vadd.f32 %v665, 1e-05
      %v714 = vadd.f32 %v666, 1e-05
      %v715 = vadd.f32 %v667, 1e-05
      %v716 = vadd.f32 %v668, 1e-05
      %v717 = vadd.f32 %v669, 1e-05
      %v718 = vadd.f32 %v670, 1e-05
      %v719 = vadd.f32 %v671, 1e-05
      %v720 = vadd.f32 %v672, 1e-05
      %v721 = vadd.f32 %v673, 1e-05
      %v722 = vrsqrt.pop %v706
      %v723 = vrsqrt.pop %v707
      %v724 = vrsqrt.pop %v708
      %v725 = vrsqrt.pop %v709
      %v726 = vrsqrt.pop %v710
      %v727 = vrsqrt.pop %v711
      %v728 = vrsqrt.pop %v712
      %v729 = vrsqrt.pop %v713
      %v730 = vrsqrt.pop %v714
      %v731 = vrsqrt.pop %v715
      %v732 = vrsqrt.pop %v716
      %v733 = vrsqrt.pop %v717
      %v734 = vrsqrt.pop %v718
      %v735 = vrsqrt.pop %v719
      %v736 = vrsqrt.pop %v720
      %v737 = vrsqrt.pop %v721
      %v738 = vmul.f32 %v674, %v722
      %v739 = vmul.f32 %v675, %v722
      %v740 = vmul.f32 %v676, %v723
      %v741 = vmul.f32 %v677, %v723
      %v742 = vmul.f32 %v678, %v724
      %v743 = vmul.f32 %v679, %v724
      %v744 = vmul.f32 %v680, %v725
      %v745 = vmul.f32 %v681, %v725
      %v746 = vmul.f32 %v682, %v726
      %v747 = vmul.f32 %v683, %v726
      %v748 = vmul.f32 %v684, %v727
      %v749 = vmul.f32 %v685, %v727
      %v750 = vmul.f32 %v686, %v728
      %v751 = vmul.f32 %v687, %v728
      %v752 = vmul.f32 %v688, %v729
      %v753 = vmul.f32 %v689, %v729
      %v754 = vmul.f32 %v690, %v730
      %v755 = vmul.f32 %v691, %v730
      %v756 = vmul.f32 %v692, %v731
      %v757 = vmul.f32 %v693, %v731
      %v758 = vmul.f32 %v694, %v732
      %v759 = vmul.f32 %v695, %v732
      %v760 = vmul.f32 %v696, %v733
      %v761 = vmul.f32 %v697, %v733
      %v762 = vmul.f32 %v698, %v734
      %v763 = vmul.f32 %v699, %v734
      %v764 = vmul.f32 %v700, %v735
      %v765 = vmul.f32 %v701, %v735
      %v766 = vmul.f32 %v702, %v736
      %v767 = vmul.f32 %v703, %v736
      %v768 = vmul.f32 %v704, %v737
      %v769 = vmul.f32 %v705, %v737
      %v771 = vlaneseq
      %v772 = vshrl.u32 %v771, 7
      %v773 = vsub.s32 0, %v772
      %v774 = vrot.slane %v447, %v773
      %v775 = vlaneseq
      %v776 = vshrl.u32 %v775, 7
      %v777 = vsub.s32 1, %v776
      %v778 = vrot.slane %v447, %v777
      %v781 = vmul.f32 %v738, %v774
      %v782 = vmul.f32 %v739, %v778
      %v783 = vmul.f32 %v740, %v774
      %v784 = vmul.f32 %v741, %v778
      %v785 = vmul.f32 %v742, %v774
      %v786 = vmul.f32 %v743, %v778
      %v787 = vmul.f32 %v744, %v774
      %v788 = vmul.f32 %v745, %v778
      %v789 = vmul.f32 %v746, %v774
      %v790 = vmul.f32 %v747, %v778
      %v791 = vmul.f32 %v748, %v774
      %v792 = vmul.f32 %v749, %v778
      %v793 = vmul.f32 %v750, %v774
      %v794 = vmul.f32 %v751, %v778
      %v795 = vmul.f32 %v752, %v774
      %v796 = vmul.f32 %v753, %v778
      %v797 = vmul.f32 %v754, %v774
      %v798 = vmul.f32 %v755, %v778
      %v799 = vmul.f32 %v756, %v774
      %v800 = vmul.f32 %v757, %v778
      %v801 = vmul.f32 %v758, %v774
      %v802 = vmul.f32 %v759, %v778
      %v803 = vmul.f32 %v760, %v774
      %v804 = vmul.f32 %v761, %v778
      %v805 = vmul.f32 %v762, %v774
      %v806 = vmul.f32 %v763, %v778
      %v807 = vmul.f32 %v764, %v774
      %v808 = vmul.f32 %v765, %v778
      %v809 = vmul.f32 %v766, %v774
      %v810 = vmul.f32 %v767, %v778
      %v811 = vmul.f32 %v768, %v774
      %v812 = vmul.f32 %v769, %v778
      %v814 = vlaneseq
      %v815 = vshrl.u32 %v814, 7
      %v816 = vsub.s32 0, %v815
      %v817 = vrot.slane %v448, %v816
      %v818 = vlaneseq
      %v819 = vshrl.u32 %v818, 7
      %v820 = vsub.s32 1, %v819
      %v821 = vrot.slane %v448, %v820
      %v824 = vadd.f32 %v781, %v817
      %v825 = vadd.f32 %v782, %v821
      %v826 = vadd.f32 %v783, %v817
      %v827 = vadd.f32 %v784, %v821
      %v828 = vadd.f32 %v785, %v817
      %v829 = vadd.f32 %v786, %v821
      %v830 = vadd.f32 %v787, %v817
      %v831 = vadd.f32 %v788, %v821
      %v832 = vadd.f32 %v789, %v817
      %v833 = vadd.f32 %v790, %v821
      %v834 = vadd.f32 %v791, %v817
      %v835 = vadd.f32 %v792, %v821
      %v836 = vadd.f32 %v793, %v817
      %v837 = vadd.f32 %v794, %v821
      %v838 = vadd.f32 %v795, %v817
      %v839 = vadd.f32 %v796, %v821
      %v840 = vadd.f32 %v797, %v817
      %v841 = vadd.f32 %v798, %v821
      %v842 = vadd.f32 %v799, %v817
      %v843 = vadd.f32 %v800, %v821
      %v844 = vadd.f32 %v801, %v817
      %v845 = vadd.f32 %v802, %v821
      %v846 = vadd.f32 %v803, %v817
      %v847 = vadd.f32 %v804, %v821
      %v848 = vadd.f32 %v805, %v817
      %v849 = vadd.f32 %v806, %v821
      %v850 = vadd.f32 %v807, %v817
      %v851 = vadd.f32 %v808, %v821
      %v852 = vadd.f32 %v809, %v817
      %v853 = vadd.f32 %v810, %v821
      %v854 = vadd.f32 %v811, %v817
      %v855 = vadd.f32 %v812, %v821
      %v856 = vpack.c.bf16 %v826, %v824
      %v857 = vpack.c.bf16 %v827, %v825
      %v858 = vpack.c.bf16 %v830, %v828
      %v859 = vpack.c.bf16 %v831, %v829
      %v860 = vpack.c.bf16 %v834, %v832
      %v861 = vpack.c.bf16 %v835, %v833
      %v862 = vpack.c.bf16 %v838, %v836
      %v863 = vpack.c.bf16 %v839, %v837
      %v864 = vpack.c.bf16 %v842, %v840
      %v865 = vpack.c.bf16 %v843, %v841
      %v866 = vpack.c.bf16 %v846, %v844
      %v867 = vpack.c.bf16 %v847, %v845
      %v868 = vpack.c.bf16 %v850, %v848
      %v869 = vpack.c.bf16 %v851, %v849
      %v870 = vpack.c.bf16 %v854, %v852
      %v871 = vpack.c.bf16 %v855, %v853
      %v872 = vld [vmem:[%s1] sm:$0xff]
      %v873 = vld [vmem:[%s1 + $0x8] sm:$0xff]
      %v874 = vld [vmem:[%s1 + $0x10] sm:$0xf]
      %v875 = vld [vmem:[%s1 + $0x14] sm:$0xff]
      %v876 = vld [vmem:[%s1 + $0x1c] sm:$0xff]
      %v877 = vld [vmem:[%s1 + $0x24] sm:$0xf]
      %v878 = vld [vmem:[%s1 + $0x28] sm:$0xff]
      %v879 = vld [vmem:[%s1 + $0x30] sm:$0xff]
      %v880 = vld [vmem:[%s1 + $0x38] sm:$0xf]
      %v881 = vld [vmem:[%s1 + $0x3c] sm:$0xff]
      %v882 = vld [vmem:[%s1 + $0x44] sm:$0xff]
      %v883 = vld [vmem:[%s1 + $0x4c] sm:$0xf]
      %v884 = vld [vmem:[%s1 + $0x50] sm:$0xff]
      %v885 = vld [vmem:[%s1 + $0x58] sm:$0xff]
      %v886 = vld [vmem:[%s1 + $0x60] sm:$0xf]
      %v887 = vld [vmem:[%s1 + $0x64] sm:$0xff]
      %v888 = vld [vmem:[%s1 + $0x6c] sm:$0xff]
      %v889 = vld [vmem:[%s1 + $0x74] sm:$0xf]
      %v890 = vld [vmem:[%s1 + $0x78] sm:$0xff]
      %v891 = vld [vmem:[%s1 + $0x80] sm:$0xff]
      %v892 = vld [vmem:[%s1 + $0x88] sm:$0xf]
      %v893 = vld [vmem:[%s1 + $0x8c] sm:$0xff]
      %v894 = vld [vmem:[%s1 + $0x94] sm:$0xff]
      %v895 = vld [vmem:[%s1 + $0x9c] sm:$0xf]
      %v896 = vld [vmem:[%s1 + $0xa0] sm:$0xff]
      %v897 = vld [vmem:[%s1 + $0xa8] sm:$0xff]
      %v898 = vld [vmem:[%s1 + $0xb0] sm:$0xf]
      %v899 = vld [vmem:[%s1 + $0xb4] sm:$0xff]
      %v900 = vld [vmem:[%s1 + $0xbc] sm:$0xff]
      %v901 = vld [vmem:[%s1 + $0xc4] sm:$0xf]
      %v902 = vld [vmem:[%s1 + $0xc8] sm:$0xff]
      %v903 = vld [vmem:[%s1 + $0xd0] sm:$0xff]
      %v904 = vld [vmem:[%s1 + $0xd8] sm:$0xf]
      %v905 = vld [vmem:[%s1 + $0xdc] sm:$0xff]
      %v906 = vld [vmem:[%s1 + $0xe4] sm:$0xff]
      %v907 = vld [vmem:[%s1 + $0xec] sm:$0xf]
      %v908 = vld [vmem:[%s1 + $0xf0] sm:$0xff]
      %v909 = vld [vmem:[%s1 + $0xf8] sm:$0xff]
      %v910 = vld [vmem:[%s1 + $0x100] sm:$0xf]
      %v911 = vld [vmem:[%s1 + $0x104] sm:$0xff]
      %v912 = vld [vmem:[%s1 + $0x10c] sm:$0xff]
      %v913 = vld [vmem:[%s1 + $0x114] sm:$0xf]
      %v914 = vld [vmem:[%s1 + $0x118] sm:$0xff]
      %v915 = vld [vmem:[%s1 + $0x120] sm:$0xff]
      %v916 = vld [vmem:[%s1 + $0x128] sm:$0xf]
      %v917 = vld [vmem:[%s1 + $0x12c] sm:$0xff]
      %v918 = vld [vmem:[%s1 + $0x134] sm:$0xff]
      %v919 = vld [vmem:[%s1 + $0x13c] sm:$0xf]
      %v920 = vld [vmem:[%s1 + $0x140] sm:$0xff]
      %v921 = vld [vmem:[%s1 + $0x148] sm:$0xff]
      %v922 = vld [vmem:[%s1 + $0x150] sm:$0xf]
      %v923 = vld [vmem:[%s1 + $0x154] sm:$0xff]
      %v924 = vld [vmem:[%s1 + $0x15c] sm:$0xff]
      %v925 = vld [vmem:[%s1 + $0x164] sm:$0xf]
      %v926 = vld [vmem:[%s1 + $0x168] sm:$0xff]
      %v927 = vld [vmem:[%s1 + $0x170] sm:$0xff]
      %v928 = vld [vmem:[%s1 + $0x178] sm:$0xf]
      %v929 = vld [vmem:[%s1 + $0x17c] sm:$0xff]
      %v930 = vld [vmem:[%s1 + $0x184] sm:$0xff]
      %v931 = vld [vmem:[%s1 + $0x18c] sm:$0xf]
      %v932 = vld [vmem:[%s1 + $0x190] sm:$0xff]
      %v933 = vld [vmem:[%s1 + $0x198] sm:$0xff]
      %v934 = vld [vmem:[%s1 + $0x1a0] sm:$0xf]
      %v935 = vld [vmem:[%s1 + $0x1a4] sm:$0xff]
      %v936 = vld [vmem:[%s1 + $0x1ac] sm:$0xff]
      %v937 = vld [vmem:[%s1 + $0x1b4] sm:$0xf]
      %v938 = vld [vmem:[%s1 + $0x1b8] sm:$0xff]
      %v939 = vld [vmem:[%s1 + $0x1c0] sm:$0xff]
      %v940 = vld [vmem:[%s1 + $0x1c8] sm:$0xf]
      %v941 = vld [vmem:[%s1 + $0x1cc] sm:$0xff]
      %v942 = vld [vmem:[%s1 + $0x1d4] sm:$0xff]
      %v943 = vld [vmem:[%s1 + $0x1dc] sm:$0xf]
      %v1016 = vunpack.c.l.b16 %v872
      %v1017 = vunpack.c.h.b16 %v872
      %v1018 = vunpack.c.l.b16 %v873
      %v1019 = vunpack.c.h.b16 %v873
      %v1020 = vunpack.c.l.b16 %v874
      %v1021 = vunpack.c.l.b16 %v875
      %v1022 = vunpack.c.h.b16 %v875
      %v1023 = vunpack.c.l.b16 %v876
      %v1024 = vunpack.c.h.b16 %v876
      %v1025 = vunpack.c.l.b16 %v877
      %v1026 = vunpack.c.l.b16 %v878
      %v1027 = vunpack.c.h.b16 %v878
      %v1028 = vunpack.c.l.b16 %v879
      %v1029 = vunpack.c.h.b16 %v879
      %v1030 = vunpack.c.l.b16 %v880
      %v1031 = vunpack.c.l.b16 %v881
      %v1032 = vunpack.c.h.b16 %v881
      %v1033 = vunpack.c.l.b16 %v882
      %v1034 = vunpack.c.h.b16 %v882
      %v1035 = vunpack.c.l.b16 %v883
      %v1036 = vunpack.c.l.b16 %v884
      %v1037 = vunpack.c.h.b16 %v884
      %v1038 = vunpack.c.l.b16 %v885
      %v1039 = vunpack.c.h.b16 %v885
      %v1040 = vunpack.c.l.b16 %v886
      %v1041 = vunpack.c.l.b16 %v887
      %v1042 = vunpack.c.h.b16 %v887
      %v1043 = vunpack.c.l.b16 %v888
      %v1044 = vunpack.c.h.b16 %v888
      %v1045 = vunpack.c.l.b16 %v889
      %v1046 = vunpack.c.l.b16 %v890
      %v1047 = vunpack.c.h.b16 %v890
      %v1048 = vunpack.c.l.b16 %v891
      %v1049 = vunpack.c.h.b16 %v891
      %v1050 = vunpack.c.l.b16 %v892
      %v1051 = vunpack.c.l.b16 %v893
      %v1052 = vunpack.c.h.b16 %v893
      %v1053 = vunpack.c.l.b16 %v894
      %v1054 = vunpack.c.h.b16 %v894
      %v1055 = vunpack.c.l.b16 %v895
      %v1056 = vunpack.c.l.b16 %v896
      %v1057 = vunpack.c.h.b16 %v896
      %v1058 = vunpack.c.l.b16 %v897
      %v1059 = vunpack.c.h.b16 %v897
      %v1060 = vunpack.c.l.b16 %v898
      %v1061 = vunpack.c.l.b16 %v899
      %v1062 = vunpack.c.h.b16 %v899
      %v1063 = vunpack.c.l.b16 %v900
      %v1064 = vunpack.c.h.b16 %v900
      %v1065 = vunpack.c.l.b16 %v901
      %v1066 = vunpack.c.l.b16 %v902
      %v1067 = vunpack.c.h.b16 %v902
      %v1068 = vunpack.c.l.b16 %v903
      %v1069 = vunpack.c.h.b16 %v903
      %v1070 = vunpack.c.l.b16 %v904
      %v1071 = vunpack.c.l.b16 %v905
      %v1072 = vunpack.c.h.b16 %v905
      %v1073 = vunpack.c.l.b16 %v906
      %v1074 = vunpack.c.h.b16 %v906
      %v1075 = vunpack.c.l.b16 %v907
      %v1076 = vunpack.c.l.b16 %v908
      %v1077 = vunpack.c.h.b16 %v908
      %v1078 = vunpack.c.l.b16 %v909
      %v1079 = vunpack.c.h.b16 %v909
      %v1080 = vunpack.c.l.b16 %v910
      %v1081 = vunpack.c.l.b16 %v911
      %v1082 = vunpack.c.h.b16 %v911
      %v1083 = vunpack.c.l.b16 %v912
      %v1084 = vunpack.c.h.b16 %v912
      %v1085 = vunpack.c.l.b16 %v913
      %v1086 = vunpack.c.l.b16 %v914
      %v1087 = vunpack.c.h.b16 %v914
      %v1088 = vunpack.c.l.b16 %v915
      %v1089 = vunpack.c.h.b16 %v915
      %v1090 = vunpack.c.l.b16 %v916
      %v1091 = vunpack.c.l.b16 %v917
      %v1092 = vunpack.c.h.b16 %v917
      %v1093 = vunpack.c.l.b16 %v918
      %v1094 = vunpack.c.h.b16 %v918
      %v1095 = vunpack.c.l.b16 %v919
      %v1096 = vunpack.c.l.b16 %v920
      %v1097 = vunpack.c.h.b16 %v920
      %v1098 = vunpack.c.l.b16 %v921
      %v1099 = vunpack.c.h.b16 %v921
      %v1100 = vunpack.c.l.b16 %v922
      %v1101 = vunpack.c.l.b16 %v923
      %v1102 = vunpack.c.h.b16 %v923
      %v1103 = vunpack.c.l.b16 %v924
      %v1104 = vunpack.c.h.b16 %v924
      %v1105 = vunpack.c.l.b16 %v925
      %v1106 = vunpack.c.l.b16 %v926
      %v1107 = vunpack.c.h.b16 %v926
      %v1108 = vunpack.c.l.b16 %v927
      %v1109 = vunpack.c.h.b16 %v927
      %v1110 = vunpack.c.l.b16 %v928
      %v1111 = vunpack.c.l.b16 %v929
      %v1112 = vunpack.c.h.b16 %v929
      %v1113 = vunpack.c.l.b16 %v930
      %v1114 = vunpack.c.h.b16 %v930
      %v1115 = vunpack.c.l.b16 %v931
      %v1116 = vunpack.c.l.b16 %v932
      %v1117 = vunpack.c.h.b16 %v932
      %v1118 = vunpack.c.l.b16 %v933
      %v1119 = vunpack.c.h.b16 %v933
      %v1120 = vunpack.c.l.b16 %v934
      %v1121 = vunpack.c.l.b16 %v935
      %v1122 = vunpack.c.h.b16 %v935
      %v1123 = vunpack.c.l.b16 %v936
      %v1124 = vunpack.c.h.b16 %v936
      %v1125 = vunpack.c.l.b16 %v937
      %v1126 = vunpack.c.l.b16 %v938
      %v1127 = vunpack.c.h.b16 %v938
      %v1128 = vunpack.c.l.b16 %v939
      %v1129 = vunpack.c.h.b16 %v939
      %v1130 = vunpack.c.l.b16 %v940
      %v1131 = vunpack.c.l.b16 %v941
      %v1132 = vunpack.c.h.b16 %v941
      %v1133 = vunpack.c.l.b16 %v942
      %v1134 = vunpack.c.h.b16 %v942
      %v1135 = vunpack.c.l.b16 %v943
      %v1136 = vpack.c.b16 %v1021, %v1016
      %v1137 = vpack.c.b16 %v1022, %v1017
      %v1138 = vpack.c.b16 %v1023, %v1018
      %v1139 = vpack.c.b16 %v1024, %v1019
      %v1140 = vpack.c.b16 %v1025, %v1020
      %v1141 = vpack.c.b16 %v1031, %v1026
      %v1142 = vpack.c.b16 %v1032, %v1027
      %v1143 = vpack.c.b16 %v1033, %v1028
      %v1144 = vpack.c.b16 %v1034, %v1029
      %v1145 = vpack.c.b16 %v1035, %v1030
      %v1146 = vpack.c.b16 %v1041, %v1036
      %v1147 = vpack.c.b16 %v1042, %v1037
      %v1148 = vpack.c.b16 %v1043, %v1038
      %v1149 = vpack.c.b16 %v1044, %v1039
      %v1150 = vpack.c.b16 %v1045, %v1040
      %v1151 = vpack.c.b16 %v1051, %v1046
      %v1152 = vpack.c.b16 %v1052, %v1047
      %v1153 = vpack.c.b16 %v1053, %v1048
      %v1154 = vpack.c.b16 %v1054, %v1049
      %v1155 = vpack.c.b16 %v1055, %v1050
      %v1156 = vpack.c.b16 %v1061, %v1056
      %v1157 = vpack.c.b16 %v1062, %v1057
      %v1158 = vpack.c.b16 %v1063, %v1058
      %v1159 = vpack.c.b16 %v1064, %v1059
      %v1160 = vpack.c.b16 %v1065, %v1060
      %v1161 = vpack.c.b16 %v1071, %v1066
      %v1162 = vpack.c.b16 %v1072, %v1067
      %v1163 = vpack.c.b16 %v1073, %v1068
      %v1164 = vpack.c.b16 %v1074, %v1069
      %v1165 = vpack.c.b16 %v1075, %v1070
      %v1166 = vpack.c.b16 %v1081, %v1076
      %v1167 = vpack.c.b16 %v1082, %v1077
      %v1168 = vpack.c.b16 %v1083, %v1078
      %v1169 = vpack.c.b16 %v1084, %v1079
      %v1170 = vpack.c.b16 %v1085, %v1080
      %v1171 = vpack.c.b16 %v1091, %v1086
      %v1172 = vpack.c.b16 %v1092, %v1087
      %v1173 = vpack.c.b16 %v1093, %v1088
      %v1174 = vpack.c.b16 %v1094, %v1089
      %v1175 = vpack.c.b16 %v1095, %v1090
      %v1176 = vpack.c.b16 %v1101, %v1096
      %v1177 = vpack.c.b16 %v1102, %v1097
      %v1178 = vpack.c.b16 %v1103, %v1098
      %v1179 = vpack.c.b16 %v1104, %v1099
      %v1180 = vpack.c.b16 %v1105, %v1100
      %v1181 = vpack.c.b16 %v1111, %v1106
      %v1182 = vpack.c.b16 %v1112, %v1107
      %v1183 = vpack.c.b16 %v1113, %v1108
      %v1184 = vpack.c.b16 %v1114, %v1109
      %v1185 = vpack.c.b16 %v1115, %v1110
      %v1186 = vpack.c.b16 %v1121, %v1116
      %v1187 = vpack.c.b16 %v1122, %v1117
      %v1188 = vpack.c.b16 %v1123, %v1118
      %v1189 = vpack.c.b16 %v1124, %v1119
      %v1190 = vpack.c.b16 %v1125, %v1120
      %v1191 = vpack.c.b16 %v1131, %v1126
      %v1192 = vpack.c.b16 %v1132, %v1127
      %v1193 = vpack.c.b16 %v1133, %v1128
      %v1194 = vpack.c.b16 %v1134, %v1129
      %v1195 = vpack.c.b16 %v1135, %v1130
      %v1257 = vsel %vm449, %v857, 0
      %v1260 = vsel %vm449, %v859, 0
      %v1263 = vsel %vm449, %v861, 0
      %v1266 = vsel %vm449, %v863, 0
      %v1269 = vsel %vm449, %v865, 0
      %v1272 = vsel %vm449, %v867, 0
      %v1275 = vsel %vm449, %v869, 0
      %v1278 = vsel %vm449, %v871, 0
      %1280 = vmatprep.subr.bf16.mxu0 %v1137
      %1281 = vmatpush1.bf16.msra.mxu0 %v1136
      %1282 = vmatprep.subr.bf16.mxu0 %v1142
      %1283 = vmatpush1.bf16.msra.mxu0 %v1141
      %1284 = vmatprep.subr.bf16.mxu0 %v1147
      %1285 = vmatpush1.bf16.msra.mxu0 %v1146
      %1286 = vmatprep.subr.bf16.mxu0 %v1152
      %1287 = vmatpush1.bf16.msra.mxu0 %v1151
      %1288 = vmatprep.subr.bf16.mxu0 %v1157
      %1289 = vmatpush1.bf16.msra.mxu0 %v1156
      %1290 = vmatprep.subr.bf16.mxu0 %v1162
      %1291 = vmatpush1.bf16.msra.mxu0 %v1161
      %1292 = vmatprep.subr.bf16.mxu0 %v1167
      %1293 = vmatpush1.bf16.msra.mxu0 %v1166
      %1294 = vmatprep.subr.bf16.mxu0 %v1172
      %1295 = vmatpush1.bf16.msra.mxu0 %v1171
      %1296 = vmatprep.subr.bf16.mxu0 %v1177
      %1297 = vmatpush1.bf16.msra.mxu0 %v1176
      %1298 = vmatprep.subr.bf16.mxu0 %v1182
      %1299 = vmatpush1.bf16.msra.mxu0 %v1181
      %1300 = vmatprep.subr.bf16.mxu0 %v1187
      %1301 = vmatpush1.bf16.msra.mxu0 %v1186
      %1302 = vmatprep.subr.bf16.mxu0 %v1192
      %1303 = vmatpush1.bf16.msra.mxu0 %v1191
      %1304 = vmatprep.subr.bf16.mxu0 0
      %1305 = vmatpush1.bf16.msra.mxu0 0
      %1306 = vmatprep.subr.bf16.mxu0 0
      %1307 = vmatpush1.bf16.msra.mxu0 0
      %1308 = vmatprep.subr.bf16.mxu0 0
      %1309 = vmatpush1.bf16.msra.mxu0 0
      %1310 = vmatprep.subr.bf16.mxu0 0
      %1311 = vmatpush1.bf16.msra.mxu0 0
      %1312 = vmatprep.mubr.bf16.mxu0 %v1257
      %1313 = vmatmul.mubr.bf16.gmra.mrb[0].mxu0 %v856
      %v1314 = vpop.f32.mrb[0].mxu0
      %v1315 = vadd.f32 0.0, %v1314
      %v1316 = vpop.f32.mrb[0].mxu0
      %v1317 = vadd.f32 0.0, %v1316
      %v1318 = vpop.f32.mrb[0].mxu0
      %v1319 = vadd.f32 0.0, %v1318
      %v1320 = vpop.f32.mrb[0].mxu0
      %v1321 = vadd.f32 0.0, %v1320
      %1322 = vmatprep.mubr.bf16.mxu0 %v1260
      %1323 = vmatmul.mubr.bf16.gmra.mrb[0].mxu0 %v858
      %v1324 = vpop.f32.mrb[0].mxu0
      %v1325 = vadd.f32 0.0, %v1324
      %v1326 = vpop.f32.mrb[0].mxu0
      %v1327 = vadd.f32 0.0, %v1326
      %v1328 = vpop.f32.mrb[0].mxu0
      %v1329 = vadd.f32 0.0, %v1328
      %v1330 = vpop.f32.mrb[0].mxu0
      %v1331 = vadd.f32 0.0, %v1330
      %1332 = vmatprep.mubr.bf16.mxu0 %v1263
      %1333 = vmatmul.mubr.bf16.gmra.mrb[0].mxu0 %v860
      %v1334 = vpop.f32.mrb[0].mxu0
      %v1335 = vadd.f32 0.0, %v1334
      %v1336 = vpop.f32.mrb[0].mxu0
      %v1337 = vadd.f32 0.0, %v1336
      %v1338 = vpop.f32.mrb[0].mxu0
      %v1339 = vadd.f32 0.0, %v1338
      %v1340 = vpop.f32.mrb[0].mxu0
      %v1341 = vadd.f32 0.0, %v1340
      %1342 = vmatprep.mubr.bf16.mxu0 %v1266
      %1343 = vmatmul.mubr.bf16.gmra.mrb[0].mxu0 %v862
      %v1344 = vpop.f32.mrb[0].mxu0
      %v1345 = vadd.f32 0.0, %v1344
      %v1346 = vpop.f32.mrb[0].mxu0
      %v1347 = vadd.f32 0.0, %v1346
      %v1348 = vpop.f32.mrb[0].mxu0
      %v1349 = vadd.f32 0.0, %v1348
      %v1350 = vpop.f32.mrb[0].mxu0
      %v1351 = vadd.f32 0.0, %v1350
      %1352 = vmatprep.mubr.bf16.mxu0 %v1269
      %1353 = vmatmul.mubr.bf16.gmra.mrb[0].mxu0 %v864
      %v1354 = vpop.f32.mrb[0].mxu0
      %v1355 = vadd.f32 0.0, %v1354
      %v1356 = vpop.f32.mrb[0].mxu0
      %v1357 = vadd.f32 0.0, %v1356
      %v1358 = vpop.f32.mrb[0].mxu0
      %v1359 = vadd.f32 0.0, %v1358
      %v1360 = vpop.f32.mrb[0].mxu0
      %v1361 = vadd.f32 0.0, %v1360
      %1362 = vmatprep.mubr.bf16.mxu0 %v1272
      %1363 = vmatmul.mubr.bf16.gmra.mrb[0].mxu0 %v866
      %v1364 = vpop.f32.mrb[0].mxu0
      %v1365 = vadd.f32 0.0, %v1364
      %v1366 = vpop.f32.mrb[0].mxu0
      %v1367 = vadd.f32 0.0, %v1366
      %v1368 = vpop.f32.mrb[0].mxu0
      %v1369 = vadd.f32 0.0, %v1368
      %v1370 = vpop.f32.mrb[0].mxu0
      %v1371 = vadd.f32 0.0, %v1370
      %1372 = vmatprep.mubr.bf16.mxu0 %v1275
      %1373 = vmatmul.mubr.bf16.gmra.mrb[0].mxu0 %v868
      %v1374 = vpop.f32.mrb[0].mxu0
      %v1375 = vadd.f32 0.0, %v1374
      %v1376 = vpop.f32.mrb[0].mxu0
      %v1377 = vadd.f32 0.0, %v1376
      %v1378 = vpop.f32.mrb[0].mxu0
      %v1379 = vadd.f32 0.0, %v1378
      %v1380 = vpop.f32.mrb[0].mxu0
      %v1381 = vadd.f32 0.0, %v1380
      %1382 = vmatprep.mubr.bf16.mxu0 %v1278
      %1383 = vmatmul.mubr.bf16.gmra.mrb[0].mxu0 %v870
      %v1384 = vpop.f32.mrb[0].mxu0
      %v1385 = vadd.f32 0.0, %v1384
      %v1386 = vpop.f32.mrb[0].mxu0
      %v1387 = vadd.f32 0.0, %v1386
      %v1388 = vpop.f32.mrb[0].mxu0
      %v1389 = vadd.f32 0.0, %v1388
      %v1390 = vpop.f32.mrb[0].mxu0
      %v1391 = vadd.f32 0.0, %v1390
      %1392 = vdwg.mxu0
      %1393 = vmatprep.subr.bf16.mxu0 %v1139
      %1394 = vmatpush1.bf16.msra.mxu0 %v1138
      %1395 = vmatprep.subr.bf16.mxu0 %v1144
      %1396 = vmatpush1.bf16.msra.mxu0 %v1143
      %1397 = vmatprep.subr.bf16.mxu0 %v1149
      %1398 = vmatpush1.bf16.msra.mxu0 %v1148
      %1399 = vmatprep.subr.bf16.mxu0 %v1154
      %1400 = vmatpush1.bf16.msra.mxu0 %v1153
      %1401 = vmatprep.subr.bf16.mxu0 %v1159
      %1402 = vmatpush1.bf16.msra.mxu0 %v1158
      %1403 = vmatprep.subr.bf16.mxu0 %v1164
      %1404 = vmatpush1.bf16.msra.mxu0 %v1163
      %1405 = vmatprep.subr.bf16.mxu0 %v1169
      %1406 = vmatpush1.bf16.msra.mxu0 %v1168
      %1407 = vmatprep.subr.bf16.mxu0 %v1174
      %1408 = vmatpush1.bf16.msra.mxu0 %v1173
      %1409 = vmatprep.subr.bf16.mxu0 %v1179
      %1410 = vmatpush1.bf16.msra.mxu0 %v1178
      %1411 = vmatprep.subr.bf16.mxu0 %v1184
      %1412 = vmatpush1.bf16.msra.mxu0 %v1183
      %1413 = vmatprep.subr.bf16.mxu0 %v1189
      %1414 = vmatpush1.bf16.msra.mxu0 %v1188
      %1415 = vmatprep.subr.bf16.mxu0 %v1194
      %1416 = vmatpush1.bf16.msra.mxu0 %v1193
      %1417 = vmatprep.subr.bf16.mxu0 0
      %1418 = vmatpush1.bf16.msra.mxu0 0
      %1419 = vmatprep.subr.bf16.mxu0 0
      %1420 = vmatpush1.bf16.msra.mxu0 0
      %1421 = vmatprep.subr.bf16.mxu0 0
      %1422 = vmatpush1.bf16.msra.mxu0 0
      %1423 = vmatprep.subr.bf16.mxu0 0
      %1424 = vmatpush1.bf16.msra.mxu0 0
      %1425 = vmatprep.mubr.bf16.mxu0 %v1257
      %1426 = vmatmul.mubr.bf16.gmra.mrb[0].mxu0 %v856
      %v1427 = vpop.f32.mrb[0].mxu0
      %v1428 = vadd.f32 0.0, %v1427
      %v1429 = vpop.f32.mrb[0].mxu0
      %v1430 = vadd.f32 0.0, %v1429
      %v1431 = vpop.f32.mrb[0].mxu0
      %v1432 = vadd.f32 0.0, %v1431
      %v1433 = vpop.f32.mrb[0].mxu0
      %v1434 = vadd.f32 0.0, %v1433
      %1435 = vmatprep.mubr.bf16.mxu0 %v1260
      %1436 = vmatmul.mubr.bf16.gmra.mrb[0].mxu0 %v858
      %v1437 = vpop.f32.mrb[0].mxu0
      %v1438 = vadd.f32 0.0, %v1437
      %v1439 = vpop.f32.mrb[0].mxu0
      %v1440 = vadd.f32 0.0, %v1439
      %v1441 = vpop.f32.mrb[0].mxu0
      %v1442 = vadd.f32 0.0, %v1441
      %v1443 = vpop.f32.mrb[0].mxu0
      %v1444 = vadd.f32 0.0, %v1443
      %1445 = vmatprep.mubr.bf16.mxu0 %v1263
      %1446 = vmatmul.mubr.bf16.gmra.mrb[0].mxu0 %v860
      %v1447 = vpop.f32.mrb[0].mxu0
      %v1448 = vadd.f32 0.0, %v1447
      %v1449 = vpop.f32.mrb[0].mxu0
      %v1450 = vadd.f32 0.0, %v1449
      %v1451 = vpop.f32.mrb[0].mxu0
      %v1452 = vadd.f32 0.0, %v1451
      %v1453 = vpop.f32.mrb[0].mxu0
      %v1454 = vadd.f32 0.0, %v1453
      %1455 = vmatprep.mubr.bf16.mxu0 %v1266
      %1456 = vmatmul.mubr.bf16.gmra.mrb[0].mxu0 %v862
      %v1457 = vpop.f32.mrb[0].mxu0
      %v1458 = vadd.f32 0.0, %v1457
      %v1459 = vpop.f32.mrb[0].mxu0
      %v1460 = vadd.f32 0.0, %v1459
      %v1461 = vpop.f32.mrb[0].mxu0
      %v1462 = vadd.f32 0.0, %v1461
      %v1463 = vpop.f32.mrb[0].mxu0
      %v1464 = vadd.f32 0.0, %v1463
      %1465 = vmatprep.mubr.bf16.mxu0 %v1269
      %1466 = vmatmul.mubr.bf16.gmra.mrb[0].mxu0 %v864
      %v1467 = vpop.f32.mrb[0].mxu0
      %v1468 = vadd.f32 0.0, %v1467
      %v1469 = vpop.f32.mrb[0].mxu0
      %v1470 = vadd.f32 0.0, %v1469
      %v1471 = vpop.f32.mrb[0].mxu0
      %v1472 = vadd.f32 0.0, %v1471
      %v1473 = vpop.f32.mrb[0].mxu0
      %v1474 = vadd.f32 0.0, %v1473
      %1475 = vmatprep.mubr.bf16.mxu0 %v1272
      %1476 = vmatmul.mubr.bf16.gmra.mrb[0].mxu0 %v866
      %v1477 = vpop.f32.mrb[0].mxu0
      %v1478 = vadd.f32 0.0, %v1477
      %v1479 = vpop.f32.mrb[0].mxu0
      %v1480 = vadd.f32 0.0, %v1479
      %v1481 = vpop.f32.mrb[0].mxu0
      %v1482 = vadd.f32 0.0, %v1481
      %v1483 = vpop.f32.mrb[0].mxu0
      %v1484 = vadd.f32 0.0, %v1483
      %1485 = vmatprep.mubr.bf16.mxu0 %v1275
      %1486 = vmatmul.mubr.bf16.gmra.mrb[0].mxu0 %v868
      %v1487 = vpop.f32.mrb[0].mxu0
      %v1488 = vadd.f32 0.0, %v1487
      %v1489 = vpop.f32.mrb[0].mxu0
      %v1490 = vadd.f32 0.0, %v1489
      %v1491 = vpop.f32.mrb[0].mxu0
      %v1492 = vadd.f32 0.0, %v1491
      %v1493 = vpop.f32.mrb[0].mxu0
      %v1494 = vadd.f32 0.0, %v1493
      %1495 = vmatprep.mubr.bf16.mxu0 %v1278
      %1496 = vmatmul.mubr.bf16.gmra.mrb[0].mxu0 %v870
      %v1497 = vpop.f32.mrb[0].mxu0
      %v1498 = vadd.f32 0.0, %v1497
      %v1499 = vpop.f32.mrb[0].mxu0
      %v1500 = vadd.f32 0.0, %v1499
      %v1501 = vpop.f32.mrb[0].mxu0
      %v1502 = vadd.f32 0.0, %v1501
      %v1503 = vpop.f32.mrb[0].mxu0
      %v1504 = vadd.f32 0.0, %v1503
      %1505 = vdwg.mxu0
      %1506 = vmatprep.subr.bf16.mxu0 0
      %1507 = vmatpush1.bf16.msra.mxu0 %v1140
      %1508 = vmatprep.subr.bf16.mxu0 0
      %1509 = vmatpush1.bf16.msra.mxu0 %v1145
      %1510 = vmatprep.subr.bf16.mxu0 0
      %1511 = vmatpush1.bf16.msra.mxu0 %v1150
      %1512 = vmatprep.subr.bf16.mxu0 0
      %1513 = vmatpush1.bf16.msra.mxu0 %v1155
      %1514 = vmatprep.subr.bf16.mxu0 0
      %1515 = vmatpush1.bf16.msra.mxu0 %v1160
      %1516 = vmatprep.subr.bf16.mxu0 0
      %1517 = vmatpush1.bf16.msra.mxu0 %v1165
      %1518 = vmatprep.subr.bf16.mxu0 0
      %1519 = vmatpush1.bf16.msra.mxu0 %v1170
      %1520 = vmatprep.subr.bf16.mxu0 0
      %1521 = vmatpush1.bf16.msra.mxu0 %v1175
      %1522 = vmatprep.subr.bf16.mxu0 0
      %1523 = vmatpush1.bf16.msra.mxu0 %v1180
      %1524 = vmatprep.subr.bf16.mxu0 0
      %1525 = vmatpush1.bf16.msra.mxu0 %v1185
      %1526 = vmatprep.subr.bf16.mxu0 0
      %1527 = vmatpush1.bf16.msra.mxu0 %v1190
      %1528 = vmatprep.subr.bf16.mxu0 0
      %1529 = vmatpush1.bf16.msra.mxu0 %v1195
      %1530 = vmatprep.subr.bf16.mxu0 0
      %1531 = vmatpush1.bf16.msra.mxu0 0
      %1532 = vmatprep.subr.bf16.mxu0 0
      %1533 = vmatpush1.bf16.msra.mxu0 0
      %1534 = vmatprep.subr.bf16.mxu0 0
      %1535 = vmatpush1.bf16.msra.mxu0 0
      %1536 = vmatprep.subr.bf16.mxu0 0
      %1537 = vmatpush1.bf16.msra.mxu0 0
      %1538 = vmatprep.mubr.bf16.mxu0 %v1257
      %1539 = vmatmul.mubr.bf16.gmra.mrb[0].mxu0 %v856
      %v1540 = vpop.f32.mrb[0].mxu0
      %v1541 = vadd.f32 0.0, %v1540
      %v1542 = vpop.f32.mrb[0].mxu0
      %v1543 = vpop.f32.mrb[0].mxu0
      %v1544 = vadd.f32 0.0, %v1543
      %v1545 = vpop.f32.mrb[0].mxu0
      %1546 = vmatprep.mubr.bf16.mxu0 %v1260
      %1547 = vmatmul.mubr.bf16.gmra.mrb[0].mxu0 %v858
      %v1548 = vpop.f32.mrb[0].mxu0
      %v1549 = vadd.f32 0.0, %v1548
      %v1550 = vpop.f32.mrb[0].mxu0
      %v1551 = vpop.f32.mrb[0].mxu0
      %v1552 = vadd.f32 0.0, %v1551
      %v1553 = vpop.f32.mrb[0].mxu0
      %1554 = vmatprep.mubr.bf16.mxu0 %v1263
      %1555 = vmatmul.mubr.bf16.gmra.mrb[0].mxu0 %v860
      %v1556 = vpop.f32.mrb[0].mxu0
      %v1557 = vadd.f32 0.0, %v1556
      %v1558 = vpop.f32.mrb[0].mxu0
      %v1559 = vpop.f32.mrb[0].mxu0
      %v1560 = vadd.f32 0.0, %v1559
      %v1561 = vpop.f32.mrb[0].mxu0
      %1562 = vmatprep.mubr.bf16.mxu0 %v1266
      %1563 = vmatmul.mubr.bf16.gmra.mrb[0].mxu0 %v862
      %v1564 = vpop.f32.mrb[0].mxu0
      %v1565 = vadd.f32 0.0, %v1564
      %v1566 = vpop.f32.mrb[0].mxu0
      %v1567 = vpop.f32.mrb[0].mxu0
      %v1568 = vadd.f32 0.0, %v1567
      %v1569 = vpop.f32.mrb[0].mxu0
      %1570 = vmatprep.mubr.bf16.mxu0 %v1269
      %1571 = vmatmul.mubr.bf16.gmra.mrb[0].mxu0 %v864
      %v1572 = vpop.f32.mrb[0].mxu0
      %v1573 = vadd.f32 0.0, %v1572
      %v1574 = vpop.f32.mrb[0].mxu0
      %v1575 = vpop.f32.mrb[0].mxu0
      %v1576 = vadd.f32 0.0, %v1575
      %v1577 = vpop.f32.mrb[0].mxu0
      %1578 = vmatprep.mubr.bf16.mxu0 %v1272
      %1579 = vmatmul.mubr.bf16.gmra.mrb[0].mxu0 %v866
      %v1580 = vpop.f32.mrb[0].mxu0
      %v1581 = vadd.f32 0.0, %v1580
      %v1582 = vpop.f32.mrb[0].mxu0
      %v1583 = vpop.f32.mrb[0].mxu0
      %v1584 = vadd.f32 0.0, %v1583
      %v1585 = vpop.f32.mrb[0].mxu0
      %1586 = vmatprep.mubr.bf16.mxu0 %v1275
      %1587 = vmatmul.mubr.bf16.gmra.mrb[0].mxu0 %v868
      %v1588 = vpop.f32.mrb[0].mxu0
      %v1589 = vadd.f32 0.0, %v1588
      %v1590 = vpop.f32.mrb[0].mxu0
      %v1591 = vpop.f32.mrb[0].mxu0
      %v1592 = vadd.f32 0.0, %v1591
      %v1593 = vpop.f32.mrb[0].mxu0
      %1594 = vmatprep.mubr.bf16.mxu0 %v1278
      %1595 = vmatmul.mubr.bf16.gmra.mrb[0].mxu0 %v870
      %v1596 = vpop.f32.mrb[0].mxu0
      %v1597 = vadd.f32 0.0, %v1596
      %v1598 = vpop.f32.mrb[0].mxu0
      %v1599 = vpop.f32.mrb[0].mxu0
      %v1600 = vadd.f32 0.0, %v1599
      %v1601 = vpop.f32.mrb[0].mxu0
      %1602 = vdwg.mxu0
      %v1603 = vpack.c.bf16 %v1319, %v1315
      %v1604 = vpack.c.bf16 %v1321, %v1317
      %v1605 = vpack.c.bf16 %v1432, %v1428
      %v1606 = vpack.c.bf16 %v1434, %v1430
      %v1607 = vpack.c.bf16 %v1544, %v1541
      %v1608 = vpack.c.bf16 %v1329, %v1325
      %v1609 = vpack.c.bf16 %v1331, %v1327
      %v1610 = vpack.c.bf16 %v1442, %v1438
      %v1611 = vpack.c.bf16 %v1444, %v1440
      %v1612 = vpack.c.bf16 %v1552, %v1549
      %v1613 = vpack.c.bf16 %v1339, %v1335
      %v1614 = vpack.c.bf16 %v1341, %v1337
      %v1615 = vpack.c.bf16 %v1452, %v1448
      %v1616 = vpack.c.bf16 %v1454, %v1450
      %v1617 = vpack.c.bf16 %v1560, %v1557
      %v1618 = vpack.c.bf16 %v1349, %v1345
      %v1619 = vpack.c.bf16 %v1351, %v1347
      %v1620 = vpack.c.bf16 %v1462, %v1458
      %v1621 = vpack.c.bf16 %v1464, %v1460
      %v1622 = vpack.c.bf16 %v1568, %v1565
      %v1623 = vpack.c.bf16 %v1359, %v1355
      %v1624 = vpack.c.bf16 %v1361, %v1357
      %v1625 = vpack.c.bf16 %v1472, %v1468
      %v1626 = vpack.c.bf16 %v1474, %v1470
      %v1627 = vpack.c.bf16 %v1576, %v1573
      %v1628 = vpack.c.bf16 %v1369, %v1365
      %v1629 = vpack.c.bf16 %v1371, %v1367
      %v1630 = vpack.c.bf16 %v1482, %v1478
      %v1631 = vpack.c.bf16 %v1484, %v1480
      %v1632 = vpack.c.bf16 %v1584, %v1581
      %v1633 = vpack.c.bf16 %v1379, %v1375
      %v1634 = vpack.c.bf16 %v1381, %v1377
      %v1635 = vpack.c.bf16 %v1492, %v1488
      %v1636 = vpack.c.bf16 %v1494, %v1490
      %v1637 = vpack.c.bf16 %v1592, %v1589
      %v1638 = vpack.c.bf16 %v1389, %v1385
      %v1639 = vpack.c.bf16 %v1391, %v1387
      %v1640 = vpack.c.bf16 %v1502, %v1498
      %v1641 = vpack.c.bf16 %v1504, %v1500
      %v1642 = vpack.c.bf16 %v1600, %v1597
      %1643 = vst [vmem:[#allocation2] sm:$0xff] %v1603
      %1644 = vst [vmem:[#allocation2 + $0x8] sm:$0xff] %v1604
      %1645 = vst [vmem:[#allocation2 + $0x10] sm:$0xff] %v1605
      %1646 = vst [vmem:[#allocation2 + $0x18] sm:$0xff] %v1606
      %1647 = vst.msk [vmem:[#allocation2 + $0x20] sm:$0xff] %vm449, %v1607
      %1648 = vst [vmem:[#allocation2 + $0x28] sm:$0xff] %v1608
      %1649 = vst [vmem:[#allocation2 + $0x30] sm:$0xff] %v1609
      %1650 = vst [vmem:[#allocation2 + $0x38] sm:$0xff] %v1610
      %1651 = vst [vmem:[#allocation2 + $0x40] sm:$0xff] %v1611
      %1652 = vst.msk [vmem:[#allocation2 + $0x48] sm:$0xff] %vm449, %v1612
      %1653 = vst [vmem:[#allocation2 + $0x50] sm:$0xff] %v1613
      %1654 = vst [vmem:[#allocation2 + $0x58] sm:$0xff] %v1614
      %1655 = vst [vmem:[#allocation2 + $0x60] sm:$0xff] %v1615
      %1656 = vst [vmem:[#allocation2 + $0x68] sm:$0xff] %v1616
      %1657 = vst.msk [vmem:[#allocation2 + $0x70] sm:$0xff] %vm449, %v1617
      %1658 = vst [vmem:[#allocation2 + $0x78] sm:$0xff] %v1618
      %1659 = vst [vmem:[#allocation2 + $0x80] sm:$0xff] %v1619
      %1660 = vst [vmem:[#allocation2 + $0x88] sm:$0xff] %v1620
      %1661 = vst [vmem:[#allocation2 + $0x90] sm:$0xff] %v1621
      %1662 = vst.msk [vmem:[#allocation2 + $0x98] sm:$0xff] %vm449, %v1622
      %1663 = vst [vmem:[#allocation2 + $0xa0] sm:$0xff] %v1623
      %1664 = vst [vmem:[#allocation2 + $0xa8] sm:$0xff] %v1624
      %1665 = vst [vmem:[#allocation2 + $0xb0] sm:$0xff] %v1625
      %1666 = vst [vmem:[#allocation2 + $0xb8] sm:$0xff] %v1626
      %1667 = vst.msk [vmem:[#allocation2 + $0xc0] sm:$0xff] %vm449, %v1627
      %1668 = vst [vmem:[#allocation2 + $0xc8] sm:$0xff] %v1628
      %1669 = vst [vmem:[#allocation2 + $0xd0] sm:$0xff] %v1629
      %1670 = vst [vmem:[#allocation2 + $0xd8] sm:$0xff] %v1630
      %1671 = vst [vmem:[#allocation2 + $0xe0] sm:$0xff] %v1631
      %1672 = vst.msk [vmem:[#allocation2 + $0xe8] sm:$0xff] %vm449, %v1632
      %1673 = vst [vmem:[#allocation2 + $0xf0] sm:$0xff] %v1633
      %1674 = vst [vmem:[#allocation2 + $0xf8] sm:$0xff] %v1634
      %1675 = vst [vmem:[#allocation2 + $0x100] sm:$0xff] %v1635
      %1676 = vst [vmem:[#allocation2 + $0x108] sm:$0xff] %v1636
      %1677 = vst.msk [vmem:[#allocation2 + $0x110] sm:$0xff] %vm449, %v1637
      %1678 = vst [vmem:[#allocation2 + $0x118] sm:$0xff] %v1638
      %1679 = vst [vmem:[#allocation2 + $0x120] sm:$0xff] %v1639
      %1680 = vst [vmem:[#allocation2 + $0x128] sm:$0xff] %v1640
      %1681 = vst [vmem:[#allocation2 + $0x130] sm:$0xff] %v1641
      %1682 = vst.msk [vmem:[#allocation2 + $0x138] sm:$0xff] %vm449, %v1642
      %v1683 = vlaneseq
      %v1684 = vshrl.u32 %v1683, 7
      %v1685 = vadd.s32 %v1684, 8
      %v1686 = vadd.s32 %v1684, 16
      %v1687 = vadd.s32 %v1684, 24
      %v1688 = vadd.s32 %v1684, 32
      %v1689 = vadd.s32 %v1684, 40
      %v1690 = vadd.s32 %v1684, 48
      %v1691 = vadd.s32 %v1684, 56
      %v1692 = vadd.s32 %v1684, 64
      %v1693 = vadd.s32 %v1684, 72
      %v1694 = vadd.s32 %v1684, 80
      %v1695 = vadd.s32 %v1684, 88
      %v1696 = vadd.s32 %v1684, 96
      %v1697 = vadd.s32 %v1684, 104
      %v1698 = vadd.s32 %v1684, 112
      %v1699 = vadd.s32 %v1684, 120
      %v1700 = vlaneseq
      %v1701 = vand.u32 %v1700, 127
      %vm1702 = vcmp.le.s32.totalorder %v1701, %v1684
      %vm1703 = vcmp.le.s32.totalorder %v1701, %v1685
      %vm1704 = vcmp.le.s32.totalorder %v1701, %v1686
      %vm1705 = vcmp.le.s32.totalorder %v1701, %v1687
      %vm1706 = vcmp.le.s32.totalorder %v1701, %v1688
      %vm1707 = vcmp.le.s32.totalorder %v1701, %v1689
      %vm1708 = vcmp.le.s32.totalorder %v1701, %v1690
      %vm1709 = vcmp.le.s32.totalorder %v1701, %v1691
      %vm1710 = vcmp.le.s32.totalorder %v1701, %v1692
      %vm1711 = vcmp.le.s32.totalorder %v1701, %v1693
      %vm1712 = vcmp.le.s32.totalorder %v1701, %v1694
      %vm1713 = vcmp.le.s32.totalorder %v1701, %v1695
      %vm1714 = vcmp.le.s32.totalorder %v1701, %v1696
      %vm1715 = vcmp.le.s32.totalorder %v1701, %v1697
      %vm1716 = vcmp.le.s32.totalorder %v1701, %v1698
      %vm1717 = vcmp.le.s32.totalorder %v1701, %v1699
      %v1718 = vsel %vm1702, 0.0, -1e+30
      %v1719 = vsel %vm1703, 0.0, -1e+30
      %v1720 = vsel %vm1704, 0.0, -1e+30
      %v1721 = vsel %vm1705, 0.0, -1e+30
      %v1722 = vsel %vm1706, 0.0, -1e+30
      %v1723 = vsel %vm1707, 0.0, -1e+30
      %v1724 = vsel %vm1708, 0.0, -1e+30
      %v1725 = vsel %vm1709, 0.0, -1e+30
      %v1726 = vsel %vm1710, 0.0, -1e+30
      %v1727 = vsel %vm1711, 0.0, -1e+30
      %v1728 = vsel %vm1712, 0.0, -1e+30
      %v1729 = vsel %vm1713, 0.0, -1e+30
      %v1730 = vsel %vm1714, 0.0, -1e+30
      %v1731 = vsel %vm1715, 0.0, -1e+30
      %v1732 = vsel %vm1716, 0.0, -1e+30
      %v1733 = vsel %vm1717, 0.0, -1e+30
      %v1734 = vld [vmem:[#allocation2] sm:$0xff]
      %v1735 = vld [vmem:[#allocation2 + $0x28] sm:$0xff]
      %v1736 = vld [vmem:[#allocation2 + $0x50] sm:$0xff]
      %v1737 = vld [vmem:[#allocation2 + $0x78] sm:$0xff]
      %v1738 = vld [vmem:[#allocation2 + $0xa0] sm:$0xff]
      %v1739 = vld [vmem:[#allocation2 + $0xc8] sm:$0xff]
      %v1740 = vld [vmem:[#allocation2 + $0xf0] sm:$0xff]
      %v1741 = vld [vmem:[#allocation2 + $0x118] sm:$0xff]
      %v1742 = vld [vmem:[#allocation2 + $0x8] sm:$0xff]
      %v1743 = vld [vmem:[#allocation2 + $0x30] sm:$0xff]
      %v1744 = vld [vmem:[#allocation2 + $0x58] sm:$0xff]
      %v1745 = vld [vmem:[#allocation2 + $0x80] sm:$0xff]
      %v1746 = vld [vmem:[#allocation2 + $0xa8] sm:$0xff]
      %v1747 = vld [vmem:[#allocation2 + $0xd0] sm:$0xff]
      %v1748 = vld [vmem:[#allocation2 + $0xf8] sm:$0xff]
      %v1749 = vld [vmem:[#allocation2 + $0x120] sm:$0xff]
      %v1750 = vld [vmem:[#allocation2 + $0x18] sm:$0xff]
      %v1751 = vld [vmem:[#allocation2 + $0x40] sm:$0xff]
      %v1752 = vld [vmem:[#allocation2 + $0x68] sm:$0xff]
      %v1753 = vld [vmem:[#allocation2 + $0x90] sm:$0xff]
      %v1754 = vld [vmem:[#allocation2 + $0xb8] sm:$0xff]
      %v1755 = vld [vmem:[#allocation2 + $0xe0] sm:$0xff]
      %v1756 = vld [vmem:[#allocation2 + $0x108] sm:$0xff]
      %v1757 = vld [vmem:[#allocation2 + $0x130] sm:$0xff]
      %1766 = vrot.lane.b32.xlu0 %v1742, 64
      %v1767 = vpop.permute.xlu0 %1766
      %1768 = vrot.lane.b32.xlu0 %v1743, 64
      %v1769 = vpop.permute.xlu0 %1768
      %1770 = vrot.lane.b32.xlu0 %v1744, 64
      %v1771 = vpop.permute.xlu0 %1770
      %1772 = vrot.lane.b32.xlu0 %v1745, 64
      %v1773 = vpop.permute.xlu0 %1772
      %1774 = vrot.lane.b32.xlu0 %v1746, 64
      %v1775 = vpop.permute.xlu0 %1774
      %1776 = vrot.lane.b32.xlu0 %v1747, 64
      %v1777 = vpop.permute.xlu0 %1776
      %1778 = vrot.lane.b32.xlu0 %v1748, 64
      %v1779 = vpop.permute.xlu0 %1778
      %1780 = vrot.lane.b32.xlu0 %v1749, 64
      %v1781 = vpop.permute.xlu0 %1780
      %vm1782 = vcmask 261120
      %v1784 = vsel %vm1782, %v1734, 0
      %v1787 = vsel %vm1782, %v1735, 0
      %v1790 = vsel %vm1782, %v1736, 0
      %v1793 = vsel %vm1782, %v1737, 0
      %v1796 = vsel %vm1782, %v1738, 0
      %v1799 = vsel %vm1782, %v1739, 0
      %v1802 = vsel %vm1782, %v1740, 0
      %v1805 = vsel %vm1782, %v1741, 0
      %v1808 = vsel %vm1782, %v1767, 0
      %v1811 = vsel %vm1782, %v1769, 0
      %v1814 = vsel %vm1782, %v1771, 0
      %v1817 = vsel %vm1782, %v1773, 0
      %v1820 = vsel %vm1782, %v1775, 0
      %v1823 = vsel %vm1782, %v1777, 0
      %v1826 = vsel %vm1782, %v1779, 0
      %v1829 = vsel %vm1782, %v1781, 0
      %1831 = vmatprep.subr.bf16.mxu0 0
      %1832 = vmatpush1.bf16.xpose.msra.mxu0 %v1808
      %1833 = vmatprep.subr.bf16.mxu0 0
      %1834 = vmatpush1.bf16.xpose.msra.mxu0 %v1811
      %1835 = vmatprep.subr.bf16.mxu0 0
      %1836 = vmatpush1.bf16.xpose.msra.mxu0 %v1814
      %1837 = vmatprep.subr.bf16.mxu0 0
      %1838 = vmatpush1.bf16.xpose.msra.mxu0 %v1817
      %1839 = vmatprep.subr.bf16.mxu0 0
      %1840 = vmatpush1.bf16.xpose.msra.mxu0 %v1820
      %1841 = vmatprep.subr.bf16.mxu0 0
      %1842 = vmatpush1.bf16.xpose.msra.mxu0 %v1823
      %1843 = vmatprep.subr.bf16.mxu0 0
      %1844 = vmatpush1.bf16.xpose.msra.mxu0 %v1826
      %1845 = vmatprep.subr.bf16.mxu0 0
      %1846 = vmatpush1.bf16.xpose.msra.mxu0 %v1829
      %1847 = vmatprep.subr.bf16.mxu0 0
      %1848 = vmatpush1.bf16.xpose.msra.mxu0 0
      %1849 = vmatprep.subr.bf16.mxu0 0
      %1850 = vmatpush1.bf16.xpose.msra.mxu0 0
      %1851 = vmatprep.subr.bf16.mxu0 0
      %1852 = vmatpush1.bf16.xpose.msra.mxu0 0
      %1853 = vmatprep.subr.bf16.mxu0 0
      %1854 = vmatpush1.bf16.xpose.msra.mxu0 0
      %1855 = vmatprep.subr.bf16.mxu0 0
      %1856 = vmatpush1.bf16.xpose.msra.mxu0 0
      %1857 = vmatprep.subr.bf16.mxu0 0
      %1858 = vmatpush1.bf16.xpose.msra.mxu0 0
      %1859 = vmatprep.subr.bf16.mxu0 0
      %1860 = vmatpush1.bf16.xpose.msra.mxu0 0
      %1861 = vmatprep.subr.bf16.mxu0 0
      %1862 = vmatpush1.bf16.xpose.msra.mxu0 0
      %1863 = vmatprep.mubr.bf16.mxu0 0
      %1864 = vmatmul.mubr.bf16.gmra.mrb[0].mxu0 %v1784
      %v1865 = vpop.f32.mrb[0].mxu0
      %v1866 = vadd.f32 %v1718, %v1865
      %v1867 = vpop.f32.mrb[0].mxu0
      %v1868 = vpop.f32.mrb[0].mxu0
      %v1869 = vadd.f32 %v1719, %v1868
      %v1870 = vpop.f32.mrb[0].mxu0
      %1871 = vmatprep.mubr.bf16.mxu0 0
      %1872 = vmatmul.mubr.bf16.gmra.mrb[0].mxu0 %v1787
      %v1873 = vpop.f32.mrb[0].mxu0
      %v1874 = vadd.f32 %v1720, %v1873
      %v1875 = vpop.f32.mrb[0].mxu0
      %v1876 = vpop.f32.mrb[0].mxu0
      %v1877 = vadd.f32 %v1721, %v1876
      %v1878 = vpop.f32.mrb[0].mxu0
      %1879 = vmatprep.mubr.bf16.mxu0 0
      %1880 = vmatmul.mubr.bf16.gmra.mrb[0].mxu0 %v1790
      %v1881 = vpop.f32.mrb[0].mxu0
      %v1882 = vadd.f32 %v1722, %v1881
      %v1883 = vpop.f32.mrb[0].mxu0
      %v1884 = vpop.f32.mrb[0].mxu0
      %v1885 = vadd.f32 %v1723, %v1884
      %v1886 = vpop.f32.mrb[0].mxu0
      %1887 = vmatprep.mubr.bf16.mxu0 0
      %1888 = vmatmul.mubr.bf16.gmra.mrb[0].mxu0 %v1793
      %v1889 = vpop.f32.mrb[0].mxu0
      %v1890 = vadd.f32 %v1724, %v1889
      %v1891 = vpop.f32.mrb[0].mxu0
      %v1892 = vpop.f32.mrb[0].mxu0
      %v1893 = vadd.f32 %v1725, %v1892
      %v1894 = vpop.f32.mrb[0].mxu0
      %1895 = vmatprep.mubr.bf16.mxu0 0
      %1896 = vmatmul.mubr.bf16.gmra.mrb[0].mxu0 %v1796
      %v1897 = vpop.f32.mrb[0].mxu0
      %v1898 = vadd.f32 %v1726, %v1897
      %v1899 = vpop.f32.mrb[0].mxu0
      %v1900 = vpop.f32.mrb[0].mxu0
      %v1901 = vadd.f32 %v1727, %v1900
      %v1902 = vpop.f32.mrb[0].mxu0
      %1903 = vmatprep.mubr.bf16.mxu0 0
      %1904 = vmatmul.mubr.bf16.gmra.mrb[0].mxu0 %v1799
      %v1905 = vpop.f32.mrb[0].mxu0
      %v1906 = vadd.f32 %v1728, %v1905
      %v1907 = vpop.f32.mrb[0].mxu0
      %v1908 = vpop.f32.mrb[0].mxu0
      %v1909 = vadd.f32 %v1729, %v1908
      %v1910 = vpop.f32.mrb[0].mxu0
      %1911 = vmatprep.mubr.bf16.mxu0 0
      %1912 = vmatmul.mubr.bf16.gmra.mrb[0].mxu0 %v1802
      %v1913 = vpop.f32.mrb[0].mxu0
      %v1914 = vadd.f32 %v1730, %v1913
      %v1915 = vpop.f32.mrb[0].mxu0
      %v1916 = vpop.f32.mrb[0].mxu0
      %v1917 = vadd.f32 %v1731, %v1916
      %v1918 = vpop.f32.mrb[0].mxu0
      %1919 = vmatprep.mubr.bf16.mxu0 0
      %1920 = vmatmul.mubr.bf16.gmra.mrb[0].mxu0 %v1805
      %v1921 = vpop.f32.mrb[0].mxu0
      %v1922 = vadd.f32 %v1732, %v1921
      %v1923 = vpop.f32.mrb[0].mxu0
      %v1924 = vpop.f32.mrb[0].mxu0
      %v1925 = vadd.f32 %v1733, %v1924
      %v1926 = vpop.f32.mrb[0].mxu0
      %1927 = vdwg.mxu0
      %1928 = vmax.xlane.f32.xlu0 %v1866
      %v1929 = vpop.xlane.xlu0 %1928
      %1930 = vmax.xlane.f32.xlu0 %v1869
      %v1931 = vpop.xlane.xlu0 %1930
      %1932 = vmax.xlane.f32.xlu0 %v1874
      %v1933 = vpop.xlane.xlu0 %1932
      %1934 = vmax.xlane.f32.xlu0 %v1877
      %v1935 = vpop.xlane.xlu0 %1934
      %1936 = vmax.xlane.f32.xlu0 %v1882
      %v1937 = vpop.xlane.xlu0 %1936
      %1938 = vmax.xlane.f32.xlu0 %v1885
      %v1939 = vpop.xlane.xlu0 %1938
      %1940 = vmax.xlane.f32.xlu0 %v1890
      %v1941 = vpop.xlane.xlu0 %1940
      %1942 = vmax.xlane.f32.xlu0 %v1893
      %v1943 = vpop.xlane.xlu0 %1942
      %1944 = vmax.xlane.f32.xlu0 %v1898
      %v1945 = vpop.xlane.xlu0 %1944
      %1946 = vmax.xlane.f32.xlu0 %v1901
      %v1947 = vpop.xlane.xlu0 %1946
      %1948 = vmax.xlane.f32.xlu0 %v1906
      %v1949 = vpop.xlane.xlu0 %1948
      %1950 = vmax.xlane.f32.xlu0 %v1909
      %v1951 = vpop.xlane.xlu0 %1950
      %1952 = vmax.xlane.f32.xlu0 %v1914
      %v1953 = vpop.xlane.xlu0 %1952
      %1954 = vmax.xlane.f32.xlu0 %v1917
      %v1955 = vpop.xlane.xlu0 %1954
      %1956 = vmax.xlane.f32.xlu0 %v1922
      %v1957 = vpop.xlane.xlu0 %1956
      %1958 = vmax.xlane.f32.xlu0 %v1925
      %v1959 = vpop.xlane.xlu0 %1958
      %v1960 = vsub.f32 %v1866, %v1929
      %v1961 = vsub.f32 %v1869, %v1931
      %v1962 = vsub.f32 %v1874, %v1933
      %v1963 = vsub.f32 %v1877, %v1935
      %v1964 = vsub.f32 %v1882, %v1937
      %v1965 = vsub.f32 %v1885, %v1939
      %v1966 = vsub.f32 %v1890, %v1941
      %v1967 = vsub.f32 %v1893, %v1943
      %v1968 = vsub.f32 %v1898, %v1945
      %v1969 = vsub.f32 %v1901, %v1947
      %v1970 = vsub.f32 %v1906, %v1949
      %v1971 = vsub.f32 %v1909, %v1951
      %v1972 = vsub.f32 %v1914, %v1953
      %v1973 = vsub.f32 %v1917, %v1955
      %v1974 = vsub.f32 %v1922, %v1957
      %v1975 = vsub.f32 %v1925, %v1959
      %v1976 = vmul.f32 %v1960, 1.442695
      %v1977 = vpow.pop %v1976
      %v1978 = vmul.f32 %v1961, 1.442695
      %v1979 = vpow.pop %v1978
      %v1980 = vmul.f32 %v1962, 1.442695
      %v1981 = vpow.pop %v1980
      %v1982 = vmul.f32 %v1963, 1.442695
      %v1983 = vpow.pop %v1982
      %v1984 = vmul.f32 %v1964, 1.442695
      %v1985 = vpow.pop %v1984
      %v1986 = vmul.f32 %v1965, 1.442695
      %v1987 = vpow.pop %v1986
      %v1988 = vmul.f32 %v1966, 1.442695
      %v1989 = vpow.pop %v1988
      %v1990 = vmul.f32 %v1967, 1.442695
      %v1991 = vpow.pop %v1990
      %v1992 = vmul.f32 %v1968, 1.442695
      %v1993 = vpow.pop %v1992
      %v1994 = vmul.f32 %v1969, 1.442695
      %v1995 = vpow.pop %v1994
      %v1996 = vmul.f32 %v1970, 1.442695
      %v1997 = vpow.pop %v1996
      %v1998 = vmul.f32 %v1971, 1.442695
      %v1999 = vpow.pop %v1998
      %v2000 = vmul.f32 %v1972, 1.442695
      %v2001 = vpow.pop %v2000
      %v2002 = vmul.f32 %v1973, 1.442695
      %v2003 = vpow.pop %v2002
      %v2004 = vmul.f32 %v1974, 1.442695
      %v2005 = vpow.pop %v2004
      %v2006 = vmul.f32 %v1975, 1.442695
      %v2007 = vpow.pop %v2006
      %2008 = vadd.xlane.f32.xlu0 %v1977
      %v2009 = vpop.xlane.xlu0 %2008
      %2010 = vadd.xlane.f32.xlu0 %v1979
      %v2011 = vpop.xlane.xlu0 %2010
      %2012 = vadd.xlane.f32.xlu0 %v1981
      %v2013 = vpop.xlane.xlu0 %2012
      %2014 = vadd.xlane.f32.xlu0 %v1983
      %v2015 = vpop.xlane.xlu0 %2014
      %2016 = vadd.xlane.f32.xlu0 %v1985
      %v2017 = vpop.xlane.xlu0 %2016
      %2018 = vadd.xlane.f32.xlu0 %v1987
      %v2019 = vpop.xlane.xlu0 %2018
      %2020 = vadd.xlane.f32.xlu0 %v1989
      %v2021 = vpop.xlane.xlu0 %2020
      %2022 = vadd.xlane.f32.xlu0 %v1991
      %v2023 = vpop.xlane.xlu0 %2022
      %2024 = vadd.xlane.f32.xlu0 %v1993
      %v2025 = vpop.xlane.xlu0 %2024
      %2026 = vadd.xlane.f32.xlu0 %v1995
      %v2027 = vpop.xlane.xlu0 %2026
      %2028 = vadd.xlane.f32.xlu0 %v1997
      %v2029 = vpop.xlane.xlu0 %2028
      %2030 = vadd.xlane.f32.xlu0 %v1999
      %v2031 = vpop.xlane.xlu0 %2030
      %2032 = vadd.xlane.f32.xlu0 %v2001
      %v2033 = vpop.xlane.xlu0 %2032
      %2034 = vadd.xlane.f32.xlu0 %v2003
      %v2035 = vpop.xlane.xlu0 %2034
      %2036 = vadd.xlane.f32.xlu0 %v2005
      %v2037 = vpop.xlane.xlu0 %2036
      %2038 = vadd.xlane.f32.xlu0 %v2007
      %v2039 = vpop.xlane.xlu0 %2038
      %v2040 = vrcp.pop %v2009
      %v2041 = vrcp.pop %v2011
      %v2042 = vrcp.pop %v2013
      %v2043 = vrcp.pop %v2015
      %v2044 = vrcp.pop %v2017
      %v2045 = vrcp.pop %v2019
      %v2046 = vrcp.pop %v2021
      %v2047 = vrcp.pop %v2023
      %v2048 = vrcp.pop %v2025
      %v2049 = vrcp.pop %v2027
      %v2050 = vrcp.pop %v2029
      %v2051 = vrcp.pop %v2031
      %v2052 = vrcp.pop %v2033
      %v2053 = vrcp.pop %v2035
      %v2054 = vrcp.pop %v2037
      %v2055 = vrcp.pop %v2039
      %v2056 = vmul.f32 %v1977, %v2040
      %v2057 = vmul.f32 %v1979, %v2041
      %v2058 = vmul.f32 %v1981, %v2042
      %v2059 = vmul.f32 %v1983, %v2043
      %v2060 = vmul.f32 %v1985, %v2044
      %v2061 = vmul.f32 %v1987, %v2045
      %v2062 = vmul.f32 %v1989, %v2046
      %v2063 = vmul.f32 %v1991, %v2047
      %v2064 = vmul.f32 %v1993, %v2048
      %v2065 = vmul.f32 %v1995, %v2049
      %v2066 = vmul.f32 %v1997, %v2050
      %v2067 = vmul.f32 %v1999, %v2051
      %v2068 = vmul.f32 %v2001, %v2052
      %v2069 = vmul.f32 %v2003, %v2053
      %v2070 = vmul.f32 %v2005, %v2054
      %v2071 = vmul.f32 %v2007, %v2055
      %v2072 = vpack.c.bf16 %v2057, %v2056
      %v2073 = vpack.c.bf16 %v2059, %v2058
      %v2074 = vpack.c.bf16 %v2061, %v2060
      %v2075 = vpack.c.bf16 %v2063, %v2062
      %v2076 = vpack.c.bf16 %v2065, %v2064
      %v2077 = vpack.c.bf16 %v2067, %v2066
      %v2078 = vpack.c.bf16 %v2069, %v2068
      %v2079 = vpack.c.bf16 %v2071, %v2070
      %2080 = vmatprep.subr.bf16.mxu0 0
      %2081 = vmatpush1.bf16.msra.mxu0 %v1750
      %2082 = vmatprep.subr.bf16.mxu0 0
      %2083 = vmatpush1.bf16.msra.mxu0 %v1751
      %2084 = vmatprep.subr.bf16.mxu0 0
      %2085 = vmatpush1.bf16.msra.mxu0 %v1752
      %2086 = vmatprep.subr.bf16.mxu0 0
      %2087 = vmatpush1.bf16.msra.mxu0 %v1753
      %2088 = vmatprep.subr.bf16.mxu0 0
      %2089 = vmatpush1.bf16.msra.mxu0 %v1754
      %2090 = vmatprep.subr.bf16.mxu0 0
      %2091 = vmatpush1.bf16.msra.mxu0 %v1755
      %2092 = vmatprep.subr.bf16.mxu0 0
      %2093 = vmatpush1.bf16.msra.mxu0 %v1756
      %2094 = vmatprep.subr.bf16.mxu0 0
      %2095 = vmatpush1.bf16.msra.mxu0 %v1757
      %2096 = vmatprep.subr.bf16.mxu0 0
      %2097 = vmatpush1.bf16.msra.mxu0 0
      %2098 = vmatprep.subr.bf16.mxu0 0
      %2099 = vmatpush1.bf16.msra.mxu0 0
      %2100 = vmatprep.subr.bf16.mxu0 0
      %2101 = vmatpush1.bf16.msra.mxu0 0
      %2102 = vmatprep.subr.bf16.mxu0 0
      %2103 = vmatpush1.bf16.msra.mxu0 0
      %2104 = vmatprep.subr.bf16.mxu0 0
      %2105 = vmatpush1.bf16.msra.mxu0 0
      %2106 = vmatprep.subr.bf16.mxu0 0
      %2107 = vmatpush1.bf16.msra.mxu0 0
      %2108 = vmatprep.subr.bf16.mxu0 0
      %2109 = vmatpush1.bf16.msra.mxu0 0
      %2110 = vmatprep.subr.bf16.mxu0 0
      %2111 = vmatpush1.bf16.msra.mxu0 0
      %2112 = vmatprep.mubr.bf16.mxu0 0
      %2113 = vmatmul.mubr.bf16.gmra.mrb[0].mxu0 %v2072
      %v2114 = vpop.f32.mrb[0].mxu0
      %v2115 = vadd.f32 0.0, %v2114
      %v2116 = vpop.f32.mrb[0].mxu0
      %v2117 = vpop.f32.mrb[0].mxu0
      %v2118 = vadd.f32 0.0, %v2117
      %v2119 = vpop.f32.mrb[0].mxu0
      %2120 = vmatprep.mubr.bf16.mxu0 0
      %2121 = vmatmul.mubr.bf16.gmra.mrb[0].mxu0 %v2073
      %v2122 = vpop.f32.mrb[0].mxu0
      %v2123 = vadd.f32 0.0, %v2122
      %v2124 = vpop.f32.mrb[0].mxu0
      %v2125 = vpop.f32.mrb[0].mxu0
      %v2126 = vadd.f32 0.0, %v2125
      %v2127 = vpop.f32.mrb[0].mxu0
      %2128 = vmatprep.mubr.bf16.mxu0 0
      %2129 = vmatmul.mubr.bf16.gmra.mrb[0].mxu0 %v2074
      %v2130 = vpop.f32.mrb[0].mxu0
      %v2131 = vadd.f32 0.0, %v2130
      %v2132 = vpop.f32.mrb[0].mxu0
      %v2133 = vpop.f32.mrb[0].mxu0
      %v2134 = vadd.f32 0.0, %v2133
      %v2135 = vpop.f32.mrb[0].mxu0
      %2136 = vmatprep.mubr.bf16.mxu0 0
      %2137 = vmatmul.mubr.bf16.gmra.mrb[0].mxu0 %v2075
      %v2138 = vpop.f32.mrb[0].mxu0
      %v2139 = vadd.f32 0.0, %v2138
      %v2140 = vpop.f32.mrb[0].mxu0
      %v2141 = vpop.f32.mrb[0].mxu0
      %v2142 = vadd.f32 0.0, %v2141
      %v2143 = vpop.f32.mrb[0].mxu0
      %2144 = vmatprep.mubr.bf16.mxu0 0
      %2145 = vmatmul.mubr.bf16.gmra.mrb[0].mxu0 %v2076
      %v2146 = vpop.f32.mrb[0].mxu0
      %v2147 = vadd.f32 0.0, %v2146
      %v2148 = vpop.f32.mrb[0].mxu0
      %v2149 = vpop.f32.mrb[0].mxu0
      %v2150 = vadd.f32 0.0, %v2149
      %v2151 = vpop.f32.mrb[0].mxu0
      %2152 = vmatprep.mubr.bf16.mxu0 0
      %2153 = vmatmul.mubr.bf16.gmra.mrb[0].mxu0 %v2077
      %v2154 = vpop.f32.mrb[0].mxu0
      %v2155 = vadd.f32 0.0, %v2154
      %v2156 = vpop.f32.mrb[0].mxu0
      %v2157 = vpop.f32.mrb[0].mxu0
      %v2158 = vadd.f32 0.0, %v2157
      %v2159 = vpop.f32.mrb[0].mxu0
      %2160 = vmatprep.mubr.bf16.mxu0 0
      %2161 = vmatmul.mubr.bf16.gmra.mrb[0].mxu0 %v2078
      %v2162 = vpop.f32.mrb[0].mxu0
      %v2163 = vadd.f32 0.0, %v2162
      %v2164 = vpop.f32.mrb[0].mxu0
      %v2165 = vpop.f32.mrb[0].mxu0
      %v2166 = vadd.f32 0.0, %v2165
      %v2167 = vpop.f32.mrb[0].mxu0
      %2168 = vmatprep.mubr.bf16.mxu0 0
      %2169 = vmatmul.mubr.bf16.gmra.mrb[0].mxu0 %v2079
      %v2170 = vpop.f32.mrb[0].mxu0
      %v2171 = vadd.f32 0.0, %v2170
      %v2172 = vpop.f32.mrb[0].mxu0
      %v2173 = vpop.f32.mrb[0].mxu0
      %v2174 = vadd.f32 0.0, %v2173
      %v2175 = vpop.f32.mrb[0].mxu0
      %2176 = vdwg.mxu0
      %v2177 = vpack.c.bf16 %v2118, %v2115
      %v2178 = vpack.c.bf16 %v2126, %v2123
      %v2179 = vpack.c.bf16 %v2134, %v2131
      %v2180 = vpack.c.bf16 %v2142, %v2139
      %v2181 = vpack.c.bf16 %v2150, %v2147
      %v2182 = vpack.c.bf16 %v2158, %v2155
      %v2183 = vpack.c.bf16 %v2166, %v2163
      %v2184 = vpack.c.bf16 %v2174, %v2171
      %2185 = vst.msk [vmem:[#allocation3] sm:$0xff] %vm1782, %v2177
      %2186 = vst.msk [vmem:[#allocation3 + $0x10] sm:$0xff] %vm1782, %v2178
      %2187 = vst.msk [vmem:[#allocation3 + $0x20] sm:$0xff] %vm1782, %v2179
      %2188 = vst.msk [vmem:[#allocation3 + $0x30] sm:$0xff] %vm1782, %v2180
      %2189 = vst.msk [vmem:[#allocation3 + $0x40] sm:$0xff] %vm1782, %v2181
      %2190 = vst.msk [vmem:[#allocation3 + $0x50] sm:$0xff] %vm1782, %v2182
      %2191 = vst.msk [vmem:[#allocation3 + $0x60] sm:$0xff] %vm1782, %v2183
      %2192 = vst.msk [vmem:[#allocation3 + $0x70] sm:$0xff] %vm1782, %v2184
      %v2193 = vld [vmem:[#allocation2] sm:$0xff]
      %v2194 = vld [vmem:[#allocation2 + $0x28] sm:$0xff]
      %v2195 = vld [vmem:[#allocation2 + $0x50] sm:$0xff]
      %v2196 = vld [vmem:[#allocation2 + $0x78] sm:$0xff]
      %v2197 = vld [vmem:[#allocation2 + $0xa0] sm:$0xff]
      %v2198 = vld [vmem:[#allocation2 + $0xc8] sm:$0xff]
      %v2199 = vld [vmem:[#allocation2 + $0xf0] sm:$0xff]
      %v2200 = vld [vmem:[#allocation2 + $0x118] sm:$0xff]
      %v2201 = vld [vmem:[#allocation2 + $0x8] sm:$0xff]
      %v2202 = vld [vmem:[#allocation2 + $0x30] sm:$0xff]
      %v2203 = vld [vmem:[#allocation2 + $0x58] sm:$0xff]
      %v2204 = vld [vmem:[#allocation2 + $0x80] sm:$0xff]
      %v2205 = vld [vmem:[#allocation2 + $0xa8] sm:$0xff]
      %v2206 = vld [vmem:[#allocation2 + $0xd0] sm:$0xff]
      %v2207 = vld [vmem:[#allocation2 + $0xf8] sm:$0xff]
      %v2208 = vld [vmem:[#allocation2 + $0x120] sm:$0xff]
      %v2209 = vld [vmem:[#allocation2 + $0x18] sm:$0xff]
      %v2210 = vld [vmem:[#allocation2 + $0x40] sm:$0xff]
      %v2211 = vld [vmem:[#allocation2 + $0x68] sm:$0xff]
      %v2212 = vld [vmem:[#allocation2 + $0x90] sm:$0xff]
      %v2213 = vld [vmem:[#allocation2 + $0xb8] sm:$0xff]
      %v2214 = vld [vmem:[#allocation2 + $0xe0] sm:$0xff]
      %v2215 = vld [vmem:[#allocation2 + $0x108] sm:$0xff]
      %v2216 = vld [vmem:[#allocation2 + $0x130] sm:$0xff]
      %2225 = vrot.lane.b32.xlu0 %v2193, 96
      %v2226 = vpop.permute.xlu0 %2225
      %2227 = vrot.lane.b32.xlu0 %v2194, 96
      %v2228 = vpop.permute.xlu0 %2227
      %2229 = vrot.lane.b32.xlu0 %v2195, 96
      %v2230 = vpop.permute.xlu0 %2229
      %2231 = vrot.lane.b32.xlu0 %v2196, 96
      %v2232 = vpop.permute.xlu0 %2231
      %2233 = vrot.lane.b32.xlu0 %v2197, 96
      %v2234 = vpop.permute.xlu0 %2233
      %2235 = vrot.lane.b32.xlu0 %v2198, 96
      %v2236 = vpop.permute.xlu0 %2235
      %2237 = vrot.lane.b32.xlu0 %v2199, 96
      %v2238 = vpop.permute.xlu0 %2237
      %2239 = vrot.lane.b32.xlu0 %v2200, 96
      %v2240 = vpop.permute.xlu0 %2239
      %2249 = vrot.lane.b32.xlu0 %v2201, 32
      %v2250 = vpop.permute.xlu0 %2249
      %2251 = vrot.lane.b32.xlu0 %v2202, 32
      %v2252 = vpop.permute.xlu0 %2251
      %2253 = vrot.lane.b32.xlu0 %v2203, 32
      %v2254 = vpop.permute.xlu0 %2253
      %2255 = vrot.lane.b32.xlu0 %v2204, 32
      %v2256 = vpop.permute.xlu0 %2255
      %2257 = vrot.lane.b32.xlu0 %v2205, 32
      %v2258 = vpop.permute.xlu0 %2257
      %2259 = vrot.lane.b32.xlu0 %v2206, 32
      %v2260 = vpop.permute.xlu0 %2259
      %2261 = vrot.lane.b32.xlu0 %v2207, 32
      %v2262 = vpop.permute.xlu0 %2261
      %2263 = vrot.lane.b32.xlu0 %v2208, 32
      %v2264 = vpop.permute.xlu0 %2263
      %v2266 = vsel %vm1782, %v2226, 0
      %v2269 = vsel %vm1782, %v2228, 0
      %v2272 = vsel %vm1782, %v2230, 0
      %v2275 = vsel %vm1782, %v2232, 0
      %v2278 = vsel %vm1782, %v2234, 0
      %v2281 = vsel %vm1782, %v2236, 0
      %v2284 = vsel %vm1782, %v2238, 0
      %v2287 = vsel %vm1782, %v2240, 0
      %v2290 = vsel %vm1782, %v2250, 0
      %v2293 = vsel %vm1782, %v2252, 0
      %v2296 = vsel %vm1782, %v2254, 0
      %v2299 = vsel %vm1782, %v2256, 0
      %v2302 = vsel %vm1782, %v2258, 0
      %v2305 = vsel %vm1782, %v2260, 0
      %v2308 = vsel %vm1782, %v2262, 0
      %v2311 = vsel %vm1782, %v2264, 0
      %2313 = vmatprep.subr.bf16.mxu0 0
      %2314 = vmatpush1.bf16.xpose.msra.mxu0 %v2290
      %2315 = vmatprep.subr.bf16.mxu0 0
      %2316 = vmatpush1.bf16.xpose.msra.mxu0 %v2293
      %2317 = vmatprep.subr.bf16.mxu0 0
      %2318 = vmatpush1.bf16.xpose.msra.mxu0 %v2296
      %2319 = vmatprep.subr.bf16.mxu0 0
      %2320 = vmatpush1.bf16.xpose.msra.mxu0 %v2299
      %2321 = vmatprep.subr.bf16.mxu0 0
      %2322 = vmatpush1.bf16.xpose.msra.mxu0 %v2302
      %2323 = vmatprep.subr.bf16.mxu0 0
      %2324 = vmatpush1.bf16.xpose.msra.mxu0 %v2305
      %2325 = vmatprep.subr.bf16.mxu0 0
      %2326 = vmatpush1.bf16.xpose.msra.mxu0 %v2308
      %2327 = vmatprep.subr.bf16.mxu0 0
      %2328 = vmatpush1.bf16.xpose.msra.mxu0 %v2311
      %2329 = vmatprep.subr.bf16.mxu0 0
      %2330 = vmatpush1.bf16.xpose.msra.mxu0 0
      %2331 = vmatprep.subr.bf16.mxu0 0
      %2332 = vmatpush1.bf16.xpose.msra.mxu0 0
      %2333 = vmatprep.subr.bf16.mxu0 0
      %2334 = vmatpush1.bf16.xpose.msra.mxu0 0
      %2335 = vmatprep.subr.bf16.mxu0 0
      %2336 = vmatpush1.bf16.xpose.msra.mxu0 0
      %2337 = vmatprep.subr.bf16.mxu0 0
      %2338 = vmatpush1.bf16.xpose.msra.mxu0 0
      %2339 = vmatprep.subr.bf16.mxu0 0
      %2340 = vmatpush1.bf16.xpose.msra.mxu0 0
      %2341 = vmatprep.subr.bf16.mxu0 0
      %2342 = vmatpush1.bf16.xpose.msra.mxu0 0
      %2343 = vmatprep.subr.bf16.mxu0 0
      %2344 = vmatpush1.bf16.xpose.msra.mxu0 0
      %2345 = vmatprep.mubr.bf16.mxu0 0
      %2346 = vmatmul.mubr.bf16.gmra.mrb[0].mxu0 %v2266
      %v2347 = vpop.f32.mrb[0].mxu0
      %v2348 = vadd.f32 %v1718, %v2347
      %v2349 = vpop.f32.mrb[0].mxu0
      %v2350 = vpop.f32.mrb[0].mxu0
      %v2351 = vadd.f32 %v1719, %v2350
      %v2352 = vpop.f32.mrb[0].mxu0
      %2353 = vmatprep.mubr.bf16.mxu0 0
      %2354 = vmatmul.mubr.bf16.gmra.mrb[0].mxu0 %v2269
      %v2355 = vpop.f32.mrb[0].mxu0
      %v2356 = vadd.f32 %v1720, %v2355
      %v2357 = vpop.f32.mrb[0].mxu0
      %v2358 = vpop.f32.mrb[0].mxu0
      %v2359 = vadd.f32 %v1721, %v2358
      %v2360 = vpop.f32.mrb[0].mxu0
      %2361 = vmatprep.mubr.bf16.mxu0 0
      %2362 = vmatmul.mubr.bf16.gmra.mrb[0].mxu0 %v2272
      %v2363 = vpop.f32.mrb[0].mxu0
      %v2364 = vadd.f32 %v1722, %v2363
      %v2365 = vpop.f32.mrb[0].mxu0
      %v2366 = vpop.f32.mrb[0].mxu0
      %v2367 = vadd.f32 %v1723, %v2366
      %v2368 = vpop.f32.mrb[0].mxu0
      %2369 = vmatprep.mubr.bf16.mxu0 0
      %2370 = vmatmul.mubr.bf16.gmra.mrb[0].mxu0 %v2275
      %v2371 = vpop.f32.mrb[0].mxu0
      %v2372 = vadd.f32 %v1724, %v2371
      %v2373 = vpop.f32.mrb[0].mxu0
      %v2374 = vpop.f32.mrb[0].mxu0
      %v2375 = vadd.f32 %v1725, %v2374
      %v2376 = vpop.f32.mrb[0].mxu0
      %2377 = vmatprep.mubr.bf16.mxu0 0
      %2378 = vmatmul.mubr.bf16.gmra.mrb[0].mxu0 %v2278
      %v2379 = vpop.f32.mrb[0].mxu0
      %v2380 = vadd.f32 %v1726, %v2379
      %v2381 = vpop.f32.mrb[0].mxu0
      %v2382 = vpop.f32.mrb[0].mxu0
      %v2383 = vadd.f32 %v1727, %v2382
      %v2384 = vpop.f32.mrb[0].mxu0
      %2385 = vmatprep.mubr.bf16.mxu0 0
      %2386 = vmatmul.mubr.bf16.gmra.mrb[0].mxu0 %v2281
      %v2387 = vpop.f32.mrb[0].mxu0
      %v2388 = vadd.f32 %v1728, %v2387
      %v2389 = vpop.f32.mrb[0].mxu0
      %v2390 = vpop.f32.mrb[0].mxu0
      %v2391 = vadd.f32 %v1729, %v2390
      %v2392 = vpop.f32.mrb[0].mxu0
      %2393 = vmatprep.mubr.bf16.mxu0 0
      %2394 = vmatmul.mubr.bf16.gmra.mrb[0].mxu0 %v2284
      %v2395 = vpop.f32.mrb[0].mxu0
      %v2396 = vadd.f32 %v1730, %v2395
      %v2397 = vpop.f32.mrb[0].mxu0
      %v2398 = vpop.f32.mrb[0].mxu0
      %v2399 = vadd.f32 %v1731, %v2398
      %v2400 = vpop.f32.mrb[0].mxu0
      %2401 = vmatprep.mubr.bf16.mxu0 0
      %2402 = vmatmul.mubr.bf16.gmra.mrb[0].mxu0 %v2287
      %v2403 = vpop.f32.mrb[0].mxu0
      %v2404 = vadd.f32 %v1732, %v2403
      %v2405 = vpop.f32.mrb[0].mxu0
      %v2406 = vpop.f32.mrb[0].mxu0
      %v2407 = vadd.f32 %v1733, %v2406
      %v2408 = vpop.f32.mrb[0].mxu0
      %2409 = vdwg.mxu0
      %2410 = vmax.xlane.f32.xlu0 %v2348
      %v2411 = vpop.xlane.xlu0 %2410
      %2412 = vmax.xlane.f32.xlu0 %v2351
      %v2413 = vpop.xlane.xlu0 %2412
      %2414 = vmax.xlane.f32.xlu0 %v2356
      %v2415 = vpop.xlane.xlu0 %2414
      %2416 = vmax.xlane.f32.xlu0 %v2359
      %v2417 = vpop.xlane.xlu0 %2416
      %2418 = vmax.xlane.f32.xlu0 %v2364
      %v2419 = vpop.xlane.xlu0 %2418
      %2420 = vmax.xlane.f32.xlu0 %v2367
      %v2421 = vpop.xlane.xlu0 %2420
      %2422 = vmax.xlane.f32.xlu0 %v2372
      %v2423 = vpop.xlane.xlu0 %2422
      %2424 = vmax.xlane.f32.xlu0 %v2375
      %v2425 = vpop.xlane.xlu0 %2424
      %2426 = vmax.xlane.f32.xlu0 %v2380
      %v2427 = vpop.xlane.xlu0 %2426
      %2428 = vmax.xlane.f32.xlu0 %v2383
      %v2429 = vpop.xlane.xlu0 %2428
      %2430 = vmax.xlane.f32.xlu0 %v2388
      %v2431 = vpop.xlane.xlu0 %2430
      %2432 = vmax.xlane.f32.xlu0 %v2391
      %v2433 = vpop.xlane.xlu0 %2432
      %2434 = vmax.xlane.f32.xlu0 %v2396
      %v2435 = vpop.xlane.xlu0 %2434
      %2436 = vmax.xlane.f32.xlu0 %v2399
      %v2437 = vpop.xlane.xlu0 %2436
      %2438 = vmax.xlane.f32.xlu0 %v2404
      %v2439 = vpop.xlane.xlu0 %2438
      %2440 = vmax.xlane.f32.xlu0 %v2407
      %v2441 = vpop.xlane.xlu0 %2440
      %v2442 = vsub.f32 %v2348, %v2411
      %v2443 = vsub.f32 %v2351, %v2413
      %v2444 = vsub.f32 %v2356, %v2415
      %v2445 = vsub.f32 %v2359, %v2417
      %v2446 = vsub.f32 %v2364, %v2419
      %v2447 = vsub.f32 %v2367, %v2421
      %v2448 = vsub.f32 %v2372, %v2423
      %v2449 = vsub.f32 %v2375, %v2425
      %v2450 = vsub.f32 %v2380, %v2427
      %v2451 = vsub.f32 %v2383, %v2429
      %v2452 = vsub.f32 %v2388, %v2431
      %v2453 = vsub.f32 %v2391, %v2433
      %v2454 = vsub.f32 %v2396, %v2435
      %v2455 = vsub.f32 %v2399, %v2437
      %v2456 = vsub.f32 %v2404, %v2439
      %v2457 = vsub.f32 %v2407, %v2441
      %v2458 = vmul.f32 %v2442, 1.442695
      %v2459 = vpow.pop %v2458
      %v2460 = vmul.f32 %v2443, 1.442695
      %v2461 = vpow.pop %v2460
      %v2462 = vmul.f32 %v2444, 1.442695
      %v2463 = vpow.pop %v2462
      %v2464 = vmul.f32 %v2445, 1.442695
      %v2465 = vpow.pop %v2464
      %v2466 = vmul.f32 %v2446, 1.442695
      %v2467 = vpow.pop %v2466
      %v2468 = vmul.f32 %v2447, 1.442695
      %v2469 = vpow.pop %v2468
      %v2470 = vmul.f32 %v2448, 1.442695
      %v2471 = vpow.pop %v2470
      %v2472 = vmul.f32 %v2449, 1.442695
      %v2473 = vpow.pop %v2472
      %v2474 = vmul.f32 %v2450, 1.442695
      %v2475 = vpow.pop %v2474
      %v2476 = vmul.f32 %v2451, 1.442695
      %v2477 = vpow.pop %v2476
      %v2478 = vmul.f32 %v2452, 1.442695
      %v2479 = vpow.pop %v2478
      %v2480 = vmul.f32 %v2453, 1.442695
      %v2481 = vpow.pop %v2480
      %v2482 = vmul.f32 %v2454, 1.442695
      %v2483 = vpow.pop %v2482
      %v2484 = vmul.f32 %v2455, 1.442695
      %v2485 = vpow.pop %v2484
      %v2486 = vmul.f32 %v2456, 1.442695
      %v2487 = vpow.pop %v2486
      %v2488 = vmul.f32 %v2457, 1.442695
      %v2489 = vpow.pop %v2488
      %2490 = vadd.xlane.f32.xlu0 %v2459
      %v2491 = vpop.xlane.xlu0 %2490
      %2492 = vadd.xlane.f32.xlu0 %v2461
      %v2493 = vpop.xlane.xlu0 %2492
      %2494 = vadd.xlane.f32.xlu0 %v2463
      %v2495 = vpop.xlane.xlu0 %2494
      %2496 = vadd.xlane.f32.xlu0 %v2465
      %v2497 = vpop.xlane.xlu0 %2496
      %2498 = vadd.xlane.f32.xlu0 %v2467
      %v2499 = vpop.xlane.xlu0 %2498
      %2500 = vadd.xlane.f32.xlu0 %v2469
      %v2501 = vpop.xlane.xlu0 %2500
      %2502 = vadd.xlane.f32.xlu0 %v2471
      %v2503 = vpop.xlane.xlu0 %2502
      %2504 = vadd.xlane.f32.xlu0 %v2473
      %v2505 = vpop.xlane.xlu0 %2504
      %2506 = vadd.xlane.f32.xlu0 %v2475
      %v2507 = vpop.xlane.xlu0 %2506
      %2508 = vadd.xlane.f32.xlu0 %v2477
      %v2509 = vpop.xlane.xlu0 %2508
      %2510 = vadd.xlane.f32.xlu0 %v2479
      %v2511 = vpop.xlane.xlu0 %2510
      %2512 = vadd.xlane.f32.xlu0 %v2481
      %v2513 = vpop.xlane.xlu0 %2512
      %2514 = vadd.xlane.f32.xlu0 %v2483
      %v2515 = vpop.xlane.xlu0 %2514
      %2516 = vadd.xlane.f32.xlu0 %v2485
      %v2517 = vpop.xlane.xlu0 %2516
      %2518 = vadd.xlane.f32.xlu0 %v2487
      %v2519 = vpop.xlane.xlu0 %2518
      %2520 = vadd.xlane.f32.xlu0 %v2489
      %v2521 = vpop.xlane.xlu0 %2520
      %v2522 = vrcp.pop %v2491
      %v2523 = vrcp.pop %v2493
      %v2524 = vrcp.pop %v2495
      %v2525 = vrcp.pop %v2497
      %v2526 = vrcp.pop %v2499
      %v2527 = vrcp.pop %v2501
      %v2528 = vrcp.pop %v2503
      %v2529 = vrcp.pop %v2505
      %v2530 = vrcp.pop %v2507
      %v2531 = vrcp.pop %v2509
      %v2532 = vrcp.pop %v2511
      %v2533 = vrcp.pop %v2513
      %v2534 = vrcp.pop %v2515
      %v2535 = vrcp.pop %v2517
      %v2536 = vrcp.pop %v2519
      %v2537 = vrcp.pop %v2521
      %v2538 = vmul.f32 %v2459, %v2522
      %v2539 = vmul.f32 %v2461, %v2523
      %v2540 = vmul.f32 %v2463, %v2524
      %v2541 = vmul.f32 %v2465, %v2525
      %v2542 = vmul.f32 %v2467, %v2526
      %v2543 = vmul.f32 %v2469, %v2527
      %v2544 = vmul.f32 %v2471, %v2528
      %v2545 = vmul.f32 %v2473, %v2529
      %v2546 = vmul.f32 %v2475, %v2530
      %v2547 = vmul.f32 %v2477, %v2531
      %v2548 = vmul.f32 %v2479, %v2532
      %v2549 = vmul.f32 %v2481, %v2533
      %v2550 = vmul.f32 %v2483, %v2534
      %v2551 = vmul.f32 %v2485, %v2535
      %v2552 = vmul.f32 %v2487, %v2536
      %v2553 = vmul.f32 %v2489, %v2537
      %v2554 = vpack.c.bf16 %v2539, %v2538
      %v2555 = vpack.c.bf16 %v2541, %v2540
      %v2556 = vpack.c.bf16 %v2543, %v2542
      %v2557 = vpack.c.bf16 %v2545, %v2544
      %v2558 = vpack.c.bf16 %v2547, %v2546
      %v2559 = vpack.c.bf16 %v2549, %v2548
      %v2560 = vpack.c.bf16 %v2551, %v2550
      %v2561 = vpack.c.bf16 %v2553, %v2552
      %2570 = vrot.lane.b32.xlu0 %v2209, 96
      %v2571 = vpop.permute.xlu0 %2570
      %2572 = vrot.lane.b32.xlu0 %v2210, 96
      %v2573 = vpop.permute.xlu0 %2572
      %2574 = vrot.lane.b32.xlu0 %v2211, 96
      %v2575 = vpop.permute.xlu0 %2574
      %2576 = vrot.lane.b32.xlu0 %v2212, 96
      %v2577 = vpop.permute.xlu0 %2576
      %2578 = vrot.lane.b32.xlu0 %v2213, 96
      %v2579 = vpop.permute.xlu0 %2578
      %2580 = vrot.lane.b32.xlu0 %v2214, 96
      %v2581 = vpop.permute.xlu0 %2580
      %2582 = vrot.lane.b32.xlu0 %v2215, 96
      %v2583 = vpop.permute.xlu0 %2582
      %2584 = vrot.lane.b32.xlu0 %v2216, 96
      %v2585 = vpop.permute.xlu0 %2584
      %2594 = vmatprep.subr.bf16.mxu0 0
      %2595 = vmatpush1.bf16.msra.mxu0 %v2571
      %2596 = vmatprep.subr.bf16.mxu0 0
      %2597 = vmatpush1.bf16.msra.mxu0 %v2573
      %2598 = vmatprep.subr.bf16.mxu0 0
      %2599 = vmatpush1.bf16.msra.mxu0 %v2575
      %2600 = vmatprep.subr.bf16.mxu0 0
      %2601 = vmatpush1.bf16.msra.mxu0 %v2577
      %2602 = vmatprep.subr.bf16.mxu0 0
      %2603 = vmatpush1.bf16.msra.mxu0 %v2579
      %2604 = vmatprep.subr.bf16.mxu0 0
      %2605 = vmatpush1.bf16.msra.mxu0 %v2581
      %2606 = vmatprep.subr.bf16.mxu0 0
      %2607 = vmatpush1.bf16.msra.mxu0 %v2583
      %2608 = vmatprep.subr.bf16.mxu0 0
      %2609 = vmatpush1.bf16.msra.mxu0 %v2585
      %2610 = vmatprep.subr.bf16.mxu0 0
      %2611 = vmatpush1.bf16.msra.mxu0 0
      %2612 = vmatprep.subr.bf16.mxu0 0
      %2613 = vmatpush1.bf16.msra.mxu0 0
      %2614 = vmatprep.subr.bf16.mxu0 0
      %2615 = vmatpush1.bf16.msra.mxu0 0
      %2616 = vmatprep.subr.bf16.mxu0 0
      %2617 = vmatpush1.bf16.msra.mxu0 0
      %2618 = vmatprep.subr.bf16.mxu0 0
      %2619 = vmatpush1.bf16.msra.mxu0 0
      %2620 = vmatprep.subr.bf16.mxu0 0
      %2621 = vmatpush1.bf16.msra.mxu0 0
      %2622 = vmatprep.subr.bf16.mxu0 0
      %2623 = vmatpush1.bf16.msra.mxu0 0
      %2624 = vmatprep.subr.bf16.mxu0 0
      %2625 = vmatpush1.bf16.msra.mxu0 0
      %2626 = vmatprep.mubr.bf16.mxu0 0
      %2627 = vmatmul.mubr.bf16.gmra.mrb[0].mxu0 %v2554
      %v2628 = vpop.f32.mrb[0].mxu0
      %v2629 = vadd.f32 0.0, %v2628
      %v2630 = vpop.f32.mrb[0].mxu0
      %v2631 = vpop.f32.mrb[0].mxu0
      %v2632 = vadd.f32 0.0, %v2631
      %v2633 = vpop.f32.mrb[0].mxu0
      %2634 = vmatprep.mubr.bf16.mxu0 0
      %2635 = vmatmul.mubr.bf16.gmra.mrb[0].mxu0 %v2555
      %v2636 = vpop.f32.mrb[0].mxu0
      %v2637 = vadd.f32 0.0, %v2636
      %v2638 = vpop.f32.mrb[0].mxu0
      %v2639 = vpop.f32.mrb[0].mxu0
      %v2640 = vadd.f32 0.0, %v2639
      %v2641 = vpop.f32.mrb[0].mxu0
      %2642 = vmatprep.mubr.bf16.mxu0 0
      %2643 = vmatmul.mubr.bf16.gmra.mrb[0].mxu0 %v2556
      %v2644 = vpop.f32.mrb[0].mxu0
      %v2645 = vadd.f32 0.0, %v2644
      %v2646 = vpop.f32.mrb[0].mxu0
      %v2647 = vpop.f32.mrb[0].mxu0
      %v2648 = vadd.f32 0.0, %v2647
      %v2649 = vpop.f32.mrb[0].mxu0
      %2650 = vmatprep.mubr.bf16.mxu0 0
      %2651 = vmatmul.mubr.bf16.gmra.mrb[0].mxu0 %v2557
      %v2652 = vpop.f32.mrb[0].mxu0
      %v2653 = vadd.f32 0.0, %v2652
      %v2654 = vpop.f32.mrb[0].mxu0
      %v2655 = vpop.f32.mrb[0].mxu0
      %v2656 = vadd.f32 0.0, %v2655
      %v2657 = vpop.f32.mrb[0].mxu0
      %2658 = vmatprep.mubr.bf16.mxu0 0
      %2659 = vmatmul.mubr.bf16.gmra.mrb[0].mxu0 %v2558
      %v2660 = vpop.f32.mrb[0].mxu0
      %v2661 = vadd.f32 0.0, %v2660
      %v2662 = vpop.f32.mrb[0].mxu0
      %v2663 = vpop.f32.mrb[0].mxu0
      %v2664 = vadd.f32 0.0, %v2663
      %v2665 = vpop.f32.mrb[0].mxu0
      %2666 = vmatprep.mubr.bf16.mxu0 0
      %2667 = vmatmul.mubr.bf16.gmra.mrb[0].mxu0 %v2559
      %v2668 = vpop.f32.mrb[0].mxu0
      %v2669 = vadd.f32 0.0, %v2668
      %v2670 = vpop.f32.mrb[0].mxu0
      %v2671 = vpop.f32.mrb[0].mxu0
      %v2672 = vadd.f32 0.0, %v2671
      %v2673 = vpop.f32.mrb[0].mxu0
      %2674 = vmatprep.mubr.bf16.mxu0 0
      %2675 = vmatmul.mubr.bf16.gmra.mrb[0].mxu0 %v2560
      %v2676 = vpop.f32.mrb[0].mxu0
      %v2677 = vadd.f32 0.0, %v2676
      %v2678 = vpop.f32.mrb[0].mxu0
      %v2679 = vpop.f32.mrb[0].mxu0
      %v2680 = vadd.f32 0.0, %v2679
      %v2681 = vpop.f32.mrb[0].mxu0
      %2682 = vmatprep.mubr.bf16.mxu0 0
      %2683 = vmatmul.mubr.bf16.gmra.mrb[0].mxu0 %v2561
      %v2684 = vpop.f32.mrb[0].mxu0
      %v2685 = vadd.f32 0.0, %v2684
      %v2686 = vpop.f32.mrb[0].mxu0
      %v2687 = vpop.f32.mrb[0].mxu0
      %v2688 = vadd.f32 0.0, %v2687
      %v2689 = vpop.f32.mrb[0].mxu0
      %2690 = vdwg.mxu0
      %v2691 = vpack.c.bf16 %v2632, %v2629
      %v2692 = vpack.c.bf16 %v2640, %v2637
      %v2693 = vpack.c.bf16 %v2648, %v2645
      %v2694 = vpack.c.bf16 %v2656, %v2653
      %v2695 = vpack.c.bf16 %v2664, %v2661
      %v2696 = vpack.c.bf16 %v2672, %v2669
      %v2697 = vpack.c.bf16 %v2680, %v2677
      %v2698 = vpack.c.bf16 %v2688, %v2685
      %2707 = vrot.lane.b32.xlu0 %v2691, 32
      %v2708 = vpop.permute.xlu0 %2707
      %2709 = vrot.lane.b32.xlu0 %v2692, 32
      %v2710 = vpop.permute.xlu0 %2709
      %2711 = vrot.lane.b32.xlu0 %v2693, 32
      %v2712 = vpop.permute.xlu0 %2711
      %2713 = vrot.lane.b32.xlu0 %v2694, 32
      %v2714 = vpop.permute.xlu0 %2713
      %2715 = vrot.lane.b32.xlu0 %v2695, 32
      %v2716 = vpop.permute.xlu0 %2715
      %2717 = vrot.lane.b32.xlu0 %v2696, 32
      %v2718 = vpop.permute.xlu0 %2717
      %2719 = vrot.lane.b32.xlu0 %v2697, 32
      %v2720 = vpop.permute.xlu0 %2719
      %2721 = vrot.lane.b32.xlu0 %v2698, 32
      %v2722 = vpop.permute.xlu0 %2721
      %vm2731 = vcmask 523520
      %2732 = vst.msk [vmem:[#allocation3] sm:$0xff] %vm2731, %v2708
      %2733 = vst.msk [vmem:[#allocation3 + $0x10] sm:$0xff] %vm2731, %v2710
      %2734 = vst.msk [vmem:[#allocation3 + $0x20] sm:$0xff] %vm2731, %v2712
      %2735 = vst.msk [vmem:[#allocation3 + $0x30] sm:$0xff] %vm2731, %v2714
      %2736 = vst.msk [vmem:[#allocation3 + $0x40] sm:$0xff] %vm2731, %v2716
      %2737 = vst.msk [vmem:[#allocation3 + $0x50] sm:$0xff] %vm2731, %v2718
      %2738 = vst.msk [vmem:[#allocation3 + $0x60] sm:$0xff] %vm2731, %v2720
      %2739 = vst.msk [vmem:[#allocation3 + $0x70] sm:$0xff] %vm2731, %v2722
      %v2740 = vld [vmem:[#allocation2] sm:$0xff]
      %v2741 = vld [vmem:[#allocation2 + $0x28] sm:$0xff]
      %v2742 = vld [vmem:[#allocation2 + $0x50] sm:$0xff]
      %v2743 = vld [vmem:[#allocation2 + $0x78] sm:$0xff]
      %v2744 = vld [vmem:[#allocation2 + $0xa0] sm:$0xff]
      %v2745 = vld [vmem:[#allocation2 + $0xc8] sm:$0xff]
      %v2746 = vld [vmem:[#allocation2 + $0xf0] sm:$0xff]
      %v2747 = vld [vmem:[#allocation2 + $0x118] sm:$0xff]
      %v2748 = vld [vmem:[#allocation2 + $0x10] sm:$0xff]
      %v2749 = vld [vmem:[#allocation2 + $0x38] sm:$0xff]
      %v2750 = vld [vmem:[#allocation2 + $0x60] sm:$0xff]
      %v2751 = vld [vmem:[#allocation2 + $0x88] sm:$0xff]
      %v2752 = vld [vmem:[#allocation2 + $0xb0] sm:$0xff]
      %v2753 = vld [vmem:[#allocation2 + $0xd8] sm:$0xff]
      %v2754 = vld [vmem:[#allocation2 + $0x100] sm:$0xff]
      %v2755 = vld [vmem:[#allocation2 + $0x128] sm:$0xff]
      %v2756 = vld [vmem:[#allocation2 + $0x18] sm:$0xff]
      %v2757 = vld [vmem:[#allocation2 + $0x40] sm:$0xff]
      %v2758 = vld [vmem:[#allocation2 + $0x68] sm:$0xff]
      %v2759 = vld [vmem:[#allocation2 + $0x90] sm:$0xff]
      %v2760 = vld [vmem:[#allocation2 + $0xb8] sm:$0xff]
      %v2761 = vld [vmem:[#allocation2 + $0xe0] sm:$0xff]
      %v2762 = vld [vmem:[#allocation2 + $0x108] sm:$0xff]
      %v2763 = vld [vmem:[#allocation2 + $0x130] sm:$0xff]
      %2772 = vrot.lane.b32.xlu0 %v2740, 64
      %v2773 = vpop.permute.xlu0 %2772
      %2774 = vrot.lane.b32.xlu0 %v2741, 64
      %v2775 = vpop.permute.xlu0 %2774
      %2776 = vrot.lane.b32.xlu0 %v2742, 64
      %v2777 = vpop.permute.xlu0 %2776
      %2778 = vrot.lane.b32.xlu0 %v2743, 64
      %v2779 = vpop.permute.xlu0 %2778
      %2780 = vrot.lane.b32.xlu0 %v2744, 64
      %v2781 = vpop.permute.xlu0 %2780
      %2782 = vrot.lane.b32.xlu0 %v2745, 64
      %v2783 = vpop.permute.xlu0 %2782
      %2784 = vrot.lane.b32.xlu0 %v2746, 64
      %v2785 = vpop.permute.xlu0 %2784
      %2786 = vrot.lane.b32.xlu0 %v2747, 64
      %v2787 = vpop.permute.xlu0 %2786
      %v2789 = vsel %vm1782, %v2773, 0
      %v2792 = vsel %vm1782, %v2775, 0
      %v2795 = vsel %vm1782, %v2777, 0
      %v2798 = vsel %vm1782, %v2779, 0
      %v2801 = vsel %vm1782, %v2781, 0
      %v2804 = vsel %vm1782, %v2783, 0
      %v2807 = vsel %vm1782, %v2785, 0
      %v2810 = vsel %vm1782, %v2787, 0
      %v2813 = vsel %vm1782, %v2748, 0
      %v2816 = vsel %vm1782, %v2749, 0
      %v2819 = vsel %vm1782, %v2750, 0
      %v2822 = vsel %vm1782, %v2751, 0
      %v2825 = vsel %vm1782, %v2752, 0
      %v2828 = vsel %vm1782, %v2753, 0
      %v2831 = vsel %vm1782, %v2754, 0
      %v2834 = vsel %vm1782, %v2755, 0
      %2836 = vmatprep.subr.bf16.mxu0 0
      %2837 = vmatpush1.bf16.xpose.msra.mxu0 %v2813
      %2838 = vmatprep.subr.bf16.mxu0 0
      %2839 = vmatpush1.bf16.xpose.msra.mxu0 %v2816
      %2840 = vmatprep.subr.bf16.mxu0 0
      %2841 = vmatpush1.bf16.xpose.msra.mxu0 %v2819
      %2842 = vmatprep.subr.bf16.mxu0 0
      %2843 = vmatpush1.bf16.xpose.msra.mxu0 %v2822
      %2844 = vmatprep.subr.bf16.mxu0 0
      %2845 = vmatpush1.bf16.xpose.msra.mxu0 %v2825
      %2846 = vmatprep.subr.bf16.mxu0 0
      %2847 = vmatpush1.bf16.xpose.msra.mxu0 %v2828
      %2848 = vmatprep.subr.bf16.mxu0 0
      %2849 = vmatpush1.bf16.xpose.msra.mxu0 %v2831
      %2850 = vmatprep.subr.bf16.mxu0 0
      %2851 = vmatpush1.bf16.xpose.msra.mxu0 %v2834
      %2852 = vmatprep.subr.bf16.mxu0 0
      %2853 = vmatpush1.bf16.xpose.msra.mxu0 0
      %2854 = vmatprep.subr.bf16.mxu0 0
      %2855 = vmatpush1.bf16.xpose.msra.mxu0 0
      %2856 = vmatprep.subr.bf16.mxu0 0
      %2857 = vmatpush1.bf16.xpose.msra.mxu0 0
      %2858 = vmatprep.subr.bf16.mxu0 0
      %2859 = vmatpush1.bf16.xpose.msra.mxu0 0
      %2860 = vmatprep.subr.bf16.mxu0 0
      %2861 = vmatpush1.bf16.xpose.msra.mxu0 0
      %2862 = vmatprep.subr.bf16.mxu0 0
      %2863 = vmatpush1.bf16.xpose.msra.mxu0 0
      %2864 = vmatprep.subr.bf16.mxu0 0
      %2865 = vmatpush1.bf16.xpose.msra.mxu0 0
      %2866 = vmatprep.subr.bf16.mxu0 0
      %2867 = vmatpush1.bf16.xpose.msra.mxu0 0
      %2868 = vmatprep.mubr.bf16.mxu0 0
      %2869 = vmatmul.mubr.bf16.gmra.mrb[0].mxu0 %v2789
      %v2870 = vpop.f32.mrb[0].mxu0
      %v2871 = vadd.f32 %v1718, %v2870
      %v2872 = vpop.f32.mrb[0].mxu0
      %v2873 = vpop.f32.mrb[0].mxu0
      %v2874 = vadd.f32 %v1719, %v2873
      %v2875 = vpop.f32.mrb[0].mxu0
      %2876 = vmatprep.mubr.bf16.mxu0 0
      %2877 = vmatmul.mubr.bf16.gmra.mrb[0].mxu0 %v2792
      %v2878 = vpop.f32.mrb[0].mxu0
      %v2879 = vadd.f32 %v1720, %v2878
      %v2880 = vpop.f32.mrb[0].mxu0
      %v2881 = vpop.f32.mrb[0].mxu0
      %v2882 = vadd.f32 %v1721, %v2881
      %v2883 = vpop.f32.mrb[0].mxu0
      %2884 = vmatprep.mubr.bf16.mxu0 0
      %2885 = vmatmul.mubr.bf16.gmra.mrb[0].mxu0 %v2795
      %v2886 = vpop.f32.mrb[0].mxu0
      %v2887 = vadd.f32 %v1722, %v2886
      %v2888 = vpop.f32.mrb[0].mxu0
      %v2889 = vpop.f32.mrb[0].mxu0
      %v2890 = vadd.f32 %v1723, %v2889
      %v2891 = vpop.f32.mrb[0].mxu0
      %2892 = vmatprep.mubr.bf16.mxu0 0
      %2893 = vmatmul.mubr.bf16.gmra.mrb[0].mxu0 %v2798
      %v2894 = vpop.f32.mrb[0].mxu0
      %v2895 = vadd.f32 %v1724, %v2894
      %v2896 = vpop.f32.mrb[0].mxu0
      %v2897 = vpop.f32.mrb[0].mxu0
      %v2898 = vadd.f32 %v1725, %v2897
      %v2899 = vpop.f32.mrb[0].mxu0
      %2900 = vmatprep.mubr.bf16.mxu0 0
      %2901 = vmatmul.mubr.bf16.gmra.mrb[0].mxu0 %v2801
      %v2902 = vpop.f32.mrb[0].mxu0
      %v2903 = vadd.f32 %v1726, %v2902
      %v2904 = vpop.f32.mrb[0].mxu0
      %v2905 = vpop.f32.mrb[0].mxu0
      %v2906 = vadd.f32 %v1727, %v2905
      %v2907 = vpop.f32.mrb[0].mxu0
      %2908 = vmatprep.mubr.bf16.mxu0 0
      %2909 = vmatmul.mubr.bf16.gmra.mrb[0].mxu0 %v2804
      %v2910 = vpop.f32.mrb[0].mxu0
      %v2911 = vadd.f32 %v1728, %v2910
      %v2912 = vpop.f32.mrb[0].mxu0
      %v2913 = vpop.f32.mrb[0].mxu0
      %v2914 = vadd.f32 %v1729, %v2913
      %v2915 = vpop.f32.mrb[0].mxu0
      %2916 = vmatprep.mubr.bf16.mxu0 0
      %2917 = vmatmul.mubr.bf16.gmra.mrb[0].mxu0 %v2807
      %v2918 = vpop.f32.mrb[0].mxu0
      %v2919 = vadd.f32 %v1730, %v2918
      %v2920 = vpop.f32.mrb[0].mxu0
      %v2921 = vpop.f32.mrb[0].mxu0
      %v2922 = vadd.f32 %v1731, %v2921
      %v2923 = vpop.f32.mrb[0].mxu0
      %2924 = vmatprep.mubr.bf16.mxu0 0
      %2925 = vmatmul.mubr.bf16.gmra.mrb[0].mxu0 %v2810
      %v2926 = vpop.f32.mrb[0].mxu0
      %v2927 = vadd.f32 %v1732, %v2926
      %v2928 = vpop.f32.mrb[0].mxu0
      %v2929 = vpop.f32.mrb[0].mxu0
      %v2930 = vadd.f32 %v1733, %v2929
      %v2931 = vpop.f32.mrb[0].mxu0
      %2932 = vdwg.mxu0
      %2933 = vmax.xlane.f32.xlu0 %v2871
      %v2934 = vpop.xlane.xlu0 %2933
      %2935 = vmax.xlane.f32.xlu0 %v2874
      %v2936 = vpop.xlane.xlu0 %2935
      %2937 = vmax.xlane.f32.xlu0 %v2879
      %v2938 = vpop.xlane.xlu0 %2937
      %2939 = vmax.xlane.f32.xlu0 %v2882
      %v2940 = vpop.xlane.xlu0 %2939
      %2941 = vmax.xlane.f32.xlu0 %v2887
      %v2942 = vpop.xlane.xlu0 %2941
      %2943 = vmax.xlane.f32.xlu0 %v2890
      %v2944 = vpop.xlane.xlu0 %2943
      %2945 = vmax.xlane.f32.xlu0 %v2895
      %v2946 = vpop.xlane.xlu0 %2945
      %2947 = vmax.xlane.f32.xlu0 %v2898
      %v2948 = vpop.xlane.xlu0 %2947
      %2949 = vmax.xlane.f32.xlu0 %v2903
      %v2950 = vpop.xlane.xlu0 %2949
      %2951 = vmax.xlane.f32.xlu0 %v2906
      %v2952 = vpop.xlane.xlu0 %2951
      %2953 = vmax.xlane.f32.xlu0 %v2911
      %v2954 = vpop.xlane.xlu0 %2953
      %2955 = vmax.xlane.f32.xlu0 %v2914
      %v2956 = vpop.xlane.xlu0 %2955
      %2957 = vmax.xlane.f32.xlu0 %v2919
      %v2958 = vpop.xlane.xlu0 %2957
      %2959 = vmax.xlane.f32.xlu0 %v2922
      %v2960 = vpop.xlane.xlu0 %2959
      %2961 = vmax.xlane.f32.xlu0 %v2927
      %v2962 = vpop.xlane.xlu0 %2961
      %2963 = vmax.xlane.f32.xlu0 %v2930
      %v2964 = vpop.xlane.xlu0 %2963
      %v2965 = vsub.f32 %v2871, %v2934
      %v2966 = vsub.f32 %v2874, %v2936
      %v2967 = vsub.f32 %v2879, %v2938
      %v2968 = vsub.f32 %v2882, %v2940
      %v2969 = vsub.f32 %v2887, %v2942
      %v2970 = vsub.f32 %v2890, %v2944
      %v2971 = vsub.f32 %v2895, %v2946
      %v2972 = vsub.f32 %v2898, %v2948
      %v2973 = vsub.f32 %v2903, %v2950
      %v2974 = vsub.f32 %v2906, %v2952
      %v2975 = vsub.f32 %v2911, %v2954
      %v2976 = vsub.f32 %v2914, %v2956
      %v2977 = vsub.f32 %v2919, %v2958
      %v2978 = vsub.f32 %v2922, %v2960
      %v2979 = vsub.f32 %v2927, %v2962
      %v2980 = vsub.f32 %v2930, %v2964
      %v2981 = vmul.f32 %v2965, 1.442695
      %v2982 = vpow.pop %v2981
      %v2983 = vmul.f32 %v2966, 1.442695
      %v2984 = vpow.pop %v2983
      %v2985 = vmul.f32 %v2967, 1.442695
      %v2986 = vpow.pop %v2985
      %v2987 = vmul.f32 %v2968, 1.442695
      %v2988 = vpow.pop %v2987
      %v2989 = vmul.f32 %v2969, 1.442695
      %v2990 = vpow.pop %v2989
      %v2991 = vmul.f32 %v2970, 1.442695
      %v2992 = vpow.pop %v2991
      %v2993 = vmul.f32 %v2971, 1.442695
      %v2994 = vpow.pop %v2993
      %v2995 = vmul.f32 %v2972, 1.442695
      %v2996 = vpow.pop %v2995
      %v2997 = vmul.f32 %v2973, 1.442695
      %v2998 = vpow.pop %v2997
      %v2999 = vmul.f32 %v2974, 1.442695
      %v3000 = vpow.pop %v2999
      %v3001 = vmul.f32 %v2975, 1.442695
      %v3002 = vpow.pop %v3001
      %v3003 = vmul.f32 %v2976, 1.442695
      %v3004 = vpow.pop %v3003
      %v3005 = vmul.f32 %v2977, 1.442695
      %v3006 = vpow.pop %v3005
      %v3007 = vmul.f32 %v2978, 1.442695
      %v3008 = vpow.pop %v3007
      %v3009 = vmul.f32 %v2979, 1.442695
      %v3010 = vpow.pop %v3009
      %v3011 = vmul.f32 %v2980, 1.442695
      %v3012 = vpow.pop %v3011
      %3013 = vadd.xlane.f32.xlu0 %v2982
      %v3014 = vpop.xlane.xlu0 %3013
      %3015 = vadd.xlane.f32.xlu0 %v2984
      %v3016 = vpop.xlane.xlu0 %3015
      %3017 = vadd.xlane.f32.xlu0 %v2986
      %v3018 = vpop.xlane.xlu0 %3017
      %3019 = vadd.xlane.f32.xlu0 %v2988
      %v3020 = vpop.xlane.xlu0 %3019
      %3021 = vadd.xlane.f32.xlu0 %v2990
      %v3022 = vpop.xlane.xlu0 %3021
      %3023 = vadd.xlane.f32.xlu0 %v2992
      %v3024 = vpop.xlane.xlu0 %3023
      %3025 = vadd.xlane.f32.xlu0 %v2994
      %v3026 = vpop.xlane.xlu0 %3025
      %3027 = vadd.xlane.f32.xlu0 %v2996
      %v3028 = vpop.xlane.xlu0 %3027
      %3029 = vadd.xlane.f32.xlu0 %v2998
      %v3030 = vpop.xlane.xlu0 %3029
      %3031 = vadd.xlane.f32.xlu0 %v3000
      %v3032 = vpop.xlane.xlu0 %3031
      %3033 = vadd.xlane.f32.xlu0 %v3002
      %v3034 = vpop.xlane.xlu0 %3033
      %3035 = vadd.xlane.f32.xlu0 %v3004
      %v3036 = vpop.xlane.xlu0 %3035
      %3037 = vadd.xlane.f32.xlu0 %v3006
      %v3038 = vpop.xlane.xlu0 %3037
      %3039 = vadd.xlane.f32.xlu0 %v3008
      %v3040 = vpop.xlane.xlu0 %3039
      %3041 = vadd.xlane.f32.xlu0 %v3010
      %v3042 = vpop.xlane.xlu0 %3041
      %3043 = vadd.xlane.f32.xlu0 %v3012
      %v3044 = vpop.xlane.xlu0 %3043
      %v3045 = vrcp.pop %v3014
      %v3046 = vrcp.pop %v3016
      %v3047 = vrcp.pop %v3018
      %v3048 = vrcp.pop %v3020
      %v3049 = vrcp.pop %v3022
      %v3050 = vrcp.pop %v3024
      %v3051 = vrcp.pop %v3026
      %v3052 = vrcp.pop %v3028
      %v3053 = vrcp.pop %v3030
      %v3054 = vrcp.pop %v3032
      %v3055 = vrcp.pop %v3034
      %v3056 = vrcp.pop %v3036
      %v3057 = vrcp.pop %v3038
      %v3058 = vrcp.pop %v3040
      %v3059 = vrcp.pop %v3042
      %v3060 = vrcp.pop %v3044
      %v3061 = vmul.f32 %v2982, %v3045
      %v3062 = vmul.f32 %v2984, %v3046
      %v3063 = vmul.f32 %v2986, %v3047
      %v3064 = vmul.f32 %v2988, %v3048
      %v3065 = vmul.f32 %v2990, %v3049
      %v3066 = vmul.f32 %v2992, %v3050
      %v3067 = vmul.f32 %v2994, %v3051
      %v3068 = vmul.f32 %v2996, %v3052
      %v3069 = vmul.f32 %v2998, %v3053
      %v3070 = vmul.f32 %v3000, %v3054
      %v3071 = vmul.f32 %v3002, %v3055
      %v3072 = vmul.f32 %v3004, %v3056
      %v3073 = vmul.f32 %v3006, %v3057
      %v3074 = vmul.f32 %v3008, %v3058
      %v3075 = vmul.f32 %v3010, %v3059
      %v3076 = vmul.f32 %v3012, %v3060
      %v3077 = vpack.c.bf16 %v3062, %v3061
      %v3078 = vpack.c.bf16 %v3064, %v3063
      %v3079 = vpack.c.bf16 %v3066, %v3065
      %v3080 = vpack.c.bf16 %v3068, %v3067
      %v3081 = vpack.c.bf16 %v3070, %v3069
      %v3082 = vpack.c.bf16 %v3072, %v3071
      %v3083 = vpack.c.bf16 %v3074, %v3073
      %v3084 = vpack.c.bf16 %v3076, %v3075
      %3093 = vrot.lane.b32.xlu0 %v2756, 64
      %v3094 = vpop.permute.xlu0 %3093
      %3095 = vrot.lane.b32.xlu0 %v2757, 64
      %v3096 = vpop.permute.xlu0 %3095
      %3097 = vrot.lane.b32.xlu0 %v2758, 64
      %v3098 = vpop.permute.xlu0 %3097
      %3099 = vrot.lane.b32.xlu0 %v2759, 64
      %v3100 = vpop.permute.xlu0 %3099
      %3101 = vrot.lane.b32.xlu0 %v2760, 64
      %v3102 = vpop.permute.xlu0 %3101
      %3103 = vrot.lane.b32.xlu0 %v2761, 64
      %v3104 = vpop.permute.xlu0 %3103
      %3105 = vrot.lane.b32.xlu0 %v2762, 64
      %v3106 = vpop.permute.xlu0 %3105
      %3107 = vrot.lane.b32.xlu0 %v2763, 64
      %v3108 = vpop.permute.xlu0 %3107
      %3117 = vmatprep.subr.bf16.mxu0 0
      %3118 = vmatpush1.bf16.msra.mxu0 %v3094
      %3119 = vmatprep.subr.bf16.mxu0 0
      %3120 = vmatpush1.bf16.msra.mxu0 %v3096
      %3121 = vmatprep.subr.bf16.mxu0 0
      %3122 = vmatpush1.bf16.msra.mxu0 %v3098
      %3123 = vmatprep.subr.bf16.mxu0 0
      %3124 = vmatpush1.bf16.msra.mxu0 %v3100
      %3125 = vmatprep.subr.bf16.mxu0 0
      %3126 = vmatpush1.bf16.msra.mxu0 %v3102
      %3127 = vmatprep.subr.bf16.mxu0 0
      %3128 = vmatpush1.bf16.msra.mxu0 %v3104
      %3129 = vmatprep.subr.bf16.mxu0 0
      %3130 = vmatpush1.bf16.msra.mxu0 %v3106
      %3131 = vmatprep.subr.bf16.mxu0 0
      %3132 = vmatpush1.bf16.msra.mxu0 %v3108
      %3133 = vmatprep.subr.bf16.mxu0 0
      %3134 = vmatpush1.bf16.msra.mxu0 0
      %3135 = vmatprep.subr.bf16.mxu0 0
      %3136 = vmatpush1.bf16.msra.mxu0 0
      %3137 = vmatprep.subr.bf16.mxu0 0
      %3138 = vmatpush1.bf16.msra.mxu0 0
      %3139 = vmatprep.subr.bf16.mxu0 0
      %3140 = vmatpush1.bf16.msra.mxu0 0
      %3141 = vmatprep.subr.bf16.mxu0 0
      %3142 = vmatpush1.bf16.msra.mxu0 0
      %3143 = vmatprep.subr.bf16.mxu0 0
      %3144 = vmatpush1.bf16.msra.mxu0 0
      %3145 = vmatprep.subr.bf16.mxu0 0
      %3146 = vmatpush1.bf16.msra.mxu0 0
      %3147 = vmatprep.subr.bf16.mxu0 0
      %3148 = vmatpush1.bf16.msra.mxu0 0
      %3149 = vmatprep.mubr.bf16.mxu0 0
      %3150 = vmatmul.mubr.bf16.gmra.mrb[0].mxu0 %v3077
      %v3151 = vpop.f32.mrb[0].mxu0
      %v3152 = vadd.f32 0.0, %v3151
      %v3153 = vpop.f32.mrb[0].mxu0
      %v3154 = vpop.f32.mrb[0].mxu0
      %v3155 = vadd.f32 0.0, %v3154
      %v3156 = vpop.f32.mrb[0].mxu0
      %3157 = vmatprep.mubr.bf16.mxu0 0
      %3158 = vmatmul.mubr.bf16.gmra.mrb[0].mxu0 %v3078
      %v3159 = vpop.f32.mrb[0].mxu0
      %v3160 = vadd.f32 0.0, %v3159
      %v3161 = vpop.f32.mrb[0].mxu0
      %v3162 = vpop.f32.mrb[0].mxu0
      %v3163 = vadd.f32 0.0, %v3162
      %v3164 = vpop.f32.mrb[0].mxu0
      %3165 = vmatprep.mubr.bf16.mxu0 0
      %3166 = vmatmul.mubr.bf16.gmra.mrb[0].mxu0 %v3079
      %v3167 = vpop.f32.mrb[0].mxu0
      %v3168 = vadd.f32 0.0, %v3167
      %v3169 = vpop.f32.mrb[0].mxu0
      %v3170 = vpop.f32.mrb[0].mxu0
      %v3171 = vadd.f32 0.0, %v3170
      %v3172 = vpop.f32.mrb[0].mxu0
      %3173 = vmatprep.mubr.bf16.mxu0 0
      %3174 = vmatmul.mubr.bf16.gmra.mrb[0].mxu0 %v3080
      %v3175 = vpop.f32.mrb[0].mxu0
      %v3176 = vadd.f32 0.0, %v3175
      %v3177 = vpop.f32.mrb[0].mxu0
      %v3178 = vpop.f32.mrb[0].mxu0
      %v3179 = vadd.f32 0.0, %v3178
      %v3180 = vpop.f32.mrb[0].mxu0
      %3181 = vmatprep.mubr.bf16.mxu0 0
      %3182 = vmatmul.mubr.bf16.gmra.mrb[0].mxu0 %v3081
      %v3183 = vpop.f32.mrb[0].mxu0
      %v3184 = vadd.f32 0.0, %v3183
      %v3185 = vpop.f32.mrb[0].mxu0
      %v3186 = vpop.f32.mrb[0].mxu0
      %v3187 = vadd.f32 0.0, %v3186
      %v3188 = vpop.f32.mrb[0].mxu0
      %3189 = vmatprep.mubr.bf16.mxu0 0
      %3190 = vmatmul.mubr.bf16.gmra.mrb[0].mxu0 %v3082
      %v3191 = vpop.f32.mrb[0].mxu0
      %v3192 = vadd.f32 0.0, %v3191
      %v3193 = vpop.f32.mrb[0].mxu0
      %v3194 = vpop.f32.mrb[0].mxu0
      %v3195 = vadd.f32 0.0, %v3194
      %v3196 = vpop.f32.mrb[0].mxu0
      %3197 = vmatprep.mubr.bf16.mxu0 0
      %3198 = vmatmul.mubr.bf16.gmra.mrb[0].mxu0 %v3083
      %v3199 = vpop.f32.mrb[0].mxu0
      %v3200 = vadd.f32 0.0, %v3199
      %v3201 = vpop.f32.mrb[0].mxu0
      %v3202 = vpop.f32.mrb[0].mxu0
      %v3203 = vadd.f32 0.0, %v3202
      %v3204 = vpop.f32.mrb[0].mxu0
      %3205 = vmatprep.mubr.bf16.mxu0 0
      %3206 = vmatmul.mubr.bf16.gmra.mrb[0].mxu0 %v3084
      %v3207 = vpop.f32.mrb[0].mxu0
      %v3208 = vadd.f32 0.0, %v3207
      %v3209 = vpop.f32.mrb[0].mxu0
      %v3210 = vpop.f32.mrb[0].mxu0
      %v3211 = vadd.f32 0.0, %v3210
      %v3212 = vpop.f32.mrb[0].mxu0
      %3213 = vdwg.mxu0
      %v3214 = vpack.c.bf16 %v3155, %v3152
      %v3215 = vpack.c.bf16 %v3163, %v3160
      %v3216 = vpack.c.bf16 %v3171, %v3168
      %v3217 = vpack.c.bf16 %v3179, %v3176
      %v3218 = vpack.c.bf16 %v3187, %v3184
      %v3219 = vpack.c.bf16 %v3195, %v3192
      %v3220 = vpack.c.bf16 %v3203, %v3200
      %v3221 = vpack.c.bf16 %v3211, %v3208
      %3230 = vrot.lane.b32.xlu0 %v3214, 64
      %v3231 = vpop.permute.xlu0 %3230
      %3232 = vrot.lane.b32.xlu0 %v3215, 64
      %v3233 = vpop.permute.xlu0 %3232
      %3234 = vrot.lane.b32.xlu0 %v3216, 64
      %v3235 = vpop.permute.xlu0 %3234
      %3236 = vrot.lane.b32.xlu0 %v3217, 64
      %v3237 = vpop.permute.xlu0 %3236
      %3238 = vrot.lane.b32.xlu0 %v3218, 64
      %v3239 = vpop.permute.xlu0 %3238
      %3240 = vrot.lane.b32.xlu0 %v3219, 64
      %v3241 = vpop.permute.xlu0 %3240
      %3242 = vrot.lane.b32.xlu0 %v3220, 64
      %v3243 = vpop.permute.xlu0 %3242
      %3244 = vrot.lane.b32.xlu0 %v3221, 64
      %v3245 = vpop.permute.xlu0 %3244
      %vm3254 = vcmask 785920
      %3255 = vst.msk [vmem:[#allocation3] sm:$0xff] %vm3254, %v3231
      %3256 = vst.msk [vmem:[#allocation3 + $0x10] sm:$0xff] %vm3254, %v3233
      %3257 = vst.msk [vmem:[#allocation3 + $0x20] sm:$0xff] %vm3254, %v3235
      %3258 = vst.msk [vmem:[#allocation3 + $0x30] sm:$0xff] %vm3254, %v3237
      %3259 = vst.msk [vmem:[#allocation3 + $0x40] sm:$0xff] %vm3254, %v3239
      %3260 = vst.msk [vmem:[#allocation3 + $0x50] sm:$0xff] %vm3254, %v3241
      %3261 = vst.msk [vmem:[#allocation3 + $0x60] sm:$0xff] %vm3254, %v3243
      %3262 = vst.msk [vmem:[#allocation3 + $0x70] sm:$0xff] %vm3254, %v3245
      %v3263 = vld [vmem:[#allocation2] sm:$0xff]
      %v3264 = vld [vmem:[#allocation2 + $0x28] sm:$0xff]
      %v3265 = vld [vmem:[#allocation2 + $0x50] sm:$0xff]
      %v3266 = vld [vmem:[#allocation2 + $0x78] sm:$0xff]
      %v3267 = vld [vmem:[#allocation2 + $0xa0] sm:$0xff]
      %v3268 = vld [vmem:[#allocation2 + $0xc8] sm:$0xff]
      %v3269 = vld [vmem:[#allocation2 + $0xf0] sm:$0xff]
      %v3270 = vld [vmem:[#allocation2 + $0x118] sm:$0xff]
      %v3271 = vld [vmem:[#allocation2 + $0x10] sm:$0xff]
      %v3272 = vld [vmem:[#allocation2 + $0x38] sm:$0xff]
      %v3273 = vld [vmem:[#allocation2 + $0x60] sm:$0xff]
      %v3274 = vld [vmem:[#allocation2 + $0x88] sm:$0xff]
      %v3275 = vld [vmem:[#allocation2 + $0xb0] sm:$0xff]
      %v3276 = vld [vmem:[#allocation2 + $0xd8] sm:$0xff]
      %v3277 = vld [vmem:[#allocation2 + $0x100] sm:$0xff]
      %v3278 = vld [vmem:[#allocation2 + $0x128] sm:$0xff]
      %v3279 = vld [vmem:[#allocation2 + $0x18] sm:$0xff]
      %v3280 = vld [vmem:[#allocation2 + $0x40] sm:$0xff]
      %v3281 = vld [vmem:[#allocation2 + $0x68] sm:$0xff]
      %v3282 = vld [vmem:[#allocation2 + $0x90] sm:$0xff]
      %v3283 = vld [vmem:[#allocation2 + $0xb8] sm:$0xff]
      %v3284 = vld [vmem:[#allocation2 + $0xe0] sm:$0xff]
      %v3285 = vld [vmem:[#allocation2 + $0x108] sm:$0xff]
      %v3286 = vld [vmem:[#allocation2 + $0x130] sm:$0xff]
      %3295 = vrot.lane.b32.xlu0 %v3263, 32
      %v3296 = vpop.permute.xlu0 %3295
      %3297 = vrot.lane.b32.xlu0 %v3264, 32
      %v3298 = vpop.permute.xlu0 %3297
      %3299 = vrot.lane.b32.xlu0 %v3265, 32
      %v3300 = vpop.permute.xlu0 %3299
      %3301 = vrot.lane.b32.xlu0 %v3266, 32
      %v3302 = vpop.permute.xlu0 %3301
      %3303 = vrot.lane.b32.xlu0 %v3267, 32
      %v3304 = vpop.permute.xlu0 %3303
      %3305 = vrot.lane.b32.xlu0 %v3268, 32
      %v3306 = vpop.permute.xlu0 %3305
      %3307 = vrot.lane.b32.xlu0 %v3269, 32
      %v3308 = vpop.permute.xlu0 %3307
      %3309 = vrot.lane.b32.xlu0 %v3270, 32
      %v3310 = vpop.permute.xlu0 %3309
      %3319 = vrot.lane.b32.xlu0 %v3271, 96
      %v3320 = vpop.permute.xlu0 %3319
      %3321 = vrot.lane.b32.xlu0 %v3272, 96
      %v3322 = vpop.permute.xlu0 %3321
      %3323 = vrot.lane.b32.xlu0 %v3273, 96
      %v3324 = vpop.permute.xlu0 %3323
      %3325 = vrot.lane.b32.xlu0 %v3274, 96
      %v3326 = vpop.permute.xlu0 %3325
      %3327 = vrot.lane.b32.xlu0 %v3275, 96
      %v3328 = vpop.permute.xlu0 %3327
      %3329 = vrot.lane.b32.xlu0 %v3276, 96
      %v3330 = vpop.permute.xlu0 %3329
      %3331 = vrot.lane.b32.xlu0 %v3277, 96
      %v3332 = vpop.permute.xlu0 %3331
      %3333 = vrot.lane.b32.xlu0 %v3278, 96
      %v3334 = vpop.permute.xlu0 %3333
      %v3336 = vsel %vm1782, %v3296, 0
      %v3339 = vsel %vm1782, %v3298, 0
      %v3342 = vsel %vm1782, %v3300, 0
      %v3345 = vsel %vm1782, %v3302, 0
      %v3348 = vsel %vm1782, %v3304, 0
      %v3351 = vsel %vm1782, %v3306, 0
      %v3354 = vsel %vm1782, %v3308, 0
      %v3357 = vsel %vm1782, %v3310, 0
      %v3360 = vsel %vm1782, %v3320, 0
      %v3363 = vsel %vm1782, %v3322, 0
      %v3366 = vsel %vm1782, %v3324, 0
      %v3369 = vsel %vm1782, %v3326, 0
      %v3372 = vsel %vm1782, %v3328, 0
      %v3375 = vsel %vm1782, %v3330, 0
      %v3378 = vsel %vm1782, %v3332, 0
      %v3381 = vsel %vm1782, %v3334, 0
      %3383 = vmatprep.subr.bf16.mxu0 0
      %3384 = vmatpush1.bf16.xpose.msra.mxu0 %v3360
      %3385 = vmatprep.subr.bf16.mxu0 0
      %3386 = vmatpush1.bf16.xpose.msra.mxu0 %v3363
      %3387 = vmatprep.subr.bf16.mxu0 0
      %3388 = vmatpush1.bf16.xpose.msra.mxu0 %v3366
      %3389 = vmatprep.subr.bf16.mxu0 0
      %3390 = vmatpush1.bf16.xpose.msra.mxu0 %v3369
      %3391 = vmatprep.subr.bf16.mxu0 0
      %3392 = vmatpush1.bf16.xpose.msra.mxu0 %v3372
      %3393 = vmatprep.subr.bf16.mxu0 0
      %3394 = vmatpush1.bf16.xpose.msra.mxu0 %v3375
      %3395 = vmatprep.subr.bf16.mxu0 0
      %3396 = vmatpush1.bf16.xpose.msra.mxu0 %v3378
      %3397 = vmatprep.subr.bf16.mxu0 0
      %3398 = vmatpush1.bf16.xpose.msra.mxu0 %v3381
      %3399 = vmatprep.subr.bf16.mxu0 0
      %3400 = vmatpush1.bf16.xpose.msra.mxu0 0
      %3401 = vmatprep.subr.bf16.mxu0 0
      %3402 = vmatpush1.bf16.xpose.msra.mxu0 0
      %3403 = vmatprep.subr.bf16.mxu0 0
      %3404 = vmatpush1.bf16.xpose.msra.mxu0 0
      %3405 = vmatprep.subr.bf16.mxu0 0
      %3406 = vmatpush1.bf16.xpose.msra.mxu0 0
      %3407 = vmatprep.subr.bf16.mxu0 0
      %3408 = vmatpush1.bf16.xpose.msra.mxu0 0
      %3409 = vmatprep.subr.bf16.mxu0 0
      %3410 = vmatpush1.bf16.xpose.msra.mxu0 0
      %3411 = vmatprep.subr.bf16.mxu0 0
      %3412 = vmatpush1.bf16.xpose.msra.mxu0 0
      %3413 = vmatprep.subr.bf16.mxu0 0
      %3414 = vmatpush1.bf16.xpose.msra.mxu0 0
      %3415 = vmatprep.mubr.bf16.mxu0 0
      %3416 = vmatmul.mubr.bf16.gmra.mrb[0].mxu0 %v3336
      %v3417 = vpop.f32.mrb[0].mxu0
      %v3418 = vadd.f32 %v1718, %v3417
      %v3419 = vpop.f32.mrb[0].mxu0
      %v3420 = vpop.f32.mrb[0].mxu0
      %v3421 = vadd.f32 %v1719, %v3420
      %v3422 = vpop.f32.mrb[0].mxu0
      %3423 = vmatprep.mubr.bf16.mxu0 0
      %3424 = vmatmul.mubr.bf16.gmra.mrb[0].mxu0 %v3339
      %v3425 = vpop.f32.mrb[0].mxu0
      %v3426 = vadd.f32 %v1720, %v3425
      %v3427 = vpop.f32.mrb[0].mxu0
      %v3428 = vpop.f32.mrb[0].mxu0
      %v3429 = vadd.f32 %v1721, %v3428
      %v3430 = vpop.f32.mrb[0].mxu0
      %3431 = vmatprep.mubr.bf16.mxu0 0
      %3432 = vmatmul.mubr.bf16.gmra.mrb[0].mxu0 %v3342
      %v3433 = vpop.f32.mrb[0].mxu0
      %v3434 = vadd.f32 %v1722, %v3433
      %v3435 = vpop.f32.mrb[0].mxu0
      %v3436 = vpop.f32.mrb[0].mxu0
      %v3437 = vadd.f32 %v1723, %v3436
      %v3438 = vpop.f32.mrb[0].mxu0
      %3439 = vmatprep.mubr.bf16.mxu0 0
      %3440 = vmatmul.mubr.bf16.gmra.mrb[0].mxu0 %v3345
      %v3441 = vpop.f32.mrb[0].mxu0
      %v3442 = vadd.f32 %v1724, %v3441
      %v3443 = vpop.f32.mrb[0].mxu0
      %v3444 = vpop.f32.mrb[0].mxu0
      %v3445 = vadd.f32 %v1725, %v3444
      %v3446 = vpop.f32.mrb[0].mxu0
      %3447 = vmatprep.mubr.bf16.mxu0 0
      %3448 = vmatmul.mubr.bf16.gmra.mrb[0].mxu0 %v3348
      %v3449 = vpop.f32.mrb[0].mxu0
      %v3450 = vadd.f32 %v1726, %v3449
      %v3451 = vpop.f32.mrb[0].mxu0
      %v3452 = vpop.f32.mrb[0].mxu0
      %v3453 = vadd.f32 %v1727, %v3452
      %v3454 = vpop.f32.mrb[0].mxu0
      %3455 = vmatprep.mubr.bf16.mxu0 0
      %3456 = vmatmul.mubr.bf16.gmra.mrb[0].mxu0 %v3351
      %v3457 = vpop.f32.mrb[0].mxu0
      %v3458 = vadd.f32 %v1728, %v3457
      %v3459 = vpop.f32.mrb[0].mxu0
      %v3460 = vpop.f32.mrb[0].mxu0
      %v3461 = vadd.f32 %v1729, %v3460
      %v3462 = vpop.f32.mrb[0].mxu0
      %3463 = vmatprep.mubr.bf16.mxu0 0
      %3464 = vmatmul.mubr.bf16.gmra.mrb[0].mxu0 %v3354
      %v3465 = vpop.f32.mrb[0].mxu0
      %v3466 = vadd.f32 %v1730, %v3465
      %v3467 = vpop.f32.mrb[0].mxu0
      %v3468 = vpop.f32.mrb[0].mxu0
      %v3469 = vadd.f32 %v1731, %v3468
      %v3470 = vpop.f32.mrb[0].mxu0
      %3471 = vmatprep.mubr.bf16.mxu0 0
      %3472 = vmatmul.mubr.bf16.gmra.mrb[0].mxu0 %v3357
      %v3473 = vpop.f32.mrb[0].mxu0
      %v3474 = vadd.f32 %v1732, %v3473
      %v3475 = vpop.f32.mrb[0].mxu0
      %v3476 = vpop.f32.mrb[0].mxu0
      %v3477 = vadd.f32 %v1733, %v3476
      %v3478 = vpop.f32.mrb[0].mxu0
      %3479 = vdwg.mxu0
      %3480 = vmax.xlane.f32.xlu0 %v3418
      %v3481 = vpop.xlane.xlu0 %3480
      %3482 = vmax.xlane.f32.xlu0 %v3421
      %v3483 = vpop.xlane.xlu0 %3482
      %3484 = vmax.xlane.f32.xlu0 %v3426
      %v3485 = vpop.xlane.xlu0 %3484
      %3486 = vmax.xlane.f32.xlu0 %v3429
      %v3487 = vpop.xlane.xlu0 %3486
      %3488 = vmax.xlane.f32.xlu0 %v3434
      %v3489 = vpop.xlane.xlu0 %3488
      %3490 = vmax.xlane.f32.xlu0 %v3437
      %v3491 = vpop.xlane.xlu0 %3490
      %3492 = vmax.xlane.f32.xlu0 %v3442
      %v3493 = vpop.xlane.xlu0 %3492
      %3494 = vmax.xlane.f32.xlu0 %v3445
      %v3495 = vpop.xlane.xlu0 %3494
      %3496 = vmax.xlane.f32.xlu0 %v3450
      %v3497 = vpop.xlane.xlu0 %3496
      %3498 = vmax.xlane.f32.xlu0 %v3453
      %v3499 = vpop.xlane.xlu0 %3498
      %3500 = vmax.xlane.f32.xlu0 %v3458
      %v3501 = vpop.xlane.xlu0 %3500
      %3502 = vmax.xlane.f32.xlu0 %v3461
      %v3503 = vpop.xlane.xlu0 %3502
      %3504 = vmax.xlane.f32.xlu0 %v3466
      %v3505 = vpop.xlane.xlu0 %3504
      %3506 = vmax.xlane.f32.xlu0 %v3469
      %v3507 = vpop.xlane.xlu0 %3506
      %3508 = vmax.xlane.f32.xlu0 %v3474
      %v3509 = vpop.xlane.xlu0 %3508
      %3510 = vmax.xlane.f32.xlu0 %v3477
      %v3511 = vpop.xlane.xlu0 %3510
      %v3512 = vsub.f32 %v3418, %v3481
      %v3513 = vsub.f32 %v3421, %v3483
      %v3514 = vsub.f32 %v3426, %v3485
      %v3515 = vsub.f32 %v3429, %v3487
      %v3516 = vsub.f32 %v3434, %v3489
      %v3517 = vsub.f32 %v3437, %v3491
      %v3518 = vsub.f32 %v3442, %v3493
      %v3519 = vsub.f32 %v3445, %v3495
      %v3520 = vsub.f32 %v3450, %v3497
      %v3521 = vsub.f32 %v3453, %v3499
      %v3522 = vsub.f32 %v3458, %v3501
      %v3523 = vsub.f32 %v3461, %v3503
      %v3524 = vsub.f32 %v3466, %v3505
      %v3525 = vsub.f32 %v3469, %v3507
      %v3526 = vsub.f32 %v3474, %v3509
      %v3527 = vsub.f32 %v3477, %v3511
      %v3528 = vmul.f32 %v3512, 1.442695
      %v3529 = vpow.pop %v3528
      %v3530 = vmul.f32 %v3513, 1.442695
      %v3531 = vpow.pop %v3530
      %v3532 = vmul.f32 %v3514, 1.442695
      %v3533 = vpow.pop %v3532
      %v3534 = vmul.f32 %v3515, 1.442695
      %v3535 = vpow.pop %v3534
      %v3536 = vmul.f32 %v3516, 1.442695
      %v3537 = vpow.pop %v3536
      %v3538 = vmul.f32 %v3517, 1.442695
      %v3539 = vpow.pop %v3538
      %v3540 = vmul.f32 %v3518, 1.442695
      %v3541 = vpow.pop %v3540
      %v3542 = vmul.f32 %v3519, 1.442695
      %v3543 = vpow.pop %v3542
      %v3544 = vmul.f32 %v3520, 1.442695
      %v3545 = vpow.pop %v3544
      %v3546 = vmul.f32 %v3521, 1.442695
      %v3547 = vpow.pop %v3546
      %v3548 = vmul.f32 %v3522, 1.442695
      %v3549 = vpow.pop %v3548
      %v3550 = vmul.f32 %v3523, 1.442695
      %v3551 = vpow.pop %v3550
      %v3552 = vmul.f32 %v3524, 1.442695
      %v3553 = vpow.pop %v3552
      %v3554 = vmul.f32 %v3525, 1.442695
      %v3555 = vpow.pop %v3554
      %v3556 = vmul.f32 %v3526, 1.442695
      %v3557 = vpow.pop %v3556
      %v3558 = vmul.f32 %v3527, 1.442695
      %v3559 = vpow.pop %v3558
      %3560 = vadd.xlane.f32.xlu0 %v3529
      %v3561 = vpop.xlane.xlu0 %3560
      %3562 = vadd.xlane.f32.xlu0 %v3531
      %v3563 = vpop.xlane.xlu0 %3562
      %3564 = vadd.xlane.f32.xlu0 %v3533
      %v3565 = vpop.xlane.xlu0 %3564
      %3566 = vadd.xlane.f32.xlu0 %v3535
      %v3567 = vpop.xlane.xlu0 %3566
      %3568 = vadd.xlane.f32.xlu0 %v3537
      %v3569 = vpop.xlane.xlu0 %3568
      %3570 = vadd.xlane.f32.xlu0 %v3539
      %v3571 = vpop.xlane.xlu0 %3570
      %3572 = vadd.xlane.f32.xlu0 %v3541
      %v3573 = vpop.xlane.xlu0 %3572
      %3574 = vadd.xlane.f32.xlu0 %v3543
      %v3575 = vpop.xlane.xlu0 %3574
      %3576 = vadd.xlane.f32.xlu0 %v3545
      %v3577 = vpop.xlane.xlu0 %3576
      %3578 = vadd.xlane.f32.xlu0 %v3547
      %v3579 = vpop.xlane.xlu0 %3578
      %3580 = vadd.xlane.f32.xlu0 %v3549
      %v3581 = vpop.xlane.xlu0 %3580
      %3582 = vadd.xlane.f32.xlu0 %v3551
      %v3583 = vpop.xlane.xlu0 %3582
      %3584 = vadd.xlane.f32.xlu0 %v3553
      %v3585 = vpop.xlane.xlu0 %3584
      %3586 = vadd.xlane.f32.xlu0 %v3555
      %v3587 = vpop.xlane.xlu0 %3586
      %3588 = vadd.xlane.f32.xlu0 %v3557
      %v3589 = vpop.xlane.xlu0 %3588
      %3590 = vadd.xlane.f32.xlu0 %v3559
      %v3591 = vpop.xlane.xlu0 %3590
      %v3592 = vrcp.pop %v3561
      %v3593 = vrcp.pop %v3563
      %v3594 = vrcp.pop %v3565
      %v3595 = vrcp.pop %v3567
      %v3596 = vrcp.pop %v3569
      %v3597 = vrcp.pop %v3571
      %v3598 = vrcp.pop %v3573
      %v3599 = vrcp.pop %v3575
      %v3600 = vrcp.pop %v3577
      %v3601 = vrcp.pop %v3579
      %v3602 = vrcp.pop %v3581
      %v3603 = vrcp.pop %v3583
      %v3604 = vrcp.pop %v3585
      %v3605 = vrcp.pop %v3587
      %v3606 = vrcp.pop %v3589
      %v3607 = vrcp.pop %v3591
      %v3608 = vmul.f32 %v3529, %v3592
      %v3609 = vmul.f32 %v3531, %v3593
      %v3610 = vmul.f32 %v3533, %v3594
      %v3611 = vmul.f32 %v3535, %v3595
      %v3612 = vmul.f32 %v3537, %v3596
      %v3613 = vmul.f32 %v3539, %v3597
      %v3614 = vmul.f32 %v3541, %v3598
      %v3615 = vmul.f32 %v3543, %v3599
      %v3616 = vmul.f32 %v3545, %v3600
      %v3617 = vmul.f32 %v3547, %v3601
      %v3618 = vmul.f32 %v3549, %v3602
      %v3619 = vmul.f32 %v3551, %v3603
      %v3620 = vmul.f32 %v3553, %v3604
      %v3621 = vmul.f32 %v3555, %v3605
      %v3622 = vmul.f32 %v3557, %v3606
      %v3623 = vmul.f32 %v3559, %v3607
      %v3624 = vpack.c.bf16 %v3609, %v3608
      %v3625 = vpack.c.bf16 %v3611, %v3610
      %v3626 = vpack.c.bf16 %v3613, %v3612
      %v3627 = vpack.c.bf16 %v3615, %v3614
      %v3628 = vpack.c.bf16 %v3617, %v3616
      %v3629 = vpack.c.bf16 %v3619, %v3618
      %v3630 = vpack.c.bf16 %v3621, %v3620
      %v3631 = vpack.c.bf16 %v3623, %v3622
      %3640 = vrot.lane.b32.xlu0 %v3279, 32
      %v3641 = vpop.permute.xlu0 %3640
      %3642 = vrot.lane.b32.xlu0 %v3280, 32
      %v3643 = vpop.permute.xlu0 %3642
      %3644 = vrot.lane.b32.xlu0 %v3281, 32
      %v3645 = vpop.permute.xlu0 %3644
      %3646 = vrot.lane.b32.xlu0 %v3282, 32
      %v3647 = vpop.permute.xlu0 %3646
      %3648 = vrot.lane.b32.xlu0 %v3283, 32
      %v3649 = vpop.permute.xlu0 %3648
      %3650 = vrot.lane.b32.xlu0 %v3284, 32
      %v3651 = vpop.permute.xlu0 %3650
      %3652 = vrot.lane.b32.xlu0 %v3285, 32
      %v3653 = vpop.permute.xlu0 %3652
      %3654 = vrot.lane.b32.xlu0 %v3286, 32
      %v3655 = vpop.permute.xlu0 %3654
      %3664 = vmatprep.subr.bf16.mxu0 0
      %3665 = vmatpush1.bf16.msra.mxu0 %v3641
      %3666 = vmatprep.subr.bf16.mxu0 0
      %3667 = vmatpush1.bf16.msra.mxu0 %v3643
      %3668 = vmatprep.subr.bf16.mxu0 0
      %3669 = vmatpush1.bf16.msra.mxu0 %v3645
      %3670 = vmatprep.subr.bf16.mxu0 0
      %3671 = vmatpush1.bf16.msra.mxu0 %v3647
      %3672 = vmatprep.subr.bf16.mxu0 0
      %3673 = vmatpush1.bf16.msra.mxu0 %v3649
      %3674 = vmatprep.subr.bf16.mxu0 0
      %3675 = vmatpush1.bf16.msra.mxu0 %v3651
      %3676 = vmatprep.subr.bf16.mxu0 0
      %3677 = vmatpush1.bf16.msra.mxu0 %v3653
      %3678 = vmatprep.subr.bf16.mxu0 0
      %3679 = vmatpush1.bf16.msra.mxu0 %v3655
      %3680 = vmatprep.subr.bf16.mxu0 0
      %3681 = vmatpush1.bf16.msra.mxu0 0
      %3682 = vmatprep.subr.bf16.mxu0 0
      %3683 = vmatpush1.bf16.msra.mxu0 0
      %3684 = vmatprep.subr.bf16.mxu0 0
      %3685 = vmatpush1.bf16.msra.mxu0 0
      %3686 = vmatprep.subr.bf16.mxu0 0
      %3687 = vmatpush1.bf16.msra.mxu0 0
      %3688 = vmatprep.subr.bf16.mxu0 0
      %3689 = vmatpush1.bf16.msra.mxu0 0
      %3690 = vmatprep.subr.bf16.mxu0 0
      %3691 = vmatpush1.bf16.msra.mxu0 0
      %3692 = vmatprep.subr.bf16.mxu0 0
      %3693 = vmatpush1.bf16.msra.mxu0 0
      %3694 = vmatprep.subr.bf16.mxu0 0
      %3695 = vmatpush1.bf16.msra.mxu0 0
      %3696 = vmatprep.mubr.bf16.mxu0 0
      %3697 = vmatmul.mubr.bf16.gmra.mrb[0].mxu0 %v3624
      %v3698 = vpop.f32.mrb[0].mxu0
      %v3699 = vadd.f32 0.0, %v3698
      %v3700 = vpop.f32.mrb[0].mxu0
      %v3701 = vpop.f32.mrb[0].mxu0
      %v3702 = vadd.f32 0.0, %v3701
      %v3703 = vpop.f32.mrb[0].mxu0
      %3704 = vmatprep.mubr.bf16.mxu0 0
      %3705 = vmatmul.mubr.bf16.gmra.mrb[0].mxu0 %v3625
      %v3706 = vpop.f32.mrb[0].mxu0
      %v3707 = vadd.f32 0.0, %v3706
      %v3708 = vpop.f32.mrb[0].mxu0
      %v3709 = vpop.f32.mrb[0].mxu0
      %v3710 = vadd.f32 0.0, %v3709
      %v3711 = vpop.f32.mrb[0].mxu0
      %3712 = vmatprep.mubr.bf16.mxu0 0
      %3713 = vmatmul.mubr.bf16.gmra.mrb[0].mxu0 %v3626
      %v3714 = vpop.f32.mrb[0].mxu0
      %v3715 = vadd.f32 0.0, %v3714
      %v3716 = vpop.f32.mrb[0].mxu0
      %v3717 = vpop.f32.mrb[0].mxu0
      %v3718 = vadd.f32 0.0, %v3717
      %v3719 = vpop.f32.mrb[0].mxu0
      %3720 = vmatprep.mubr.bf16.mxu0 0
      %3721 = vmatmul.mubr.bf16.gmra.mrb[0].mxu0 %v3627
      %v3722 = vpop.f32.mrb[0].mxu0
      %v3723 = vadd.f32 0.0, %v3722
      %v3724 = vpop.f32.mrb[0].mxu0
      %v3725 = vpop.f32.mrb[0].mxu0
      %v3726 = vadd.f32 0.0, %v3725
      %v3727 = vpop.f32.mrb[0].mxu0
      %3728 = vmatprep.mubr.bf16.mxu0 0
      %3729 = vmatmul.mubr.bf16.gmra.mrb[0].mxu0 %v3628
      %v3730 = vpop.f32.mrb[0].mxu0
      %v3731 = vadd.f32 0.0, %v3730
      %v3732 = vpop.f32.mrb[0].mxu0
      %v3733 = vpop.f32.mrb[0].mxu0
      %v3734 = vadd.f32 0.0, %v3733
      %v3735 = vpop.f32.mrb[0].mxu0
      %3736 = vmatprep.mubr.bf16.mxu0 0
      %3737 = vmatmul.mubr.bf16.gmra.mrb[0].mxu0 %v3629
      %v3738 = vpop.f32.mrb[0].mxu0
      %v3739 = vadd.f32 0.0, %v3738
      %v3740 = vpop.f32.mrb[0].mxu0
      %v3741 = vpop.f32.mrb[0].mxu0
      %v3742 = vadd.f32 0.0, %v3741
      %v3743 = vpop.f32.mrb[0].mxu0
      %3744 = vmatprep.mubr.bf16.mxu0 0
      %3745 = vmatmul.mubr.bf16.gmra.mrb[0].mxu0 %v3630
      %v3746 = vpop.f32.mrb[0].mxu0
      %v3747 = vadd.f32 0.0, %v3746
      %v3748 = vpop.f32.mrb[0].mxu0
      %v3749 = vpop.f32.mrb[0].mxu0
      %v3750 = vadd.f32 0.0, %v3749
      %v3751 = vpop.f32.mrb[0].mxu0
      %3752 = vmatprep.mubr.bf16.mxu0 0
      %3753 = vmatmul.mubr.bf16.gmra.mrb[0].mxu0 %v3631
      %v3754 = vpop.f32.mrb[0].mxu0
      %v3755 = vadd.f32 0.0, %v3754
      %v3756 = vpop.f32.mrb[0].mxu0
      %v3757 = vpop.f32.mrb[0].mxu0
      %v3758 = vadd.f32 0.0, %v3757
      %v3759 = vpop.f32.mrb[0].mxu0
      %3760 = vdwg.mxu0
      %v3761 = vpack.c.bf16 %v3702, %v3699
      %v3762 = vpack.c.bf16 %v3710, %v3707
      %v3763 = vpack.c.bf16 %v3718, %v3715
      %v3764 = vpack.c.bf16 %v3726, %v3723
      %v3765 = vpack.c.bf16 %v3734, %v3731
      %v3766 = vpack.c.bf16 %v3742, %v3739
      %v3767 = vpack.c.bf16 %v3750, %v3747
      %v3768 = vpack.c.bf16 %v3758, %v3755
      %3777 = vrot.lane.b32.xlu0 %v3761, 96
      %v3778 = vpop.permute.xlu0 %3777
      %3779 = vrot.lane.b32.xlu0 %v3762, 96
      %v3780 = vpop.permute.xlu0 %3779
      %3781 = vrot.lane.b32.xlu0 %v3763, 96
      %v3782 = vpop.permute.xlu0 %3781
      %3783 = vrot.lane.b32.xlu0 %v3764, 96
      %v3784 = vpop.permute.xlu0 %3783
      %3785 = vrot.lane.b32.xlu0 %v3765, 96
      %v3786 = vpop.permute.xlu0 %3785
      %3787 = vrot.lane.b32.xlu0 %v3766, 96
      %v3788 = vpop.permute.xlu0 %3787
      %3789 = vrot.lane.b32.xlu0 %v3767, 96
      %v3790 = vpop.permute.xlu0 %3789
      %3791 = vrot.lane.b32.xlu0 %v3768, 96
      %v3792 = vpop.permute.xlu0 %3791
      %vm3801 = vcmask 1048320
      %3802 = vst.msk [vmem:[#allocation3] sm:$0xff] %vm3801, %v3778
      %3803 = vst.msk [vmem:[#allocation3 + $0x10] sm:$0xff] %vm3801, %v3780
      %3804 = vst.msk [vmem:[#allocation3 + $0x20] sm:$0xff] %vm3801, %v3782
      %3805 = vst.msk [vmem:[#allocation3 + $0x30] sm:$0xff] %vm3801, %v3784
      %3806 = vst.msk [vmem:[#allocation3 + $0x40] sm:$0xff] %vm3801, %v3786
      %3807 = vst.msk [vmem:[#allocation3 + $0x50] sm:$0xff] %vm3801, %v3788
      %3808 = vst.msk [vmem:[#allocation3 + $0x60] sm:$0xff] %vm3801, %v3790
      %3809 = vst.msk [vmem:[#allocation3 + $0x70] sm:$0xff] %vm3801, %v3792
      %v3810 = vld [vmem:[#allocation2 + $0x8] sm:$0xff]
      %v3811 = vld [vmem:[#allocation2 + $0x30] sm:$0xff]
      %v3812 = vld [vmem:[#allocation2 + $0x58] sm:$0xff]
      %v3813 = vld [vmem:[#allocation2 + $0x80] sm:$0xff]
      %v3814 = vld [vmem:[#allocation2 + $0xa8] sm:$0xff]
      %v3815 = vld [vmem:[#allocation2 + $0xd0] sm:$0xff]
      %v3816 = vld [vmem:[#allocation2 + $0xf8] sm:$0xff]
      %v3817 = vld [vmem:[#allocation2 + $0x120] sm:$0xff]
      %v3818 = vld [vmem:[#allocation2 + $0x10] sm:$0xff]
      %v3819 = vld [vmem:[#allocation2 + $0x38] sm:$0xff]
      %v3820 = vld [vmem:[#allocation2 + $0x60] sm:$0xff]
      %v3821 = vld [vmem:[#allocation2 + $0x88] sm:$0xff]
      %v3822 = vld [vmem:[#allocation2 + $0xb0] sm:$0xff]
      %v3823 = vld [vmem:[#allocation2 + $0xd8] sm:$0xff]
      %v3824 = vld [vmem:[#allocation2 + $0x100] sm:$0xff]
      %v3825 = vld [vmem:[#allocation2 + $0x128] sm:$0xff]
      %v3826 = vld [vmem:[#allocation2 + $0x20] sm:$0xff]
      %v3827 = vld [vmem:[#allocation2 + $0x48] sm:$0xff]
      %v3828 = vld [vmem:[#allocation2 + $0x70] sm:$0xff]
      %v3829 = vld [vmem:[#allocation2 + $0x98] sm:$0xff]
      %v3830 = vld [vmem:[#allocation2 + $0xc0] sm:$0xff]
      %v3831 = vld [vmem:[#allocation2 + $0xe8] sm:$0xff]
      %v3832 = vld [vmem:[#allocation2 + $0x110] sm:$0xff]
      %v3833 = vld [vmem:[#allocation2 + $0x138] sm:$0xff]
      %3842 = vrot.lane.b32.xlu0 %v3818, 64
      %v3843 = vpop.permute.xlu0 %3842
      %3844 = vrot.lane.b32.xlu0 %v3819, 64
      %v3845 = vpop.permute.xlu0 %3844
      %3846 = vrot.lane.b32.xlu0 %v3820, 64
      %v3847 = vpop.permute.xlu0 %3846
      %3848 = vrot.lane.b32.xlu0 %v3821, 64
      %v3849 = vpop.permute.xlu0 %3848
      %3850 = vrot.lane.b32.xlu0 %v3822, 64
      %v3851 = vpop.permute.xlu0 %3850
      %3852 = vrot.lane.b32.xlu0 %v3823, 64
      %v3853 = vpop.permute.xlu0 %3852
      %3854 = vrot.lane.b32.xlu0 %v3824, 64
      %v3855 = vpop.permute.xlu0 %3854
      %3856 = vrot.lane.b32.xlu0 %v3825, 64
      %v3857 = vpop.permute.xlu0 %3856
      %v3859 = vsel %vm1782, %v3810, 0
      %v3862 = vsel %vm1782, %v3811, 0
      %v3865 = vsel %vm1782, %v3812, 0
      %v3868 = vsel %vm1782, %v3813, 0
      %v3871 = vsel %vm1782, %v3814, 0
      %v3874 = vsel %vm1782, %v3815, 0
      %v3877 = vsel %vm1782, %v3816, 0
      %v3880 = vsel %vm1782, %v3817, 0
      %v3883 = vsel %vm1782, %v3843, 0
      %v3886 = vsel %vm1782, %v3845, 0
      %v3889 = vsel %vm1782, %v3847, 0
      %v3892 = vsel %vm1782, %v3849, 0
      %v3895 = vsel %vm1782, %v3851, 0
      %v3898 = vsel %vm1782, %v3853, 0
      %v3901 = vsel %vm1782, %v3855, 0
      %v3904 = vsel %vm1782, %v3857, 0
      %3906 = vmatprep.subr.bf16.mxu0 0
      %3907 = vmatpush1.bf16.xpose.msra.mxu0 %v3883
      %3908 = vmatprep.subr.bf16.mxu0 0
      %3909 = vmatpush1.bf16.xpose.msra.mxu0 %v3886
      %3910 = vmatprep.subr.bf16.mxu0 0
      %3911 = vmatpush1.bf16.xpose.msra.mxu0 %v3889
      %3912 = vmatprep.subr.bf16.mxu0 0
      %3913 = vmatpush1.bf16.xpose.msra.mxu0 %v3892
      %3914 = vmatprep.subr.bf16.mxu0 0
      %3915 = vmatpush1.bf16.xpose.msra.mxu0 %v3895
      %3916 = vmatprep.subr.bf16.mxu0 0
      %3917 = vmatpush1.bf16.xpose.msra.mxu0 %v3898
      %3918 = vmatprep.subr.bf16.mxu0 0
      %3919 = vmatpush1.bf16.xpose.msra.mxu0 %v3901
      %3920 = vmatprep.subr.bf16.mxu0 0
      %3921 = vmatpush1.bf16.xpose.msra.mxu0 %v3904
      %3922 = vmatprep.subr.bf16.mxu0 0
      %3923 = vmatpush1.bf16.xpose.msra.mxu0 0
      %3924 = vmatprep.subr.bf16.mxu0 0
      %3925 = vmatpush1.bf16.xpose.msra.mxu0 0
      %3926 = vmatprep.subr.bf16.mxu0 0
      %3927 = vmatpush1.bf16.xpose.msra.mxu0 0
      %3928 = vmatprep.subr.bf16.mxu0 0
      %3929 = vmatpush1.bf16.xpose.msra.mxu0 0
      %3930 = vmatprep.subr.bf16.mxu0 0
      %3931 = vmatpush1.bf16.xpose.msra.mxu0 0
      %3932 = vmatprep.subr.bf16.mxu0 0
      %3933 = vmatpush1.bf16.xpose.msra.mxu0 0
      %3934 = vmatprep.subr.bf16.mxu0 0
      %3935 = vmatpush1.bf16.xpose.msra.mxu0 0
      %3936 = vmatprep.subr.bf16.mxu0 0
      %3937 = vmatpush1.bf16.xpose.msra.mxu0 0
      %3938 = vmatprep.mubr.bf16.mxu0 0
      %3939 = vmatmul.mubr.bf16.gmra.mrb[0].mxu0 %v3859
      %v3940 = vpop.f32.mrb[0].mxu0
      %v3941 = vadd.f32 %v1718, %v3940
      %v3942 = vpop.f32.mrb[0].mxu0
      %v3943 = vpop.f32.mrb[0].mxu0
      %v3944 = vadd.f32 %v1719, %v3943
      %v3945 = vpop.f32.mrb[0].mxu0
      %3946 = vmatprep.mubr.bf16.mxu0 0
      %3947 = vmatmul.mubr.bf16.gmra.mrb[0].mxu0 %v3862
      %v3948 = vpop.f32.mrb[0].mxu0
      %v3949 = vadd.f32 %v1720, %v3948
      %v3950 = vpop.f32.mrb[0].mxu0
      %v3951 = vpop.f32.mrb[0].mxu0
      %v3952 = vadd.f32 %v1721, %v3951
      %v3953 = vpop.f32.mrb[0].mxu0
      %3954 = vmatprep.mubr.bf16.mxu0 0
      %3955 = vmatmul.mubr.bf16.gmra.mrb[0].mxu0 %v3865
      %v3956 = vpop.f32.mrb[0].mxu0
      %v3957 = vadd.f32 %v1722, %v3956
      %v3958 = vpop.f32.mrb[0].mxu0
      %v3959 = vpop.f32.mrb[0].mxu0
      %v3960 = vadd.f32 %v1723, %v3959
      %v3961 = vpop.f32.mrb[0].mxu0
      %3962 = vmatprep.mubr.bf16.mxu0 0
      %3963 = vmatmul.mubr.bf16.gmra.mrb[0].mxu0 %v3868
      %v3964 = vpop.f32.mrb[0].mxu0
      %v3965 = vadd.f32 %v1724, %v3964
      %v3966 = vpop.f32.mrb[0].mxu0
      %v3967 = vpop.f32.mrb[0].mxu0
      %v3968 = vadd.f32 %v1725, %v3967
      %v3969 = vpop.f32.mrb[0].mxu0
      %3970 = vmatprep.mubr.bf16.mxu0 0
      %3971 = vmatmul.mubr.bf16.gmra.mrb[0].mxu0 %v3871
      %v3972 = vpop.f32.mrb[0].mxu0
      %v3973 = vadd.f32 %v1726, %v3972
      %v3974 = vpop.f32.mrb[0].mxu0
      %v3975 = vpop.f32.mrb[0].mxu0
      %v3976 = vadd.f32 %v1727, %v3975
      %v3977 = vpop.f32.mrb[0].mxu0
      %3978 = vmatprep.mubr.bf16.mxu0 0
      %3979 = vmatmul.mubr.bf16.gmra.mrb[0].mxu0 %v3874
      %v3980 = vpop.f32.mrb[0].mxu0
      %v3981 = vadd.f32 %v1728, %v3980
      %v3982 = vpop.f32.mrb[0].mxu0
      %v3983 = vpop.f32.mrb[0].mxu0
      %v3984 = vadd.f32 %v1729, %v3983
      %v3985 = vpop.f32.mrb[0].mxu0
      %3986 = vmatprep.mubr.bf16.mxu0 0
      %3987 = vmatmul.mubr.bf16.gmra.mrb[0].mxu0 %v3877
      %v3988 = vpop.f32.mrb[0].mxu0
      %v3989 = vadd.f32 %v1730, %v3988
      %v3990 = vpop.f32.mrb[0].mxu0
      %v3991 = vpop.f32.mrb[0].mxu0
      %v3992 = vadd.f32 %v1731, %v3991
      %v3993 = vpop.f32.mrb[0].mxu0
      %3994 = vmatprep.mubr.bf16.mxu0 0
      %3995 = vmatmul.mubr.bf16.gmra.mrb[0].mxu0 %v3880
      %v3996 = vpop.f32.mrb[0].mxu0
      %v3997 = vadd.f32 %v1732, %v3996
      %v3998 = vpop.f32.mrb[0].mxu0
      %v3999 = vpop.f32.mrb[0].mxu0
      %v4000 = vadd.f32 %v1733, %v3999
      %v4001 = vpop.f32.mrb[0].mxu0
      %4002 = vdwg.mxu0
      %4003 = vmax.xlane.f32.xlu0 %v3941
      %v4004 = vpop.xlane.xlu0 %4003
      %4005 = vmax.xlane.f32.xlu0 %v3944
      %v4006 = vpop.xlane.xlu0 %4005
      %4007 = vmax.xlane.f32.xlu0 %v3949
      %v4008 = vpop.xlane.xlu0 %4007
      %4009 = vmax.xlane.f32.xlu0 %v3952
      %v4010 = vpop.xlane.xlu0 %4009
      %4011 = vmax.xlane.f32.xlu0 %v3957
      %v4012 = vpop.xlane.xlu0 %4011
      %4013 = vmax.xlane.f32.xlu0 %v3960
      %v4014 = vpop.xlane.xlu0 %4013
      %4015 = vmax.xlane.f32.xlu0 %v3965
      %v4016 = vpop.xlane.xlu0 %4015
      %4017 = vmax.xlane.f32.xlu0 %v3968
      %v4018 = vpop.xlane.xlu0 %4017
      %4019 = vmax.xlane.f32.xlu0 %v3973
      %v4020 = vpop.xlane.xlu0 %4019
      %4021 = vmax.xlane.f32.xlu0 %v3976
      %v4022 = vpop.xlane.xlu0 %4021
      %4023 = vmax.xlane.f32.xlu0 %v3981
      %v4024 = vpop.xlane.xlu0 %4023
      %4025 = vmax.xlane.f32.xlu0 %v3984
      %v4026 = vpop.xlane.xlu0 %4025
      %4027 = vmax.xlane.f32.xlu0 %v3989
      %v4028 = vpop.xlane.xlu0 %4027
      %4029 = vmax.xlane.f32.xlu0 %v3992
      %v4030 = vpop.xlane.xlu0 %4029
      %4031 = vmax.xlane.f32.xlu0 %v3997
      %v4032 = vpop.xlane.xlu0 %4031
      %4033 = vmax.xlane.f32.xlu0 %v4000
      %v4034 = vpop.xlane.xlu0 %4033
      %v4035 = vsub.f32 %v3941, %v4004
      %v4036 = vsub.f32 %v3944, %v4006
      %v4037 = vsub.f32 %v3949, %v4008
      %v4038 = vsub.f32 %v3952, %v4010
      %v4039 = vsub.f32 %v3957, %v4012
      %v4040 = vsub.f32 %v3960, %v4014
      %v4041 = vsub.f32 %v3965, %v4016
      %v4042 = vsub.f32 %v3968, %v4018
      %v4043 = vsub.f32 %v3973, %v4020
      %v4044 = vsub.f32 %v3976, %v4022
      %v4045 = vsub.f32 %v3981, %v4024
      %v4046 = vsub.f32 %v3984, %v4026
      %v4047 = vsub.f32 %v3989, %v4028
      %v4048 = vsub.f32 %v3992, %v4030
      %v4049 = vsub.f32 %v3997, %v4032
      %v4050 = vsub.f32 %v4000, %v4034
      %v4051 = vmul.f32 %v4035, 1.442695
      %v4052 = vpow.pop %v4051
      %v4053 = vmul.f32 %v4036, 1.442695
      %v4054 = vpow.pop %v4053
      %v4055 = vmul.f32 %v4037, 1.442695
      %v4056 = vpow.pop %v4055
      %v4057 = vmul.f32 %v4038, 1.442695
      %v4058 = vpow.pop %v4057
      %v4059 = vmul.f32 %v4039, 1.442695
      %v4060 = vpow.pop %v4059
      %v4061 = vmul.f32 %v4040, 1.442695
      %v4062 = vpow.pop %v4061
      %v4063 = vmul.f32 %v4041, 1.442695
      %v4064 = vpow.pop %v4063
      %v4065 = vmul.f32 %v4042, 1.442695
      %v4066 = vpow.pop %v4065
      %v4067 = vmul.f32 %v4043, 1.442695
      %v4068 = vpow.pop %v4067
      %v4069 = vmul.f32 %v4044, 1.442695
      %v4070 = vpow.pop %v4069
      %v4071 = vmul.f32 %v4045, 1.442695
      %v4072 = vpow.pop %v4071
      %v4073 = vmul.f32 %v4046, 1.442695
      %v4074 = vpow.pop %v4073
      %v4075 = vmul.f32 %v4047, 1.442695
      %v4076 = vpow.pop %v4075
      %v4077 = vmul.f32 %v4048, 1.442695
      %v4078 = vpow.pop %v4077
      %v4079 = vmul.f32 %v4049, 1.442695
      %v4080 = vpow.pop %v4079
      %v4081 = vmul.f32 %v4050, 1.442695
      %v4082 = vpow.pop %v4081
      %4083 = vadd.xlane.f32.xlu0 %v4052
      %v4084 = vpop.xlane.xlu0 %4083
      %4085 = vadd.xlane.f32.xlu0 %v4054
      %v4086 = vpop.xlane.xlu0 %4085
      %4087 = vadd.xlane.f32.xlu0 %v4056
      %v4088 = vpop.xlane.xlu0 %4087
      %4089 = vadd.xlane.f32.xlu0 %v4058
      %v4090 = vpop.xlane.xlu0 %4089
      %4091 = vadd.xlane.f32.xlu0 %v4060
      %v4092 = vpop.xlane.xlu0 %4091
      %4093 = vadd.xlane.f32.xlu0 %v4062
      %v4094 = vpop.xlane.xlu0 %4093
      %4095 = vadd.xlane.f32.xlu0 %v4064
      %v4096 = vpop.xlane.xlu0 %4095
      %4097 = vadd.xlane.f32.xlu0 %v4066
      %v4098 = vpop.xlane.xlu0 %4097
      %4099 = vadd.xlane.f32.xlu0 %v4068
      %v4100 = vpop.xlane.xlu0 %4099
      %4101 = vadd.xlane.f32.xlu0 %v4070
      %v4102 = vpop.xlane.xlu0 %4101
      %4103 = vadd.xlane.f32.xlu0 %v4072
      %v4104 = vpop.xlane.xlu0 %4103
      %4105 = vadd.xlane.f32.xlu0 %v4074
      %v4106 = vpop.xlane.xlu0 %4105
      %4107 = vadd.xlane.f32.xlu0 %v4076
      %v4108 = vpop.xlane.xlu0 %4107
      %4109 = vadd.xlane.f32.xlu0 %v4078
      %v4110 = vpop.xlane.xlu0 %4109
      %4111 = vadd.xlane.f32.xlu0 %v4080
      %v4112 = vpop.xlane.xlu0 %4111
      %4113 = vadd.xlane.f32.xlu0 %v4082
      %v4114 = vpop.xlane.xlu0 %4113
      %v4115 = vrcp.pop %v4084
      %v4116 = vrcp.pop %v4086
      %v4117 = vrcp.pop %v4088
      %v4118 = vrcp.pop %v4090
      %v4119 = vrcp.pop %v4092
      %v4120 = vrcp.pop %v4094
      %v4121 = vrcp.pop %v4096
      %v4122 = vrcp.pop %v4098
      %v4123 = vrcp.pop %v4100
      %v4124 = vrcp.pop %v4102
      %v4125 = vrcp.pop %v4104
      %v4126 = vrcp.pop %v4106
      %v4127 = vrcp.pop %v4108
      %v4128 = vrcp.pop %v4110
      %v4129 = vrcp.pop %v4112
      %v4130 = vrcp.pop %v4114
      %v4131 = vmul.f32 %v4052, %v4115
      %v4132 = vmul.f32 %v4054, %v4116
      %v4133 = vmul.f32 %v4056, %v4117
      %v4134 = vmul.f32 %v4058, %v4118
      %v4135 = vmul.f32 %v4060, %v4119
      %v4136 = vmul.f32 %v4062, %v4120
      %v4137 = vmul.f32 %v4064, %v4121
      %v4138 = vmul.f32 %v4066, %v4122
      %v4139 = vmul.f32 %v4068, %v4123
      %v4140 = vmul.f32 %v4070, %v4124
      %v4141 = vmul.f32 %v4072, %v4125
      %v4142 = vmul.f32 %v4074, %v4126
      %v4143 = vmul.f32 %v4076, %v4127
      %v4144 = vmul.f32 %v4078, %v4128
      %v4145 = vmul.f32 %v4080, %v4129
      %v4146 = vmul.f32 %v4082, %v4130
      %v4147 = vpack.c.bf16 %v4132, %v4131
      %v4148 = vpack.c.bf16 %v4134, %v4133
      %v4149 = vpack.c.bf16 %v4136, %v4135
      %v4150 = vpack.c.bf16 %v4138, %v4137
      %v4151 = vpack.c.bf16 %v4140, %v4139
      %v4152 = vpack.c.bf16 %v4142, %v4141
      %v4153 = vpack.c.bf16 %v4144, %v4143
      %v4154 = vpack.c.bf16 %v4146, %v4145
      %4155 = vmatprep.subr.bf16.mxu0 0
      %4156 = vmatpush1.bf16.msra.mxu0 %v3826
      %4157 = vmatprep.subr.bf16.mxu0 0
      %4158 = vmatpush1.bf16.msra.mxu0 %v3827
      %4159 = vmatprep.subr.bf16.mxu0 0
      %4160 = vmatpush1.bf16.msra.mxu0 %v3828
      %4161 = vmatprep.subr.bf16.mxu0 0
      %4162 = vmatpush1.bf16.msra.mxu0 %v3829
      %4163 = vmatprep.subr.bf16.mxu0 0
      %4164 = vmatpush1.bf16.msra.mxu0 %v3830
      %4165 = vmatprep.subr.bf16.mxu0 0
      %4166 = vmatpush1.bf16.msra.mxu0 %v3831
      %4167 = vmatprep.subr.bf16.mxu0 0
      %4168 = vmatpush1.bf16.msra.mxu0 %v3832
      %4169 = vmatprep.subr.bf16.mxu0 0
      %4170 = vmatpush1.bf16.msra.mxu0 %v3833
      %4171 = vmatprep.subr.bf16.mxu0 0
      %4172 = vmatpush1.bf16.msra.mxu0 0
      %4173 = vmatprep.subr.bf16.mxu0 0
      %4174 = vmatpush1.bf16.msra.mxu0 0
      %4175 = vmatprep.subr.bf16.mxu0 0
      %4176 = vmatpush1.bf16.msra.mxu0 0
      %4177 = vmatprep.subr.bf16.mxu0 0
      %4178 = vmatpush1.bf16.msra.mxu0 0
      %4179 = vmatprep.subr.bf16.mxu0 0
      %4180 = vmatpush1.bf16.msra.mxu0 0
      %4181 = vmatprep.subr.bf16.mxu0 0
      %4182 = vmatpush1.bf16.msra.mxu0 0
      %4183 = vmatprep.subr.bf16.mxu0 0
      %4184 = vmatpush1.bf16.msra.mxu0 0
      %4185 = vmatprep.subr.bf16.mxu0 0
      %4186 = vmatpush1.bf16.msra.mxu0 0
      %4187 = vmatprep.mubr.bf16.mxu0 0
      %4188 = vmatmul.mubr.bf16.gmra.mrb[0].mxu0 %v4147
      %v4189 = vpop.f32.mrb[0].mxu0
      %v4190 = vadd.f32 0.0, %v4189
      %v4191 = vpop.f32.mrb[0].mxu0
      %v4192 = vpop.f32.mrb[0].mxu0
      %v4193 = vadd.f32 0.0, %v4192
      %v4194 = vpop.f32.mrb[0].mxu0
      %4195 = vmatprep.mubr.bf16.mxu0 0
      %4196 = vmatmul.mubr.bf16.gmra.mrb[0].mxu0 %v4148
      %v4197 = vpop.f32.mrb[0].mxu0
      %v4198 = vadd.f32 0.0, %v4197
      %v4199 = vpop.f32.mrb[0].mxu0
      %v4200 = vpop.f32.mrb[0].mxu0
      %v4201 = vadd.f32 0.0, %v4200
      %v4202 = vpop.f32.mrb[0].mxu0
      %4203 = vmatprep.mubr.bf16.mxu0 0
      %4204 = vmatmul.mubr.bf16.gmra.mrb[0].mxu0 %v4149
      %v4205 = vpop.f32.mrb[0].mxu0
      %v4206 = vadd.f32 0.0, %v4205
      %v4207 = vpop.f32.mrb[0].mxu0
      %v4208 = vpop.f32.mrb[0].mxu0
      %v4209 = vadd.f32 0.0, %v4208
      %v4210 = vpop.f32.mrb[0].mxu0
      %4211 = vmatprep.mubr.bf16.mxu0 0
      %4212 = vmatmul.mubr.bf16.gmra.mrb[0].mxu0 %v4150
      %v4213 = vpop.f32.mrb[0].mxu0
      %v4214 = vadd.f32 0.0, %v4213
      %v4215 = vpop.f32.mrb[0].mxu0
      %v4216 = vpop.f32.mrb[0].mxu0
      %v4217 = vadd.f32 0.0, %v4216
      %v4218 = vpop.f32.mrb[0].mxu0
      %4219 = vmatprep.mubr.bf16.mxu0 0
      %4220 = vmatmul.mubr.bf16.gmra.mrb[0].mxu0 %v4151
      %v4221 = vpop.f32.mrb[0].mxu0
      %v4222 = vadd.f32 0.0, %v4221
      %v4223 = vpop.f32.mrb[0].mxu0
      %v4224 = vpop.f32.mrb[0].mxu0
      %v4225 = vadd.f32 0.0, %v4224
      %v4226 = vpop.f32.mrb[0].mxu0
      %4227 = vmatprep.mubr.bf16.mxu0 0
      %4228 = vmatmul.mubr.bf16.gmra.mrb[0].mxu0 %v4152
      %v4229 = vpop.f32.mrb[0].mxu0
      %v4230 = vadd.f32 0.0, %v4229
      %v4231 = vpop.f32.mrb[0].mxu0
      %v4232 = vpop.f32.mrb[0].mxu0
      %v4233 = vadd.f32 0.0, %v4232
      %v4234 = vpop.f32.mrb[0].mxu0
      %4235 = vmatprep.mubr.bf16.mxu0 0
      %4236 = vmatmul.mubr.bf16.gmra.mrb[0].mxu0 %v4153
      %v4237 = vpop.f32.mrb[0].mxu0
      %v4238 = vadd.f32 0.0, %v4237
      %v4239 = vpop.f32.mrb[0].mxu0
      %v4240 = vpop.f32.mrb[0].mxu0
      %v4241 = vadd.f32 0.0, %v4240
      %v4242 = vpop.f32.mrb[0].mxu0
      %4243 = vmatprep.mubr.bf16.mxu0 0
      %4244 = vmatmul.mubr.bf16.gmra.mrb[0].mxu0 %v4154
      %v4245 = vpop.f32.mrb[0].mxu0
      %v4246 = vadd.f32 0.0, %v4245
      %v4247 = vpop.f32.mrb[0].mxu0
      %v4248 = vpop.f32.mrb[0].mxu0
      %v4249 = vadd.f32 0.0, %v4248
      %v4250 = vpop.f32.mrb[0].mxu0
      %4251 = vdwg.mxu0
      %v4252 = vpack.c.bf16 %v4193, %v4190
      %v4253 = vpack.c.bf16 %v4201, %v4198
      %v4254 = vpack.c.bf16 %v4209, %v4206
      %v4255 = vpack.c.bf16 %v4217, %v4214
      %v4256 = vpack.c.bf16 %v4225, %v4222
      %v4257 = vpack.c.bf16 %v4233, %v4230
      %v4258 = vpack.c.bf16 %v4241, %v4238
      %v4259 = vpack.c.bf16 %v4249, %v4246
      %4260 = vst.msk [vmem:[#allocation3 + $0x8] sm:$0xff] %vm1782, %v4252
      %4261 = vst.msk [vmem:[#allocation3 + $0x18] sm:$0xff] %vm1782, %v4253
      %4262 = vst.msk [vmem:[#allocation3 + $0x28] sm:$0xff] %vm1782, %v4254
      %4263 = vst.msk [vmem:[#allocation3 + $0x38] sm:$0xff] %vm1782, %v4255
      %4264 = vst.msk [vmem:[#allocation3 + $0x48] sm:$0xff] %vm1782, %v4256
      %4265 = vst.msk [vmem:[#allocation3 + $0x58] sm:$0xff] %vm1782, %v4257
      %4266 = vst.msk [vmem:[#allocation3 + $0x68] sm:$0xff] %vm1782, %v4258
      %4267 = vst.msk [vmem:[#allocation3 + $0x78] sm:$0xff] %vm1782, %v4259
      %v4268 = vld [vmem:[#allocation2 + $0x8] sm:$0xff]
      %v4269 = vld [vmem:[#allocation2 + $0x30] sm:$0xff]
      %v4270 = vld [vmem:[#allocation2 + $0x58] sm:$0xff]
      %v4271 = vld [vmem:[#allocation2 + $0x80] sm:$0xff]
      %v4272 = vld [vmem:[#allocation2 + $0xa8] sm:$0xff]
      %v4273 = vld [vmem:[#allocation2 + $0xd0] sm:$0xff]
      %v4274 = vld [vmem:[#allocation2 + $0xf8] sm:$0xff]
      %v4275 = vld [vmem:[#allocation2 + $0x120] sm:$0xff]
      %v4276 = vld [vmem:[#allocation2 + $0x10] sm:$0xff]
      %v4277 = vld [vmem:[#allocation2 + $0x38] sm:$0xff]
      %v4278 = vld [vmem:[#allocation2 + $0x60] sm:$0xff]
      %v4279 = vld [vmem:[#allocation2 + $0x88] sm:$0xff]
      %v4280 = vld [vmem:[#allocation2 + $0xb0] sm:$0xff]
      %v4281 = vld [vmem:[#allocation2 + $0xd8] sm:$0xff]
      %v4282 = vld [vmem:[#allocation2 + $0x100] sm:$0xff]
      %v4283 = vld [vmem:[#allocation2 + $0x128] sm:$0xff]
      %v4284 = vld [vmem:[#allocation2 + $0x20] sm:$0xff]
      %v4285 = vld [vmem:[#allocation2 + $0x48] sm:$0xff]
      %v4286 = vld [vmem:[#allocation2 + $0x70] sm:$0xff]
      %v4287 = vld [vmem:[#allocation2 + $0x98] sm:$0xff]
      %v4288 = vld [vmem:[#allocation2 + $0xc0] sm:$0xff]
      %v4289 = vld [vmem:[#allocation2 + $0xe8] sm:$0xff]
      %v4290 = vld [vmem:[#allocation2 + $0x110] sm:$0xff]
      %v4291 = vld [vmem:[#allocation2 + $0x138] sm:$0xff]
      %4300 = vrot.lane.b32.xlu0 %v4268, 96
      %v4301 = vpop.permute.xlu0 %4300
      %4302 = vrot.lane.b32.xlu0 %v4269, 96
      %v4303 = vpop.permute.xlu0 %4302
      %4304 = vrot.lane.b32.xlu0 %v4270, 96
      %v4305 = vpop.permute.xlu0 %4304
      %4306 = vrot.lane.b32.xlu0 %v4271, 96
      %v4307 = vpop.permute.xlu0 %4306
      %4308 = vrot.lane.b32.xlu0 %v4272, 96
      %v4309 = vpop.permute.xlu0 %4308
      %4310 = vrot.lane.b32.xlu0 %v4273, 96
      %v4311 = vpop.permute.xlu0 %4310
      %4312 = vrot.lane.b32.xlu0 %v4274, 96
      %v4313 = vpop.permute.xlu0 %4312
      %4314 = vrot.lane.b32.xlu0 %v4275, 96
      %v4315 = vpop.permute.xlu0 %4314
      %4324 = vrot.lane.b32.xlu0 %v4276, 32
      %v4325 = vpop.permute.xlu0 %4324
      %4326 = vrot.lane.b32.xlu0 %v4277, 32
      %v4327 = vpop.permute.xlu0 %4326
      %4328 = vrot.lane.b32.xlu0 %v4278, 32
      %v4329 = vpop.permute.xlu0 %4328
      %4330 = vrot.lane.b32.xlu0 %v4279, 32
      %v4331 = vpop.permute.xlu0 %4330
      %4332 = vrot.lane.b32.xlu0 %v4280, 32
      %v4333 = vpop.permute.xlu0 %4332
      %4334 = vrot.lane.b32.xlu0 %v4281, 32
      %v4335 = vpop.permute.xlu0 %4334
      %4336 = vrot.lane.b32.xlu0 %v4282, 32
      %v4337 = vpop.permute.xlu0 %4336
      %4338 = vrot.lane.b32.xlu0 %v4283, 32
      %v4339 = vpop.permute.xlu0 %4338
      %v4341 = vsel %vm1782, %v4301, 0
      %v4344 = vsel %vm1782, %v4303, 0
      %v4347 = vsel %vm1782, %v4305, 0
      %v4350 = vsel %vm1782, %v4307, 0
      %v4353 = vsel %vm1782, %v4309, 0
      %v4356 = vsel %vm1782, %v4311, 0
      %v4359 = vsel %vm1782, %v4313, 0
      %v4362 = vsel %vm1782, %v4315, 0
      %v4365 = vsel %vm1782, %v4325, 0
      %v4368 = vsel %vm1782, %v4327, 0
      %v4371 = vsel %vm1782, %v4329, 0
      %v4374 = vsel %vm1782, %v4331, 0
      %v4377 = vsel %vm1782, %v4333, 0
      %v4380 = vsel %vm1782, %v4335, 0
      %v4383 = vsel %vm1782, %v4337, 0
      %v4386 = vsel %vm1782, %v4339, 0
      %4388 = vmatprep.subr.bf16.mxu0 0
      %4389 = vmatpush1.bf16.xpose.msra.mxu0 %v4365
      %4390 = vmatprep.subr.bf16.mxu0 0
      %4391 = vmatpush1.bf16.xpose.msra.mxu0 %v4368
      %4392 = vmatprep.subr.bf16.mxu0 0
      %4393 = vmatpush1.bf16.xpose.msra.mxu0 %v4371
      %4394 = vmatprep.subr.bf16.mxu0 0
      %4395 = vmatpush1.bf16.xpose.msra.mxu0 %v4374
      %4396 = vmatprep.subr.bf16.mxu0 0
      %4397 = vmatpush1.bf16.xpose.msra.mxu0 %v4377
      %4398 = vmatprep.subr.bf16.mxu0 0
      %4399 = vmatpush1.bf16.xpose.msra.mxu0 %v4380
      %4400 = vmatprep.subr.bf16.mxu0 0
      %4401 = vmatpush1.bf16.xpose.msra.mxu0 %v4383
      %4402 = vmatprep.subr.bf16.mxu0 0
      %4403 = vmatpush1.bf16.xpose.msra.mxu0 %v4386
      %4404 = vmatprep.subr.bf16.mxu0 0
      %4405 = vmatpush1.bf16.xpose.msra.mxu0 0
      %4406 = vmatprep.subr.bf16.mxu0 0
      %4407 = vmatpush1.bf16.xpose.msra.mxu0 0
      %4408 = vmatprep.subr.bf16.mxu0 0
      %4409 = vmatpush1.bf16.xpose.msra.mxu0 0
      %4410 = vmatprep.subr.bf16.mxu0 0
      %4411 = vmatpush1.bf16.xpose.msra.mxu0 0
      %4412 = vmatprep.subr.bf16.mxu0 0
      %4413 = vmatpush1.bf16.xpose.msra.mxu0 0
      %4414 = vmatprep.subr.bf16.mxu0 0
      %4415 = vmatpush1.bf16.xpose.msra.mxu0 0
      %4416 = vmatprep.subr.bf16.mxu0 0
      %4417 = vmatpush1.bf16.xpose.msra.mxu0 0
      %4418 = vmatprep.subr.bf16.mxu0 0
      %4419 = vmatpush1.bf16.xpose.msra.mxu0 0
      %4420 = vmatprep.mubr.bf16.mxu0 0
      %4421 = vmatmul.mubr.bf16.gmra.mrb[0].mxu0 %v4341
      %v4422 = vpop.f32.mrb[0].mxu0
      %v4423 = vadd.f32 %v1718, %v4422
      %v4424 = vpop.f32.mrb[0].mxu0
      %v4425 = vpop.f32.mrb[0].mxu0
      %v4426 = vadd.f32 %v1719, %v4425
      %v4427 = vpop.f32.mrb[0].mxu0
      %4428 = vmatprep.mubr.bf16.mxu0 0
      %4429 = vmatmul.mubr.bf16.gmra.mrb[0].mxu0 %v4344
      %v4430 = vpop.f32.mrb[0].mxu0
      %v4431 = vadd.f32 %v1720, %v4430
      %v4432 = vpop.f32.mrb[0].mxu0
      %v4433 = vpop.f32.mrb[0].mxu0
      %v4434 = vadd.f32 %v1721, %v4433
      %v4435 = vpop.f32.mrb[0].mxu0
      %4436 = vmatprep.mubr.bf16.mxu0 0
      %4437 = vmatmul.mubr.bf16.gmra.mrb[0].mxu0 %v4347
      %v4438 = vpop.f32.mrb[0].mxu0
      %v4439 = vadd.f32 %v1722, %v4438
      %v4440 = vpop.f32.mrb[0].mxu0
      %v4441 = vpop.f32.mrb[0].mxu0
      %v4442 = vadd.f32 %v1723, %v4441
      %v4443 = vpop.f32.mrb[0].mxu0
      %4444 = vmatprep.mubr.bf16.mxu0 0
      %4445 = vmatmul.mubr.bf16.gmra.mrb[0].mxu0 %v4350
      %v4446 = vpop.f32.mrb[0].mxu0
      %v4447 = vadd.f32 %v1724, %v4446
      %v4448 = vpop.f32.mrb[0].mxu0
      %v4449 = vpop.f32.mrb[0].mxu0
      %v4450 = vadd.f32 %v1725, %v4449
      %v4451 = vpop.f32.mrb[0].mxu0
      %4452 = vmatprep.mubr.bf16.mxu0 0
      %4453 = vmatmul.mubr.bf16.gmra.mrb[0].mxu0 %v4353
      %v4454 = vpop.f32.mrb[0].mxu0
      %v4455 = vadd.f32 %v1726, %v4454
      %v4456 = vpop.f32.mrb[0].mxu0
      %v4457 = vpop.f32.mrb[0].mxu0
      %v4458 = vadd.f32 %v1727, %v4457
      %v4459 = vpop.f32.mrb[0].mxu0
      %4460 = vmatprep.mubr.bf16.mxu0 0
      %4461 = vmatmul.mubr.bf16.gmra.mrb[0].mxu0 %v4356
      %v4462 = vpop.f32.mrb[0].mxu0
      %v4463 = vadd.f32 %v1728, %v4462
      %v4464 = vpop.f32.mrb[0].mxu0
      %v4465 = vpop.f32.mrb[0].mxu0
      %v4466 = vadd.f32 %v1729, %v4465
      %v4467 = vpop.f32.mrb[0].mxu0
      %4468 = vmatprep.mubr.bf16.mxu0 0
      %4469 = vmatmul.mubr.bf16.gmra.mrb[0].mxu0 %v4359
      %v4470 = vpop.f32.mrb[0].mxu0
      %v4471 = vadd.f32 %v1730, %v4470
      %v4472 = vpop.f32.mrb[0].mxu0
      %v4473 = vpop.f32.mrb[0].mxu0
      %v4474 = vadd.f32 %v1731, %v4473
      %v4475 = vpop.f32.mrb[0].mxu0
      %4476 = vmatprep.mubr.bf16.mxu0 0
      %4477 = vmatmul.mubr.bf16.gmra.mrb[0].mxu0 %v4362
      %v4478 = vpop.f32.mrb[0].mxu0
      %v4479 = vadd.f32 %v1732, %v4478
      %v4480 = vpop.f32.mrb[0].mxu0
      %v4481 = vpop.f32.mrb[0].mxu0
      %v4482 = vadd.f32 %v1733, %v4481
      %v4483 = vpop.f32.mrb[0].mxu0
      %4484 = vdwg.mxu0
      %4485 = vmax.xlane.f32.xlu0 %v4423
      %v4486 = vpop.xlane.xlu0 %4485
      %4487 = vmax.xlane.f32.xlu0 %v4426
      %v4488 = vpop.xlane.xlu0 %4487
      %4489 = vmax.xlane.f32.xlu0 %v4431
      %v4490 = vpop.xlane.xlu0 %4489
      %4491 = vmax.xlane.f32.xlu0 %v4434
      %v4492 = vpop.xlane.xlu0 %4491
      %4493 = vmax.xlane.f32.xlu0 %v4439
      %v4494 = vpop.xlane.xlu0 %4493
      %4495 = vmax.xlane.f32.xlu0 %v4442
      %v4496 = vpop.xlane.xlu0 %4495
      %4497 = vmax.xlane.f32.xlu0 %v4447
      %v4498 = vpop.xlane.xlu0 %4497
      %4499 = vmax.xlane.f32.xlu0 %v4450
      %v4500 = vpop.xlane.xlu0 %4499
      %4501 = vmax.xlane.f32.xlu0 %v4455
      %v4502 = vpop.xlane.xlu0 %4501
      %4503 = vmax.xlane.f32.xlu0 %v4458
      %v4504 = vpop.xlane.xlu0 %4503
      %4505 = vmax.xlane.f32.xlu0 %v4463
      %v4506 = vpop.xlane.xlu0 %4505
      %4507 = vmax.xlane.f32.xlu0 %v4466
      %v4508 = vpop.xlane.xlu0 %4507
      %4509 = vmax.xlane.f32.xlu0 %v4471
      %v4510 = vpop.xlane.xlu0 %4509
      %4511 = vmax.xlane.f32.xlu0 %v4474
      %v4512 = vpop.xlane.xlu0 %4511
      %4513 = vmax.xlane.f32.xlu0 %v4479
      %v4514 = vpop.xlane.xlu0 %4513
      %4515 = vmax.xlane.f32.xlu0 %v4482
      %v4516 = vpop.xlane.xlu0 %4515
      %v4517 = vsub.f32 %v4423, %v4486
      %v4518 = vsub.f32 %v4426, %v4488
      %v4519 = vsub.f32 %v4431, %v4490
      %v4520 = vsub.f32 %v4434, %v4492
      %v4521 = vsub.f32 %v4439, %v4494
      %v4522 = vsub.f32 %v4442, %v4496
      %v4523 = vsub.f32 %v4447, %v4498
      %v4524 = vsub.f32 %v4450, %v4500
      %v4525 = vsub.f32 %v4455, %v4502
      %v4526 = vsub.f32 %v4458, %v4504
      %v4527 = vsub.f32 %v4463, %v4506
      %v4528 = vsub.f32 %v4466, %v4508
      %v4529 = vsub.f32 %v4471, %v4510
      %v4530 = vsub.f32 %v4474, %v4512
      %v4531 = vsub.f32 %v4479, %v4514
      %v4532 = vsub.f32 %v4482, %v4516
      %v4533 = vmul.f32 %v4517, 1.442695
      %v4534 = vpow.pop %v4533
      %v4535 = vmul.f32 %v4518, 1.442695
      %v4536 = vpow.pop %v4535
      %v4537 = vmul.f32 %v4519, 1.442695
      %v4538 = vpow.pop %v4537
      %v4539 = vmul.f32 %v4520, 1.442695
      %v4540 = vpow.pop %v4539
      %v4541 = vmul.f32 %v4521, 1.442695
      %v4542 = vpow.pop %v4541
      %v4543 = vmul.f32 %v4522, 1.442695
      %v4544 = vpow.pop %v4543
      %v4545 = vmul.f32 %v4523, 1.442695
      %v4546 = vpow.pop %v4545
      %v4547 = vmul.f32 %v4524, 1.442695
      %v4548 = vpow.pop %v4547
      %v4549 = vmul.f32 %v4525, 1.442695
      %v4550 = vpow.pop %v4549
      %v4551 = vmul.f32 %v4526, 1.442695
      %v4552 = vpow.pop %v4551
      %v4553 = vmul.f32 %v4527, 1.442695
      %v4554 = vpow.pop %v4553
      %v4555 = vmul.f32 %v4528, 1.442695
      %v4556 = vpow.pop %v4555
      %v4557 = vmul.f32 %v4529, 1.442695
      %v4558 = vpow.pop %v4557
      %v4559 = vmul.f32 %v4530, 1.442695
      %v4560 = vpow.pop %v4559
      %v4561 = vmul.f32 %v4531, 1.442695
      %v4562 = vpow.pop %v4561
      %v4563 = vmul.f32 %v4532, 1.442695
      %v4564 = vpow.pop %v4563
      %4565 = vadd.xlane.f32.xlu0 %v4534
      %v4566 = vpop.xlane.xlu0 %4565
      %4567 = vadd.xlane.f32.xlu0 %v4536
      %v4568 = vpop.xlane.xlu0 %4567
      %4569 = vadd.xlane.f32.xlu0 %v4538
      %v4570 = vpop.xlane.xlu0 %4569
      %4571 = vadd.xlane.f32.xlu0 %v4540
      %v4572 = vpop.xlane.xlu0 %4571
      %4573 = vadd.xlane.f32.xlu0 %v4542
      %v4574 = vpop.xlane.xlu0 %4573
      %4575 = vadd.xlane.f32.xlu0 %v4544
      %v4576 = vpop.xlane.xlu0 %4575
      %4577 = vadd.xlane.f32.xlu0 %v4546
      %v4578 = vpop.xlane.xlu0 %4577
      %4579 = vadd.xlane.f32.xlu0 %v4548
      %v4580 = vpop.xlane.xlu0 %4579
      %4581 = vadd.xlane.f32.xlu0 %v4550
      %v4582 = vpop.xlane.xlu0 %4581
      %4583 = vadd.xlane.f32.xlu0 %v4552
      %v4584 = vpop.xlane.xlu0 %4583
      %4585 = vadd.xlane.f32.xlu0 %v4554
      %v4586 = vpop.xlane.xlu0 %4585
      %4587 = vadd.xlane.f32.xlu0 %v4556
      %v4588 = vpop.xlane.xlu0 %4587
      %4589 = vadd.xlane.f32.xlu0 %v4558
      %v4590 = vpop.xlane.xlu0 %4589
      %4591 = vadd.xlane.f32.xlu0 %v4560
      %v4592 = vpop.xlane.xlu0 %4591
      %4593 = vadd.xlane.f32.xlu0 %v4562
      %v4594 = vpop.xlane.xlu0 %4593
      %4595 = vadd.xlane.f32.xlu0 %v4564
      %v4596 = vpop.xlane.xlu0 %4595
      %v4597 = vrcp.pop %v4566
      %v4598 = vrcp.pop %v4568
      %v4599 = vrcp.pop %v4570
      %v4600 = vrcp.pop %v4572
      %v4601 = vrcp.pop %v4574
      %v4602 = vrcp.pop %v4576
      %v4603 = vrcp.pop %v4578
      %v4604 = vrcp.pop %v4580
      %v4605 = vrcp.pop %v4582
      %v4606 = vrcp.pop %v4584
      %v4607 = vrcp.pop %v4586
      %v4608 = vrcp.pop %v4588
      %v4609 = vrcp.pop %v4590
      %v4610 = vrcp.pop %v4592
      %v4611 = vrcp.pop %v4594
      %v4612 = vrcp.pop %v4596
      %v4613 = vmul.f32 %v4534, %v4597
      %v4614 = vmul.f32 %v4536, %v4598
      %v4615 = vmul.f32 %v4538, %v4599
      %v4616 = vmul.f32 %v4540, %v4600
      %v4617 = vmul.f32 %v4542, %v4601
      %v4618 = vmul.f32 %v4544, %v4602
      %v4619 = vmul.f32 %v4546, %v4603
      %v4620 = vmul.f32 %v4548, %v4604
      %v4621 = vmul.f32 %v4550, %v4605
      %v4622 = vmul.f32 %v4552, %v4606
      %v4623 = vmul.f32 %v4554, %v4607
      %v4624 = vmul.f32 %v4556, %v4608
      %v4625 = vmul.f32 %v4558, %v4609
      %v4626 = vmul.f32 %v4560, %v4610
      %v4627 = vmul.f32 %v4562, %v4611
      %v4628 = vmul.f32 %v4564, %v4612
      %v4629 = vpack.c.bf16 %v4614, %v4613
      %v4630 = vpack.c.bf16 %v4616, %v4615
      %v4631 = vpack.c.bf16 %v4618, %v4617
      %v4632 = vpack.c.bf16 %v4620, %v4619
      %v4633 = vpack.c.bf16 %v4622, %v4621
      %v4634 = vpack.c.bf16 %v4624, %v4623
      %v4635 = vpack.c.bf16 %v4626, %v4625
      %v4636 = vpack.c.bf16 %v4628, %v4627
      %4645 = vrot.lane.b32.xlu0 %v4284, 96
      %v4646 = vpop.permute.xlu0 %4645
      %4647 = vrot.lane.b32.xlu0 %v4285, 96
      %v4648 = vpop.permute.xlu0 %4647
      %4649 = vrot.lane.b32.xlu0 %v4286, 96
      %v4650 = vpop.permute.xlu0 %4649
      %4651 = vrot.lane.b32.xlu0 %v4287, 96
      %v4652 = vpop.permute.xlu0 %4651
      %4653 = vrot.lane.b32.xlu0 %v4288, 96
      %v4654 = vpop.permute.xlu0 %4653
      %4655 = vrot.lane.b32.xlu0 %v4289, 96
      %v4656 = vpop.permute.xlu0 %4655
      %4657 = vrot.lane.b32.xlu0 %v4290, 96
      %v4658 = vpop.permute.xlu0 %4657
      %4659 = vrot.lane.b32.xlu0 %v4291, 96
      %v4660 = vpop.permute.xlu0 %4659
      %4669 = vmatprep.subr.bf16.mxu0 0
      %4670 = vmatpush1.bf16.msra.mxu0 %v4646
      %4671 = vmatprep.subr.bf16.mxu0 0
      %4672 = vmatpush1.bf16.msra.mxu0 %v4648
      %4673 = vmatprep.subr.bf16.mxu0 0
      %4674 = vmatpush1.bf16.msra.mxu0 %v4650
      %4675 = vmatprep.subr.bf16.mxu0 0
      %4676 = vmatpush1.bf16.msra.mxu0 %v4652
      %4677 = vmatprep.subr.bf16.mxu0 0
      %4678 = vmatpush1.bf16.msra.mxu0 %v4654
      %4679 = vmatprep.subr.bf16.mxu0 0
      %4680 = vmatpush1.bf16.msra.mxu0 %v4656
      %4681 = vmatprep.subr.bf16.mxu0 0
      %4682 = vmatpush1.bf16.msra.mxu0 %v4658
      %4683 = vmatprep.subr.bf16.mxu0 0
      %4684 = vmatpush1.bf16.msra.mxu0 %v4660
      %4685 = vmatprep.subr.bf16.mxu0 0
      %4686 = vmatpush1.bf16.msra.mxu0 0
      %4687 = vmatprep.subr.bf16.mxu0 0
      %4688 = vmatpush1.bf16.msra.mxu0 0
      %4689 = vmatprep.subr.bf16.mxu0 0
      %4690 = vmatpush1.bf16.msra.mxu0 0
      %4691 = vmatprep.subr.bf16.mxu0 0
      %4692 = vmatpush1.bf16.msra.mxu0 0
      %4693 = vmatprep.subr.bf16.mxu0 0
      %4694 = vmatpush1.bf16.msra.mxu0 0
      %4695 = vmatprep.subr.bf16.mxu0 0
      %4696 = vmatpush1.bf16.msra.mxu0 0
      %4697 = vmatprep.subr.bf16.mxu0 0
      %4698 = vmatpush1.bf16.msra.mxu0 0
      %4699 = vmatprep.subr.bf16.mxu0 0
      %4700 = vmatpush1.bf16.msra.mxu0 0
      %4701 = vmatprep.mubr.bf16.mxu0 0
      %4702 = vmatmul.mubr.bf16.gmra.mrb[0].mxu0 %v4629
      %v4703 = vpop.f32.mrb[0].mxu0
      %v4704 = vadd.f32 0.0, %v4703
      %v4705 = vpop.f32.mrb[0].mxu0
      %v4706 = vpop.f32.mrb[0].mxu0
      %v4707 = vadd.f32 0.0, %v4706
      %v4708 = vpop.f32.mrb[0].mxu0
      %4709 = vmatprep.mubr.bf16.mxu0 0
      %4710 = vmatmul.mubr.bf16.gmra.mrb[0].mxu0 %v4630
      %v4711 = vpop.f32.mrb[0].mxu0
      %v4712 = vadd.f32 0.0, %v4711
      %v4713 = vpop.f32.mrb[0].mxu0
      %v4714 = vpop.f32.mrb[0].mxu0
      %v4715 = vadd.f32 0.0, %v4714
      %v4716 = vpop.f32.mrb[0].mxu0
      %4717 = vmatprep.mubr.bf16.mxu0 0
      %4718 = vmatmul.mubr.bf16.gmra.mrb[0].mxu0 %v4631
      %v4719 = vpop.f32.mrb[0].mxu0
      %v4720 = vadd.f32 0.0, %v4719
      %v4721 = vpop.f32.mrb[0].mxu0
      %v4722 = vpop.f32.mrb[0].mxu0
      %v4723 = vadd.f32 0.0, %v4722
      %v4724 = vpop.f32.mrb[0].mxu0
      %4725 = vmatprep.mubr.bf16.mxu0 0
      %4726 = vmatmul.mubr.bf16.gmra.mrb[0].mxu0 %v4632
      %v4727 = vpop.f32.mrb[0].mxu0
      %v4728 = vadd.f32 0.0, %v4727
      %v4729 = vpop.f32.mrb[0].mxu0
      %v4730 = vpop.f32.mrb[0].mxu0
      %v4731 = vadd.f32 0.0, %v4730
      %v4732 = vpop.f32.mrb[0].mxu0
      %4733 = vmatprep.mubr.bf16.mxu0 0
      %4734 = vmatmul.mubr.bf16.gmra.mrb[0].mxu0 %v4633
      %v4735 = vpop.f32.mrb[0].mxu0
      %v4736 = vadd.f32 0.0, %v4735
      %v4737 = vpop.f32.mrb[0].mxu0
      %v4738 = vpop.f32.mrb[0].mxu0
      %v4739 = vadd.f32 0.0, %v4738
      %v4740 = vpop.f32.mrb[0].mxu0
      %4741 = vmatprep.mubr.bf16.mxu0 0
      %4742 = vmatmul.mubr.bf16.gmra.mrb[0].mxu0 %v4634
      %v4743 = vpop.f32.mrb[0].mxu0
      %v4744 = vadd.f32 0.0, %v4743
      %v4745 = vpop.f32.mrb[0].mxu0
      %v4746 = vpop.f32.mrb[0].mxu0
      %v4747 = vadd.f32 0.0, %v4746
      %v4748 = vpop.f32.mrb[0].mxu0
      %4749 = vmatprep.mubr.bf16.mxu0 0
      %4750 = vmatmul.mubr.bf16.gmra.mrb[0].mxu0 %v4635
      %v4751 = vpop.f32.mrb[0].mxu0
      %v4752 = vadd.f32 0.0, %v4751
      %v4753 = vpop.f32.mrb[0].mxu0
      %v4754 = vpop.f32.mrb[0].mxu0
      %v4755 = vadd.f32 0.0, %v4754
      %v4756 = vpop.f32.mrb[0].mxu0
      %4757 = vmatprep.mubr.bf16.mxu0 0
      %4758 = vmatmul.mubr.bf16.gmra.mrb[0].mxu0 %v4636
      %v4759 = vpop.f32.mrb[0].mxu0
      %v4760 = vadd.f32 0.0, %v4759
      %v4761 = vpop.f32.mrb[0].mxu0
      %v4762 = vpop.f32.mrb[0].mxu0
      %v4763 = vadd.f32 0.0, %v4762
      %v4764 = vpop.f32.mrb[0].mxu0
      %4765 = vdwg.mxu0
      %v4766 = vpack.c.bf16 %v4707, %v4704
      %v4767 = vpack.c.bf16 %v4715, %v4712
      %v4768 = vpack.c.bf16 %v4723, %v4720
      %v4769 = vpack.c.bf16 %v4731, %v4728
      %v4770 = vpack.c.bf16 %v4739, %v4736
      %v4771 = vpack.c.bf16 %v4747, %v4744
      %v4772 = vpack.c.bf16 %v4755, %v4752
      %v4773 = vpack.c.bf16 %v4763, %v4760
      %4782 = vrot.lane.b32.xlu0 %v4766, 32
      %v4783 = vpop.permute.xlu0 %4782
      %4784 = vrot.lane.b32.xlu0 %v4767, 32
      %v4785 = vpop.permute.xlu0 %4784
      %4786 = vrot.lane.b32.xlu0 %v4768, 32
      %v4787 = vpop.permute.xlu0 %4786
      %4788 = vrot.lane.b32.xlu0 %v4769, 32
      %v4789 = vpop.permute.xlu0 %4788
      %4790 = vrot.lane.b32.xlu0 %v4770, 32
      %v4791 = vpop.permute.xlu0 %4790
      %4792 = vrot.lane.b32.xlu0 %v4771, 32
      %v4793 = vpop.permute.xlu0 %4792
      %4794 = vrot.lane.b32.xlu0 %v4772, 32
      %v4795 = vpop.permute.xlu0 %4794
      %4796 = vrot.lane.b32.xlu0 %v4773, 32
      %v4797 = vpop.permute.xlu0 %4796
      %4806 = vst.msk [vmem:[#allocation3 + $0x8] sm:$0xff] %vm2731, %v4783
      %4807 = vst.msk [vmem:[#allocation3 + $0x18] sm:$0xff] %vm2731, %v4785
      %4808 = vst.msk [vmem:[#allocation3 + $0x28] sm:$0xff] %vm2731, %v4787
      %4809 = vst.msk [vmem:[#allocation3 + $0x38] sm:$0xff] %vm2731, %v4789
      %4810 = vst.msk [vmem:[#allocation3 + $0x48] sm:$0xff] %vm2731, %v4791
      %4811 = vst.msk [vmem:[#allocation3 + $0x58] sm:$0xff] %vm2731, %v4793
      %4812 = vst.msk [vmem:[#allocation3 + $0x68] sm:$0xff] %vm2731, %v4795
      %4813 = vst.msk [vmem:[#allocation3 + $0x78] sm:$0xff] %vm2731, %v4797
      %v4814 = vld [vmem:[#allocation3] sm:$0xff]
      %v4815 = vld [vmem:[#allocation3 + $0x8] sm:$0xff]
      %v4816 = vld [vmem:[#allocation3 + $0x10] sm:$0xff]
      %v4817 = vld [vmem:[#allocation3 + $0x18] sm:$0xff]
      %v4818 = vld [vmem:[#allocation3 + $0x20] sm:$0xff]
      %v4819 = vld [vmem:[#allocation3 + $0x28] sm:$0xff]
      %v4820 = vld [vmem:[#allocation3 + $0x30] sm:$0xff]
      %v4821 = vld [vmem:[#allocation3 + $0x38] sm:$0xff]
      %v4822 = vld [vmem:[#allocation3 + $0x40] sm:$0xff]
      %v4823 = vld [vmem:[#allocation3 + $0x48] sm:$0xff]
      %v4824 = vld [vmem:[#allocation3 + $0x50] sm:$0xff]
      %v4825 = vld [vmem:[#allocation3 + $0x58] sm:$0xff]
      %v4826 = vld [vmem:[#allocation3 + $0x60] sm:$0xff]
      %v4827 = vld [vmem:[#allocation3 + $0x68] sm:$0xff]
      %v4828 = vld [vmem:[#allocation3 + $0x70] sm:$0xff]
      %v4829 = vld [vmem:[#allocation3 + $0x78] sm:$0xff]
      %v4830 = vld [vmem:[%s2] sm:$0xff]
      %v4831 = vld [vmem:[%s2 + $0x8] sm:$0xff]
      %v4832 = vld [vmem:[%s2 + $0x10] sm:$0xff]
      %v4833 = vld [vmem:[%s2 + $0x18] sm:$0xff]
      %v4834 = vld [vmem:[%s2 + $0x20] sm:$0xff]
      %v4835 = vld [vmem:[%s2 + $0x28] sm:$0xff]
      %v4836 = vld [vmem:[%s2 + $0x30] sm:$0xff]
      %v4837 = vld [vmem:[%s2 + $0x38] sm:$0xff]
      %v4838 = vld [vmem:[%s2 + $0x40] sm:$0xff]
      %v4839 = vld [vmem:[%s2 + $0x48] sm:$0xff]
      %v4840 = vld [vmem:[%s2 + $0x50] sm:$0xff]
      %v4841 = vld [vmem:[%s2 + $0x58] sm:$0xff]
      %v4842 = vld [vmem:[%s2 + $0x60] sm:$0xff]
      %v4843 = vld [vmem:[%s2 + $0x68] sm:$0xff]
      %v4844 = vld [vmem:[%s2 + $0x70] sm:$0xff]
      %v4845 = vld [vmem:[%s2 + $0x78] sm:$0xff]
      %v4846 = vld [vmem:[%s2 + $0x80] sm:$0xff]
      %v4847 = vld [vmem:[%s2 + $0x88] sm:$0xff]
      %v4848 = vld [vmem:[%s2 + $0x90] sm:$0xff]
      %v4849 = vld [vmem:[%s2 + $0x98] sm:$0xff]
      %v4850 = vld [vmem:[%s2 + $0xa0] sm:$0xff]
      %v4851 = vld [vmem:[%s2 + $0xa8] sm:$0xff]
      %v4852 = vld [vmem:[%s2 + $0xb0] sm:$0xff]
      %v4853 = vld [vmem:[%s2 + $0xb8] sm:$0xff]
      %v4878 = vunpack.c.l.b16 %v4830
      %v4879 = vunpack.c.h.b16 %v4830
      %v4880 = vunpack.c.l.b16 %v4831
      %v4881 = vunpack.c.h.b16 %v4831
      %v4882 = vunpack.c.l.b16 %v4832
      %v4883 = vunpack.c.h.b16 %v4832
      %v4884 = vunpack.c.l.b16 %v4833
      %v4885 = vunpack.c.h.b16 %v4833
      %v4886 = vunpack.c.l.b16 %v4834
      %v4887 = vunpack.c.h.b16 %v4834
      %v4888 = vunpack.c.l.b16 %v4835
      %v4889 = vunpack.c.h.b16 %v4835
      %v4890 = vunpack.c.l.b16 %v4836
      %v4891 = vunpack.c.h.b16 %v4836
      %v4892 = vunpack.c.l.b16 %v4837
      %v4893 = vunpack.c.h.b16 %v4837
      %v4894 = vunpack.c.l.b16 %v4838
      %v4895 = vunpack.c.h.b16 %v4838
      %v4896 = vunpack.c.l.b16 %v4839
      %v4897 = vunpack.c.h.b16 %v4839
      %v4898 = vunpack.c.l.b16 %v4840
      %v4899 = vunpack.c.h.b16 %v4840
      %v4900 = vunpack.c.l.b16 %v4841
      %v4901 = vunpack.c.h.b16 %v4841
      %v4902 = vunpack.c.l.b16 %v4842
      %v4903 = vunpack.c.h.b16 %v4842
      %v4904 = vunpack.c.l.b16 %v4843
      %v4905 = vunpack.c.h.b16 %v4843
      %v4906 = vunpack.c.l.b16 %v4844
      %v4907 = vunpack.c.h.b16 %v4844
      %v4908 = vunpack.c.l.b16 %v4845
      %v4909 = vunpack.c.h.b16 %v4845
      %v4910 = vunpack.c.l.b16 %v4846
      %v4911 = vunpack.c.h.b16 %v4846
      %v4912 = vunpack.c.l.b16 %v4847
      %v4913 = vunpack.c.h.b16 %v4847
      %v4914 = vunpack.c.l.b16 %v4848
      %v4915 = vunpack.c.h.b16 %v4848
      %v4916 = vunpack.c.l.b16 %v4849
      %v4917 = vunpack.c.h.b16 %v4849
      %v4918 = vunpack.c.l.b16 %v4850
      %v4919 = vunpack.c.h.b16 %v4850
      %v4920 = vunpack.c.l.b16 %v4851
      %v4921 = vunpack.c.h.b16 %v4851
      %v4922 = vunpack.c.l.b16 %v4852
      %v4923 = vunpack.c.h.b16 %v4852
      %v4924 = vunpack.c.l.b16 %v4853
      %v4925 = vunpack.c.h.b16 %v4853
      %v4926 = vpack.c.b16 %v4880, %v4878
      %v4927 = vpack.c.b16 %v4881, %v4879
      %v4928 = vpack.c.b16 %v4884, %v4882
      %v4929 = vpack.c.b16 %v4885, %v4883
      %v4930 = vpack.c.b16 %v4888, %v4886
      %v4931 = vpack.c.b16 %v4889, %v4887
      %v4932 = vpack.c.b16 %v4892, %v4890
      %v4933 = vpack.c.b16 %v4893, %v4891
      %v4934 = vpack.c.b16 %v4896, %v4894
      %v4935 = vpack.c.b16 %v4897, %v4895
      %v4936 = vpack.c.b16 %v4900, %v4898
      %v4937 = vpack.c.b16 %v4901, %v4899
      %v4938 = vpack.c.b16 %v4904, %v4902
      %v4939 = vpack.c.b16 %v4905, %v4903
      %v4940 = vpack.c.b16 %v4908, %v4906
      %v4941 = vpack.c.b16 %v4909, %v4907
      %v4942 = vpack.c.b16 %v4912, %v4910
      %v4943 = vpack.c.b16 %v4913, %v4911
      %v4944 = vpack.c.b16 %v4916, %v4914
      %v4945 = vpack.c.b16 %v4917, %v4915
      %v4946 = vpack.c.b16 %v4920, %v4918
      %v4947 = vpack.c.b16 %v4921, %v4919
      %v4948 = vpack.c.b16 %v4924, %v4922
      %v4949 = vpack.c.b16 %v4925, %v4923
      %v4975 = vsel %vm449, %v4815, 0
      %v4978 = vsel %vm449, %v4817, 0
      %v4981 = vsel %vm449, %v4819, 0
      %v4984 = vsel %vm449, %v4821, 0
      %v4987 = vsel %vm449, %v4823, 0
      %v4990 = vsel %vm449, %v4825, 0
      %v4993 = vsel %vm449, %v4827, 0
      %v4996 = vsel %vm449, %v4829, 0
      %4998 = vmatprep.subr.bf16.mxu0 %v4927
      %4999 = vmatpush1.bf16.msra.mxu0 %v4926
      %5000 = vmatprep.subr.bf16.mxu0 %v4929
      %5001 = vmatpush1.bf16.msra.mxu0 %v4928
      %5002 = vmatprep.subr.bf16.mxu0 %v4931
      %5003 = vmatpush1.bf16.msra.mxu0 %v4930
      %5004 = vmatprep.subr.bf16.mxu0 %v4933
      %5005 = vmatpush1.bf16.msra.mxu0 %v4932
      %5006 = vmatprep.subr.bf16.mxu0 %v4935
      %5007 = vmatpush1.bf16.msra.mxu0 %v4934
      %5008 = vmatprep.subr.bf16.mxu0 %v4937
      %5009 = vmatpush1.bf16.msra.mxu0 %v4936
      %5010 = vmatprep.subr.bf16.mxu0 %v4939
      %5011 = vmatpush1.bf16.msra.mxu0 %v4938
      %5012 = vmatprep.subr.bf16.mxu0 %v4941
      %5013 = vmatpush1.bf16.msra.mxu0 %v4940
      %5014 = vmatprep.subr.bf16.mxu0 %v4943
      %5015 = vmatpush1.bf16.msra.mxu0 %v4942
      %5016 = vmatprep.subr.bf16.mxu0 %v4945
      %5017 = vmatpush1.bf16.msra.mxu0 %v4944
      %5018 = vmatprep.subr.bf16.mxu0 %v4947
      %5019 = vmatpush1.bf16.msra.mxu0 %v4946
      %5020 = vmatprep.subr.bf16.mxu0 %v4949
      %5021 = vmatpush1.bf16.msra.mxu0 %v4948
      %5022 = vmatprep.subr.bf16.mxu0 0
      %5023 = vmatpush1.bf16.msra.mxu0 0
      %5024 = vmatprep.subr.bf16.mxu0 0
      %5025 = vmatpush1.bf16.msra.mxu0 0
      %5026 = vmatprep.subr.bf16.mxu0 0
      %5027 = vmatpush1.bf16.msra.mxu0 0
      %5028 = vmatprep.subr.bf16.mxu0 0
      %5029 = vmatpush1.bf16.msra.mxu0 0
      %5030 = vmatprep.mubr.bf16.mxu0 %v4975
      %5031 = vmatmul.mubr.bf16.gmra.mrb[0].mxu0 %v4814
      %v5032 = vpop.f32.mrb[0].mxu0
      %v5033 = vadd.f32 0.0, %v5032
      %v5034 = vpop.f32.mrb[0].mxu0
      %v5035 = vadd.f32 0.0, %v5034
      %v5036 = vpop.f32.mrb[0].mxu0
      %v5037 = vadd.f32 0.0, %v5036
      %v5038 = vpop.f32.mrb[0].mxu0
      %v5039 = vadd.f32 0.0, %v5038
      %5040 = vmatprep.mubr.bf16.mxu0 %v4978
      %5041 = vmatmul.mubr.bf16.gmra.mrb[0].mxu0 %v4816
      %v5042 = vpop.f32.mrb[0].mxu0
      %v5043 = vadd.f32 0.0, %v5042
      %v5044 = vpop.f32.mrb[0].mxu0
      %v5045 = vadd.f32 0.0, %v5044
      %v5046 = vpop.f32.mrb[0].mxu0
      %v5047 = vadd.f32 0.0, %v5046
      %v5048 = vpop.f32.mrb[0].mxu0
      %v5049 = vadd.f32 0.0, %v5048
      %5050 = vmatprep.mubr.bf16.mxu0 %v4981
      %5051 = vmatmul.mubr.bf16.gmra.mrb[0].mxu0 %v4818
      %v5052 = vpop.f32.mrb[0].mxu0
      %v5053 = vadd.f32 0.0, %v5052
      %v5054 = vpop.f32.mrb[0].mxu0
      %v5055 = vadd.f32 0.0, %v5054
      %v5056 = vpop.f32.mrb[0].mxu0
      %v5057 = vadd.f32 0.0, %v5056
      %v5058 = vpop.f32.mrb[0].mxu0
      %v5059 = vadd.f32 0.0, %v5058
      %5060 = vmatprep.mubr.bf16.mxu0 %v4984
      %5061 = vmatmul.mubr.bf16.gmra.mrb[0].mxu0 %v4820
      %v5062 = vpop.f32.mrb[0].mxu0
      %v5063 = vadd.f32 0.0, %v5062
      %v5064 = vpop.f32.mrb[0].mxu0
      %v5065 = vadd.f32 0.0, %v5064
      %v5066 = vpop.f32.mrb[0].mxu0
      %v5067 = vadd.f32 0.0, %v5066
      %v5068 = vpop.f32.mrb[0].mxu0
      %v5069 = vadd.f32 0.0, %v5068
      %5070 = vmatprep.mubr.bf16.mxu0 %v4987
      %5071 = vmatmul.mubr.bf16.gmra.mrb[0].mxu0 %v4822
      %v5072 = vpop.f32.mrb[0].mxu0
      %v5073 = vadd.f32 0.0, %v5072
      %v5074 = vpop.f32.mrb[0].mxu0
      %v5075 = vadd.f32 0.0, %v5074
      %v5076 = vpop.f32.mrb[0].mxu0
      %v5077 = vadd.f32 0.0, %v5076
      %v5078 = vpop.f32.mrb[0].mxu0
      %v5079 = vadd.f32 0.0, %v5078
      %5080 = vmatprep.mubr.bf16.mxu0 %v4990
      %5081 = vmatmul.mubr.bf16.gmra.mrb[0].mxu0 %v4824
      %v5082 = vpop.f32.mrb[0].mxu0
      %v5083 = vadd.f32 0.0, %v5082
      %v5084 = vpop.f32.mrb[0].mxu0
      %v5085 = vadd.f32 0.0, %v5084
      %v5086 = vpop.f32.mrb[0].mxu0
      %v5087 = vadd.f32 0.0, %v5086
      %v5088 = vpop.f32.mrb[0].mxu0
      %v5089 = vadd.f32 0.0, %v5088
      %5090 = vmatprep.mubr.bf16.mxu0 %v4993
      %5091 = vmatmul.mubr.bf16.gmra.mrb[0].mxu0 %v4826
      %v5092 = vpop.f32.mrb[0].mxu0
      %v5093 = vadd.f32 0.0, %v5092
      %v5094 = vpop.f32.mrb[0].mxu0
      %v5095 = vadd.f32 0.0, %v5094
      %v5096 = vpop.f32.mrb[0].mxu0
      %v5097 = vadd.f32 0.0, %v5096
      %v5098 = vpop.f32.mrb[0].mxu0
      %v5099 = vadd.f32 0.0, %v5098
      %5100 = vmatprep.mubr.bf16.mxu0 %v4996
      %5101 = vmatmul.mubr.bf16.gmra.mrb[0].mxu0 %v4828
      %v5102 = vpop.f32.mrb[0].mxu0
      %v5103 = vadd.f32 0.0, %v5102
      %v5104 = vpop.f32.mrb[0].mxu0
      %v5105 = vadd.f32 0.0, %v5104
      %v5106 = vpop.f32.mrb[0].mxu0
      %v5107 = vadd.f32 0.0, %v5106
      %v5108 = vpop.f32.mrb[0].mxu0
      %v5109 = vadd.f32 0.0, %v5108
      %5110 = vdwg.mxu0
      %v5111 = vld [vmem:[%s408] sm:$0xff]
      %v5112 = vld [vmem:[%s408 + $0x8] sm:$0xff]
      %v5113 = vld [vmem:[%s408 + $0x10] sm:$0xff]
      %v5114 = vld [vmem:[%s408 + $0x18] sm:$0xff]
      %v5115 = vld [vmem:[%s408 + $0x20] sm:$0xff]
      %v5116 = vld [vmem:[%s408 + $0x28] sm:$0xff]
      %v5117 = vld [vmem:[%s408 + $0x30] sm:$0xff]
      %v5118 = vld [vmem:[%s408 + $0x38] sm:$0xff]
      %v5119 = vld [vmem:[%s408 + $0x40] sm:$0xff]
      %v5120 = vld [vmem:[%s408 + $0x48] sm:$0xff]
      %v5121 = vld [vmem:[%s408 + $0x50] sm:$0xff]
      %v5122 = vld [vmem:[%s408 + $0x58] sm:$0xff]
      %v5123 = vld [vmem:[%s408 + $0x60] sm:$0xff]
      %v5124 = vld [vmem:[%s408 + $0x68] sm:$0xff]
      %v5125 = vld [vmem:[%s408 + $0x70] sm:$0xff]
      %v5126 = vld [vmem:[%s408 + $0x78] sm:$0xff]
      %v5127 = vld [vmem:[%s408 + $0x80] sm:$0xff]
      %v5128 = vld [vmem:[%s408 + $0x88] sm:$0xff]
      %v5129 = vld [vmem:[%s408 + $0x90] sm:$0xff]
      %v5130 = vld [vmem:[%s408 + $0x98] sm:$0xff]
      %v5131 = vld [vmem:[%s408 + $0xa0] sm:$0xff]
      %v5132 = vld [vmem:[%s408 + $0xa8] sm:$0xff]
      %v5133 = vld [vmem:[%s408 + $0xb0] sm:$0xff]
      %v5134 = vld [vmem:[%s408 + $0xb8] sm:$0xff]
      %v5135 = vld [vmem:[%s408 + $0xc0] sm:$0xff]
      %v5136 = vld [vmem:[%s408 + $0xc8] sm:$0xff]
      %v5137 = vld [vmem:[%s408 + $0xd0] sm:$0xff]
      %v5138 = vld [vmem:[%s408 + $0xd8] sm:$0xff]
      %v5139 = vld [vmem:[%s408 + $0xe0] sm:$0xff]
      %v5140 = vld [vmem:[%s408 + $0xe8] sm:$0xff]
      %v5141 = vld [vmem:[%s408 + $0xf0] sm:$0xff]
      %v5142 = vld [vmem:[%s408 + $0xf8] sm:$0xff]
      %v5143 = vadd.f32 %v5111, %v5033
      %v5144 = vadd.f32 %v5112, %v5035
      %v5145 = vadd.f32 %v5113, %v5037
      %v5146 = vadd.f32 %v5114, %v5039
      %v5147 = vadd.f32 %v5115, %v5043
      %v5148 = vadd.f32 %v5116, %v5045
      %v5149 = vadd.f32 %v5117, %v5047
      %v5150 = vadd.f32 %v5118, %v5049
      %v5151 = vadd.f32 %v5119, %v5053
      %v5152 = vadd.f32 %v5120, %v5055
      %v5153 = vadd.f32 %v5121, %v5057
      %v5154 = vadd.f32 %v5122, %v5059
      %v5155 = vadd.f32 %v5123, %v5063
      %v5156 = vadd.f32 %v5124, %v5065
      %v5157 = vadd.f32 %v5125, %v5067
      %v5158 = vadd.f32 %v5126, %v5069
      %v5159 = vadd.f32 %v5127, %v5073
      %v5160 = vadd.f32 %v5128, %v5075
      %v5161 = vadd.f32 %v5129, %v5077
      %v5162 = vadd.f32 %v5130, %v5079
      %v5163 = vadd.f32 %v5131, %v5083
      %v5164 = vadd.f32 %v5132, %v5085
      %v5165 = vadd.f32 %v5133, %v5087
      %v5166 = vadd.f32 %v5134, %v5089
      %v5167 = vadd.f32 %v5135, %v5093
      %v5168 = vadd.f32 %v5136, %v5095
      %v5169 = vadd.f32 %v5137, %v5097
      %v5170 = vadd.f32 %v5138, %v5099
      %v5171 = vadd.f32 %v5139, %v5103
      %v5172 = vadd.f32 %v5140, %v5105
      %v5173 = vadd.f32 %v5141, %v5107
      %v5174 = vadd.f32 %v5142, %v5109
      %v5175 = vld [vmem:[%s3] sm:$0x3]
      %v5177 = vlaneseq
      %v5178 = vshrl.u32 %v5177, 7
      %v5179 = vsub.s32 0, %v5178
      %v5180 = vrot.slane %v5175, %v5179
      %v5181 = vlaneseq
      %v5182 = vshrl.u32 %v5181, 7
      %v5183 = vsub.s32 1, %v5182
      %v5184 = vrot.slane %v5175, %v5183
      %v5187 = vadd.f32 %v5143, %v5180
      %v5188 = vadd.f32 %v5144, %v5184
      %v5189 = vadd.f32 %v5145, %v5180
      %v5190 = vadd.f32 %v5146, %v5184
      %v5191 = vadd.f32 %v5147, %v5180
      %v5192 = vadd.f32 %v5148, %v5184
      %v5193 = vadd.f32 %v5149, %v5180
      %v5194 = vadd.f32 %v5150, %v5184
      %v5195 = vadd.f32 %v5151, %v5180
      %v5196 = vadd.f32 %v5152, %v5184
      %v5197 = vadd.f32 %v5153, %v5180
      %v5198 = vadd.f32 %v5154, %v5184
      %v5199 = vadd.f32 %v5155, %v5180
      %v5200 = vadd.f32 %v5156, %v5184
      %v5201 = vadd.f32 %v5157, %v5180
      %v5202 = vadd.f32 %v5158, %v5184
      %v5203 = vadd.f32 %v5159, %v5180
      %v5204 = vadd.f32 %v5160, %v5184
      %v5205 = vadd.f32 %v5161, %v5180
      %v5206 = vadd.f32 %v5162, %v5184
      %v5207 = vadd.f32 %v5163, %v5180
      %v5208 = vadd.f32 %v5164, %v5184
      %v5209 = vadd.f32 %v5165, %v5180
      %v5210 = vadd.f32 %v5166, %v5184
      %v5211 = vadd.f32 %v5167, %v5180
      %v5212 = vadd.f32 %v5168, %v5184
      %v5213 = vadd.f32 %v5169, %v5180
      %v5214 = vadd.f32 %v5170, %v5184
      %v5215 = vadd.f32 %v5171, %v5180
      %v5216 = vadd.f32 %v5172, %v5184
      %v5217 = vadd.f32 %v5173, %v5180
      %v5218 = vadd.f32 %v5174, %v5184
      %v5219 = vld [vmem:[%s6] sm:$0x3]
      %v5220 = vld [vmem:[%s7] sm:$0x3]
      %v5221 = vsel %vm449, %v5188, 0.0
      %v5222 = vadd.f32 %v5187, %v5221
      %5223 = vadd.xlane.f32.xlu0 %v5222
      %v5224 = vpop.xlane.xlu0 %5223
      %v5225 = vsel %vm449, %v5190, 0.0
      %v5226 = vadd.f32 %v5189, %v5225
      %5227 = vadd.xlane.f32.xlu0 %v5226
      %v5228 = vpop.xlane.xlu0 %5227
      %v5229 = vsel %vm449, %v5192, 0.0
      %v5230 = vadd.f32 %v5191, %v5229
      %5231 = vadd.xlane.f32.xlu0 %v5230
      %v5232 = vpop.xlane.xlu0 %5231
      %v5233 = vsel %vm449, %v5194, 0.0
      %v5234 = vadd.f32 %v5193, %v5233
      %5235 = vadd.xlane.f32.xlu0 %v5234
      %v5236 = vpop.xlane.xlu0 %5235
      %v5237 = vsel %vm449, %v5196, 0.0
      %v5238 = vadd.f32 %v5195, %v5237
      %5239 = vadd.xlane.f32.xlu0 %v5238
      %v5240 = vpop.xlane.xlu0 %5239
      %v5241 = vsel %vm449, %v5198, 0.0
      %v5242 = vadd.f32 %v5197, %v5241
      %5243 = vadd.xlane.f32.xlu0 %v5242
      %v5244 = vpop.xlane.xlu0 %5243
      %v5245 = vsel %vm449, %v5200, 0.0
      %v5246 = vadd.f32 %v5199, %v5245
      %5247 = vadd.xlane.f32.xlu0 %v5246
      %v5248 = vpop.xlane.xlu0 %5247
      %v5249 = vsel %vm449, %v5202, 0.0
      %v5250 = vadd.f32 %v5201, %v5249
      %5251 = vadd.xlane.f32.xlu0 %v5250
      %v5252 = vpop.xlane.xlu0 %5251
      %v5253 = vsel %vm449, %v5204, 0.0
      %v5254 = vadd.f32 %v5203, %v5253
      %5255 = vadd.xlane.f32.xlu0 %v5254
      %v5256 = vpop.xlane.xlu0 %5255
      %v5257 = vsel %vm449, %v5206, 0.0
      %v5258 = vadd.f32 %v5205, %v5257
      %5259 = vadd.xlane.f32.xlu0 %v5258
      %v5260 = vpop.xlane.xlu0 %5259
      %v5261 = vsel %vm449, %v5208, 0.0
      %v5262 = vadd.f32 %v5207, %v5261
      %5263 = vadd.xlane.f32.xlu0 %v5262
      %v5264 = vpop.xlane.xlu0 %5263
      %v5265 = vsel %vm449, %v5210, 0.0
      %v5266 = vadd.f32 %v5209, %v5265
      %5267 = vadd.xlane.f32.xlu0 %v5266
      %v5268 = vpop.xlane.xlu0 %5267
      %v5269 = vsel %vm449, %v5212, 0.0
      %v5270 = vadd.f32 %v5211, %v5269
      %5271 = vadd.xlane.f32.xlu0 %v5270
      %v5272 = vpop.xlane.xlu0 %5271
      %v5273 = vsel %vm449, %v5214, 0.0
      %v5274 = vadd.f32 %v5213, %v5273
      %5275 = vadd.xlane.f32.xlu0 %v5274
      %v5276 = vpop.xlane.xlu0 %5275
      %v5277 = vsel %vm449, %v5216, 0.0
      %v5278 = vadd.f32 %v5215, %v5277
      %5279 = vadd.xlane.f32.xlu0 %v5278
      %v5280 = vpop.xlane.xlu0 %5279
      %v5281 = vsel %vm449, %v5218, 0.0
      %v5282 = vadd.f32 %v5217, %v5281
      %5283 = vadd.xlane.f32.xlu0 %v5282
      %v5284 = vpop.xlane.xlu0 %5283
      %v5285 = vmul.f32 %v5187, %v5187
      %v5286 = vmul.f32 %v5188, %v5188
      %v5287 = vmul.f32 %v5189, %v5189
      %v5288 = vmul.f32 %v5190, %v5190
      %v5289 = vmul.f32 %v5191, %v5191
      %v5290 = vmul.f32 %v5192, %v5192
      %v5291 = vmul.f32 %v5193, %v5193
      %v5292 = vmul.f32 %v5194, %v5194
      %v5293 = vmul.f32 %v5195, %v5195
      %v5294 = vmul.f32 %v5196, %v5196
      %v5295 = vmul.f32 %v5197, %v5197
      %v5296 = vmul.f32 %v5198, %v5198
      %v5297 = vmul.f32 %v5199, %v5199
      %v5298 = vmul.f32 %v5200, %v5200
      %v5299 = vmul.f32 %v5201, %v5201
      %v5300 = vmul.f32 %v5202, %v5202
      %v5301 = vmul.f32 %v5203, %v5203
      %v5302 = vmul.f32 %v5204, %v5204
      %v5303 = vmul.f32 %v5205, %v5205
      %v5304 = vmul.f32 %v5206, %v5206
      %v5305 = vmul.f32 %v5207, %v5207
      %v5306 = vmul.f32 %v5208, %v5208
      %v5307 = vmul.f32 %v5209, %v5209
      %v5308 = vmul.f32 %v5210, %v5210
      %v5309 = vmul.f32 %v5211, %v5211
      %v5310 = vmul.f32 %v5212, %v5212
      %v5311 = vmul.f32 %v5213, %v5213
      %v5312 = vmul.f32 %v5214, %v5214
      %v5313 = vmul.f32 %v5215, %v5215
      %v5314 = vmul.f32 %v5216, %v5216
      %v5315 = vmul.f32 %v5217, %v5217
      %v5316 = vmul.f32 %v5218, %v5218
      %v5317 = vsel %vm449, %v5286, 0.0
      %v5318 = vadd.f32 %v5285, %v5317
      %5319 = vadd.xlane.f32.xlu0 %v5318
      %v5320 = vpop.xlane.xlu0 %5319
      %v5321 = vsel %vm449, %v5288, 0.0
      %v5322 = vadd.f32 %v5287, %v5321
      %5323 = vadd.xlane.f32.xlu0 %v5322
      %v5324 = vpop.xlane.xlu0 %5323
      %v5325 = vsel %vm449, %v5290, 0.0
      %v5326 = vadd.f32 %v5289, %v5325
      %5327 = vadd.xlane.f32.xlu0 %v5326
      %v5328 = vpop.xlane.xlu0 %5327
      %v5329 = vsel %vm449, %v5292, 0.0
      %v5330 = vadd.f32 %v5291, %v5329
      %5331 = vadd.xlane.f32.xlu0 %v5330
      %v5332 = vpop.xlane.xlu0 %5331
      %v5333 = vsel %vm449, %v5294, 0.0
      %v5334 = vadd.f32 %v5293, %v5333
      %5335 = vadd.xlane.f32.xlu0 %v5334
      %v5336 = vpop.xlane.xlu0 %5335
      %v5337 = vsel %vm449, %v5296, 0.0
      %v5338 = vadd.f32 %v5295, %v5337
      %5339 = vadd.xlane.f32.xlu0 %v5338
      %v5340 = vpop.xlane.xlu0 %5339
      %v5341 = vsel %vm449, %v5298, 0.0
      %v5342 = vadd.f32 %v5297, %v5341
      %5343 = vadd.xlane.f32.xlu0 %v5342
      %v5344 = vpop.xlane.xlu0 %5343
      %v5345 = vsel %vm449, %v5300, 0.0
      %v5346 = vadd.f32 %v5299, %v5345
      %5347 = vadd.xlane.f32.xlu0 %v5346
      %v5348 = vpop.xlane.xlu0 %5347
      %v5349 = vsel %vm449, %v5302, 0.0
      %v5350 = vadd.f32 %v5301, %v5349
      %5351 = vadd.xlane.f32.xlu0 %v5350
      %v5352 = vpop.xlane.xlu0 %5351
      %v5353 = vsel %vm449, %v5304, 0.0
      %v5354 = vadd.f32 %v5303, %v5353
      %5355 = vadd.xlane.f32.xlu0 %v5354
      %v5356 = vpop.xlane.xlu0 %5355
      %v5357 = vsel %vm449, %v5306, 0.0
      %v5358 = vadd.f32 %v5305, %v5357
      %5359 = vadd.xlane.f32.xlu0 %v5358
      %v5360 = vpop.xlane.xlu0 %5359
      %v5361 = vsel %vm449, %v5308, 0.0
      %v5362 = vadd.f32 %v5307, %v5361
      %5363 = vadd.xlane.f32.xlu0 %v5362
      %v5364 = vpop.xlane.xlu0 %5363
      %v5365 = vsel %vm449, %v5310, 0.0
      %v5366 = vadd.f32 %v5309, %v5365
      %5367 = vadd.xlane.f32.xlu0 %v5366
      %v5368 = vpop.xlane.xlu0 %5367
      %v5369 = vsel %vm449, %v5312, 0.0
      %v5370 = vadd.f32 %v5311, %v5369
      %5371 = vadd.xlane.f32.xlu0 %v5370
      %v5372 = vpop.xlane.xlu0 %5371
      %v5373 = vsel %vm449, %v5314, 0.0
      %v5374 = vadd.f32 %v5313, %v5373
      %5375 = vadd.xlane.f32.xlu0 %v5374
      %v5376 = vpop.xlane.xlu0 %5375
      %v5377 = vsel %vm449, %v5316, 0.0
      %v5378 = vadd.f32 %v5315, %v5377
      %5379 = vadd.xlane.f32.xlu0 %v5378
      %v5380 = vpop.xlane.xlu0 %5379
      %v5381 = vmul.f32 %v5224, 0.0052083335
      %v5382 = vmul.f32 %v5228, 0.0052083335
      %v5383 = vmul.f32 %v5232, 0.0052083335
      %v5384 = vmul.f32 %v5236, 0.0052083335
      %v5385 = vmul.f32 %v5240, 0.0052083335
      %v5386 = vmul.f32 %v5244, 0.0052083335
      %v5387 = vmul.f32 %v5248, 0.0052083335
      %v5388 = vmul.f32 %v5252, 0.0052083335
      %v5389 = vmul.f32 %v5256, 0.0052083335
      %v5390 = vmul.f32 %v5260, 0.0052083335
      %v5391 = vmul.f32 %v5264, 0.0052083335
      %v5392 = vmul.f32 %v5268, 0.0052083335
      %v5393 = vmul.f32 %v5272, 0.0052083335
      %v5394 = vmul.f32 %v5276, 0.0052083335
      %v5395 = vmul.f32 %v5280, 0.0052083335
      %v5396 = vmul.f32 %v5284, 0.0052083335
      %v5397 = vmul.f32 %v5320, 0.0052083335
      %v5398 = vmul.f32 %v5324, 0.0052083335
      %v5399 = vmul.f32 %v5328, 0.0052083335
      %v5400 = vmul.f32 %v5332, 0.0052083335
      %v5401 = vmul.f32 %v5336, 0.0052083335
      %v5402 = vmul.f32 %v5340, 0.0052083335
      %v5403 = vmul.f32 %v5344, 0.0052083335
      %v5404 = vmul.f32 %v5348, 0.0052083335
      %v5405 = vmul.f32 %v5352, 0.0052083335
      %v5406 = vmul.f32 %v5356, 0.0052083335
      %v5407 = vmul.f32 %v5360, 0.0052083335
      %v5408 = vmul.f32 %v5364, 0.0052083335
      %v5409 = vmul.f32 %v5368, 0.0052083335
      %v5410 = vmul.f32 %v5372, 0.0052083335
      %v5411 = vmul.f32 %v5376, 0.0052083335
      %v5412 = vmul.f32 %v5380, 0.0052083335
      %v5413 = vmul.f32 %v5381, %v5381
      %v5414 = vmul.f32 %v5382, %v5382
      %v5415 = vmul.f32 %v5383, %v5383
      %v5416 = vmul.f32 %v5384, %v5384
      %v5417 = vmul.f32 %v5385, %v5385
      %v5418 = vmul.f32 %v5386, %v5386
      %v5419 = vmul.f32 %v5387, %v5387
      %v5420 = vmul.f32 %v5388, %v5388
      %v5421 = vmul.f32 %v5389, %v5389
      %v5422 = vmul.f32 %v5390, %v5390
      %v5423 = vmul.f32 %v5391, %v5391
      %v5424 = vmul.f32 %v5392, %v5392
      %v5425 = vmul.f32 %v5393, %v5393
      %v5426 = vmul.f32 %v5394, %v5394
      %v5427 = vmul.f32 %v5395, %v5395
      %v5428 = vmul.f32 %v5396, %v5396
      %v5429 = vsub.f32 %v5397, %v5413
      %v5430 = vsub.f32 %v5398, %v5414
      %v5431 = vsub.f32 %v5399, %v5415
      %v5432 = vsub.f32 %v5400, %v5416
      %v5433 = vsub.f32 %v5401, %v5417
      %v5434 = vsub.f32 %v5402, %v5418
      %v5435 = vsub.f32 %v5403, %v5419
      %v5436 = vsub.f32 %v5404, %v5420
      %v5437 = vsub.f32 %v5405, %v5421
      %v5438 = vsub.f32 %v5406, %v5422
      %v5439 = vsub.f32 %v5407, %v5423
      %v5440 = vsub.f32 %v5408, %v5424
      %v5441 = vsub.f32 %v5409, %v5425
      %v5442 = vsub.f32 %v5410, %v5426
      %v5443 = vsub.f32 %v5411, %v5427
      %v5444 = vsub.f32 %v5412, %v5428
      %v5445 = vsub.f32 %v5187, %v5381
      %v5446 = vsub.f32 %v5188, %v5381
      %v5447 = vsub.f32 %v5189, %v5382
      %v5448 = vsub.f32 %v5190, %v5382
      %v5449 = vsub.f32 %v5191, %v5383
      %v5450 = vsub.f32 %v5192, %v5383
      %v5451 = vsub.f32 %v5193, %v5384
      %v5452 = vsub.f32 %v5194, %v5384
      %v5453 = vsub.f32 %v5195, %v5385
      %v5454 = vsub.f32 %v5196, %v5385
      %v5455 = vsub.f32 %v5197, %v5386
      %v5456 = vsub.f32 %v5198, %v5386
      %v5457 = vsub.f32 %v5199, %v5387
      %v5458 = vsub.f32 %v5200, %v5387
      %v5459 = vsub.f32 %v5201, %v5388
      %v5460 = vsub.f32 %v5202, %v5388
      %v5461 = vsub.f32 %v5203, %v5389
      %v5462 = vsub.f32 %v5204, %v5389
      %v5463 = vsub.f32 %v5205, %v5390
      %v5464 = vsub.f32 %v5206, %v5390
      %v5465 = vsub.f32 %v5207, %v5391
      %v5466 = vsub.f32 %v5208, %v5391
      %v5467 = vsub.f32 %v5209, %v5392
      %v5468 = vsub.f32 %v5210, %v5392
      %v5469 = vsub.f32 %v5211, %v5393
      %v5470 = vsub.f32 %v5212, %v5393
      %v5471 = vsub.f32 %v5213, %v5394
      %v5472 = vsub.f32 %v5214, %v5394
      %v5473 = vsub.f32 %v5215, %v5395
      %v5474 = vsub.f32 %v5216, %v5395
      %v5475 = vsub.f32 %v5217, %v5396
      %v5476 = vsub.f32 %v5218, %v5396
      %v5477 = vadd.f32 %v5429, 1e-05
      %v5478 = vadd.f32 %v5430, 1e-05
      %v5479 = vadd.f32 %v5431, 1e-05
      %v5480 = vadd.f32 %v5432, 1e-05
      %v5481 = vadd.f32 %v5433, 1e-05
      %v5482 = vadd.f32 %v5434, 1e-05
      %v5483 = vadd.f32 %v5435, 1e-05
      %v5484 = vadd.f32 %v5436, 1e-05
      %v5485 = vadd.f32 %v5437, 1e-05
      %v5486 = vadd.f32 %v5438, 1e-05
      %v5487 = vadd.f32 %v5439, 1e-05
      %v5488 = vadd.f32 %v5440, 1e-05
      %v5489 = vadd.f32 %v5441, 1e-05
      %v5490 = vadd.f32 %v5442, 1e-05
      %v5491 = vadd.f32 %v5443, 1e-05
      %v5492 = vadd.f32 %v5444, 1e-05
      %v5493 = vrsqrt.pop %v5477
      %v5494 = vrsqrt.pop %v5478
      %v5495 = vrsqrt.pop %v5479
      %v5496 = vrsqrt.pop %v5480
      %v5497 = vrsqrt.pop %v5481
      %v5498 = vrsqrt.pop %v5482
      %v5499 = vrsqrt.pop %v5483
      %v5500 = vrsqrt.pop %v5484
      %v5501 = vrsqrt.pop %v5485
      %v5502 = vrsqrt.pop %v5486
      %v5503 = vrsqrt.pop %v5487
      %v5504 = vrsqrt.pop %v5488
      %v5505 = vrsqrt.pop %v5489
      %v5506 = vrsqrt.pop %v5490
      %v5507 = vrsqrt.pop %v5491
      %v5508 = vrsqrt.pop %v5492
      %v5509 = vmul.f32 %v5445, %v5493
      %v5510 = vmul.f32 %v5446, %v5493
      %v5511 = vmul.f32 %v5447, %v5494
      %v5512 = vmul.f32 %v5448, %v5494
      %v5513 = vmul.f32 %v5449, %v5495
      %v5514 = vmul.f32 %v5450, %v5495
      %v5515 = vmul.f32 %v5451, %v5496
      %v5516 = vmul.f32 %v5452, %v5496
      %v5517 = vmul.f32 %v5453, %v5497
      %v5518 = vmul.f32 %v5454, %v5497
      %v5519 = vmul.f32 %v5455, %v5498
      %v5520 = vmul.f32 %v5456, %v5498
      %v5521 = vmul.f32 %v5457, %v5499
      %v5522 = vmul.f32 %v5458, %v5499
      %v5523 = vmul.f32 %v5459, %v5500
      %v5524 = vmul.f32 %v5460, %v5500
      %v5525 = vmul.f32 %v5461, %v5501
      %v5526 = vmul.f32 %v5462, %v5501
      %v5527 = vmul.f32 %v5463, %v5502
      %v5528 = vmul.f32 %v5464, %v5502
      %v5529 = vmul.f32 %v5465, %v5503
      %v5530 = vmul.f32 %v5466, %v5503
      %v5531 = vmul.f32 %v5467, %v5504
      %v5532 = vmul.f32 %v5468, %v5504
      %v5533 = vmul.f32 %v5469, %v5505
      %v5534 = vmul.f32 %v5470, %v5505
      %v5535 = vmul.f32 %v5471, %v5506
      %v5536 = vmul.f32 %v5472, %v5506
      %v5537 = vmul.f32 %v5473, %v5507
      %v5538 = vmul.f32 %v5474, %v5507
      %v5539 = vmul.f32 %v5475, %v5508
      %v5540 = vmul.f32 %v5476, %v5508
      %v5542 = vlaneseq
      %v5543 = vshrl.u32 %v5542, 7
      %v5544 = vsub.s32 0, %v5543
      %v5545 = vrot.slane %v5219, %v5544
      %v5546 = vlaneseq
      %v5547 = vshrl.u32 %v5546, 7
      %v5548 = vsub.s32 1, %v5547
      %v5549 = vrot.slane %v5219, %v5548
      %v5552 = vmul.f32 %v5509, %v5545
      %v5553 = vmul.f32 %v5510, %v5549
      %v5554 = vmul.f32 %v5511, %v5545
      %v5555 = vmul.f32 %v5512, %v5549
      %v5556 = vmul.f32 %v5513, %v5545
      %v5557 = vmul.f32 %v5514, %v5549
      %v5558 = vmul.f32 %v5515, %v5545
      %v5559 = vmul.f32 %v5516, %v5549
      %v5560 = vmul.f32 %v5517, %v5545
      %v5561 = vmul.f32 %v5518, %v5549
      %v5562 = vmul.f32 %v5519, %v5545
      %v5563 = vmul.f32 %v5520, %v5549
      %v5564 = vmul.f32 %v5521, %v5545
      %v5565 = vmul.f32 %v5522, %v5549
      %v5566 = vmul.f32 %v5523, %v5545
      %v5567 = vmul.f32 %v5524, %v5549
      %v5568 = vmul.f32 %v5525, %v5545
      %v5569 = vmul.f32 %v5526, %v5549
      %v5570 = vmul.f32 %v5527, %v5545
      %v5571 = vmul.f32 %v5528, %v5549
      %v5572 = vmul.f32 %v5529, %v5545
      %v5573 = vmul.f32 %v5530, %v5549
      %v5574 = vmul.f32 %v5531, %v5545
      %v5575 = vmul.f32 %v5532, %v5549
      %v5576 = vmul.f32 %v5533, %v5545
      %v5577 = vmul.f32 %v5534, %v5549
      %v5578 = vmul.f32 %v5535, %v5545
      %v5579 = vmul.f32 %v5536, %v5549
      %v5580 = vmul.f32 %v5537, %v5545
      %v5581 = vmul.f32 %v5538, %v5549
      %v5582 = vmul.f32 %v5539, %v5545
      %v5583 = vmul.f32 %v5540, %v5549
      %v5585 = vlaneseq
      %v5586 = vshrl.u32 %v5585, 7
      %v5587 = vsub.s32 0, %v5586
      %v5588 = vrot.slane %v5220, %v5587
      %v5589 = vlaneseq
      %v5590 = vshrl.u32 %v5589, 7
      %v5591 = vsub.s32 1, %v5590
      %v5592 = vrot.slane %v5220, %v5591
      %v5595 = vadd.f32 %v5552, %v5588
      %v5596 = vadd.f32 %v5553, %v5592
      %v5597 = vadd.f32 %v5554, %v5588
      %v5598 = vadd.f32 %v5555, %v5592
      %v5599 = vadd.f32 %v5556, %v5588
      %v5600 = vadd.f32 %v5557, %v5592
      %v5601 = vadd.f32 %v5558, %v5588
      %v5602 = vadd.f32 %v5559, %v5592
      %v5603 = vadd.f32 %v5560, %v5588
      %v5604 = vadd.f32 %v5561, %v5592
      %v5605 = vadd.f32 %v5562, %v5588
      %v5606 = vadd.f32 %v5563, %v5592
      %v5607 = vadd.f32 %v5564, %v5588
      %v5608 = vadd.f32 %v5565, %v5592
      %v5609 = vadd.f32 %v5566, %v5588
      %v5610 = vadd.f32 %v5567, %v5592
      %v5611 = vadd.f32 %v5568, %v5588
      %v5612 = vadd.f32 %v5569, %v5592
      %v5613 = vadd.f32 %v5570, %v5588
      %v5614 = vadd.f32 %v5571, %v5592
      %v5615 = vadd.f32 %v5572, %v5588
      %v5616 = vadd.f32 %v5573, %v5592
      %v5617 = vadd.f32 %v5574, %v5588
      %v5618 = vadd.f32 %v5575, %v5592
      %v5619 = vadd.f32 %v5576, %v5588
      %v5620 = vadd.f32 %v5577, %v5592
      %v5621 = vadd.f32 %v5578, %v5588
      %v5622 = vadd.f32 %v5579, %v5592
      %v5623 = vadd.f32 %v5580, %v5588
      %v5624 = vadd.f32 %v5581, %v5592
      %v5625 = vadd.f32 %v5582, %v5588
      %v5626 = vadd.f32 %v5583, %v5592
      %v5627 = vpack.c.bf16 %v5597, %v5595
      %v5628 = vpack.c.bf16 %v5598, %v5596
      %v5629 = vpack.c.bf16 %v5601, %v5599
      %v5630 = vpack.c.bf16 %v5602, %v5600
      %v5631 = vpack.c.bf16 %v5605, %v5603
      %v5632 = vpack.c.bf16 %v5606, %v5604
      %v5633 = vpack.c.bf16 %v5609, %v5607
      %v5634 = vpack.c.bf16 %v5610, %v5608
      %v5635 = vpack.c.bf16 %v5613, %v5611
      %v5636 = vpack.c.bf16 %v5614, %v5612
      %v5637 = vpack.c.bf16 %v5617, %v5615
      %v5638 = vpack.c.bf16 %v5618, %v5616
      %v5639 = vpack.c.bf16 %v5621, %v5619
      %v5640 = vpack.c.bf16 %v5622, %v5620
      %v5641 = vpack.c.bf16 %v5625, %v5623
      %v5642 = vpack.c.bf16 %v5626, %v5624
      %v5643 = vld [vmem:[%s8] sm:$0xff]
      %v5644 = vld [vmem:[%s8 + $0x8] sm:$0xff]
      %v5645 = vld [vmem:[%s8 + $0x10] sm:$0xff]
      %v5646 = vld [vmem:[%s8 + $0x18] sm:$0xff]
      %v5647 = vld [vmem:[%s8 + $0x20] sm:$0xff]
      %v5648 = vld [vmem:[%s8 + $0x28] sm:$0xff]
      %v5649 = vld [vmem:[%s8 + $0x30] sm:$0xff]
      %v5650 = vld [vmem:[%s8 + $0x38] sm:$0xff]
      %v5651 = vld [vmem:[%s8 + $0x40] sm:$0xff]
      %v5652 = vld [vmem:[%s8 + $0x48] sm:$0xff]
      %v5653 = vld [vmem:[%s8 + $0x50] sm:$0xff]
      %v5654 = vld [vmem:[%s8 + $0x58] sm:$0xff]
      %v5655 = vld [vmem:[%s8 + $0x60] sm:$0xff]
      %v5656 = vld [vmem:[%s8 + $0x68] sm:$0xff]
      %v5657 = vld [vmem:[%s8 + $0x70] sm:$0xff]
      %v5658 = vld [vmem:[%s8 + $0x78] sm:$0xff]
      %v5659 = vld [vmem:[%s8 + $0x80] sm:$0xff]
      %v5660 = vld [vmem:[%s8 + $0x88] sm:$0xff]
      %v5661 = vld [vmem:[%s8 + $0x90] sm:$0xff]
      %v5662 = vld [vmem:[%s8 + $0x98] sm:$0xff]
      %v5663 = vld [vmem:[%s8 + $0xa0] sm:$0xff]
      %v5664 = vld [vmem:[%s8 + $0xa8] sm:$0xff]
      %v5665 = vld [vmem:[%s8 + $0xb0] sm:$0xff]
      %v5666 = vld [vmem:[%s8 + $0xb8] sm:$0xff]
      %v5667 = vld [vmem:[%s8 + $0xc0] sm:$0xff]
      %v5668 = vld [vmem:[%s8 + $0xc8] sm:$0xff]
      %v5669 = vld [vmem:[%s8 + $0xd0] sm:$0xff]
      %v5670 = vld [vmem:[%s8 + $0xd8] sm:$0xff]
      %v5671 = vld [vmem:[%s8 + $0xe0] sm:$0xff]
      %v5672 = vld [vmem:[%s8 + $0xe8] sm:$0xff]
      %v5673 = vld [vmem:[%s8 + $0xf0] sm:$0xff]
      %v5674 = vld [vmem:[%s8 + $0xf8] sm:$0xff]
      %v5675 = vld [vmem:[%s8 + $0x100] sm:$0xff]
      %v5676 = vld [vmem:[%s8 + $0x108] sm:$0xff]
      %v5677 = vld [vmem:[%s8 + $0x110] sm:$0xff]
      %v5678 = vld [vmem:[%s8 + $0x118] sm:$0xff]
      %v5679 = vld [vmem:[%s8 + $0x120] sm:$0xff]
      %v5680 = vld [vmem:[%s8 + $0x128] sm:$0xff]
      %v5681 = vld [vmem:[%s8 + $0x130] sm:$0xff]
      %v5682 = vld [vmem:[%s8 + $0x138] sm:$0xff]
      %v5683 = vld [vmem:[%s8 + $0x140] sm:$0xff]
      %v5684 = vld [vmem:[%s8 + $0x148] sm:$0xff]
      %v5685 = vld [vmem:[%s8 + $0x150] sm:$0xff]
      %v5686 = vld [vmem:[%s8 + $0x158] sm:$0xff]
      %v5687 = vld [vmem:[%s8 + $0x160] sm:$0xff]
      %v5688 = vld [vmem:[%s8 + $0x168] sm:$0xff]
      %v5689 = vld [vmem:[%s8 + $0x170] sm:$0xff]
      %v5690 = vld [vmem:[%s8 + $0x178] sm:$0xff]
      %v5691 = vld [vmem:[%s8 + $0x180] sm:$0xff]
      %v5692 = vld [vmem:[%s8 + $0x188] sm:$0xff]
      %v5693 = vld [vmem:[%s8 + $0x190] sm:$0xff]
      %v5694 = vld [vmem:[%s8 + $0x198] sm:$0xff]
      %v5695 = vld [vmem:[%s8 + $0x1a0] sm:$0xff]
      %v5696 = vld [vmem:[%s8 + $0x1a8] sm:$0xff]
      %v5697 = vld [vmem:[%s8 + $0x1b0] sm:$0xff]
      %v5698 = vld [vmem:[%s8 + $0x1b8] sm:$0xff]
      %v5699 = vld [vmem:[%s8 + $0x1c0] sm:$0xff]
      %v5700 = vld [vmem:[%s8 + $0x1c8] sm:$0xff]
      %v5701 = vld [vmem:[%s8 + $0x1d0] sm:$0xff]
      %v5702 = vld [vmem:[%s8 + $0x1d8] sm:$0xff]
      %v5703 = vld [vmem:[%s8 + $0x1e0] sm:$0xff]
      %v5704 = vld [vmem:[%s8 + $0x1e8] sm:$0xff]
      %v5705 = vld [vmem:[%s8 + $0x1f0] sm:$0xff]
      %v5706 = vld [vmem:[%s8 + $0x1f8] sm:$0xff]
      %v5707 = vld [vmem:[%s8 + $0x200] sm:$0xff]
      %v5708 = vld [vmem:[%s8 + $0x208] sm:$0xff]
      %v5709 = vld [vmem:[%s8 + $0x210] sm:$0xff]
      %v5710 = vld [vmem:[%s8 + $0x218] sm:$0xff]
      %v5711 = vld [vmem:[%s8 + $0x220] sm:$0xff]
      %v5712 = vld [vmem:[%s8 + $0x228] sm:$0xff]
      %v5713 = vld [vmem:[%s8 + $0x230] sm:$0xff]
      %v5714 = vld [vmem:[%s8 + $0x238] sm:$0xff]
      %v5715 = vld [vmem:[%s9] sm:$0x3f]
      %v5717 = vlaneseq
      %v5718 = vshrl.u32 %v5717, 7
      %v5719 = vsub.s32 0, %v5718
      %v5720 = vrot.slane %v5715, %v5719
      %v5721 = vlaneseq
      %v5722 = vshrl.u32 %v5721, 7
      %v5723 = vsub.s32 1, %v5722
      %v5724 = vrot.slane %v5715, %v5723
      %v5725 = vlaneseq
      %v5726 = vshrl.u32 %v5725, 7
      %v5727 = vsub.s32 2, %v5726
      %v5728 = vrot.slane %v5715, %v5727
      %v5729 = vlaneseq
      %v5730 = vshrl.u32 %v5729, 7
      %v5731 = vsub.s32 3, %v5730
      %v5732 = vrot.slane %v5715, %v5731
      %v5733 = vlaneseq
      %v5734 = vshrl.u32 %v5733, 7
      %v5735 = vsub.s32 4, %v5734
      %v5736 = vrot.slane %v5715, %v5735
      %v5737 = vlaneseq
      %v5738 = vshrl.u32 %v5737, 7
      %v5739 = vsub.s32 5, %v5738
      %v5740 = vrot.slane %v5715, %v5739
      %v5819 = vunpack.c.l.b16 %v5643
      %v5820 = vunpack.c.h.b16 %v5643
      %v5821 = vunpack.c.l.b16 %v5644
      %v5822 = vunpack.c.h.b16 %v5644
      %v5823 = vunpack.c.l.b16 %v5645
      %v5824 = vunpack.c.h.b16 %v5645
      %v5825 = vunpack.c.l.b16 %v5646
      %v5826 = vunpack.c.h.b16 %v5646
      %v5827 = vunpack.c.l.b16 %v5647
      %v5828 = vunpack.c.h.b16 %v5647
      %v5829 = vunpack.c.l.b16 %v5648
      %v5830 = vunpack.c.h.b16 %v5648
      %v5831 = vunpack.c.l.b16 %v5649
      %v5832 = vunpack.c.h.b16 %v5649
      %v5833 = vunpack.c.l.b16 %v5650
      %v5834 = vunpack.c.h.b16 %v5650
      %v5835 = vunpack.c.l.b16 %v5651
      %v5836 = vunpack.c.h.b16 %v5651
      %v5837 = vunpack.c.l.b16 %v5652
      %v5838 = vunpack.c.h.b16 %v5652
      %v5839 = vunpack.c.l.b16 %v5653
      %v5840 = vunpack.c.h.b16 %v5653
      %v5841 = vunpack.c.l.b16 %v5654
      %v5842 = vunpack.c.h.b16 %v5654
      %v5843 = vunpack.c.l.b16 %v5655
      %v5844 = vunpack.c.h.b16 %v5655
      %v5845 = vunpack.c.l.b16 %v5656
      %v5846 = vunpack.c.h.b16 %v5656
      %v5847 = vunpack.c.l.b16 %v5657
      %v5848 = vunpack.c.h.b16 %v5657
      %v5849 = vunpack.c.l.b16 %v5658
      %v5850 = vunpack.c.h.b16 %v5658
      %v5851 = vunpack.c.l.b16 %v5659
      %v5852 = vunpack.c.h.b16 %v5659
      %v5853 = vunpack.c.l.b16 %v5660
      %v5854 = vunpack.c.h.b16 %v5660
      %v5855 = vunpack.c.l.b16 %v5661
      %v5856 = vunpack.c.h.b16 %v5661
      %v5857 = vunpack.c.l.b16 %v5662
      %v5858 = vunpack.c.h.b16 %v5662
      %v5859 = vunpack.c.l.b16 %v5663
      %v5860 = vunpack.c.h.b16 %v5663
      %v5861 = vunpack.c.l.b16 %v5664
      %v5862 = vunpack.c.h.b16 %v5664
      %v5863 = vunpack.c.l.b16 %v5665
      %v5864 = vunpack.c.h.b16 %v5665
      %v5865 = vunpack.c.l.b16 %v5666
      %v5866 = vunpack.c.h.b16 %v5666
      %v5867 = vunpack.c.l.b16 %v5667
      %v5868 = vunpack.c.h.b16 %v5667
      %v5869 = vunpack.c.l.b16 %v5668
      %v5870 = vunpack.c.h.b16 %v5668
      %v5871 = vunpack.c.l.b16 %v5669
      %v5872 = vunpack.c.h.b16 %v5669
      %v5873 = vunpack.c.l.b16 %v5670
      %v5874 = vunpack.c.h.b16 %v5670
      %v5875 = vunpack.c.l.b16 %v5671
      %v5876 = vunpack.c.h.b16 %v5671
      %v5877 = vunpack.c.l.b16 %v5672
      %v5878 = vunpack.c.h.b16 %v5672
      %v5879 = vunpack.c.l.b16 %v5673
      %v5880 = vunpack.c.h.b16 %v5673
      %v5881 = vunpack.c.l.b16 %v5674
      %v5882 = vunpack.c.h.b16 %v5674
      %v5883 = vunpack.c.l.b16 %v5675
      %v5884 = vunpack.c.h.b16 %v5675
      %v5885 = vunpack.c.l.b16 %v5676
      %v5886 = vunpack.c.h.b16 %v5676
      %v5887 = vunpack.c.l.b16 %v5677
      %v5888 = vunpack.c.h.b16 %v5677
      %v5889 = vunpack.c.l.b16 %v5678
      %v5890 = vunpack.c.h.b16 %v5678
      %v5891 = vunpack.c.l.b16 %v5679
      %v5892 = vunpack.c.h.b16 %v5679
      %v5893 = vunpack.c.l.b16 %v5680
      %v5894 = vunpack.c.h.b16 %v5680
      %v5895 = vunpack.c.l.b16 %v5681
      %v5896 = vunpack.c.h.b16 %v5681
      %v5897 = vunpack.c.l.b16 %v5682
      %v5898 = vunpack.c.h.b16 %v5682
      %v5899 = vunpack.c.l.b16 %v5683
      %v5900 = vunpack.c.h.b16 %v5683
      %v5901 = vunpack.c.l.b16 %v5684
      %v5902 = vunpack.c.h.b16 %v5684
      %v5903 = vunpack.c.l.b16 %v5685
      %v5904 = vunpack.c.h.b16 %v5685
      %v5905 = vunpack.c.l.b16 %v5686
      %v5906 = vunpack.c.h.b16 %v5686
      %v5907 = vunpack.c.l.b16 %v5687
      %v5908 = vunpack.c.h.b16 %v5687
      %v5909 = vunpack.c.l.b16 %v5688
      %v5910 = vunpack.c.h.b16 %v5688
      %v5911 = vunpack.c.l.b16 %v5689
      %v5912 = vunpack.c.h.b16 %v5689
      %v5913 = vunpack.c.l.b16 %v5690
      %v5914 = vunpack.c.h.b16 %v5690
      %v5915 = vunpack.c.l.b16 %v5691
      %v5916 = vunpack.c.h.b16 %v5691
      %v5917 = vunpack.c.l.b16 %v5692
      %v5918 = vunpack.c.h.b16 %v5692
      %v5919 = vunpack.c.l.b16 %v5693
      %v5920 = vunpack.c.h.b16 %v5693
      %v5921 = vunpack.c.l.b16 %v5694
      %v5922 = vunpack.c.h.b16 %v5694
      %v5923 = vunpack.c.l.b16 %v5695
      %v5924 = vunpack.c.h.b16 %v5695
      %v5925 = vunpack.c.l.b16 %v5696
      %v5926 = vunpack.c.h.b16 %v5696
      %v5927 = vunpack.c.l.b16 %v5697
      %v5928 = vunpack.c.h.b16 %v5697
      %v5929 = vunpack.c.l.b16 %v5698
      %v5930 = vunpack.c.h.b16 %v5698
      %v5931 = vunpack.c.l.b16 %v5699
      %v5932 = vunpack.c.h.b16 %v5699
      %v5933 = vunpack.c.l.b16 %v5700
      %v5934 = vunpack.c.h.b16 %v5700
      %v5935 = vunpack.c.l.b16 %v5701
      %v5936 = vunpack.c.h.b16 %v5701
      %v5937 = vunpack.c.l.b16 %v5702
      %v5938 = vunpack.c.h.b16 %v5702
      %v5939 = vunpack.c.l.b16 %v5703
      %v5940 = vunpack.c.h.b16 %v5703
      %v5941 = vunpack.c.l.b16 %v5704
      %v5942 = vunpack.c.h.b16 %v5704
      %v5943 = vunpack.c.l.b16 %v5705
      %v5944 = vunpack.c.h.b16 %v5705
      %v5945 = vunpack.c.l.b16 %v5706
      %v5946 = vunpack.c.h.b16 %v5706
      %v5947 = vunpack.c.l.b16 %v5707
      %v5948 = vunpack.c.h.b16 %v5707
      %v5949 = vunpack.c.l.b16 %v5708
      %v5950 = vunpack.c.h.b16 %v5708
      %v5951 = vunpack.c.l.b16 %v5709
      %v5952 = vunpack.c.h.b16 %v5709
      %v5953 = vunpack.c.l.b16 %v5710
      %v5954 = vunpack.c.h.b16 %v5710
      %v5955 = vunpack.c.l.b16 %v5711
      %v5956 = vunpack.c.h.b16 %v5711
      %v5957 = vunpack.c.l.b16 %v5712
      %v5958 = vunpack.c.h.b16 %v5712
      %v5959 = vunpack.c.l.b16 %v5713
      %v5960 = vunpack.c.h.b16 %v5713
      %v5961 = vunpack.c.l.b16 %v5714
      %v5962 = vunpack.c.h.b16 %v5714
      %v5963 = vpack.c.b16 %v5825, %v5819
      %v5964 = vpack.c.b16 %v5826, %v5820
      %v5965 = vpack.c.b16 %v5827, %v5821
      %v5966 = vpack.c.b16 %v5828, %v5822
      %v5967 = vpack.c.b16 %v5829, %v5823
      %v5968 = vpack.c.b16 %v5830, %v5824
      %v5969 = vpack.c.b16 %v5837, %v5831
      %v5970 = vpack.c.b16 %v5838, %v5832
      %v5971 = vpack.c.b16 %v5839, %v5833
      %v5972 = vpack.c.b16 %v5840, %v5834
      %v5973 = vpack.c.b16 %v5841, %v5835
      %v5974 = vpack.c.b16 %v5842, %v5836
      %v5975 = vpack.c.b16 %v5849, %v5843
      %v5976 = vpack.c.b16 %v5850, %v5844
      %v5977 = vpack.c.b16 %v5851, %v5845
      %v5978 = vpack.c.b16 %v5852, %v5846
      %v5979 = vpack.c.b16 %v5853, %v5847
      %v5980 = vpack.c.b16 %v5854, %v5848
      %v5981 = vpack.c.b16 %v5861, %v5855
      %v5982 = vpack.c.b16 %v5862, %v5856
      %v5983 = vpack.c.b16 %v5863, %v5857
      %v5984 = vpack.c.b16 %v5864, %v5858
      %v5985 = vpack.c.b16 %v5865, %v5859
      %v5986 = vpack.c.b16 %v5866, %v5860
      %v5987 = vpack.c.b16 %v5873, %v5867
      %v5988 = vpack.c.b16 %v5874, %v5868
      %v5989 = vpack.c.b16 %v5875, %v5869
      %v5990 = vpack.c.b16 %v5876, %v5870
      %v5991 = vpack.c.b16 %v5877, %v5871
      %v5992 = vpack.c.b16 %v5878, %v5872
      %v5993 = vpack.c.b16 %v5885, %v5879
      %v5994 = vpack.c.b16 %v5886, %v5880
      %v5995 = vpack.c.b16 %v5887, %v5881
      %v5996 = vpack.c.b16 %v5888, %v5882
      %v5997 = vpack.c.b16 %v5889, %v5883
      %v5998 = vpack.c.b16 %v5890, %v5884
      %v5999 = vpack.c.b16 %v5897, %v5891
      %v6000 = vpack.c.b16 %v5898, %v5892
      %v6001 = vpack.c.b16 %v5899, %v5893
      %v6002 = vpack.c.b16 %v5900, %v5894
      %v6003 = vpack.c.b16 %v5901, %v5895
      %v6004 = vpack.c.b16 %v5902, %v5896
      %v6005 = vpack.c.b16 %v5909, %v5903
      %v6006 = vpack.c.b16 %v5910, %v5904
      %v6007 = vpack.c.b16 %v5911, %v5905
      %v6008 = vpack.c.b16 %v5912, %v5906
      %v6009 = vpack.c.b16 %v5913, %v5907
      %v6010 = vpack.c.b16 %v5914, %v5908
      %v6011 = vpack.c.b16 %v5921, %v5915
      %v6012 = vpack.c.b16 %v5922, %v5916
      %v6013 = vpack.c.b16 %v5923, %v5917
      %v6014 = vpack.c.b16 %v5924, %v5918
      %v6015 = vpack.c.b16 %v5925, %v5919
      %v6016 = vpack.c.b16 %v5926, %v5920
      %v6017 = vpack.c.b16 %v5933, %v5927
      %v6018 = vpack.c.b16 %v5934, %v5928
      %v6019 = vpack.c.b16 %v5935, %v5929
      %v6020 = vpack.c.b16 %v5936, %v5930
      %v6021 = vpack.c.b16 %v5937, %v5931
      %v6022 = vpack.c.b16 %v5938, %v5932
      %v6023 = vpack.c.b16 %v5945, %v5939
      %v6024 = vpack.c.b16 %v5946, %v5940
      %v6025 = vpack.c.b16 %v5947, %v5941
      %v6026 = vpack.c.b16 %v5948, %v5942
      %v6027 = vpack.c.b16 %v5949, %v5943
      %v6028 = vpack.c.b16 %v5950, %v5944
      %v6029 = vpack.c.b16 %v5957, %v5951
      %v6030 = vpack.c.b16 %v5958, %v5952
      %v6031 = vpack.c.b16 %v5959, %v5953
      %v6032 = vpack.c.b16 %v5960, %v5954
      %v6033 = vpack.c.b16 %v5961, %v5955
      %v6034 = vpack.c.b16 %v5962, %v5956
      %v6108 = vsel %vm449, %v5628, 0
      %v6111 = vsel %vm449, %v5630, 0
      %v6114 = vsel %vm449, %v5632, 0
      %v6117 = vsel %vm449, %v5634, 0
      %v6120 = vsel %vm449, %v5636, 0
      %v6123 = vsel %vm449, %v5638, 0
      %v6126 = vsel %vm449, %v5640, 0
      %v6129 = vsel %vm449, %v5642, 0
      %6131 = vmatprep.subr.bf16.mxu0 %v5964
      %6132 = vmatpush1.bf16.msra.mxu0 %v5963
      %6133 = vmatprep.subr.bf16.mxu0 %v5970
      %6134 = vmatpush1.bf16.msra.mxu0 %v5969
      %6135 = vmatprep.subr.bf16.mxu0 %v5976
      %6136 = vmatpush1.bf16.msra.mxu0 %v5975
      %6137 = vmatprep.subr.bf16.mxu0 %v5982
      %6138 = vmatpush1.bf16.msra.mxu0 %v5981
      %6139 = vmatprep.subr.bf16.mxu0 %v5988
      %6140 = vmatpush1.bf16.msra.mxu0 %v5987
      %6141 = vmatprep.subr.bf16.mxu0 %v5994
      %6142 = vmatpush1.bf16.msra.mxu0 %v5993
      %6143 = vmatprep.subr.bf16.mxu0 %v6000
      %6144 = vmatpush1.bf16.msra.mxu0 %v5999
      %6145 = vmatprep.subr.bf16.mxu0 %v6006
      %6146 = vmatpush1.bf16.msra.mxu0 %v6005
      %6147 = vmatprep.subr.bf16.mxu0 %v6012
      %6148 = vmatpush1.bf16.msra.mxu0 %v6011
      %6149 = vmatprep.subr.bf16.mxu0 %v6018
      %6150 = vmatpush1.bf16.msra.mxu0 %v6017
      %6151 = vmatprep.subr.bf16.mxu0 %v6024
      %6152 = vmatpush1.bf16.msra.mxu0 %v6023
      %6153 = vmatprep.subr.bf16.mxu0 %v6030
      %6154 = vmatpush1.bf16.msra.mxu0 %v6029
      %6155 = vmatprep.subr.bf16.mxu0 0
      %6156 = vmatpush1.bf16.msra.mxu0 0
      %6157 = vmatprep.subr.bf16.mxu0 0
      %6158 = vmatpush1.bf16.msra.mxu0 0
      %6159 = vmatprep.subr.bf16.mxu0 0
      %6160 = vmatpush1.bf16.msra.mxu0 0
      %6161 = vmatprep.subr.bf16.mxu0 0
      %6162 = vmatpush1.bf16.msra.mxu0 0
      %6163 = vmatprep.mubr.bf16.mxu0 %v6108
      %6164 = vmatmul.mubr.bf16.gmra.mrb[0].mxu0 %v5627
      %v6165 = vpop.f32.mrb[0].mxu0
      %v6166 = vadd.f32 %v5720, %v6165
      %v6167 = vpop.f32.mrb[0].mxu0
      %v6168 = vadd.f32 %v5724, %v6167
      %v6169 = vpop.f32.mrb[0].mxu0
      %v6170 = vadd.f32 %v5720, %v6169
      %v6171 = vpop.f32.mrb[0].mxu0
      %v6172 = vadd.f32 %v5724, %v6171
      %6173 = vmatprep.mubr.bf16.mxu0 %v6111
      %6174 = vmatmul.mubr.bf16.gmra.mrb[0].mxu0 %v5629
      %v6175 = vpop.f32.mrb[0].mxu0
      %v6176 = vadd.f32 %v5720, %v6175
      %v6177 = vpop.f32.mrb[0].mxu0
      %v6178 = vadd.f32 %v5724, %v6177
      %v6179 = vpop.f32.mrb[0].mxu0
      %v6180 = vadd.f32 %v5720, %v6179
      %v6181 = vpop.f32.mrb[0].mxu0
      %v6182 = vadd.f32 %v5724, %v6181
      %6183 = vmatprep.mubr.bf16.mxu0 %v6114
      %6184 = vmatmul.mubr.bf16.gmra.mrb[0].mxu0 %v5631
      %v6185 = vpop.f32.mrb[0].mxu0
      %v6186 = vadd.f32 %v5720, %v6185
      %v6187 = vpop.f32.mrb[0].mxu0
      %v6188 = vadd.f32 %v5724, %v6187
      %v6189 = vpop.f32.mrb[0].mxu0
      %v6190 = vadd.f32 %v5720, %v6189
      %v6191 = vpop.f32.mrb[0].mxu0
      %v6192 = vadd.f32 %v5724, %v6191
      %6193 = vmatprep.mubr.bf16.mxu0 %v6117
      %6194 = vmatmul.mubr.bf16.gmra.mrb[0].mxu0 %v5633
      %v6195 = vpop.f32.mrb[0].mxu0
      %v6196 = vadd.f32 %v5720, %v6195
      %v6197 = vpop.f32.mrb[0].mxu0
      %v6198 = vadd.f32 %v5724, %v6197
      %v6199 = vpop.f32.mrb[0].mxu0
      %v6200 = vadd.f32 %v5720, %v6199
      %v6201 = vpop.f32.mrb[0].mxu0
      %v6202 = vadd.f32 %v5724, %v6201
      %6203 = vmatprep.mubr.bf16.mxu0 %v6120
      %6204 = vmatmul.mubr.bf16.gmra.mrb[0].mxu0 %v5635
      %v6205 = vpop.f32.mrb[0].mxu0
      %v6206 = vadd.f32 %v5720, %v6205
      %v6207 = vpop.f32.mrb[0].mxu0
      %v6208 = vadd.f32 %v5724, %v6207
      %v6209 = vpop.f32.mrb[0].mxu0
      %v6210 = vadd.f32 %v5720, %v6209
      %v6211 = vpop.f32.mrb[0].mxu0
      %v6212 = vadd.f32 %v5724, %v6211
      %6213 = vmatprep.mubr.bf16.mxu0 %v6123
      %6214 = vmatmul.mubr.bf16.gmra.mrb[0].mxu0 %v5637
      %v6215 = vpop.f32.mrb[0].mxu0
      %v6216 = vadd.f32 %v5720, %v6215
      %v6217 = vpop.f32.mrb[0].mxu0
      %v6218 = vadd.f32 %v5724, %v6217
      %v6219 = vpop.f32.mrb[0].mxu0
      %v6220 = vadd.f32 %v5720, %v6219
      %v6221 = vpop.f32.mrb[0].mxu0
      %v6222 = vadd.f32 %v5724, %v6221
      %6223 = vmatprep.mubr.bf16.mxu0 %v6126
      %6224 = vmatmul.mubr.bf16.gmra.mrb[0].mxu0 %v5639
      %v6225 = vpop.f32.mrb[0].mxu0
      %v6226 = vadd.f32 %v5720, %v6225
      %v6227 = vpop.f32.mrb[0].mxu0
      %v6228 = vadd.f32 %v5724, %v6227
      %v6229 = vpop.f32.mrb[0].mxu0
      %v6230 = vadd.f32 %v5720, %v6229
      %v6231 = vpop.f32.mrb[0].mxu0
      %v6232 = vadd.f32 %v5724, %v6231
      %6233 = vmatprep.mubr.bf16.mxu0 %v6129
      %6234 = vmatmul.mubr.bf16.gmra.mrb[0].mxu0 %v5641
      %v6235 = vpop.f32.mrb[0].mxu0
      %v6236 = vadd.f32 %v5720, %v6235
      %v6237 = vpop.f32.mrb[0].mxu0
      %v6238 = vadd.f32 %v5724, %v6237
      %v6239 = vpop.f32.mrb[0].mxu0
      %v6240 = vadd.f32 %v5720, %v6239
      %v6241 = vpop.f32.mrb[0].mxu0
      %v6242 = vadd.f32 %v5724, %v6241
      %6243 = vdwg.mxu0
      %6244 = vmatprep.subr.bf16.mxu0 %v5966
      %6245 = vmatpush1.bf16.msra.mxu0 %v5965
      %6246 = vmatprep.subr.bf16.mxu0 %v5972
      %6247 = vmatpush1.bf16.msra.mxu0 %v5971
      %6248 = vmatprep.subr.bf16.mxu0 %v5978
      %6249 = vmatpush1.bf16.msra.mxu0 %v5977
      %6250 = vmatprep.subr.bf16.mxu0 %v5984
      %6251 = vmatpush1.bf16.msra.mxu0 %v5983
      %6252 = vmatprep.subr.bf16.mxu0 %v5990
      %6253 = vmatpush1.bf16.msra.mxu0 %v5989
      %6254 = vmatprep.subr.bf16.mxu0 %v5996
      %6255 = vmatpush1.bf16.msra.mxu0 %v5995
      %6256 = vmatprep.subr.bf16.mxu0 %v6002
      %6257 = vmatpush1.bf16.msra.mxu0 %v6001
      %6258 = vmatprep.subr.bf16.mxu0 %v6008
      %6259 = vmatpush1.bf16.msra.mxu0 %v6007
      %6260 = vmatprep.subr.bf16.mxu0 %v6014
      %6261 = vmatpush1.bf16.msra.mxu0 %v6013
      %6262 = vmatprep.subr.bf16.mxu0 %v6020
      %6263 = vmatpush1.bf16.msra.mxu0 %v6019
      %6264 = vmatprep.subr.bf16.mxu0 %v6026
      %6265 = vmatpush1.bf16.msra.mxu0 %v6025
      %6266 = vmatprep.subr.bf16.mxu0 %v6032
      %6267 = vmatpush1.bf16.msra.mxu0 %v6031
      %6268 = vmatprep.subr.bf16.mxu0 0
      %6269 = vmatpush1.bf16.msra.mxu0 0
      %6270 = vmatprep.subr.bf16.mxu0 0
      %6271 = vmatpush1.bf16.msra.mxu0 0
      %6272 = vmatprep.subr.bf16.mxu0 0
      %6273 = vmatpush1.bf16.msra.mxu0 0
      %6274 = vmatprep.subr.bf16.mxu0 0
      %6275 = vmatpush1.bf16.msra.mxu0 0
      %6276 = vmatprep.mubr.bf16.mxu0 %v6108
      %6277 = vmatmul.mubr.bf16.gmra.mrb[0].mxu0 %v5627
      %v6278 = vpop.f32.mrb[0].mxu0
      %v6279 = vadd.f32 %v5728, %v6278
      %v6280 = vpop.f32.mrb[0].mxu0
      %v6281 = vadd.f32 %v5732, %v6280
      %v6282 = vpop.f32.mrb[0].mxu0
      %v6283 = vadd.f32 %v5728, %v6282
      %v6284 = vpop.f32.mrb[0].mxu0
      %v6285 = vadd.f32 %v5732, %v6284
      %6286 = vmatprep.mubr.bf16.mxu0 %v6111
      %6287 = vmatmul.mubr.bf16.gmra.mrb[0].mxu0 %v5629
      %v6288 = vpop.f32.mrb[0].mxu0
      %v6289 = vadd.f32 %v5728, %v6288
      %v6290 = vpop.f32.mrb[0].mxu0
      %v6291 = vadd.f32 %v5732, %v6290
      %v6292 = vpop.f32.mrb[0].mxu0
      %v6293 = vadd.f32 %v5728, %v6292
      %v6294 = vpop.f32.mrb[0].mxu0
      %v6295 = vadd.f32 %v5732, %v6294
      %6296 = vmatprep.mubr.bf16.mxu0 %v6114
      %6297 = vmatmul.mubr.bf16.gmra.mrb[0].mxu0 %v5631
      %v6298 = vpop.f32.mrb[0].mxu0
      %v6299 = vadd.f32 %v5728, %v6298
      %v6300 = vpop.f32.mrb[0].mxu0
      %v6301 = vadd.f32 %v5732, %v6300
      %v6302 = vpop.f32.mrb[0].mxu0
      %v6303 = vadd.f32 %v5728, %v6302
      %v6304 = vpop.f32.mrb[0].mxu0
      %v6305 = vadd.f32 %v5732, %v6304
      %6306 = vmatprep.mubr.bf16.mxu0 %v6117
      %6307 = vmatmul.mubr.bf16.gmra.mrb[0].mxu0 %v5633
      %v6308 = vpop.f32.mrb[0].mxu0
      %v6309 = vadd.f32 %v5728, %v6308
      %v6310 = vpop.f32.mrb[0].mxu0
      %v6311 = vadd.f32 %v5732, %v6310
      %v6312 = vpop.f32.mrb[0].mxu0
      %v6313 = vadd.f32 %v5728, %v6312
      %v6314 = vpop.f32.mrb[0].mxu0
      %v6315 = vadd.f32 %v5732, %v6314
      %6316 = vmatprep.mubr.bf16.mxu0 %v6120
      %6317 = vmatmul.mubr.bf16.gmra.mrb[0].mxu0 %v5635
      %v6318 = vpop.f32.mrb[0].mxu0
      %v6319 = vadd.f32 %v5728, %v6318
      %v6320 = vpop.f32.mrb[0].mxu0
      %v6321 = vadd.f32 %v5732, %v6320
      %v6322 = vpop.f32.mrb[0].mxu0
      %v6323 = vadd.f32 %v5728, %v6322
      %v6324 = vpop.f32.mrb[0].mxu0
      %v6325 = vadd.f32 %v5732, %v6324
      %6326 = vmatprep.mubr.bf16.mxu0 %v6123
      %6327 = vmatmul.mubr.bf16.gmra.mrb[0].mxu0 %v5637
      %v6328 = vpop.f32.mrb[0].mxu0
      %v6329 = vadd.f32 %v5728, %v6328
      %v6330 = vpop.f32.mrb[0].mxu0
      %v6331 = vadd.f32 %v5732, %v6330
      %v6332 = vpop.f32.mrb[0].mxu0
      %v6333 = vadd.f32 %v5728, %v6332
      %v6334 = vpop.f32.mrb[0].mxu0
      %v6335 = vadd.f32 %v5732, %v6334
      %6336 = vmatprep.mubr.bf16.mxu0 %v6126
      %6337 = vmatmul.mubr.bf16.gmra.mrb[0].mxu0 %v5639
      %v6338 = vpop.f32.mrb[0].mxu0
      %v6339 = vadd.f32 %v5728, %v6338
      %v6340 = vpop.f32.mrb[0].mxu0
      %v6341 = vadd.f32 %v5732, %v6340
      %v6342 = vpop.f32.mrb[0].mxu0
      %v6343 = vadd.f32 %v5728, %v6342
      %v6344 = vpop.f32.mrb[0].mxu0
      %v6345 = vadd.f32 %v5732, %v6344
      %6346 = vmatprep.mubr.bf16.mxu0 %v6129
      %6347 = vmatmul.mubr.bf16.gmra.mrb[0].mxu0 %v5641
      %v6348 = vpop.f32.mrb[0].mxu0
      %v6349 = vadd.f32 %v5728, %v6348
      %v6350 = vpop.f32.mrb[0].mxu0
      %v6351 = vadd.f32 %v5732, %v6350
      %v6352 = vpop.f32.mrb[0].mxu0
      %v6353 = vadd.f32 %v5728, %v6352
      %v6354 = vpop.f32.mrb[0].mxu0
      %v6355 = vadd.f32 %v5732, %v6354
      %6356 = vdwg.mxu0
      %6357 = vmatprep.subr.bf16.mxu0 %v5968
      %6358 = vmatpush1.bf16.msra.mxu0 %v5967
      %6359 = vmatprep.subr.bf16.mxu0 %v5974
      %6360 = vmatpush1.bf16.msra.mxu0 %v5973
      %6361 = vmatprep.subr.bf16.mxu0 %v5980
      %6362 = vmatpush1.bf16.msra.mxu0 %v5979
      %6363 = vmatprep.subr.bf16.mxu0 %v5986
      %6364 = vmatpush1.bf16.msra.mxu0 %v5985
      %6365 = vmatprep.subr.bf16.mxu0 %v5992
      %6366 = vmatpush1.bf16.msra.mxu0 %v5991
      %6367 = vmatprep.subr.bf16.mxu0 %v5998
      %6368 = vmatpush1.bf16.msra.mxu0 %v5997
      %6369 = vmatprep.subr.bf16.mxu0 %v6004
      %6370 = vmatpush1.bf16.msra.mxu0 %v6003
      %6371 = vmatprep.subr.bf16.mxu0 %v6010
      %6372 = vmatpush1.bf16.msra.mxu0 %v6009
      %6373 = vmatprep.subr.bf16.mxu0 %v6016
      %6374 = vmatpush1.bf16.msra.mxu0 %v6015
      %6375 = vmatprep.subr.bf16.mxu0 %v6022
      %6376 = vmatpush1.bf16.msra.mxu0 %v6021
      %6377 = vmatprep.subr.bf16.mxu0 %v6028
      %6378 = vmatpush1.bf16.msra.mxu0 %v6027
      %6379 = vmatprep.subr.bf16.mxu0 %v6034
      %6380 = vmatpush1.bf16.msra.mxu0 %v6033
      %6381 = vmatprep.subr.bf16.mxu0 0
      %6382 = vmatpush1.bf16.msra.mxu0 0
      %6383 = vmatprep.subr.bf16.mxu0 0
      %6384 = vmatpush1.bf16.msra.mxu0 0
      %6385 = vmatprep.subr.bf16.mxu0 0
      %6386 = vmatpush1.bf16.msra.mxu0 0
      %6387 = vmatprep.subr.bf16.mxu0 0
      %6388 = vmatpush1.bf16.msra.mxu0 0
      %6389 = vmatprep.mubr.bf16.mxu0 %v6108
      %6390 = vmatmul.mubr.bf16.gmra.mrb[0].mxu0 %v5627
      %v6391 = vpop.f32.mrb[0].mxu0
      %v6392 = vadd.f32 %v5736, %v6391
      %v6393 = vpop.f32.mrb[0].mxu0
      %v6394 = vadd.f32 %v5740, %v6393
      %v6395 = vpop.f32.mrb[0].mxu0
      %v6396 = vadd.f32 %v5736, %v6395
      %v6397 = vpop.f32.mrb[0].mxu0
      %v6398 = vadd.f32 %v5740, %v6397
      %6399 = vmatprep.mubr.bf16.mxu0 %v6111
      %6400 = vmatmul.mubr.bf16.gmra.mrb[0].mxu0 %v5629
      %v6401 = vpop.f32.mrb[0].mxu0
      %v6402 = vadd.f32 %v5736, %v6401
      %v6403 = vpop.f32.mrb[0].mxu0
      %v6404 = vadd.f32 %v5740, %v6403
      %v6405 = vpop.f32.mrb[0].mxu0
      %v6406 = vadd.f32 %v5736, %v6405
      %v6407 = vpop.f32.mrb[0].mxu0
      %v6408 = vadd.f32 %v5740, %v6407
      %6409 = vmatprep.mubr.bf16.mxu0 %v6114
      %6410 = vmatmul.mubr.bf16.gmra.mrb[0].mxu0 %v5631
      %v6411 = vpop.f32.mrb[0].mxu0
      %v6412 = vadd.f32 %v5736, %v6411
      %v6413 = vpop.f32.mrb[0].mxu0
      %v6414 = vadd.f32 %v5740, %v6413
      %v6415 = vpop.f32.mrb[0].mxu0
      %v6416 = vadd.f32 %v5736, %v6415
      %v6417 = vpop.f32.mrb[0].mxu0
      %v6418 = vadd.f32 %v5740, %v6417
      %6419 = vmatprep.mubr.bf16.mxu0 %v6117
      %6420 = vmatmul.mubr.bf16.gmra.mrb[0].mxu0 %v5633
      %v6421 = vpop.f32.mrb[0].mxu0
      %v6422 = vadd.f32 %v5736, %v6421
      %v6423 = vpop.f32.mrb[0].mxu0
      %v6424 = vadd.f32 %v5740, %v6423
      %v6425 = vpop.f32.mrb[0].mxu0
      %v6426 = vadd.f32 %v5736, %v6425
      %v6427 = vpop.f32.mrb[0].mxu0
      %v6428 = vadd.f32 %v5740, %v6427
      %6429 = vmatprep.mubr.bf16.mxu0 %v6120
      %6430 = vmatmul.mubr.bf16.gmra.mrb[0].mxu0 %v5635
      %v6431 = vpop.f32.mrb[0].mxu0
      %v6432 = vadd.f32 %v5736, %v6431
      %v6433 = vpop.f32.mrb[0].mxu0
      %v6434 = vadd.f32 %v5740, %v6433
      %v6435 = vpop.f32.mrb[0].mxu0
      %v6436 = vadd.f32 %v5736, %v6435
      %v6437 = vpop.f32.mrb[0].mxu0
      %v6438 = vadd.f32 %v5740, %v6437
      %6439 = vmatprep.mubr.bf16.mxu0 %v6123
      %6440 = vmatmul.mubr.bf16.gmra.mrb[0].mxu0 %v5637
      %v6441 = vpop.f32.mrb[0].mxu0
      %v6442 = vadd.f32 %v5736, %v6441
      %v6443 = vpop.f32.mrb[0].mxu0
      %v6444 = vadd.f32 %v5740, %v6443
      %v6445 = vpop.f32.mrb[0].mxu0
      %v6446 = vadd.f32 %v5736, %v6445
      %v6447 = vpop.f32.mrb[0].mxu0
      %v6448 = vadd.f32 %v5740, %v6447
      %6449 = vmatprep.mubr.bf16.mxu0 %v6126
      %6450 = vmatmul.mubr.bf16.gmra.mrb[0].mxu0 %v5639
      %v6451 = vpop.f32.mrb[0].mxu0
      %v6452 = vadd.f32 %v5736, %v6451
      %v6453 = vpop.f32.mrb[0].mxu0
      %v6454 = vadd.f32 %v5740, %v6453
      %v6455 = vpop.f32.mrb[0].mxu0
      %v6456 = vadd.f32 %v5736, %v6455
      %v6457 = vpop.f32.mrb[0].mxu0
      %v6458 = vadd.f32 %v5740, %v6457
      %6459 = vmatprep.mubr.bf16.mxu0 %v6129
      %6460 = vmatmul.mubr.bf16.gmra.mrb[0].mxu0 %v5641
      %v6461 = vpop.f32.mrb[0].mxu0
      %v6462 = vadd.f32 %v5736, %v6461
      %v6463 = vpop.f32.mrb[0].mxu0
      %v6464 = vadd.f32 %v5740, %v6463
      %v6465 = vpop.f32.mrb[0].mxu0
      %v6466 = vadd.f32 %v5736, %v6465
      %v6467 = vpop.f32.mrb[0].mxu0
      %v6468 = vadd.f32 %v5740, %v6467
      %6469 = vdwg.mxu0
      %v6470 = vmax.f32 %v6166, 0.0
      %v6471 = vmax.f32 %v6168, 0.0
      %v6472 = vmax.f32 %v6279, 0.0
      %v6473 = vmax.f32 %v6281, 0.0
      %v6474 = vmax.f32 %v6392, 0.0
      %v6475 = vmax.f32 %v6394, 0.0
      %v6476 = vmax.f32 %v6170, 0.0
      %v6477 = vmax.f32 %v6172, 0.0
      %v6478 = vmax.f32 %v6283, 0.0
      %v6479 = vmax.f32 %v6285, 0.0
      %v6480 = vmax.f32 %v6396, 0.0
      %v6481 = vmax.f32 %v6398, 0.0
      %v6482 = vmax.f32 %v6176, 0.0
      %v6483 = vmax.f32 %v6178, 0.0
      %v6484 = vmax.f32 %v6289, 0.0
      %v6485 = vmax.f32 %v6291, 0.0
      %v6486 = vmax.f32 %v6402, 0.0
      %v6487 = vmax.f32 %v6404, 0.0
      %v6488 = vmax.f32 %v6180, 0.0
      %v6489 = vmax.f32 %v6182, 0.0
      %v6490 = vmax.f32 %v6293, 0.0
      %v6491 = vmax.f32 %v6295, 0.0
      %v6492 = vmax.f32 %v6406, 0.0
      %v6493 = vmax.f32 %v6408, 0.0
      %v6494 = vmax.f32 %v6186, 0.0
      %v6495 = vmax.f32 %v6188, 0.0
      %v6496 = vmax.f32 %v6299, 0.0
      %v6497 = vmax.f32 %v6301, 0.0
      %v6498 = vmax.f32 %v6412, 0.0
      %v6499 = vmax.f32 %v6414, 0.0
      %v6500 = vmax.f32 %v6190, 0.0
      %v6501 = vmax.f32 %v6192, 0.0
      %v6502 = vmax.f32 %v6303, 0.0
      %v6503 = vmax.f32 %v6305, 0.0
      %v6504 = vmax.f32 %v6416, 0.0
      %v6505 = vmax.f32 %v6418, 0.0
      %v6506 = vmax.f32 %v6196, 0.0
      %v6507 = vmax.f32 %v6198, 0.0
      %v6508 = vmax.f32 %v6309, 0.0
      %v6509 = vmax.f32 %v6311, 0.0
      %v6510 = vmax.f32 %v6422, 0.0
      %v6511 = vmax.f32 %v6424, 0.0
      %v6512 = vmax.f32 %v6200, 0.0
      %v6513 = vmax.f32 %v6202, 0.0
      %v6514 = vmax.f32 %v6313, 0.0
      %v6515 = vmax.f32 %v6315, 0.0
      %v6516 = vmax.f32 %v6426, 0.0
      %v6517 = vmax.f32 %v6428, 0.0
      %v6518 = vmax.f32 %v6206, 0.0
      %v6519 = vmax.f32 %v6208, 0.0
      %v6520 = vmax.f32 %v6319, 0.0
      %v6521 = vmax.f32 %v6321, 0.0
      %v6522 = vmax.f32 %v6432, 0.0
      %v6523 = vmax.f32 %v6434, 0.0
      %v6524 = vmax.f32 %v6210, 0.0
      %v6525 = vmax.f32 %v6212, 0.0
      %v6526 = vmax.f32 %v6323, 0.0
      %v6527 = vmax.f32 %v6325, 0.0
      %v6528 = vmax.f32 %v6436, 0.0
      %v6529 = vmax.f32 %v6438, 0.0
      %v6530 = vmax.f32 %v6216, 0.0
      %v6531 = vmax.f32 %v6218, 0.0
      %v6532 = vmax.f32 %v6329, 0.0
      %v6533 = vmax.f32 %v6331, 0.0
      %v6534 = vmax.f32 %v6442, 0.0
      %v6535 = vmax.f32 %v6444, 0.0
      %v6536 = vmax.f32 %v6220, 0.0
      %v6537 = vmax.f32 %v6222, 0.0
      %v6538 = vmax.f32 %v6333, 0.0
      %v6539 = vmax.f32 %v6335, 0.0
      %v6540 = vmax.f32 %v6446, 0.0
      %v6541 = vmax.f32 %v6448, 0.0
      %v6542 = vmax.f32 %v6226, 0.0
      %v6543 = vmax.f32 %v6228, 0.0
      %v6544 = vmax.f32 %v6339, 0.0
      %v6545 = vmax.f32 %v6341, 0.0
      %v6546 = vmax.f32 %v6452, 0.0
      %v6547 = vmax.f32 %v6454, 0.0
      %v6548 = vmax.f32 %v6230, 0.0
      %v6549 = vmax.f32 %v6232, 0.0
      %v6550 = vmax.f32 %v6343, 0.0
      %v6551 = vmax.f32 %v6345, 0.0
      %v6552 = vmax.f32 %v6456, 0.0
      %v6553 = vmax.f32 %v6458, 0.0
      %v6554 = vmax.f32 %v6236, 0.0
      %v6555 = vmax.f32 %v6238, 0.0
      %v6556 = vmax.f32 %v6349, 0.0
      %v6557 = vmax.f32 %v6351, 0.0
      %v6558 = vmax.f32 %v6462, 0.0
      %v6559 = vmax.f32 %v6464, 0.0
      %v6560 = vmax.f32 %v6240, 0.0
      %v6561 = vmax.f32 %v6242, 0.0
      %v6562 = vmax.f32 %v6353, 0.0
      %v6563 = vmax.f32 %v6355, 0.0
      %v6564 = vmax.f32 %v6466, 0.0
      %v6565 = vmax.f32 %v6468, 0.0
      %v6566 = vpack.c.bf16 %v6476, %v6470
      %v6567 = vpack.c.bf16 %v6477, %v6471
      %v6568 = vpack.c.bf16 %v6478, %v6472
      %v6569 = vpack.c.bf16 %v6479, %v6473
      %v6570 = vpack.c.bf16 %v6480, %v6474
      %v6571 = vpack.c.bf16 %v6481, %v6475
      %v6572 = vpack.c.bf16 %v6488, %v6482
      %v6573 = vpack.c.bf16 %v6489, %v6483
      %v6574 = vpack.c.bf16 %v6490, %v6484
      %v6575 = vpack.c.bf16 %v6491, %v6485
      %v6576 = vpack.c.bf16 %v6492, %v6486
      %v6577 = vpack.c.bf16 %v6493, %v6487
      %v6578 = vpack.c.bf16 %v6500, %v6494
      %v6579 = vpack.c.bf16 %v6501, %v6495
      %v6580 = vpack.c.bf16 %v6502, %v6496
      %v6581 = vpack.c.bf16 %v6503, %v6497
      %v6582 = vpack.c.bf16 %v6504, %v6498
      %v6583 = vpack.c.bf16 %v6505, %v6499
      %v6584 = vpack.c.bf16 %v6512, %v6506
      %v6585 = vpack.c.bf16 %v6513, %v6507
      %v6586 = vpack.c.bf16 %v6514, %v6508
      %v6587 = vpack.c.bf16 %v6515, %v6509
      %v6588 = vpack.c.bf16 %v6516, %v6510
      %v6589 = vpack.c.bf16 %v6517, %v6511
      %v6590 = vpack.c.bf16 %v6524, %v6518
      %v6591 = vpack.c.bf16 %v6525, %v6519
      %v6592 = vpack.c.bf16 %v6526, %v6520
      %v6593 = vpack.c.bf16 %v6527, %v6521
      %v6594 = vpack.c.bf16 %v6528, %v6522
      %v6595 = vpack.c.bf16 %v6529, %v6523
      %v6596 = vpack.c.bf16 %v6536, %v6530
      %v6597 = vpack.c.bf16 %v6537, %v6531
      %v6598 = vpack.c.bf16 %v6538, %v6532
      %v6599 = vpack.c.bf16 %v6539, %v6533
      %v6600 = vpack.c.bf16 %v6540, %v6534
      %v6601 = vpack.c.bf16 %v6541, %v6535
      %v6602 = vpack.c.bf16 %v6548, %v6542
      %v6603 = vpack.c.bf16 %v6549, %v6543
      %v6604 = vpack.c.bf16 %v6550, %v6544
      %v6605 = vpack.c.bf16 %v6551, %v6545
      %v6606 = vpack.c.bf16 %v6552, %v6546
      %v6607 = vpack.c.bf16 %v6553, %v6547
      %v6608 = vpack.c.bf16 %v6560, %v6554
      %v6609 = vpack.c.bf16 %v6561, %v6555
      %v6610 = vpack.c.bf16 %v6562, %v6556
      %v6611 = vpack.c.bf16 %v6563, %v6557
      %v6612 = vpack.c.bf16 %v6564, %v6558
      %v6613 = vpack.c.bf16 %v6565, %v6559
      %v6614 = vld [vmem:[%s10] sm:$0xff]
      %v6615 = vld [vmem:[%s10 + $0x8] sm:$0xff]
      %v6616 = vld [vmem:[%s10 + $0x10] sm:$0xff]
      %v6617 = vld [vmem:[%s10 + $0x18] sm:$0xff]
      %v6618 = vld [vmem:[%s10 + $0x20] sm:$0xff]
      %v6619 = vld [vmem:[%s10 + $0x28] sm:$0xff]
      %v6620 = vld [vmem:[%s10 + $0x30] sm:$0xff]
      %v6621 = vld [vmem:[%s10 + $0x38] sm:$0xff]
      %v6622 = vld [vmem:[%s10 + $0x40] sm:$0xff]
      %v6623 = vld [vmem:[%s10 + $0x48] sm:$0xff]
      %v6624 = vld [vmem:[%s10 + $0x50] sm:$0xff]
      %v6625 = vld [vmem:[%s10 + $0x58] sm:$0xff]
      %v6626 = vld [vmem:[%s10 + $0x60] sm:$0xff]
      %v6627 = vld [vmem:[%s10 + $0x68] sm:$0xff]
      %v6628 = vld [vmem:[%s10 + $0x70] sm:$0xff]
      %v6629 = vld [vmem:[%s10 + $0x78] sm:$0xff]
      %v6630 = vld [vmem:[%s10 + $0x80] sm:$0xff]
      %v6631 = vld [vmem:[%s10 + $0x88] sm:$0xff]
      %v6632 = vld [vmem:[%s10 + $0x90] sm:$0xff]
      %v6633 = vld [vmem:[%s10 + $0x98] sm:$0xff]
      %v6634 = vld [vmem:[%s10 + $0xa0] sm:$0xff]
      %v6635 = vld [vmem:[%s10 + $0xa8] sm:$0xff]
      %v6636 = vld [vmem:[%s10 + $0xb0] sm:$0xff]
      %v6637 = vld [vmem:[%s10 + $0xb8] sm:$0xff]
      %v6638 = vld [vmem:[%s10 + $0xc0] sm:$0xff]
      %v6639 = vld [vmem:[%s10 + $0xc8] sm:$0xff]
      %v6640 = vld [vmem:[%s10 + $0xd0] sm:$0xff]
      %v6641 = vld [vmem:[%s10 + $0xd8] sm:$0xff]
      %v6642 = vld [vmem:[%s10 + $0xe0] sm:$0xff]
      %v6643 = vld [vmem:[%s10 + $0xe8] sm:$0xff]
      %v6644 = vld [vmem:[%s10 + $0xf0] sm:$0xff]
      %v6645 = vld [vmem:[%s10 + $0xf8] sm:$0xff]
      %v6646 = vld [vmem:[%s10 + $0x100] sm:$0xff]
      %v6647 = vld [vmem:[%s10 + $0x108] sm:$0xff]
      %v6648 = vld [vmem:[%s10 + $0x110] sm:$0xff]
      %v6649 = vld [vmem:[%s10 + $0x118] sm:$0xff]
      %v6650 = vld [vmem:[%s10 + $0x120] sm:$0xff]
      %v6651 = vld [vmem:[%s10 + $0x128] sm:$0xff]
      %v6652 = vld [vmem:[%s10 + $0x130] sm:$0xff]
      %v6653 = vld [vmem:[%s10 + $0x138] sm:$0xff]
      %v6654 = vld [vmem:[%s10 + $0x140] sm:$0xff]
      %v6655 = vld [vmem:[%s10 + $0x148] sm:$0xff]
      %v6656 = vld [vmem:[%s10 + $0x150] sm:$0xff]
      %v6657 = vld [vmem:[%s10 + $0x158] sm:$0xff]
      %v6658 = vld [vmem:[%s10 + $0x160] sm:$0xff]
      %v6659 = vld [vmem:[%s10 + $0x168] sm:$0xff]
      %v6660 = vld [vmem:[%s10 + $0x170] sm:$0xff]
      %v6661 = vld [vmem:[%s10 + $0x178] sm:$0xff]
      %v6662 = vld [vmem:[%s10 + $0x180] sm:$0xff]
      %v6663 = vld [vmem:[%s10 + $0x188] sm:$0xff]
      %v6664 = vld [vmem:[%s10 + $0x190] sm:$0xff]
      %v6665 = vld [vmem:[%s10 + $0x198] sm:$0xff]
      %v6666 = vld [vmem:[%s10 + $0x1a0] sm:$0xff]
      %v6667 = vld [vmem:[%s10 + $0x1a8] sm:$0xff]
      %v6668 = vld [vmem:[%s10 + $0x1b0] sm:$0xff]
      %v6669 = vld [vmem:[%s10 + $0x1b8] sm:$0xff]
      %v6670 = vld [vmem:[%s10 + $0x1c0] sm:$0xff]
      %v6671 = vld [vmem:[%s10 + $0x1c8] sm:$0xff]
      %v6672 = vld [vmem:[%s10 + $0x1d0] sm:$0xff]
      %v6673 = vld [vmem:[%s10 + $0x1d8] sm:$0xff]
      %v6674 = vld [vmem:[%s10 + $0x1e0] sm:$0xff]
      %v6675 = vld [vmem:[%s10 + $0x1e8] sm:$0xff]
      %v6676 = vld [vmem:[%s10 + $0x1f0] sm:$0xff]
      %v6677 = vld [vmem:[%s10 + $0x1f8] sm:$0xff]
      %v6678 = vld [vmem:[%s10 + $0x200] sm:$0xff]
      %v6679 = vld [vmem:[%s10 + $0x208] sm:$0xff]
      %v6680 = vld [vmem:[%s10 + $0x210] sm:$0xff]
      %v6681 = vld [vmem:[%s10 + $0x218] sm:$0xff]
      %v6682 = vld [vmem:[%s10 + $0x220] sm:$0xff]
      %v6683 = vld [vmem:[%s10 + $0x228] sm:$0xff]
      %v6684 = vld [vmem:[%s10 + $0x230] sm:$0xff]
      %v6685 = vld [vmem:[%s10 + $0x238] sm:$0xff]
      %v6686 = vld [vmem:[%s10 + $0x240] sm:$0xff]
      %v6687 = vld [vmem:[%s10 + $0x248] sm:$0xff]
      %v6688 = vld [vmem:[%s10 + $0x250] sm:$0xff]
      %v6689 = vld [vmem:[%s10 + $0x258] sm:$0xff]
      %v6690 = vld [vmem:[%s10 + $0x260] sm:$0xff]
      %v6691 = vld [vmem:[%s10 + $0x268] sm:$0xff]
      %v6692 = vld [vmem:[%s10 + $0x270] sm:$0xff]
      %v6693 = vld [vmem:[%s10 + $0x278] sm:$0xff]
      %v6694 = vld [vmem:[%s10 + $0x280] sm:$0xff]
      %v6695 = vld [vmem:[%s10 + $0x288] sm:$0xff]
      %v6696 = vld [vmem:[%s10 + $0x290] sm:$0xff]
      %v6697 = vld [vmem:[%s10 + $0x298] sm:$0xff]
      %v6698 = vld [vmem:[%s10 + $0x2a0] sm:$0xff]
      %v6699 = vld [vmem:[%s10 + $0x2a8] sm:$0xff]
      %v6700 = vld [vmem:[%s10 + $0x2b0] sm:$0xff]
      %v6701 = vld [vmem:[%s10 + $0x2b8] sm:$0xff]
      %v6702 = vld [vmem:[%s10 + $0x2c0] sm:$0xff]
      %v6703 = vld [vmem:[%s10 + $0x2c8] sm:$0xff]
      %v6704 = vld [vmem:[%s10 + $0x2d0] sm:$0xff]
      %v6705 = vld [vmem:[%s10 + $0x2d8] sm:$0xff]
      %v6706 = vld [vmem:[%s10 + $0x2e0] sm:$0xff]
      %v6707 = vld [vmem:[%s10 + $0x2e8] sm:$0xff]
      %v6708 = vld [vmem:[%s10 + $0x2f0] sm:$0xff]
      %v6709 = vld [vmem:[%s10 + $0x2f8] sm:$0xff]
      %v6710 = vld [vmem:[%s11] sm:$0x3]
      %v6712 = vlaneseq
      %v6713 = vshrl.u32 %v6712, 7
      %v6714 = vsub.s32 0, %v6713
      %v6715 = vrot.slane %v6710, %v6714
      %v6716 = vlaneseq
      %v6717 = vshrl.u32 %v6716, 7
      %v6718 = vsub.s32 1, %v6717
      %v6719 = vrot.slane %v6710, %v6718
      %v6818 = vunpack.c.l.b16 %v6614
      %v6819 = vunpack.c.h.b16 %v6614
      %v6820 = vunpack.c.l.b16 %v6615
      %v6821 = vunpack.c.h.b16 %v6615
      %v6822 = vunpack.c.l.b16 %v6616
      %v6823 = vunpack.c.h.b16 %v6616
      %v6824 = vunpack.c.l.b16 %v6617
      %v6825 = vunpack.c.h.b16 %v6617
      %v6826 = vunpack.c.l.b16 %v6618
      %v6827 = vunpack.c.h.b16 %v6618
      %v6828 = vunpack.c.l.b16 %v6619
      %v6829 = vunpack.c.h.b16 %v6619
      %v6830 = vunpack.c.l.b16 %v6620
      %v6831 = vunpack.c.h.b16 %v6620
      %v6832 = vunpack.c.l.b16 %v6621
      %v6833 = vunpack.c.h.b16 %v6621
      %v6834 = vunpack.c.l.b16 %v6622
      %v6835 = vunpack.c.h.b16 %v6622
      %v6836 = vunpack.c.l.b16 %v6623
      %v6837 = vunpack.c.h.b16 %v6623
      %v6838 = vunpack.c.l.b16 %v6624
      %v6839 = vunpack.c.h.b16 %v6624
      %v6840 = vunpack.c.l.b16 %v6625
      %v6841 = vunpack.c.h.b16 %v6625
      %v6842 = vunpack.c.l.b16 %v6626
      %v6843 = vunpack.c.h.b16 %v6626
      %v6844 = vunpack.c.l.b16 %v6627
      %v6845 = vunpack.c.h.b16 %v6627
      %v6846 = vunpack.c.l.b16 %v6628
      %v6847 = vunpack.c.h.b16 %v6628
      %v6848 = vunpack.c.l.b16 %v6629
      %v6849 = vunpack.c.h.b16 %v6629
      %v6850 = vunpack.c.l.b16 %v6630
      %v6851 = vunpack.c.h.b16 %v6630
      %v6852 = vunpack.c.l.b16 %v6631
      %v6853 = vunpack.c.h.b16 %v6631
      %v6854 = vunpack.c.l.b16 %v6632
      %v6855 = vunpack.c.h.b16 %v6632
      %v6856 = vunpack.c.l.b16 %v6633
      %v6857 = vunpack.c.h.b16 %v6633
      %v6858 = vunpack.c.l.b16 %v6634
      %v6859 = vunpack.c.h.b16 %v6634
      %v6860 = vunpack.c.l.b16 %v6635
      %v6861 = vunpack.c.h.b16 %v6635
      %v6862 = vunpack.c.l.b16 %v6636
      %v6863 = vunpack.c.h.b16 %v6636
      %v6864 = vunpack.c.l.b16 %v6637
      %v6865 = vunpack.c.h.b16 %v6637
      %v6866 = vunpack.c.l.b16 %v6638
      %v6867 = vunpack.c.h.b16 %v6638
      %v6868 = vunpack.c.l.b16 %v6639
      %v6869 = vunpack.c.h.b16 %v6639
      %v6870 = vunpack.c.l.b16 %v6640
      %v6871 = vunpack.c.h.b16 %v6640
      %v6872 = vunpack.c.l.b16 %v6641
      %v6873 = vunpack.c.h.b16 %v6641
      %v6874 = vunpack.c.l.b16 %v6642
      %v6875 = vunpack.c.h.b16 %v6642
      %v6876 = vunpack.c.l.b16 %v6643
      %v6877 = vunpack.c.h.b16 %v6643
      %v6878 = vunpack.c.l.b16 %v6644
      %v6879 = vunpack.c.h.b16 %v6644
      %v6880 = vunpack.c.l.b16 %v6645
      %v6881 = vunpack.c.h.b16 %v6645
      %v6882 = vunpack.c.l.b16 %v6646
      %v6883 = vunpack.c.h.b16 %v6646
      %v6884 = vunpack.c.l.b16 %v6647
      %v6885 = vunpack.c.h.b16 %v6647
      %v6886 = vunpack.c.l.b16 %v6648
      %v6887 = vunpack.c.h.b16 %v6648
      %v6888 = vunpack.c.l.b16 %v6649
      %v6889 = vunpack.c.h.b16 %v6649
      %v6890 = vunpack.c.l.b16 %v6650
      %v6891 = vunpack.c.h.b16 %v6650
      %v6892 = vunpack.c.l.b16 %v6651
      %v6893 = vunpack.c.h.b16 %v6651
      %v6894 = vunpack.c.l.b16 %v6652
      %v6895 = vunpack.c.h.b16 %v6652
      %v6896 = vunpack.c.l.b16 %v6653
      %v6897 = vunpack.c.h.b16 %v6653
      %v6898 = vunpack.c.l.b16 %v6654
      %v6899 = vunpack.c.h.b16 %v6654
      %v6900 = vunpack.c.l.b16 %v6655
      %v6901 = vunpack.c.h.b16 %v6655
      %v6902 = vunpack.c.l.b16 %v6656
      %v6903 = vunpack.c.h.b16 %v6656
      %v6904 = vunpack.c.l.b16 %v6657
      %v6905 = vunpack.c.h.b16 %v6657
      %v6906 = vunpack.c.l.b16 %v6658
      %v6907 = vunpack.c.h.b16 %v6658
      %v6908 = vunpack.c.l.b16 %v6659
      %v6909 = vunpack.c.h.b16 %v6659
      %v6910 = vunpack.c.l.b16 %v6660
      %v6911 = vunpack.c.h.b16 %v6660
      %v6912 = vunpack.c.l.b16 %v6661
      %v6913 = vunpack.c.h.b16 %v6661
      %v6914 = vunpack.c.l.b16 %v6662
      %v6915 = vunpack.c.h.b16 %v6662
      %v6916 = vunpack.c.l.b16 %v6663
      %v6917 = vunpack.c.h.b16 %v6663
      %v6918 = vunpack.c.l.b16 %v6664
      %v6919 = vunpack.c.h.b16 %v6664
      %v6920 = vunpack.c.l.b16 %v6665
      %v6921 = vunpack.c.h.b16 %v6665
      %v6922 = vunpack.c.l.b16 %v6666
      %v6923 = vunpack.c.h.b16 %v6666
      %v6924 = vunpack.c.l.b16 %v6667
      %v6925 = vunpack.c.h.b16 %v6667
      %v6926 = vunpack.c.l.b16 %v6668
      %v6927 = vunpack.c.h.b16 %v6668
      %v6928 = vunpack.c.l.b16 %v6669
      %v6929 = vunpack.c.h.b16 %v6669
      %v6930 = vunpack.c.l.b16 %v6670
      %v6931 = vunpack.c.h.b16 %v6670
      %v6932 = vunpack.c.l.b16 %v6671
      %v6933 = vunpack.c.h.b16 %v6671
      %v6934 = vunpack.c.l.b16 %v6672
      %v6935 = vunpack.c.h.b16 %v6672
      %v6936 = vunpack.c.l.b16 %v6673
      %v6937 = vunpack.c.h.b16 %v6673
      %v6938 = vunpack.c.l.b16 %v6674
      %v6939 = vunpack.c.h.b16 %v6674
      %v6940 = vunpack.c.l.b16 %v6675
      %v6941 = vunpack.c.h.b16 %v6675
      %v6942 = vunpack.c.l.b16 %v6676
      %v6943 = vunpack.c.h.b16 %v6676
      %v6944 = vunpack.c.l.b16 %v6677
      %v6945 = vunpack.c.h.b16 %v6677
      %v6946 = vunpack.c.l.b16 %v6678
      %v6947 = vunpack.c.h.b16 %v6678
      %v6948 = vunpack.c.l.b16 %v6679
      %v6949 = vunpack.c.h.b16 %v6679
      %v6950 = vunpack.c.l.b16 %v6680
      %v6951 = vunpack.c.h.b16 %v6680
      %v6952 = vunpack.c.l.b16 %v6681
      %v6953 = vunpack.c.h.b16 %v6681
      %v6954 = vunpack.c.l.b16 %v6682
      %v6955 = vunpack.c.h.b16 %v6682
      %v6956 = vunpack.c.l.b16 %v6683
      %v6957 = vunpack.c.h.b16 %v6683
      %v6958 = vunpack.c.l.b16 %v6684
      %v6959 = vunpack.c.h.b16 %v6684
      %v6960 = vunpack.c.l.b16 %v6685
      %v6961 = vunpack.c.h.b16 %v6685
      %v6962 = vunpack.c.l.b16 %v6686
      %v6963 = vunpack.c.h.b16 %v6686
      %v6964 = vunpack.c.l.b16 %v6687
      %v6965 = vunpack.c.h.b16 %v6687
      %v6966 = vunpack.c.l.b16 %v6688
      %v6967 = vunpack.c.h.b16 %v6688
      %v6968 = vunpack.c.l.b16 %v6689
      %v6969 = vunpack.c.h.b16 %v6689
      %v6970 = vunpack.c.l.b16 %v6690
      %v6971 = vunpack.c.h.b16 %v6690
      %v6972 = vunpack.c.l.b16 %v6691
      %v6973 = vunpack.c.h.b16 %v6691
      %v6974 = vunpack.c.l.b16 %v6692
      %v6975 = vunpack.c.h.b16 %v6692
      %v6976 = vunpack.c.l.b16 %v6693
      %v6977 = vunpack.c.h.b16 %v6693
      %v6978 = vunpack.c.l.b16 %v6694
      %v6979 = vunpack.c.h.b16 %v6694
      %v6980 = vunpack.c.l.b16 %v6695
      %v6981 = vunpack.c.h.b16 %v6695
      %v6982 = vunpack.c.l.b16 %v6696
      %v6983 = vunpack.c.h.b16 %v6696
      %v6984 = vunpack.c.l.b16 %v6697
      %v6985 = vunpack.c.h.b16 %v6697
      %v6986 = vunpack.c.l.b16 %v6698
      %v6987 = vunpack.c.h.b16 %v6698
      %v6988 = vunpack.c.l.b16 %v6699
      %v6989 = vunpack.c.h.b16 %v6699
      %v6990 = vunpack.c.l.b16 %v6700
      %v6991 = vunpack.c.h.b16 %v6700
      %v6992 = vunpack.c.l.b16 %v6701
      %v6993 = vunpack.c.h.b16 %v6701
      %v6994 = vunpack.c.l.b16 %v6702
      %v6995 = vunpack.c.h.b16 %v6702
      %v6996 = vunpack.c.l.b16 %v6703
      %v6997 = vunpack.c.h.b16 %v6703
      %v6998 = vunpack.c.l.b16 %v6704
      %v6999 = vunpack.c.h.b16 %v6704
      %v7000 = vunpack.c.l.b16 %v6705
      %v7001 = vunpack.c.h.b16 %v6705
      %v7002 = vunpack.c.l.b16 %v6706
      %v7003 = vunpack.c.h.b16 %v6706
      %v7004 = vunpack.c.l.b16 %v6707
      %v7005 = vunpack.c.h.b16 %v6707
      %v7006 = vunpack.c.l.b16 %v6708
      %v7007 = vunpack.c.h.b16 %v6708
      %v7008 = vunpack.c.l.b16 %v6709
      %v7009 = vunpack.c.h.b16 %v6709
      %v7010 = vpack.c.b16 %v6820, %v6818
      %v7011 = vpack.c.b16 %v6821, %v6819
      %v7012 = vpack.c.b16 %v6824, %v6822
      %v7013 = vpack.c.b16 %v6825, %v6823
      %v7014 = vpack.c.b16 %v6828, %v6826
      %v7015 = vpack.c.b16 %v6829, %v6827
      %v7016 = vpack.c.b16 %v6832, %v6830
      %v7017 = vpack.c.b16 %v6833, %v6831
      %v7018 = vpack.c.b16 %v6836, %v6834
      %v7019 = vpack.c.b16 %v6837, %v6835
      %v7020 = vpack.c.b16 %v6840, %v6838
      %v7021 = vpack.c.b16 %v6841, %v6839
      %v7022 = vpack.c.b16 %v6844, %v6842
      %v7023 = vpack.c.b16 %v6845, %v6843
      %v7024 = vpack.c.b16 %v6848, %v6846
      %v7025 = vpack.c.b16 %v6849, %v6847
      %v7026 = vpack.c.b16 %v6852, %v6850
      %v7027 = vpack.c.b16 %v6853, %v6851
      %v7028 = vpack.c.b16 %v6856, %v6854
      %v7029 = vpack.c.b16 %v6857, %v6855
      %v7030 = vpack.c.b16 %v6860, %v6858
      %v7031 = vpack.c.b16 %v6861, %v6859
      %v7032 = vpack.c.b16 %v6864, %v6862
      %v7033 = vpack.c.b16 %v6865, %v6863
      %v7034 = vpack.c.b16 %v6868, %v6866
      %v7035 = vpack.c.b16 %v6869, %v6867
      %v7036 = vpack.c.b16 %v6872, %v6870
      %v7037 = vpack.c.b16 %v6873, %v6871
      %v7038 = vpack.c.b16 %v6876, %v6874
      %v7039 = vpack.c.b16 %v6877, %v6875
      %v7040 = vpack.c.b16 %v6880, %v6878
      %v7041 = vpack.c.b16 %v6881, %v6879
      %v7042 = vpack.c.b16 %v6884, %v6882
      %v7043 = vpack.c.b16 %v6885, %v6883
      %v7044 = vpack.c.b16 %v6888, %v6886
      %v7045 = vpack.c.b16 %v6889, %v6887
      %v7046 = vpack.c.b16 %v6892, %v6890
      %v7047 = vpack.c.b16 %v6893, %v6891
      %v7048 = vpack.c.b16 %v6896, %v6894
      %v7049 = vpack.c.b16 %v6897, %v6895
      %v7050 = vpack.c.b16 %v6900, %v6898
      %v7051 = vpack.c.b16 %v6901, %v6899
      %v7052 = vpack.c.b16 %v6904, %v6902
      %v7053 = vpack.c.b16 %v6905, %v6903
      %v7054 = vpack.c.b16 %v6908, %v6906
      %v7055 = vpack.c.b16 %v6909, %v6907
      %v7056 = vpack.c.b16 %v6912, %v6910
      %v7057 = vpack.c.b16 %v6913, %v6911
      %v7058 = vpack.c.b16 %v6916, %v6914
      %v7059 = vpack.c.b16 %v6917, %v6915
      %v7060 = vpack.c.b16 %v6920, %v6918
      %v7061 = vpack.c.b16 %v6921, %v6919
      %v7062 = vpack.c.b16 %v6924, %v6922
      %v7063 = vpack.c.b16 %v6925, %v6923
      %v7064 = vpack.c.b16 %v6928, %v6926
      %v7065 = vpack.c.b16 %v6929, %v6927
      %v7066 = vpack.c.b16 %v6932, %v6930
      %v7067 = vpack.c.b16 %v6933, %v6931
      %v7068 = vpack.c.b16 %v6936, %v6934
      %v7069 = vpack.c.b16 %v6937, %v6935
      %v7070 = vpack.c.b16 %v6940, %v6938
      %v7071 = vpack.c.b16 %v6941, %v6939
      %v7072 = vpack.c.b16 %v6944, %v6942
      %v7073 = vpack.c.b16 %v6945, %v6943
      %v7074 = vpack.c.b16 %v6948, %v6946
      %v7075 = vpack.c.b16 %v6949, %v6947
      %v7076 = vpack.c.b16 %v6952, %v6950
      %v7077 = vpack.c.b16 %v6953, %v6951
      %v7078 = vpack.c.b16 %v6956, %v6954
      %v7079 = vpack.c.b16 %v6957, %v6955
      %v7080 = vpack.c.b16 %v6960, %v6958
      %v7081 = vpack.c.b16 %v6961, %v6959
      %v7082 = vpack.c.b16 %v6964, %v6962
      %v7083 = vpack.c.b16 %v6965, %v6963
      %v7084 = vpack.c.b16 %v6968, %v6966
      %v7085 = vpack.c.b16 %v6969, %v6967
      %v7086 = vpack.c.b16 %v6972, %v6970
      %v7087 = vpack.c.b16 %v6973, %v6971
      %v7088 = vpack.c.b16 %v6976, %v6974
      %v7089 = vpack.c.b16 %v6977, %v6975
      %v7090 = vpack.c.b16 %v6980, %v6978
      %v7091 = vpack.c.b16 %v6981, %v6979
      %v7092 = vpack.c.b16 %v6984, %v6982
      %v7093 = vpack.c.b16 %v6985, %v6983
      %v7094 = vpack.c.b16 %v6988, %v6986
      %v7095 = vpack.c.b16 %v6989, %v6987
      %v7096 = vpack.c.b16 %v6992, %v6990
      %v7097 = vpack.c.b16 %v6993, %v6991
      %v7098 = vpack.c.b16 %v6996, %v6994
      %v7099 = vpack.c.b16 %v6997, %v6995
      %v7100 = vpack.c.b16 %v7000, %v6998
      %v7101 = vpack.c.b16 %v7001, %v6999
      %v7102 = vpack.c.b16 %v7004, %v7002
      %v7103 = vpack.c.b16 %v7005, %v7003
      %v7104 = vpack.c.b16 %v7008, %v7006
      %v7105 = vpack.c.b16 %v7009, %v7007
      %7202 = vmatprep.subr.bf16.mxu0 %v7011
      %7203 = vmatpush1.bf16.msra.mxu0 %v7010
      %7204 = vmatprep.subr.bf16.mxu0 %v7013
      %7205 = vmatpush1.bf16.msra.mxu0 %v7012
      %7206 = vmatprep.subr.bf16.mxu0 %v7015
      %7207 = vmatpush1.bf16.msra.mxu0 %v7014
      %7208 = vmatprep.subr.bf16.mxu0 %v7017
      %7209 = vmatpush1.bf16.msra.mxu0 %v7016
      %7210 = vmatprep.subr.bf16.mxu0 %v7019
      %7211 = vmatpush1.bf16.msra.mxu0 %v7018
      %7212 = vmatprep.subr.bf16.mxu0 %v7021
      %7213 = vmatpush1.bf16.msra.mxu0 %v7020
      %7214 = vmatprep.subr.bf16.mxu0 %v7023
      %7215 = vmatpush1.bf16.msra.mxu0 %v7022
      %7216 = vmatprep.subr.bf16.mxu0 %v7025
      %7217 = vmatpush1.bf16.msra.mxu0 %v7024
      %7218 = vmatprep.subr.bf16.mxu0 %v7027
      %7219 = vmatpush1.bf16.msra.mxu0 %v7026
      %7220 = vmatprep.subr.bf16.mxu0 %v7029
      %7221 = vmatpush1.bf16.msra.mxu0 %v7028
      %7222 = vmatprep.subr.bf16.mxu0 %v7031
      %7223 = vmatpush1.bf16.msra.mxu0 %v7030
      %7224 = vmatprep.subr.bf16.mxu0 %v7033
      %7225 = vmatpush1.bf16.msra.mxu0 %v7032
      %7226 = vmatprep.subr.bf16.mxu0 %v7035
      %7227 = vmatpush1.bf16.msra.mxu0 %v7034
      %7228 = vmatprep.subr.bf16.mxu0 %v7037
      %7229 = vmatpush1.bf16.msra.mxu0 %v7036
      %7230 = vmatprep.subr.bf16.mxu0 %v7039
      %7231 = vmatpush1.bf16.msra.mxu0 %v7038
      %7232 = vmatprep.subr.bf16.mxu0 %v7041
      %7233 = vmatpush1.bf16.msra.mxu0 %v7040
      %7234 = vmatprep.mubr.bf16.mxu0 %v6567
      %7235 = vmatmul.mubr.bf16.gmra.mrb[0].mxu0 %v6566
      %v7236 = vpop.f32.mrb[0].mxu0
      %v7237 = vadd.f32 %v6715, %v7236
      %v7238 = vpop.f32.mrb[0].mxu0
      %v7239 = vadd.f32 %v6719, %v7238
      %v7240 = vpop.f32.mrb[0].mxu0
      %v7241 = vadd.f32 %v6715, %v7240
      %v7242 = vpop.f32.mrb[0].mxu0
      %v7243 = vadd.f32 %v6719, %v7242
      %7244 = vmatprep.mubr.bf16.mxu0 %v6573
      %7245 = vmatmul.mubr.bf16.gmra.mrb[0].mxu0 %v6572
      %v7246 = vpop.f32.mrb[0].mxu0
      %v7247 = vadd.f32 %v6715, %v7246
      %v7248 = vpop.f32.mrb[0].mxu0
      %v7249 = vadd.f32 %v6719, %v7248
      %v7250 = vpop.f32.mrb[0].mxu0
      %v7251 = vadd.f32 %v6715, %v7250
      %v7252 = vpop.f32.mrb[0].mxu0
      %v7253 = vadd.f32 %v6719, %v7252
      %7254 = vmatprep.mubr.bf16.mxu0 %v6579
      %7255 = vmatmul.mubr.bf16.gmra.mrb[0].mxu0 %v6578
      %v7256 = vpop.f32.mrb[0].mxu0
      %v7257 = vadd.f32 %v6715, %v7256
      %v7258 = vpop.f32.mrb[0].mxu0
      %v7259 = vadd.f32 %v6719, %v7258
      %v7260 = vpop.f32.mrb[0].mxu0
      %v7261 = vadd.f32 %v6715, %v7260
      %v7262 = vpop.f32.mrb[0].mxu0
      %v7263 = vadd.f32 %v6719, %v7262
      %7264 = vmatprep.mubr.bf16.mxu0 %v6585
      %7265 = vmatmul.mubr.bf16.gmra.mrb[0].mxu0 %v6584
      %v7266 = vpop.f32.mrb[0].mxu0
      %v7267 = vadd.f32 %v6715, %v7266
      %v7268 = vpop.f32.mrb[0].mxu0
      %v7269 = vadd.f32 %v6719, %v7268
      %v7270 = vpop.f32.mrb[0].mxu0
      %v7271 = vadd.f32 %v6715, %v7270
      %v7272 = vpop.f32.mrb[0].mxu0
      %v7273 = vadd.f32 %v6719, %v7272
      %7274 = vmatprep.mubr.bf16.mxu0 %v6591
      %7275 = vmatmul.mubr.bf16.gmra.mrb[0].mxu0 %v6590
      %v7276 = vpop.f32.mrb[0].mxu0
      %v7277 = vadd.f32 %v6715, %v7276
      %v7278 = vpop.f32.mrb[0].mxu0
      %v7279 = vadd.f32 %v6719, %v7278
      %v7280 = vpop.f32.mrb[0].mxu0
      %v7281 = vadd.f32 %v6715, %v7280
      %v7282 = vpop.f32.mrb[0].mxu0
      %v7283 = vadd.f32 %v6719, %v7282
      %7284 = vmatprep.mubr.bf16.mxu0 %v6597
      %7285 = vmatmul.mubr.bf16.gmra.mrb[0].mxu0 %v6596
      %v7286 = vpop.f32.mrb[0].mxu0
      %v7287 = vadd.f32 %v6715, %v7286
      %v7288 = vpop.f32.mrb[0].mxu0
      %v7289 = vadd.f32 %v6719, %v7288
      %v7290 = vpop.f32.mrb[0].mxu0
      %v7291 = vadd.f32 %v6715, %v7290
      %v7292 = vpop.f32.mrb[0].mxu0
      %v7293 = vadd.f32 %v6719, %v7292
      %7294 = vmatprep.mubr.bf16.mxu0 %v6603
      %7295 = vmatmul.mubr.bf16.gmra.mrb[0].mxu0 %v6602
      %v7296 = vpop.f32.mrb[0].mxu0
      %v7297 = vadd.f32 %v6715, %v7296
      %v7298 = vpop.f32.mrb[0].mxu0
      %v7299 = vadd.f32 %v6719, %v7298
      %v7300 = vpop.f32.mrb[0].mxu0
      %v7301 = vadd.f32 %v6715, %v7300
      %v7302 = vpop.f32.mrb[0].mxu0
      %v7303 = vadd.f32 %v6719, %v7302
      %7304 = vmatprep.mubr.bf16.mxu0 %v6609
      %7305 = vmatmul.mubr.bf16.gmra.mrb[0].mxu0 %v6608
      %v7306 = vpop.f32.mrb[0].mxu0
      %v7307 = vadd.f32 %v6715, %v7306
      %v7308 = vpop.f32.mrb[0].mxu0
      %v7309 = vadd.f32 %v6719, %v7308
      %v7310 = vpop.f32.mrb[0].mxu0
      %v7311 = vadd.f32 %v6715, %v7310
      %v7312 = vpop.f32.mrb[0].mxu0
      %v7313 = vadd.f32 %v6719, %v7312
      %7314 = vdwg.mxu0
      %7315 = vmatprep.subr.bf16.mxu0 %v7043
      %7316 = vmatpush1.bf16.msra.mxu0 %v7042
      %7317 = vmatprep.subr.bf16.mxu0 %v7045
      %7318 = vmatpush1.bf16.msra.mxu0 %v7044
      %7319 = vmatprep.subr.bf16.mxu0 %v7047
      %7320 = vmatpush1.bf16.msra.mxu0 %v7046
      %7321 = vmatprep.subr.bf16.mxu0 %v7049
      %7322 = vmatpush1.bf16.msra.mxu0 %v7048
      %7323 = vmatprep.subr.bf16.mxu0 %v7051
      %7324 = vmatpush1.bf16.msra.mxu0 %v7050
      %7325 = vmatprep.subr.bf16.mxu0 %v7053
      %7326 = vmatpush1.bf16.msra.mxu0 %v7052
      %7327 = vmatprep.subr.bf16.mxu0 %v7055
      %7328 = vmatpush1.bf16.msra.mxu0 %v7054
      %7329 = vmatprep.subr.bf16.mxu0 %v7057
      %7330 = vmatpush1.bf16.msra.mxu0 %v7056
      %7331 = vmatprep.subr.bf16.mxu0 %v7059
      %7332 = vmatpush1.bf16.msra.mxu0 %v7058
      %7333 = vmatprep.subr.bf16.mxu0 %v7061
      %7334 = vmatpush1.bf16.msra.mxu0 %v7060
      %7335 = vmatprep.subr.bf16.mxu0 %v7063
      %7336 = vmatpush1.bf16.msra.mxu0 %v7062
      %7337 = vmatprep.subr.bf16.mxu0 %v7065
      %7338 = vmatpush1.bf16.msra.mxu0 %v7064
      %7339 = vmatprep.subr.bf16.mxu0 %v7067
      %7340 = vmatpush1.bf16.msra.mxu0 %v7066
      %7341 = vmatprep.subr.bf16.mxu0 %v7069
      %7342 = vmatpush1.bf16.msra.mxu0 %v7068
      %7343 = vmatprep.subr.bf16.mxu0 %v7071
      %7344 = vmatpush1.bf16.msra.mxu0 %v7070
      %7345 = vmatprep.subr.bf16.mxu0 %v7073
      %7346 = vmatpush1.bf16.msra.mxu0 %v7072
      %7347 = vmatprep.mubr.bf16.mxu0 %v6569
      %7348 = vmatmul.mubr.bf16.gmra.mrb[0].mxu0 %v6568
      %v7349 = vpop.f32.mrb[0].mxu0
      %v7350 = vadd.f32 %v7237, %v7349
      %v7351 = vpop.f32.mrb[0].mxu0
      %v7352 = vadd.f32 %v7239, %v7351
      %v7353 = vpop.f32.mrb[0].mxu0
      %v7354 = vadd.f32 %v7241, %v7353
      %v7355 = vpop.f32.mrb[0].mxu0
      %v7356 = vadd.f32 %v7243, %v7355
      %7357 = vmatprep.mubr.bf16.mxu0 %v6575
      %7358 = vmatmul.mubr.bf16.gmra.mrb[0].mxu0 %v6574
      %v7359 = vpop.f32.mrb[0].mxu0
      %v7360 = vadd.f32 %v7247, %v7359
      %v7361 = vpop.f32.mrb[0].mxu0
      %v7362 = vadd.f32 %v7249, %v7361
      %v7363 = vpop.f32.mrb[0].mxu0
      %v7364 = vadd.f32 %v7251, %v7363
      %v7365 = vpop.f32.mrb[0].mxu0
      %v7366 = vadd.f32 %v7253, %v7365
      %7367 = vmatprep.mubr.bf16.mxu0 %v6581
      %7368 = vmatmul.mubr.bf16.gmra.mrb[0].mxu0 %v6580
      %v7369 = vpop.f32.mrb[0].mxu0
      %v7370 = vadd.f32 %v7257, %v7369
      %v7371 = vpop.f32.mrb[0].mxu0
      %v7372 = vadd.f32 %v7259, %v7371
      %v7373 = vpop.f32.mrb[0].mxu0
      %v7374 = vadd.f32 %v7261, %v7373
      %v7375 = vpop.f32.mrb[0].mxu0
      %v7376 = vadd.f32 %v7263, %v7375
      %7377 = vmatprep.mubr.bf16.mxu0 %v6587
      %7378 = vmatmul.mubr.bf16.gmra.mrb[0].mxu0 %v6586
      %v7379 = vpop.f32.mrb[0].mxu0
      %v7380 = vadd.f32 %v7267, %v7379
      %v7381 = vpop.f32.mrb[0].mxu0
      %v7382 = vadd.f32 %v7269, %v7381
      %v7383 = vpop.f32.mrb[0].mxu0
      %v7384 = vadd.f32 %v7271, %v7383
      %v7385 = vpop.f32.mrb[0].mxu0
      %v7386 = vadd.f32 %v7273, %v7385
      %7387 = vmatprep.mubr.bf16.mxu0 %v6593
      %7388 = vmatmul.mubr.bf16.gmra.mrb[0].mxu0 %v6592
      %v7389 = vpop.f32.mrb[0].mxu0
      %v7390 = vadd.f32 %v7277, %v7389
      %v7391 = vpop.f32.mrb[0].mxu0
      %v7392 = vadd.f32 %v7279, %v7391
      %v7393 = vpop.f32.mrb[0].mxu0
      %v7394 = vadd.f32 %v7281, %v7393
      %v7395 = vpop.f32.mrb[0].mxu0
      %v7396 = vadd.f32 %v7283, %v7395
      %7397 = vmatprep.mubr.bf16.mxu0 %v6599
      %7398 = vmatmul.mubr.bf16.gmra.mrb[0].mxu0 %v6598
      %v7399 = vpop.f32.mrb[0].mxu0
      %v7400 = vadd.f32 %v7287, %v7399
      %v7401 = vpop.f32.mrb[0].mxu0
      %v7402 = vadd.f32 %v7289, %v7401
      %v7403 = vpop.f32.mrb[0].mxu0
      %v7404 = vadd.f32 %v7291, %v7403
      %v7405 = vpop.f32.mrb[0].mxu0
      %v7406 = vadd.f32 %v7293, %v7405
      %7407 = vmatprep.mubr.bf16.mxu0 %v6605
      %7408 = vmatmul.mubr.bf16.gmra.mrb[0].mxu0 %v6604
      %v7409 = vpop.f32.mrb[0].mxu0
      %v7410 = vadd.f32 %v7297, %v7409
      %v7411 = vpop.f32.mrb[0].mxu0
      %v7412 = vadd.f32 %v7299, %v7411
      %v7413 = vpop.f32.mrb[0].mxu0
      %v7414 = vadd.f32 %v7301, %v7413
      %v7415 = vpop.f32.mrb[0].mxu0
      %v7416 = vadd.f32 %v7303, %v7415
      %7417 = vmatprep.mubr.bf16.mxu0 %v6611
      %7418 = vmatmul.mubr.bf16.gmra.mrb[0].mxu0 %v6610
      %v7419 = vpop.f32.mrb[0].mxu0
      %v7420 = vadd.f32 %v7307, %v7419
      %v7421 = vpop.f32.mrb[0].mxu0
      %v7422 = vadd.f32 %v7309, %v7421
      %v7423 = vpop.f32.mrb[0].mxu0
      %v7424 = vadd.f32 %v7311, %v7423
      %v7425 = vpop.f32.mrb[0].mxu0
      %v7426 = vadd.f32 %v7313, %v7425
      %7427 = vdwg.mxu0
      %7428 = vmatprep.subr.bf16.mxu0 %v7075
      %7429 = vmatpush1.bf16.msra.mxu0 %v7074
      %7430 = vmatprep.subr.bf16.mxu0 %v7077
      %7431 = vmatpush1.bf16.msra.mxu0 %v7076
      %7432 = vmatprep.subr.bf16.mxu0 %v7079
      %7433 = vmatpush1.bf16.msra.mxu0 %v7078
      %7434 = vmatprep.subr.bf16.mxu0 %v7081
      %7435 = vmatpush1.bf16.msra.mxu0 %v7080
      %7436 = vmatprep.subr.bf16.mxu0 %v7083
      %7437 = vmatpush1.bf16.msra.mxu0 %v7082
      %7438 = vmatprep.subr.bf16.mxu0 %v7085
      %7439 = vmatpush1.bf16.msra.mxu0 %v7084
      %7440 = vmatprep.subr.bf16.mxu0 %v7087
      %7441 = vmatpush1.bf16.msra.mxu0 %v7086
      %7442 = vmatprep.subr.bf16.mxu0 %v7089
      %7443 = vmatpush1.bf16.msra.mxu0 %v7088
      %7444 = vmatprep.subr.bf16.mxu0 %v7091
      %7445 = vmatpush1.bf16.msra.mxu0 %v7090
      %7446 = vmatprep.subr.bf16.mxu0 %v7093
      %7447 = vmatpush1.bf16.msra.mxu0 %v7092
      %7448 = vmatprep.subr.bf16.mxu0 %v7095
      %7449 = vmatpush1.bf16.msra.mxu0 %v7094
      %7450 = vmatprep.subr.bf16.mxu0 %v7097
      %7451 = vmatpush1.bf16.msra.mxu0 %v7096
      %7452 = vmatprep.subr.bf16.mxu0 %v7099
      %7453 = vmatpush1.bf16.msra.mxu0 %v7098
      %7454 = vmatprep.subr.bf16.mxu0 %v7101
      %7455 = vmatpush1.bf16.msra.mxu0 %v7100
      %7456 = vmatprep.subr.bf16.mxu0 %v7103
      %7457 = vmatpush1.bf16.msra.mxu0 %v7102
      %7458 = vmatprep.subr.bf16.mxu0 %v7105
      %7459 = vmatpush1.bf16.msra.mxu0 %v7104
      %7460 = vmatprep.mubr.bf16.mxu0 %v6571
      %7461 = vmatmul.mubr.bf16.gmra.mrb[0].mxu0 %v6570
      %v7462 = vpop.f32.mrb[0].mxu0
      %v7463 = vadd.f32 %v7350, %v7462
      %v7464 = vpop.f32.mrb[0].mxu0
      %v7465 = vadd.f32 %v7352, %v7464
      %v7466 = vpop.f32.mrb[0].mxu0
      %v7467 = vadd.f32 %v7354, %v7466
      %v7468 = vpop.f32.mrb[0].mxu0
      %v7469 = vadd.f32 %v7356, %v7468
      %7470 = vmatprep.mubr.bf16.mxu0 %v6577
      %7471 = vmatmul.mubr.bf16.gmra.mrb[0].mxu0 %v6576
      %v7472 = vpop.f32.mrb[0].mxu0
      %v7473 = vadd.f32 %v7360, %v7472
      %v7474 = vpop.f32.mrb[0].mxu0
      %v7475 = vadd.f32 %v7362, %v7474
      %v7476 = vpop.f32.mrb[0].mxu0
      %v7477 = vadd.f32 %v7364, %v7476
      %v7478 = vpop.f32.mrb[0].mxu0
      %v7479 = vadd.f32 %v7366, %v7478
      %7480 = vmatprep.mubr.bf16.mxu0 %v6583
      %7481 = vmatmul.mubr.bf16.gmra.mrb[0].mxu0 %v6582
      %v7482 = vpop.f32.mrb[0].mxu0
      %v7483 = vadd.f32 %v7370, %v7482
      %v7484 = vpop.f32.mrb[0].mxu0
      %v7485 = vadd.f32 %v7372, %v7484
      %v7486 = vpop.f32.mrb[0].mxu0
      %v7487 = vadd.f32 %v7374, %v7486
      %v7488 = vpop.f32.mrb[0].mxu0
      %v7489 = vadd.f32 %v7376, %v7488
      %7490 = vmatprep.mubr.bf16.mxu0 %v6589
      %7491 = vmatmul.mubr.bf16.gmra.mrb[0].mxu0 %v6588
      %v7492 = vpop.f32.mrb[0].mxu0
      %v7493 = vadd.f32 %v7380, %v7492
      %v7494 = vpop.f32.mrb[0].mxu0
      %v7495 = vadd.f32 %v7382, %v7494
      %v7496 = vpop.f32.mrb[0].mxu0
      %v7497 = vadd.f32 %v7384, %v7496
      %v7498 = vpop.f32.mrb[0].mxu0
      %v7499 = vadd.f32 %v7386, %v7498
      %7500 = vmatprep.mubr.bf16.mxu0 %v6595
      %7501 = vmatmul.mubr.bf16.gmra.mrb[0].mxu0 %v6594
      %v7502 = vpop.f32.mrb[0].mxu0
      %v7503 = vadd.f32 %v7390, %v7502
      %v7504 = vpop.f32.mrb[0].mxu0
      %v7505 = vadd.f32 %v7392, %v7504
      %v7506 = vpop.f32.mrb[0].mxu0
      %v7507 = vadd.f32 %v7394, %v7506
      %v7508 = vpop.f32.mrb[0].mxu0
      %v7509 = vadd.f32 %v7396, %v7508
      %7510 = vmatprep.mubr.bf16.mxu0 %v6601
      %7511 = vmatmul.mubr.bf16.gmra.mrb[0].mxu0 %v6600
      %v7512 = vpop.f32.mrb[0].mxu0
      %v7513 = vadd.f32 %v7400, %v7512
      %v7514 = vpop.f32.mrb[0].mxu0
      %v7515 = vadd.f32 %v7402, %v7514
      %v7516 = vpop.f32.mrb[0].mxu0
      %v7517 = vadd.f32 %v7404, %v7516
      %v7518 = vpop.f32.mrb[0].mxu0
      %v7519 = vadd.f32 %v7406, %v7518
      %7520 = vmatprep.mubr.bf16.mxu0 %v6607
      %7521 = vmatmul.mubr.bf16.gmra.mrb[0].mxu0 %v6606
      %v7522 = vpop.f32.mrb[0].mxu0
      %v7523 = vadd.f32 %v7410, %v7522
      %v7524 = vpop.f32.mrb[0].mxu0
      %v7525 = vadd.f32 %v7412, %v7524
      %v7526 = vpop.f32.mrb[0].mxu0
      %v7527 = vadd.f32 %v7414, %v7526
      %v7528 = vpop.f32.mrb[0].mxu0
      %v7529 = vadd.f32 %v7416, %v7528
      %7530 = vmatprep.mubr.bf16.mxu0 %v6613
      %7531 = vmatmul.mubr.bf16.gmra.mrb[0].mxu0 %v6612
      %v7532 = vpop.f32.mrb[0].mxu0
      %v7533 = vadd.f32 %v7420, %v7532
      %v7534 = vpop.f32.mrb[0].mxu0
      %v7535 = vadd.f32 %v7422, %v7534
      %v7536 = vpop.f32.mrb[0].mxu0
      %v7537 = vadd.f32 %v7424, %v7536
      %v7538 = vpop.f32.mrb[0].mxu0
      %v7539 = vadd.f32 %v7426, %v7538
      %7540 = vdwg.mxu0
      %v7541 = vadd.f32 %v5187, %v7463
      %v7542 = vadd.f32 %v5188, %v7465
      %v7543 = vadd.f32 %v5189, %v7467
      %v7544 = vadd.f32 %v5190, %v7469
      %v7545 = vadd.f32 %v5191, %v7473
      %v7546 = vadd.f32 %v5192, %v7475
      %v7547 = vadd.f32 %v5193, %v7477
      %v7548 = vadd.f32 %v5194, %v7479
      %v7549 = vadd.f32 %v5195, %v7483
      %v7550 = vadd.f32 %v5196, %v7485
      %v7551 = vadd.f32 %v5197, %v7487
      %v7552 = vadd.f32 %v5198, %v7489
      %v7553 = vadd.f32 %v5199, %v7493
      %v7554 = vadd.f32 %v5200, %v7495
      %v7555 = vadd.f32 %v5201, %v7497
      %v7556 = vadd.f32 %v5202, %v7499
      %v7557 = vadd.f32 %v5203, %v7503
      %v7558 = vadd.f32 %v5204, %v7505
      %v7559 = vadd.f32 %v5205, %v7507
      %v7560 = vadd.f32 %v5206, %v7509
      %v7561 = vadd.f32 %v5207, %v7513
      %v7562 = vadd.f32 %v5208, %v7515
      %v7563 = vadd.f32 %v5209, %v7517
      %v7564 = vadd.f32 %v5210, %v7519
      %v7565 = vadd.f32 %v5211, %v7523
      %v7566 = vadd.f32 %v5212, %v7525
      %v7567 = vadd.f32 %v5213, %v7527
      %v7568 = vadd.f32 %v5214, %v7529
      %v7569 = vadd.f32 %v5215, %v7533
      %v7570 = vadd.f32 %v5216, %v7535
      %v7571 = vadd.f32 %v5217, %v7537
      %v7572 = vadd.f32 %v5218, %v7539
      %7573 = vst [vmem:[%s413] sm:$0xff] %v7541
      %7574 = vst.msk [vmem:[%s413 + $0x8] sm:$0xff] %vm449, %v7542
      %7575 = vst [vmem:[%s413 + $0x10] sm:$0xff] %v7543
      %7576 = vst.msk [vmem:[%s413 + $0x18] sm:$0xff] %vm449, %v7544
      %7577 = vst [vmem:[%s413 + $0x20] sm:$0xff] %v7545
      %7578 = vst.msk [vmem:[%s413 + $0x28] sm:$0xff] %vm449, %v7546
      %7579 = vst [vmem:[%s413 + $0x30] sm:$0xff] %v7547
      %7580 = vst.msk [vmem:[%s413 + $0x38] sm:$0xff] %vm449, %v7548
      %7581 = vst [vmem:[%s413 + $0x40] sm:$0xff] %v7549
      %7582 = vst.msk [vmem:[%s413 + $0x48] sm:$0xff] %vm449, %v7550
      %7583 = vst [vmem:[%s413 + $0x50] sm:$0xff] %v7551
      %7584 = vst.msk [vmem:[%s413 + $0x58] sm:$0xff] %vm449, %v7552
      %7585 = vst [vmem:[%s413 + $0x60] sm:$0xff] %v7553
      %7586 = vst.msk [vmem:[%s413 + $0x68] sm:$0xff] %vm449, %v7554
      %7587 = vst [vmem:[%s413 + $0x70] sm:$0xff] %v7555
      %7588 = vst.msk [vmem:[%s413 + $0x78] sm:$0xff] %vm449, %v7556
      %7589 = vst [vmem:[%s413 + $0x80] sm:$0xff] %v7557
      %7590 = vst.msk [vmem:[%s413 + $0x88] sm:$0xff] %vm449, %v7558
      %7591 = vst [vmem:[%s413 + $0x90] sm:$0xff] %v7559
      %7592 = vst.msk [vmem:[%s413 + $0x98] sm:$0xff] %vm449, %v7560
      %7593 = vst [vmem:[%s413 + $0xa0] sm:$0xff] %v7561
      %7594 = vst.msk [vmem:[%s413 + $0xa8] sm:$0xff] %vm449, %v7562
      %7595 = vst [vmem:[%s413 + $0xb0] sm:$0xff] %v7563
      %7596 = vst.msk [vmem:[%s413 + $0xb8] sm:$0xff] %vm449, %v7564
      %7597 = vst [vmem:[%s413 + $0xc0] sm:$0xff] %v7565
      %7598 = vst.msk [vmem:[%s413 + $0xc8] sm:$0xff] %vm449, %v7566
      %7599 = vst [vmem:[%s413 + $0xd0] sm:$0xff] %v7567
      %7600 = vst.msk [vmem:[%s413 + $0xd8] sm:$0xff] %vm449, %v7568
      %7601 = vst [vmem:[%s413 + $0xe0] sm:$0xff] %v7569
      %7602 = vst.msk [vmem:[%s413 + $0xe8] sm:$0xff] %vm449, %v7570
      %7603 = vst [vmem:[%s413 + $0xf0] sm:$0xff] %v7571
      %7604 = vst.msk [vmem:[%s413 + $0xf8] sm:$0xff] %vm449, %v7572
      %p7605 = scmp.lt.s32.totalorder %s23, 1
      %s7606 = scalar_select %p7605, %s23, 1
      %s7607 = smul.addr %s7606, 32
      %s7608 = smul.addr %s7607, 8
      %s7609 = scalar_lea.vmem %s12, %s7608
      // Predicated region
      $region69: #{tpu_custom_call.1} parent=67 // pred_check
        %p7610 = pneg %p298
      $region70: #{tpu_custom_call.1} parent=67 // pred_check_branch
        %7612 = sbr.rel (%p7610) target = $region72
      $region71: #{tpu_custom_call.1} parent=67 // pred_region
        _
      $region72: #{tpu_custom_call.1} parent=67 // pred_fallthru
        _
    $region68: #{tpu_custom_call.1} parent=5 // pred_fallthru
      _
    %p7613 = scmp.le.s32.totalorder 2, %s18
    // Predicated region
    $region73: #{tpu_custom_call.1} parent=5 // pred_check
      %p7614 = pneg %p7613
    $region74: #{tpu_custom_call.1} parent=5 // pred_check_branch
      %7616 = sbr.rel (%p7614) target = $region76
    $region75: #{tpu_custom_call.1} parent=5 // pred_region
      %s7617 = ssub.s32 %s18, 2
      // Predicated region
      $region77: #{tpu_custom_call.1} parent=75 // pred_check
        %p7618 = pneg %p304
      $region78: #{tpu_custom_call.1} parent=75 // pred_check_branch
        %7620 = sbr.rel (%p7618) target = $region80
      $region79: #{tpu_custom_call.1} parent=75 // pred_region
        %p7621 = scmp.lt.s32.totalorder %s24, 1
        %s7622 = scalar_select %p7621, %s24, 1
        %s7623 = smul.addr %s7622, 32
        %s7624 = smul.addr %s7623, 8
        %s7625 = scalar_lea.vmem %s12, %s7624
      $region80: #{tpu_custom_call.1} parent=75 // pred_fallthru
        _
    $region76: #{tpu_custom_call.1} parent=5 // pred_fallthru
      _
  $region6: #{tpu_custom_call.1} parent=0 // loop_footer
    %s22 = sadd.s32 1, %s18
  $region7: #{tpu_custom_call.1} parent=0 // loop_footer_branch
    %17 = sbr.rel target = $region3
  $region8: #{tpu_custom_call.1} parent=0 // loop_exit
    _

</llo_original>
